<compile_context>
chip_gen: v7x
topology: tpu7x:2x2x1
jax: 0.10.0
libtpu: 0.0.40
codegen_flags: <defaults>
</compile_context>

<pallas_src>
import jax
import jax.numpy as jnp
from jax import lax
from jax.experimental import pallas as pl
from jax.experimental.pallas import tpu as pltpu

EPS = 1e-5     # nn.BatchNorm2d default eps
LANE = 128     # TPU lane width


def _round_up(x, m):
    return (x + m - 1) // m * m


def _channel_tile(planes):
    # 256-wide N tiles fill the 256x256 MXU on v6e/v7x; 128 matches v5e.
    return 256 if planes >= 256 else 128


def _elem_row_tile(m, cap=1024):
    """Largest multiple-of-16 divisor of m (capped) for elementwise row tiles."""
    best = None
    t = 16
    while t <= min(cap, m):
        if m % t == 0:
            best = t
        t += 16
    return best


# ----------------------------------------------------------------------------
# Weight layout helpers (tiny, plain JAX)
# ----------------------------------------------------------------------------
def _w3x3_to_taps(w_oihw, cin_pad, c_pad):
    """(Cout, Cin, 3, 3) -> (9, Cin_pad, C_pad) bf16, tap-major (dy, dx)."""
    cout, cin, kh, kw = w_oihw.shape
    wt = jnp.transpose(w_oihw, (2, 3, 1, 0))                     # (3,3,cin,cout)
    wt = jnp.pad(wt, ((0, 0), (0, 0), (0, cin_pad - cin), (0, c_pad - cout)))
    return wt.reshape(kh * kw, cin_pad, c_pad).astype(jnp.bfloat16)


def _w3x3_to_mat(w_oihw, cin_pad, c_pad):
    """(Cout, Cin, 3, 3) -> (9*Cin_pad, C_pad) bf16, rows in (dy, dx, ci) order."""
    return _w3x3_to_taps(w_oihw, cin_pad, c_pad).reshape(9 * cin_pad, c_pad)


def _w1x1_to_mat(w_oihw, cin_pad, c_pad):
    cout, cin = w_oihw.shape[0], w_oihw.shape[1]
    wm = jnp.transpose(w_oihw[:, :, 0, 0], (1, 0))               # (cin, cout)
    wm = jnp.pad(wm, ((0, cin_pad - cin), (0, c_pad - cout)))
    return wm.astype(jnp.bfloat16)


# ----------------------------------------------------------------------------
# Fused 3x3 / stride-1 / pad-1 conv + per-channel BN statistics (no im2col)
# ----------------------------------------------------------------------------
def conv3x3_s1_stats(x_nhwc, w_taps, tn):
    """x_nhwc: (N, H, W, Cin_pad) bf16 (channels padded to 128-multiple).
    w_taps:  (9, Cin_pad, C_pad) bf16.
    Returns y (N*H*W, C_pad) bf16, col_sum (C_pad,) f32, col_sumsq (C_pad,) f32."""
    n, h, w, cin_pad = x_nhwc.shape
    c_pad = w_taps.shape[2]
    ho, wo = h, w
    hp, wp = h + 2, w + 2
    m_img = ho * wo
    gn = c_pad // tn

    xp = jnp.pad(x_nhwc, ((0, 0), (1, 1), (1, 1), (0, 0)))       # spatial pad 1

    def kernel(x_ref, w_ref, y_ref, s_ref, acc_ref):
        acc_ref[...] = jnp.zeros_like(acc_ref)
        # 9 shifted MXU matmuls accumulate the conv taps; the tap expansion
        # happens in VMEM (shifted slices), never in HBM.
        for t in range(9):
            dy, dx = divmod(t, 3)
            xs = x_ref[dy:dy + ho, dx:dx + wo, :].reshape(m_img, cin_pad)
            acc_ref[...] += jnp.dot(xs, w_ref[t],
                                    preferred_element_type=jnp.float32)
        acc = acc_ref[...]
        y_ref[...] = acc.astype(y_ref.dtype)
        # f32 per-channel sums for the two-pass BatchNorm (only 2 rows used).
        s_ref[0:1, :] = jnp.sum(acc, axis=0, keepdims=True)
        s_ref[1:2, :] = jnp.sum(acc * acc, axis=0, keepdims=True)

    flops = 2 * n * m_img * 9 * cin_pad * c_pad
    bytes_accessed = (n * hp * wp * cin_pad * 2 * gn
                      + 9 * cin_pad * c_pad * 2 * n
                      + n * m_img * c_pad * 2 + n * 8 * c_pad * 4)

    y, stats = pl.pallas_call(
        kernel,
        out_shape=(jax.ShapeDtypeStruct((n, m_img, c_pad), jnp.bfloat16),
                   jax.ShapeDtypeStruct((n, 8, c_pad), jnp.float32)),
        grid=(n, gn),
        in_specs=[pl.BlockSpec((None, hp, wp, cin_pad), lambda b, j: (b, 0, 0, 0)),
                  pl.BlockSpec((9, cin_pad, tn), lambda b, j: (0, 0, j))],
        out_specs=(pl.BlockSpec((None, m_img, tn), lambda b, j: (b, 0, j)),
                   pl.BlockSpec((None, 8, tn), lambda b, j: (b, 0, j))),
        scratch_shapes=[pltpu.VMEM((m_img, tn), jnp.float32)],
        compiler_params=pltpu.CompilerParams(
            dimension_semantics=("parallel", "parallel")),
        cost_estimate=pl.CostEstimate(flops=flops, transcendentals=0,
                                      bytes_accessed=bytes_accessed),
    )(xp, w_taps)

    col_sum = jnp.sum(stats[:, 0, :], axis=0)
    col_sumsq = jnp.sum(stats[:, 1, :], axis=0)
    return y.reshape(n * m_img, c_pad), col_sum, col_sumsq


# ----------------------------------------------------------------------------
# Tiled matmul conv + stats (strided conv1 fallback and 1x1 shortcut conv)
# ----------------------------------------------------------------------------
def conv_im2col_stats(patches, w_mat, tn):
    """patches: (M, Kd) bf16 with Kd a multiple of 128; w_mat: (Kd, C_pad) bf16."""
    m, kd = patches.shape
    c_pad = w_mat.shape[1]
    tm = min(512, _round_up(m, 16))
    m_pad = _round_up(m, tm)
    if m_pad != m:
        patches = jnp.pad(patches, ((0, m_pad - m), (0, 0)))
    gm, gn = m_pad // tm, c_pad // tn

    # TODO(synk): add a Kd reduction grid axis (f32 VMEM accumulator) for very
    # deep layers on v7x where (tm, Kd) blocks would exceed the scoped VMEM.
    def kernel(a_ref, w_ref, y_ref, s_ref):
        acc = jnp.dot(a_ref[...], w_ref[...], preferred_element_type=jnp.float32)
        y_ref[...] = acc.astype(y_ref.dtype)
        s_ref[0:1, :] = jnp.sum(acc, axis=0, keepdims=True)
        s_ref[1:2, :] = jnp.sum(acc * acc, axis=0, keepdims=True)

    y, stats = pl.pallas_call(
        kernel,
        out_shape=(jax.ShapeDtypeStruct((m_pad, c_pad), jnp.bfloat16),
                   jax.ShapeDtypeStruct((gm, 8, c_pad), jnp.float32)),
        grid=(gm, gn),
        in_specs=[pl.BlockSpec((tm, kd), lambda i, j: (i, 0)),
                  pl.BlockSpec((kd, tn), lambda i, j: (0, j))],
        out_specs=(pl.BlockSpec((tm, tn), lambda i, j: (i, j)),
                   pl.BlockSpec((None, 8, tn), lambda i, j: (i, 0, j))),
        compiler_params=pltpu.CompilerParams(
            dimension_semantics=("parallel", "parallel")),
    )(patches, w_mat)

    col_sum = jnp.sum(stats[:, 0, :], axis=0)
    col_sumsq = jnp.sum(stats[:, 1, :], axis=0)
    return (y[:m] if m_pad != m else y), col_sum, col_sumsq


# ----------------------------------------------------------------------------
# BN scale/shift (tiny, plain JAX) and fused finalize kernels
# ----------------------------------------------------------------------------
def _bn_scale_shift(col_sum, col_sumsq, m_rows, gamma, beta, c_pad):
    # Training-mode batch statistics (biased variance), as for a freshly
    # constructed PyTorch BatchNorm2d in .train().
    mean = col_sum / m_rows
    # TODO(synk): shifted / two-pass variance for real data where |mean| >> std.
    var = col_sumsq / m_rows - mean * mean
    scale = gamma.astype(jnp.float32) * lax.rsqrt(var + EPS)
    shift = beta.astype(jnp.float32) - mean * scale
    c = scale.shape[0]
    scale = jnp.pad(scale, (0, c_pad - c)).reshape(1, c_pad)
    shift = jnp.pad(shift, (0, c_pad - c)).reshape(1, c_pad)
    return scale, shift


def _bn_relu_kernel(y_ref, sc_ref, sh_ref, o_ref):
    v = y_ref[...].astype(jnp.float32) * sc_ref[...] + sh_ref[...]
    o_ref[...] = jnp.maximum(v, 0.0).astype(o_ref.dtype)


def _bn_addres_relu_kernel(y_ref, sc_ref, sh_ref, r_ref, o_ref):
    v = (y_ref[...].astype(jnp.float32) * sc_ref[...] + sh_ref[...]
         + r_ref[...].astype(jnp.float32))
    o_ref[...] = jnp.maximum(v, 0.0).astype(o_ref.dtype)


def _bn_scaledres_relu_kernel(y_ref, sc_ref, sh_ref, r_ref, rsc_ref, rsh_ref, o_ref):
    v = (y_ref[...].astype(jnp.float32) * sc_ref[...] + sh_ref[...]
         + r_ref[...].astype(jnp.float32) * rsc_ref[...] + rsh_ref[...])
    o_ref[...] = jnp.maximum(v, 0.0).astype(o_ref.dtype)


def bn_finalize(y, scale, shift, residual=None, res_scale=None, res_shift=None,
                out_dtype=jnp.float32):
    """Fused normalize + affine (+ residual [with its own folded BN]) + ReLU."""
    m, c_pad = y.shape
    tm = _elem_row_tile(m)
    if tm is None:                                   # rare: pad to a clean tile
        tm = 256
        mp = _round_up(m, tm)
        y = jnp.pad(y, ((0, mp - m), (0, 0)))
        if residual is not None:
            residual = jnp.pad(residual, ((0, mp - m), (0, 0)))
    else:
        mp = m
    gm = mp // tm

    row_spec = pl.BlockSpec((tm, c_pad), lambda i: (i, 0))       # full lane width
    vec_spec = pl.BlockSpec((1, c_pad), lambda i: (0, 0))

    if residual is None:
        kernel = _bn_relu_kernel
        in_specs = [row_spec, vec_spec, vec_spec]
        args = [y, scale, shift]
    elif res_scale is None:                          # identity shortcut: add only
        kernel = _bn_addres_relu_kernel
        in_specs = [row_spec, vec_spec, vec_spec, row_spec]
        args = [y, scale, shift, residual]
    else:                                            # conv shortcut with folded BN
        kernel = _bn_scaledres_relu_kernel
        in_specs = [row_spec, vec_spec, vec_spec, row_spec, vec_spec, vec_spec]
        args = [y, scale, shift, residual, res_scale, res_shift]

    out = pl.pallas_call(
        kernel,
        out_shape=jax.ShapeDtypeStruct((mp, c_pad), out_dtype),
        grid=(gm,),
        in_specs=in_specs,
        out_specs=row_spec,
        compiler_params=pltpu.CompilerParams(dimension_semantics=("parallel",)),
    )(*args)
    return out[:m] if mp != m else out


# ----------------------------------------------------------------------------
# im2col (only used for the strided conv1 fallback), built directly in bf16
# ----------------------------------------------------------------------------
def _im2col(x_nhwc, ksize, stride, pad):
    n, h, w, c = x_nhwc.shape
    xp = jnp.pad(x_nhwc, ((0, 0), (pad, pad), (pad, pad), (0, 0)))
    ho = (h + 2 * pad - ksize) // stride + 1
    wo = (w + 2 * pad - ksize) // stride + 1
    cols = []
    for dy in range(ksize):
        for dx in range(ksize):
            cols.append(xp[:, dy:dy + ho * stride:stride,
                           dx:dx + wo * stride:stride, :])
    a = jnp.concatenate(cols, axis=-1)               # (N, Ho, Wo, 9*C), (dy,dx,ci)
    return a.reshape(n * ho * wo, ksize * ksize * c), ho, wo


# ----------------------------------------------------------------------------
# BasicBlock forward
# ----------------------------------------------------------------------------
def basic_block_forward(x_nchw, params, stride=1):
    x = jnp.transpose(x_nchw, (0, 2, 3, 1))          # NCHW -> NHWC
    n, h, w, cin = x.shape
    planes = params["w1"].shape[0]
    cin_pad = _round_up(cin, LANE)
    tn = _channel_tile(planes)
    c_pad = _round_up(planes, tn)

    # Single entry copy: channel-pad + bf16 (also used as the residual input).
    x_pc = jnp.pad(x, ((0, 0), (0, 0), (0, 0), (0, cin_pad - cin))).astype(jnp.bfloat16)

    # ---- conv1 + bn1 + relu ----
    if stride == 1:
        ho, wo = h, w
        y1, s1, q1 = conv3x3_s1_stats(
            x_pc, _w3x3_to_taps(params["w1"], cin_pad, c_pad), tn)
    else:
        # TODO(synk): fold the strided tap expansion into the fused kernel too.
        p1, ho, wo = _im2col(x_pc, 3, stride, 1)     # bf16, Kd = 9*cin_pad
        y1, s1, q1 = conv_im2col_stats(
            p1, _w3x3_to_mat(params["w1"], cin_pad, c_pad), tn)
    m = n * ho * wo
    sc1, sh1 = _bn_scale_shift(s1[:planes], q1[:planes], m,
                               params["g1"], params["b1"], c_pad)
    # out1 stays channel-padded and bf16 (it only feeds conv2).
    out1 = bn_finalize(y1, sc1, sh1, out_dtype=jnp.bfloat16)

    # ---- conv2 (3x3, stride 1) + bn2 (finalized below) ----
    out1_nhwc = out1.reshape(n, ho, wo, c_pad)
    y2, s2, q2 = conv3x3_s1_stats(
        out1_nhwc, _w3x3_to_taps(params["w2"], c_pad, c_pad), tn)
    sc2, sh2 = _bn_scale_shift(s2[:planes], q2[:planes], m,
                               params["g2"], params["b2"], c_pad)

    # ---- shortcut ----
    if stride != 1 or cin != planes:
        # 1x1 / stride-s conv needs no im2col: strided slice of x, one matmul.
        xs = x_pc[:, ::stride, ::stride, :].reshape(m, cin_pad)
        yr, sr, qr = conv_im2col_stats(xs, _w1x1_to_mat(params["ws"], cin_pad, c_pad), tn)
        rsc, rsh = _bn_scale_shift(sr[:planes], qr[:planes], m,
                                   params["gs"], params["bs"], c_pad)
        out = bn_finalize(y2, sc2, sh2, residual=yr,
                          res_scale=rsc, res_shift=rsh)
    else:
        res = x_pc.reshape(m, cin_pad)               # cin_pad == c_pad here
        out = bn_finalize(y2, sc2, sh2, residual=res)

    out = out[:, :planes].reshape(n, ho, wo, planes)
    return jnp.transpose(out, (0, 3, 1, 2))          # NHWC -> NCHW


# ----------------------------------------------------------------------------
# Pure-JAX f32 reference (correctness check only)
# ----------------------------------------------------------------------------
def reference_forward(x_nchw, params, stride=1):
    def conv(x_nhwc, w, s, pad):
        return lax.conv_general_dilated(
            x_nhwc, jnp.transpose(w, (2, 3, 1, 0)),
            window_strides=(s, s), padding=((pad, pad), (pad, pad)),
            dimension_numbers=("NHWC", "HWIO", "NHWC"))

    def bn(y, g, b):
        mean = jnp.mean(y, axis=(0, 1, 2), keepdims=True)
        var = jnp.mean(jnp.square(y - mean), axis=(0, 1, 2), keepdims=True)
        return ((y - mean) * lax.rsqrt(var + EPS)
                * g.reshape(1, 1, 1, -1) + b.reshape(1, 1, 1, -1))

    x = jnp.transpose(x_nchw, (0, 2, 3, 1))
    planes = params["w1"].shape[0]
    out = jax.nn.relu(bn(conv(x, params["w1"], stride, 1),
                         params["g1"], params["b1"]))
    out = bn(conv(out, params["w2"], 1, 1), params["g2"], params["b2"])
    if stride != 1 or x.shape[-1] != planes:
        sc = bn(conv(x, params["ws"], stride, 0), params["gs"], params["bs"])
    else:
        sc = x
    out = jax.nn.relu(out + sc)
    return jnp.transpose(out, (0, 3, 1, 2))


# ----------------------------------------------------------------------------
if __name__ == "__main__":
    key = jax.random.PRNGKey(0)

    def make_params(k, in_planes, planes):
        ks = jax.random.split(k, 9)
        return {
            "w1": 0.1 * jax.random.normal(ks[0], (planes, in_planes, 3, 3), jnp.float32),
            "g1": 1.0 + 0.1 * jax.random.normal(ks[1], (planes,), jnp.float32),
            "b1": 0.1 * jax.random.normal(ks[2], (planes,), jnp.float32),
            "w2": 0.1 * jax.random.normal(ks[3], (planes, planes, 3, 3), jnp.float32),
            "g2": 1.0 + 0.1 * jax.random.normal(ks[4], (planes,), jnp.float32),
            "b2": 0.1 * jax.random.normal(ks[5], (planes,), jnp.float32),
            "ws": 0.1 * jax.random.normal(ks[6], (planes, in_planes, 1, 1), jnp.float32),
            "gs": 1.0 + 0.1 * jax.random.normal(ks[7], (planes,), jnp.float32),
            "bs": 0.1 * jax.random.normal(ks[8], (planes,), jnp.float32),
        }

    fwd = jax.jit(basic_block_forward, static_argnames=("stride",))
    ref_fwd = jax.jit(reference_forward, static_argnames=("stride",))

    N, H, W = 2, 16, 16
    configs = [
        (4, 8, 1),   # channel change  -> conv shortcut
        (8, 8, 1),   # identity shortcut
        (4, 8, 2),   # strided         -> conv shortcut + downsampling
    ]
    for idx, (cin, planes, stride) in enumerate(configs):
        kx, kp, key = jax.random.split(key, 3)
        x = jax.random.normal(kx, (N, cin, H, W), dtype=jnp.float32)
        params = make_params(kp, cin, planes)

        out = jax.block_until_ready(fwd(x, params, stride=stride))
        ref = jax.block_until_ready(ref_fwd(x, params, stride=stride))

        assert out.shape == ref.shape, f"config {idx}: shape mismatch"
        # bf16 MXU operands + bf16 intermediates with f32 accumulation/stats.
        assert jnp.allclose(out, ref, rtol=5e-2, atol=5e-2), (
            f"config {idx}: max |err| = {float(jnp.max(jnp.abs(out - ref)))}")

    print("KERNEL_OK")
</pallas_src>

<mosaic_0001>
module attributes {stable_mosaic.version = 11 : i64} {
  func.func @_bn_relu_kernel(%arg0: i32, %arg1: memref<512x128xbf16, #tpu.memory_space<vmem>>, %arg2: memref<1x128xf32, #tpu.memory_space<vmem>>, %arg3: memref<1x128xf32, #tpu.memory_space<vmem>>, %arg4: memref<512x128xbf16, #tpu.memory_space<vmem>>) attributes {dimension_semantics = [#tpu.dimension_semantics<parallel>], iteration_bounds = array<i64: 1>, scalar_prefetch = 0 : i64, scratch_operands = 0 : i64, tpu.core_type = #tpu.core_type<tc>, window_params = [{transform_indices = @transform_0, window_bounds = array<i64: 512, 128>}, {pipeline_mode = #tpu.pipeline_mode<synchronous>, transform_indices = @transform_1, window_bounds = array<i64: 1, 128>}, {pipeline_mode = #tpu.pipeline_mode<synchronous>, transform_indices = @transform_2, window_bounds = array<i64: 1, 128>}, {transform_indices = @transform_3, window_bounds = array<i64: 512, 128>}]} {
    %c0 = arith.constant 0 : index
    %c0_0 = arith.constant 0 : index
    %0 = vector.load %arg1[%c0, %c0_0] : memref<512x128xbf16, #tpu.memory_space<vmem>>, vector<512x128xbf16>
    %1 = arith.extf %0 : vector<512x128xbf16> to vector<512x128xf32>
    %c0_1 = arith.constant 0 : index
    %c0_2 = arith.constant 0 : index
    %2 = vector.load %arg2[%c0_1, %c0_2] : memref<1x128xf32, #tpu.memory_space<vmem>>, vector<1x128xf32>
    %3 = vector.broadcast %2 : vector<1x128xf32> to vector<512x128xf32>
    %4 = arith.mulf %1, %3 : vector<512x128xf32>
    %c0_3 = arith.constant 0 : index
    %c0_4 = arith.constant 0 : index
    %5 = vector.load %arg3[%c0_3, %c0_4] : memref<1x128xf32, #tpu.memory_space<vmem>>, vector<1x128xf32>
    %6 = vector.broadcast %5 : vector<1x128xf32> to vector<512x128xf32>
    %7 = arith.addf %4, %6 : vector<512x128xf32>
    %cst = arith.constant 0.000000e+00 : f32
    %8 = vector.broadcast %cst : f32 to vector<512x128xf32>
    %9 = arith.maximumf %7, %8 : vector<512x128xf32>
    %10 = arith.truncf %9 : vector<512x128xf32> to vector<512x128xbf16>
    %c0_5 = arith.constant 0 : index
    %c0_6 = arith.constant 0 : index
    %11 = vector.load %arg4[%c0_5, %c0_6] : memref<512x128xbf16, #tpu.memory_space<vmem>>, vector<512x128xbf16>
    tpu.vector_store %arg4[%c0_5, %c0_6], %10 {strides = array<i32>} : memref<512x128xbf16, #tpu.memory_space<vmem>>, vector<512x128xbf16>,
    return
  }
  func.func @transform_0(%arg0: i32) -> (i32, i32) {
    %c0_i32 = arith.constant 0 : i32
    %c0_i32_0 = arith.constant 0 : i32
    return %arg0, %c0_i32 : i32, i32
  }
  func.func @transform_1(%arg0: i32) -> (i32, i32) {
    %c0_i32 = arith.constant 0 : i32
    %c0_i32_0 = arith.constant 0 : i32
    %c0_i32_1 = arith.constant 0 : i32
    return %c0_i32, %c0_i32_0 : i32, i32
  }
  func.func @transform_2(%arg0: i32) -> (i32, i32) {
    %c0_i32 = arith.constant 0 : i32
    %c0_i32_0 = arith.constant 0 : i32
    %c0_i32_1 = arith.constant 0 : i32
    return %c0_i32, %c0_i32_0 : i32, i32
  }
  func.func @transform_3(%arg0: i32) -> (i32, i32) {
    %c0_i32 = arith.constant 0 : i32
    %c0_i32_0 = arith.constant 0 : i32
    return %arg0, %c0_i32 : i32, i32
  }
}

module attributes {stable_mosaic.version = 11 : i64} {
  func.func @kernel(%arg0: i32, %arg1: i32, %arg2: memref<1x18x18x128xbf16, #tpu.memory_space<vmem>>, %arg3: memref<9x128x128xbf16, #tpu.memory_space<vmem>>, %arg4: memref<1x256x128xbf16, #tpu.memory_space<vmem>>, %arg5: memref<1x8x128xf32, #tpu.memory_space<vmem>>, %arg6: memref<256x128xf32, #tpu.memory_space<vmem>>) attributes {dimension_semantics = [#tpu.dimension_semantics<parallel>, #tpu.dimension_semantics<parallel>], iteration_bounds = array<i64: 2, 1>, scalar_prefetch = 0 : i64, scratch_operands = 1 : i64, tpu.core_type = #tpu.core_type<tc>, window_params = [{transform_indices = @transform_0, window_bounds = array<i64: 1, 18, 18, 128>}, {transform_indices = @transform_1, window_bounds = array<i64: 9, 128, 128>}, {transform_indices = @transform_2, window_bounds = array<i64: 1, 256, 128>}, {transform_indices = @transform_3, window_bounds = array<i64: 1, 8, 128>}]} {
    %cst = arith.constant 0.000000e+00 : f32
    %0 = vector.broadcast %cst : f32 to vector<256x128xf32>
    %c0 = arith.constant 0 : index
    %c0_0 = arith.constant 0 : index
    %1 = vector.load %arg6[%c0, %c0_0] : memref<256x128xf32, #tpu.memory_space<vmem>>, vector<256x128xf32>
    tpu.vector_store %arg6[%c0, %c0_0], %0 {strides = array<i32>} : memref<256x128xf32, #tpu.memory_space<vmem>>, vector<256x128xf32>,
    %c0_1 = arith.constant 0 : index
    %c0_2 = arith.constant 0 : index
    %c0_3 = arith.constant 0 : index
    %c0_4 = arith.constant 0 : index
    %2 = vector.load %arg2[%c0_1, %c0_2, %c0_3, %c0_4] : memref<1x18x18x128xbf16, #tpu.memory_space<vmem>>, vector<1x16x16x128xbf16>
    %3 = vector.shape_cast %2 : vector<1x16x16x128xbf16> to vector<16x16x128xbf16>
    %4 = vector.shape_cast %3 : vector<16x16x128xbf16> to vector<256x128xbf16>
    %c0_5 = arith.constant 0 : index
    %c0_6 = arith.constant 0 : index
    %5 = vector.load %arg6[%c0_5, %c0_6] : memref<256x128xf32, #tpu.memory_space<vmem>>, vector<256x128xf32>
    %c0_7 = arith.constant 0 : index
    %c0_8 = arith.constant 0 : index
    %c0_9 = arith.constant 0 : index
    %6 = vector.load %arg3[%c0_7, %c0_8, %c0_9] : memref<9x128x128xbf16, #tpu.memory_space<vmem>>, vector<1x128x128xbf16>
    %7 = vector.shape_cast %6 : vector<1x128x128xbf16> to vector<128x128xbf16>
    %cst_10 = arith.constant dense<0.000000e+00> : vector<256x128xf32>
    %8 = tpu.matmul %4, %7, %cst_10 {dimension_numbers = #tpu.dot_dimension_numbers<[1], [0], [0], [1], [0, 0, 1, 1], [], []>} : vector<256x128xbf16>, vector<128x128xbf16>, vector<256x128xf32> -> vector<256x128xf32>
    %9 = arith.addf %5, %8 : vector<256x128xf32>
    %c0_11 = arith.constant 0 : index
    %c0_12 = arith.constant 0 : index
    %10 = vector.load %arg6[%c0_11, %c0_12] : memref<256x128xf32, #tpu.memory_space<vmem>>, vector<256x128xf32>
    tpu.vector_store %arg6[%c0_11, %c0_12], %9 {strides = array<i32>} : memref<256x128xf32, #tpu.memory_space<vmem>>, vector<256x128xf32>,
    %c0_13 = arith.constant 0 : index
    %c0_14 = arith.constant 0 : index
    %c1 = arith.constant 1 : index
    %c0_15 = arith.constant 0 : index
    %11 = vector.load %arg2[%c0_13, %c0_14, %c1, %c0_15] : memref<1x18x18x128xbf16, #tpu.memory_space<vmem>>, vector<1x16x16x128xbf16>
    %12 = vector.shape_cast %11 : vector<1x16x16x128xbf16> to vector<16x16x128xbf16>
    %13 = vector.shape_cast %12 : vector<16x16x128xbf16> to vector<256x128xbf16>
    %c0_16 = arith.constant 0 : index
    %c0_17 = arith.constant 0 : index
    %14 = vector.load %arg6[%c0_16, %c0_17] : memref<256x128xf32, #tpu.memory_space<vmem>>, vector<256x128xf32>
    %c1_18 = arith.constant 1 : index
    %c0_19 = arith.constant 0 : index
    %c0_20 = arith.constant 0 : index
    %15 = vector.load %arg3[%c1_18, %c0_19, %c0_20] : memref<9x128x128xbf16, #tpu.memory_space<vmem>>, vector<1x128x128xbf16>
    %16 = vector.shape_cast %15 : vector<1x128x128xbf16> to vector<128x128xbf16>
    %cst_21 = arith.constant dense<0.000000e+00> : vector<256x128xf32>
    %17 = tpu.matmul %13, %16, %cst_21 {dimension_numbers = #tpu.dot_dimension_numbers<[1], [0], [0], [1], [0, 0, 1, 1], [], []>} : vector<256x128xbf16>, vector<128x128xbf16>, vector<256x128xf32> -> vector<256x128xf32>
    %18 = arith.addf %14, %17 : vector<256x128xf32>
    %c0_22 = arith.constant 0 : index
    %c0_23 = arith.constant 0 : index
    %19 = vector.load %arg6[%c0_22, %c0_23] : memref<256x128xf32, #tpu.memory_space<vmem>>, vector<256x128xf32>
    tpu.vector_store %arg6[%c0_22, %c0_23], %18 {strides = array<i32>} : memref<256x128xf32, #tpu.memory_space<vmem>>, vector<256x128xf32>,
    %c0_24 = arith.constant 0 : index
    %c0_25 = arith.constant 0 : index
    %c2 = arith.constant 2 : index
    %c0_26 = arith.constant 0 : index
    %20 = vector.load %arg2[%c0_24, %c0_25, %c2, %c0_26] : memref<1x18x18x128xbf16, #tpu.memory_space<vmem>>, vector<1x16x16x128xbf16>
    %21 = vector.shape_cast %20 : vector<1x16x16x128xbf16> to vector<16x16x128xbf16>
    %22 = vector.shape_cast %21 : vector<16x16x128xbf16> to vector<256x128xbf16>
    %c0_27 = arith.constant 0 : index
    %c0_28 = arith.constant 0 : index
    %23 = vector.load %arg6[%c0_27, %c0_28] : memref<256x128xf32, #tpu.memory_space<vmem>>, vector<256x128xf32>
    %c2_29 = arith.constant 2 : index
    %c0_30 = arith.constant 0 : index
    %c0_31 = arith.constant 0 : index
    %24 = vector.load %arg3[%c2_29, %c0_30, %c0_31] : memref<9x128x128xbf16, #tpu.memory_space<vmem>>, vector<1x128x128xbf16>
    %25 = vector.shape_cast %24 : vector<1x128x128xbf16> to vector<128x128xbf16>
    %cst_32 = arith.constant dense<0.000000e+00> : vector<256x128xf32>
    %26 = tpu.matmul %22, %25, %cst_32 {dimension_numbers = #tpu.dot_dimension_numbers<[1], [0], [0], [1], [0, 0, 1, 1], [], []>} : vector<256x128xbf16>, vector<128x128xbf16>, vector<256x128xf32> -> vector<256x128xf32>
    %27 = arith.addf %23, %26 : vector<256x128xf32>
    %c0_33 = arith.constant 0 : index
    %c0_34 = arith.constant 0 : index
    %28 = vector.load %arg6[%c0_33, %c0_34] : memref<256x128xf32, #tpu.memory_space<vmem>>, vector<256x128xf32>
    tpu.vector_store %arg6[%c0_33, %c0_34], %27 {strides = array<i32>} : memref<256x128xf32, #tpu.memory_space<vmem>>, vector<256x128xf32>,
    %c0_35 = arith.constant 0 : index
    %c1_36 = arith.constant 1 : index
    %c0_37 = arith.constant 0 : index
    %c0_38 = arith.constant 0 : index
    %29 = vector.load %arg2[%c0_35, %c1_36, %c0_37, %c0_38] : memref<1x18x18x128xbf16, #tpu.memory_space<vmem>>, vector<1x16x16x128xbf16>
    %30 = vector.shape_cast %29 : vector<1x16x16x128xbf16> to vector<16x16x128xbf16>
    %31 = vector.shape_cast %30 : vector<16x16x128xbf16> to vector<256x128xbf16>
    %c0_39 = arith.constant 0 : index
    %c0_40 = arith.constant 0 : index
    %32 = vector.load %arg6[%c0_39, %c0_40] : memref<256x128xf32, #tpu.memory_space<vmem>>, vector<256x128xf32>
    %c3 = arith.constant 3 : index
    %c0_41 = arith.constant 0 : index
    %c0_42 = arith.constant 0 : index
    %33 = vector.load %arg3[%c3, %c0_41, %c0_42] : memref<9x128x128xbf16, #tpu.memory_space<vmem>>, vector<1x128x128xbf16>
    %34 = vector.shape_cast %33 : vector<1x128x128xbf16> to vector<128x128xbf16>
    %cst_43 = arith.constant dense<0.000000e+00> : vector<256x128xf32>
    %35 = tpu.matmul %31, %34, %cst_43 {dimension_numbers = #tpu.dot_dimension_numbers<[1], [0], [0], [1], [0, 0, 1, 1], [], []>} : vector<256x128xbf16>, vector<128x128xbf16>, vector<256x128xf32> -> vector<256x128xf32>
    %36 = arith.addf %32, %35 : vector<256x128xf32>
    %c0_44 = arith.constant 0 : index
    %c0_45 = arith.constant 0 : index
    %37 = vector.load %arg6[%c0_44, %c0_45] : memref<256x128xf32, #tpu.memory_space<vmem>>, vector<256x128xf32>
    tpu.vector_store %arg6[%c0_44, %c0_45], %36 {strides = array<i32>} : memref<256x128xf32, #tpu.memory_space<vmem>>, vector<256x128xf32>,
    %c0_46 = arith.constant 0 : index
    %c1_47 = arith.constant 1 : index
    %c1_48 = arith.constant 1 : index
    %c0_49 = arith.constant 0 : index
    %38 = vector.load %arg2[%c0_46, %c1_47, %c1_48, %c0_49] : memref<1x18x18x128xbf16, #tpu.memory_space<vmem>>, vector<1x16x16x128xbf16>
    %39 = vector.shape_cast %38 : vector<1x16x16x128xbf16> to vector<16x16x128xbf16>
    %40 = vector.shape_cast %39 : vector<16x16x128xbf16> to vector<256x128xbf16>
    %c0_50 = arith.constant 0 : index
    %c0_51 = arith.constant 0 : index
    %41 = vector.load %arg6[%c0_50, %c0_51] : memref<256x128xf32, #tpu.memory_space<vmem>>, vector<256x128xf32>
    %c4 = arith.constant 4 : index
    %c0_52 = arith.constant 0 : index
    %c0_53 = arith.constant 0 : index
    %42 = vector.load %arg3[%c4, %c0_52, %c0_53] : memref<9x128x128xbf16, #tpu.memory_space<vmem>>, vector<1x128x128xbf16>
    %43 = vector.shape_cast %42 : vector<1x128x128xbf16> to vector<128x128xbf16>
    %cst_54 = arith.constant dense<0.000000e+00> : vector<256x128xf32>
    %44 = tpu.matmul %40, %43, %cst_54 {dimension_numbers = #tpu.dot_dimension_numbers<[1], [0], [0], [1], [0, 0, 1, 1], [], []>} : vector<256x128xbf16>, vector<128x128xbf16>, vector<256x128xf32> -> vector<256x128xf32>
    %45 = arith.addf %41, %44 : vector<256x128xf32>
    %c0_55 = arith.constant 0 : index
    %c0_56 = arith.constant 0 : index
    %46 = vector.load %arg6[%c0_55, %c0_56] : memref<256x128xf32, #tpu.memory_space<vmem>>, vector<256x128xf32>
    tpu.vector_store %arg6[%c0_55, %c0_56], %45 {strides = array<i32>} : memref<256x128xf32, #tpu.memory_space<vmem>>, vector<256x128xf32>,
    %c0_57 = arith.constant 0 : index
    %c1_58 = arith.constant 1 : index
    %c2_59 = arith.constant 2 : index
    %c0_60 = arith.constant 0 : index
    %47 = vector.load %arg2[%c0_57, %c1_58, %c2_59, %c0_60] : memref<1x18x18x128xbf16, #tpu.memory_space<vmem>>, vector<1x16x16x128xbf16>
    %48 = vector.shape_cast %47 : vector<1x16x16x128xbf16> to vector<16x16x128xbf16>
    %49 = vector.shape_cast %48 : vector<16x16x128xbf16> to vector<256x128xbf16>
    %c0_61 = arith.constant 0 : index
    %c0_62 = arith.constant 0 : index
    %50 = vector.load %arg6[%c0_61, %c0_62] : memref<256x128xf32, #tpu.memory_space<vmem>>, vector<256x128xf32>
    %c5 = arith.constant 5 : index
    %c0_63 = arith.constant 0 : index
    %c0_64 = arith.constant 0 : index
    %51 = vector.load %arg3[%c5, %c0_63, %c0_64] : memref<9x128x128xbf16, #tpu.memory_space<vmem>>, vector<1x128x128xbf16>
    %52 = vector.shape_cast %51 : vector<1x128x128xbf16> to vector<128x128xbf16>
    %cst_65 = arith.constant dense<0.000000e+00> : vector<256x128xf32>
    %53 = tpu.matmul %49, %52, %cst_65 {dimension_numbers = #tpu.dot_dimension_numbers<[1], [0], [0], [1], [0, 0, 1, 1], [], []>} : vector<256x128xbf16>, vector<128x128xbf16>, vector<256x128xf32> -> vector<256x128xf32>
    %54 = arith.addf %50, %53 : vector<256x128xf32>
    %c0_66 = arith.constant 0 : index
    %c0_67 = arith.constant 0 : index
    %55 = vector.load %arg6[%c0_66, %c0_67] : memref<256x128xf32, #tpu.memory_space<vmem>>, vector<256x128xf32>
    tpu.vector_store %arg6[%c0_66, %c0_67], %54 {strides = array<i32>} : memref<256x128xf32, #tpu.memory_space<vmem>>, vector<256x128xf32>,
    %c0_68 = arith.constant 0 : index
    %c2_69 = arith.constant 2 : index
    %c0_70 = arith.constant 0 : index
    %c0_71 = arith.constant 0 : index
    %56 = vector.load %arg2[%c0_68, %c2_69, %c0_70, %c0_71] : memref<1x18x18x128xbf16, #tpu.memory_space<vmem>>, vector<1x16x16x128xbf16>
    %57 = vector.shape_cast %56 : vector<1x16x16x128xbf16> to vector<16x16x128xbf16>
    %58 = vector.shape_cast %57 : vector<16x16x128xbf16> to vector<256x128xbf16>
    %c0_72 = arith.constant 0 : index
    %c0_73 = arith.constant 0 : index
    %59 = vector.load %arg6[%c0_72, %c0_73] : memref<256x128xf32, #tpu.memory_space<vmem>>, vector<256x128xf32>
    %c6 = arith.constant 6 : index
    %c0_74 = arith.constant 0 : index
    %c0_75 = arith.constant 0 : index
    %60 = vector.load %arg3[%c6, %c0_74, %c0_75] : memref<9x128x128xbf16, #tpu.memory_space<vmem>>, vector<1x128x128xbf16>
    %61 = vector.shape_cast %60 : vector<1x128x128xbf16> to vector<128x128xbf16>
    %cst_76 = arith.constant dense<0.000000e+00> : vector<256x128xf32>
    %62 = tpu.matmul %58, %61, %cst_76 {dimension_numbers = #tpu.dot_dimension_numbers<[1], [0], [0], [1], [0, 0, 1, 1], [], []>} : vector<256x128xbf16>, vector<128x128xbf16>, vector<256x128xf32> -> vector<256x128xf32>
    %63 = arith.addf %59, %62 : vector<256x128xf32>
    %c0_77 = arith.constant 0 : index
    %c0_78 = arith.constant 0 : index
    %64 = vector.load %arg6[%c0_77, %c0_78] : memref<256x128xf32, #tpu.memory_space<vmem>>, vector<256x128xf32>
    tpu.vector_store %arg6[%c0_77, %c0_78], %63 {strides = array<i32>} : memref<256x128xf32, #tpu.memory_space<vmem>>, vector<256x128xf32>,
    %c0_79 = arith.constant 0 : index
    %c2_80 = arith.constant 2 : index
    %c1_81 = arith.constant 1 : index
    %c0_82 = arith.constant 0 : index
    %65 = vector.load %arg2[%c0_79, %c2_80, %c1_81, %c0_82] : memref<1x18x18x128xbf16, #tpu.memory_space<vmem>>, vector<1x16x16x128xbf16>
    %66 = vector.shape_cast %65 : vector<1x16x16x128xbf16> to vector<16x16x128xbf16>
    %67 = vector.shape_cast %66 : vector<16x16x128xbf16> to vector<256x128xbf16>
    %c0_83 = arith.constant 0 : index
    %c0_84 = arith.constant 0 : index
    %68 = vector.load %arg6[%c0_83, %c0_84] : memref<256x128xf32, #tpu.memory_space<vmem>>, vector<256x128xf32>
    %c7 = arith.constant 7 : index
    %c0_85 = arith.constant 0 : index
    %c0_86 = arith.constant 0 : index
    %69 = vector.load %arg3[%c7, %c0_85, %c0_86] : memref<9x128x128xbf16, #tpu.memory_space<vmem>>, vector<1x128x128xbf16>
    %70 = vector.shape_cast %69 : vector<1x128x128xbf16> to vector<128x128xbf16>
    %cst_87 = arith.constant dense<0.000000e+00> : vector<256x128xf32>
    %71 = tpu.matmul %67, %70, %cst_87 {dimension_numbers = #tpu.dot_dimension_numbers<[1], [0], [0], [1], [0, 0, 1, 1], [], []>} : vector<256x128xbf16>, vector<128x128xbf16>, vector<256x128xf32> -> vector<256x128xf32>
    %72 = arith.addf %68, %71 : vector<256x128xf32>
    %c0_88 = arith.constant 0 : index
    %c0_89 = arith.constant 0 : index
    %73 = vector.load %arg6[%c0_88, %c0_89] : memref<256x128xf32, #tpu.memory_space<vmem>>, vector<256x128xf32>
    tpu.vector_store %arg6[%c0_88, %c0_89], %72 {strides = array<i32>} : memref<256x128xf32, #tpu.memory_space<vmem>>, vector<256x128xf32>,
    %c0_90 = arith.constant 0 : index
    %c2_91 = arith.constant 2 : index
    %c2_92 = arith.constant 2 : index
    %c0_93 = arith.constant 0 : index
    %74 = vector.load %arg2[%c0_90, %c2_91, %c2_92, %c0_93] : memref<1x18x18x128xbf16, #tpu.memory_space<vmem>>, vector<1x16x16x128xbf16>
    %75 = vector.shape_cast %74 : vector<1x16x16x128xbf16> to vector<16x16x128xbf16>
    %76 = vector.shape_cast %75 : vector<16x16x128xbf16> to vector<256x128xbf16>
    %c0_94 = arith.constant 0 : index
    %c0_95 = arith.constant 0 : index
    %77 = vector.load %arg6[%c0_94, %c0_95] : memref<256x128xf32, #tpu.memory_space<vmem>>, vector<256x128xf32>
    %c8 = arith.constant 8 : index
    %c0_96 = arith.constant 0 : index
    %c0_97 = arith.constant 0 : index
    %78 = vector.load %arg3[%c8, %c0_96, %c0_97] : memref<9x128x128xbf16, #tpu.memory_space<vmem>>, vector<1x128x128xbf16>
    %79 = vector.shape_cast %78 : vector<1x128x128xbf16> to vector<128x128xbf16>
    %cst_98 = arith.constant dense<0.000000e+00> : vector<256x128xf32>
    %80 = tpu.matmul %76, %79, %cst_98 {dimension_numbers = #tpu.dot_dimension_numbers<[1], [0], [0], [1], [0, 0, 1, 1], [], []>} : vector<256x128xbf16>, vector<128x128xbf16>, vector<256x128xf32> -> vector<256x128xf32>
    %81 = arith.addf %77, %80 : vector<256x128xf32>
    %c0_99 = arith.constant 0 : index
    %c0_100 = arith.constant 0 : index
    %82 = vector.load %arg6[%c0_99, %c0_100] : memref<256x128xf32, #tpu.memory_space<vmem>>, vector<256x128xf32>
    tpu.vector_store %arg6[%c0_99, %c0_100], %81 {strides = array<i32>} : memref<256x128xf32, #tpu.memory_space<vmem>>, vector<256x128xf32>,
    %c0_101 = arith.constant 0 : index
    %c0_102 = arith.constant 0 : index
    %83 = vector.load %arg6[%c0_101, %c0_102] : memref<256x128xf32, #tpu.memory_space<vmem>>, vector<256x128xf32>
    %84 = arith.truncf %83 : vector<256x128xf32> to vector<256x128xbf16>
    %c0_103 = arith.constant 0 : index
    %c0_104 = arith.constant 0 : index
    %c0_105 = arith.constant 0 : index
    %85 = vector.load %arg4[%c0_103, %c0_104, %c0_105] : memref<1x256x128xbf16, #tpu.memory_space<vmem>>, vector<1x256x128xbf16>
    %86 = vector.shape_cast %85 : vector<1x256x128xbf16> to vector<256x128xbf16>
    %87 = vector.shape_cast %84 : vector<256x128xbf16> to vector<1x256x128xbf16>
    tpu.vector_store %arg4[%c0_103, %c0_104, %c0_105], %87 {strides = array<i32>} : memref<1x256x128xbf16, #tpu.memory_space<vmem>>, vector<1x256x128xbf16>,
    %cst_106 = arith.constant dense<0.000000e+00> : vector<128xf32>
    %88 = vector.multi_reduction <add>, %83, %cst_106 [0] : vector<256x128xf32> to vector<128xf32>
    %89 = vector.shape_cast %88 : vector<128xf32> to vector<1x128xf32>
    %c0_107 = arith.constant 0 : index
    %c0_108 = arith.constant 0 : index
    %c0_109 = arith.constant 0 : index
    %90 = vector.load %arg5[%c0_107, %c0_108, %c0_109] : memref<1x8x128xf32, #tpu.memory_space<vmem>>, vector<1x1x128xf32>
    %91 = vector.shape_cast %90 : vector<1x1x128xf32> to vector<1x128xf32>
    %92 = vector.shape_cast %89 : vector<1x128xf32> to vector<1x1x128xf32>
    tpu.vector_store %arg5[%c0_107, %c0_108, %c0_109], %92 {strides = array<i32>} : memref<1x8x128xf32, #tpu.memory_space<vmem>>, vector<1x1x128xf32>,
    %93 = arith.mulf %83, %83 : vector<256x128xf32>
    %cst_110 = arith.constant dense<0.000000e+00> : vector<128xf32>
    %94 = vector.multi_reduction <add>, %93, %cst_110 [0] : vector<256x128xf32> to vector<128xf32>
    %95 = vector.shape_cast %94 : vector<128xf32> to vector<1x128xf32>
    %c0_111 = arith.constant 0 : index
    %c1_112 = arith.constant 1 : index
    %c0_113 = arith.constant 0 : index
    %96 = vector.load %arg5[%c0_111, %c1_112, %c0_113] : memref<1x8x128xf32, #tpu.memory_space<vmem>>, vector<1x1x128xf32>
    %97 = vector.shape_cast %96 : vector<1x1x128xf32> to vector<1x128xf32>
    %98 = vector.shape_cast %95 : vector<1x128xf32> to vector<1x1x128xf32>
    tpu.vector_store %arg5[%c0_111, %c1_112, %c0_113], %98 {strides = array<i32>} : memref<1x8x128xf32, #tpu.memory_space<vmem>>, vector<1x1x128xf32>,
    return
  }
  func.func @transform_0(%arg0: i32, %arg1: i32) -> (i32, i32, i32, i32) {
    %c0_i32 = arith.constant 0 : i32
    %c0_i32_0 = arith.constant 0 : i32
    %c0_i32_1 = arith.constant 0 : i32
    %c0_i32_2 = arith.constant 0 : i32
    return %arg0, %c0_i32, %c0_i32_0, %c0_i32_1 : i32, i32, i32, i32
  }
  func.func @transform_1(%arg0: i32, %arg1: i32) -> (i32, i32, i32) {
    %c0_i32 = arith.constant 0 : i32
    %c0_i32_0 = arith.constant 0 : i32
    %c0_i32_1 = arith.constant 0 : i32
    return %c0_i32, %c0_i32_0, %arg1 : i32, i32, i32
  }
  func.func @transform_2(%arg0: i32, %arg1: i32) -> (i32, i32, i32) {
    %c0_i32 = arith.constant 0 : i32
    %c0_i32_0 = arith.constant 0 : i32
    return %arg0, %c0_i32, %arg1 : i32, i32, i32
  }
  func.func @transform_3(%arg0: i32, %arg1: i32) -> (i32, i32, i32) {
    %c0_i32 = arith.constant 0 : i32
    %c0_i32_0 = arith.constant 0 : i32
    return %arg0, %c0_i32, %arg1 : i32, i32, i32
  }
}

module attributes {stable_mosaic.version = 11 : i64} {
  func.func @kernel(%arg0: i32, %arg1: i32, %arg2: memref<512x128xbf16, #tpu.memory_space<vmem>>, %arg3: memref<128x128xbf16, #tpu.memory_space<vmem>>, %arg4: memref<512x128xbf16, #tpu.memory_space<vmem>>, %arg5: memref<1x8x128xf32, #tpu.memory_space<vmem>>) attributes {dimension_semantics = [#tpu.dimension_semantics<parallel>, #tpu.dimension_semantics<parallel>], iteration_bounds = array<i64: 1, 1>, scalar_prefetch = 0 : i64, scratch_operands = 0 : i64, tpu.core_type = #tpu.core_type<tc>, window_params = [{transform_indices = @transform_0, window_bounds = array<i64: 512, 128>}, {transform_indices = @transform_1, window_bounds = array<i64: 128, 128>}, {transform_indices = @transform_2, window_bounds = array<i64: 512, 128>}, {transform_indices = @transform_3, window_bounds = array<i64: 1, 8, 128>}]} {
    %c0 = arith.constant 0 : index
    %c0_0 = arith.constant 0 : index
    %0 = vector.load %arg2[%c0, %c0_0] : memref<512x128xbf16, #tpu.memory_space<vmem>>, vector<512x128xbf16>
    %c0_1 = arith.constant 0 : index
    %c0_2 = arith.constant 0 : index
    %1 = vector.load %arg3[%c0_1, %c0_2] : memref<128x128xbf16, #tpu.memory_space<vmem>>, vector<128x128xbf16>
    %cst = arith.constant dense<0.000000e+00> : vector<512x128xf32>
    %2 = tpu.matmul %0, %1, %cst {dimension_numbers = #tpu.dot_dimension_numbers<[1], [0], [0], [1], [0, 0, 1, 1], [], []>} : vector<512x128xbf16>, vector<128x128xbf16>, vector<512x128xf32> -> vector<512x128xf32>
    %3 = arith.truncf %2 : vector<512x128xf32> to vector<512x128xbf16>
    %c0_3 = arith.constant 0 : index
    %c0_4 = arith.constant 0 : index
    %4 = vector.load %arg4[%c0_3, %c0_4] : memref<512x128xbf16, #tpu.memory_space<vmem>>, vector<512x128xbf16>
    tpu.vector_store %arg4[%c0_3, %c0_4], %3 {strides = array<i32>} : memref<512x128xbf16, #tpu.memory_space<vmem>>, vector<512x128xbf16>,
    %cst_5 = arith.constant dense<0.000000e+00> : vector<128xf32>
    %5 = vector.multi_reduction <add>, %2, %cst_5 [0] : vector<512x128xf32> to vector<128xf32>
    %6 = vector.shape_cast %5 : vector<128xf32> to vector<1x128xf32>
    %c0_6 = arith.constant 0 : index
    %c0_7 = arith.constant 0 : index
    %c0_8 = arith.constant 0 : index
    %7 = vector.load %arg5[%c0_6, %c0_7, %c0_8] : memref<1x8x128xf32, #tpu.memory_space<vmem>>, vector<1x1x128xf32>
    %8 = vector.shape_cast %7 : vector<1x1x128xf32> to vector<1x128xf32>
    %9 = vector.shape_cast %6 : vector<1x128xf32> to vector<1x1x128xf32>
    tpu.vector_store %arg5[%c0_6, %c0_7, %c0_8], %9 {strides = array<i32>} : memref<1x8x128xf32, #tpu.memory_space<vmem>>, vector<1x1x128xf32>,
    %10 = arith.mulf %2, %2 : vector<512x128xf32>
    %cst_9 = arith.constant dense<0.000000e+00> : vector<128xf32>
    %11 = vector.multi_reduction <add>, %10, %cst_9 [0] : vector<512x128xf32> to vector<128xf32>
    %12 = vector.shape_cast %11 : vector<128xf32> to vector<1x128xf32>
    %c0_10 = arith.constant 0 : index
    %c1 = arith.constant 1 : index
    %c0_11 = arith.constant 0 : index
    %13 = vector.load %arg5[%c0_10, %c1, %c0_11] : memref<1x8x128xf32, #tpu.memory_space<vmem>>, vector<1x1x128xf32>
    %14 = vector.shape_cast %13 : vector<1x1x128xf32> to vector<1x128xf32>
    %15 = vector.shape_cast %12 : vector<1x128xf32> to vector<1x1x128xf32>
    tpu.vector_store %arg5[%c0_10, %c1, %c0_11], %15 {strides = array<i32>} : memref<1x8x128xf32, #tpu.memory_space<vmem>>, vector<1x1x128xf32>,
    return
  }
  func.func @transform_0(%arg0: i32, %arg1: i32) -> (i32, i32) {
    %c0_i32 = arith.constant 0 : i32
    %c0_i32_0 = arith.constant 0 : i32
    return %arg0, %c0_i32 : i32, i32
  }
  func.func @transform_1(%arg0: i32, %arg1: i32) -> (i32, i32) {
    %c0_i32 = arith.constant 0 : i32
    %c0_i32_0 = arith.constant 0 : i32
    return %c0_i32, %arg1 : i32, i32
  }
  func.func @transform_2(%arg0: i32, %arg1: i32) -> (i32, i32) {
    %c0_i32 = arith.constant 0 : i32
    return %arg0, %arg1 : i32, i32
  }
  func.func @transform_3(%arg0: i32, %arg1: i32) -> (i32, i32, i32) {
    %c0_i32 = arith.constant 0 : i32
    %c0_i32_0 = arith.constant 0 : i32
    return %arg0, %c0_i32, %arg1 : i32, i32, i32
  }
}

module attributes {stable_mosaic.version = 11 : i64} {
  func.func @_bn_scaledres_relu_kernel(%arg0: i32, %arg1: memref<512x128xbf16, #tpu.memory_space<vmem>>, %arg2: memref<1x128xf32, #tpu.memory_space<vmem>>, %arg3: memref<1x128xf32, #tpu.memory_space<vmem>>, %arg4: memref<512x128xbf16, #tpu.memory_space<vmem>>, %arg5: memref<1x128xf32, #tpu.memory_space<vmem>>, %arg6: memref<1x128xf32, #tpu.memory_space<vmem>>, %arg7: memref<512x128xf32, #tpu.memory_space<vmem>>) attributes {dimension_semantics = [#tpu.dimension_semantics<parallel>], iteration_bounds = array<i64: 1>, scalar_prefetch = 0 : i64, scratch_operands = 0 : i64, tpu.core_type = #tpu.core_type<tc>, window_params = [{transform_indices = @transform_0, window_bounds = array<i64: 512, 128>}, {pipeline_mode = #tpu.pipeline_mode<synchronous>, transform_indices = @transform_1, window_bounds = array<i64: 1, 128>}, {pipeline_mode = #tpu.pipeline_mode<synchronous>, transform_indices = @transform_2, window_bounds = array<i64: 1, 128>}, {transform_indices = @transform_3, window_bounds = array<i64: 512, 128>}, {pipeline_mode = #tpu.pipeline_mode<synchronous>, transform_indices = @transform_4, window_bounds = array<i64: 1, 128>}, {pipeline_mode = #tpu.pipeline_mode<synchronous>, transform_indices = @transform_5, window_bounds = array<i64: 1, 128>}, {transform_indices = @transform_6, window_bounds = array<i64: 512, 128>}]} {
    %c0 = arith.constant 0 : index
    %c0_0 = arith.constant 0 : index
    %0 = vector.load %arg1[%c0, %c0_0] : memref<512x128xbf16, #tpu.memory_space<vmem>>, vector<512x128xbf16>
    %1 = arith.extf %0 : vector<512x128xbf16> to vector<512x128xf32>
    %c0_1 = arith.constant 0 : index
    %c0_2 = arith.constant 0 : index
    %2 = vector.load %arg2[%c0_1, %c0_2] : memref<1x128xf32, #tpu.memory_space<vmem>>, vector<1x128xf32>
    %3 = vector.broadcast %2 : vector<1x128xf32> to vector<512x128xf32>
    %4 = arith.mulf %1, %3 : vector<512x128xf32>
    %c0_3 = arith.constant 0 : index
    %c0_4 = arith.constant 0 : index
    %5 = vector.load %arg3[%c0_3, %c0_4] : memref<1x128xf32, #tpu.memory_space<vmem>>, vector<1x128xf32>
    %6 = vector.broadcast %5 : vector<1x128xf32> to vector<512x128xf32>
    %7 = arith.addf %4, %6 : vector<512x128xf32>
    %c0_5 = arith.constant 0 : index
    %c0_6 = arith.constant 0 : index
    %8 = vector.load %arg4[%c0_5, %c0_6] : memref<512x128xbf16, #tpu.memory_space<vmem>>, vector<512x128xbf16>
    %9 = arith.extf %8 : vector<512x128xbf16> to vector<512x128xf32>
    %c0_7 = arith.constant 0 : index
    %c0_8 = arith.constant 0 : index
    %10 = vector.load %arg5[%c0_7, %c0_8] : memref<1x128xf32, #tpu.memory_space<vmem>>, vector<1x128xf32>
    %11 = vector.broadcast %10 : vector<1x128xf32> to vector<512x128xf32>
    %12 = arith.mulf %9, %11 : vector<512x128xf32>
    %13 = arith.addf %7, %12 : vector<512x128xf32>
    %c0_9 = arith.constant 0 : index
    %c0_10 = arith.constant 0 : index
    %14 = vector.load %arg6[%c0_9, %c0_10] : memref<1x128xf32, #tpu.memory_space<vmem>>, vector<1x128xf32>
    %15 = vector.broadcast %14 : vector<1x128xf32> to vector<512x128xf32>
    %16 = arith.addf %13, %15 : vector<512x128xf32>
    %cst = arith.constant 0.000000e+00 : f32
    %17 = vector.broadcast %cst : f32 to vector<512x128xf32>
    %18 = arith.maximumf %16, %17 : vector<512x128xf32>
    %c0_11 = arith.constant 0 : index
    %c0_12 = arith.constant 0 : index
    %19 = vector.load %arg7[%c0_11, %c0_12] : memref<512x128xf32, #tpu.memory_space<vmem>>, vector<512x128xf32>
    tpu.vector_store %arg7[%c0_11, %c0_12], %18 {strides = array<i32>} : memref<512x128xf32, #tpu.memory_space<vmem>>, vector<512x128xf32>,
    return
  }
  func.func @transform_0(%arg0: i32) -> (i32, i32) {
    %c0_i32 = arith.constant 0 : i32
    %c0_i32_0 = arith.constant 0 : i32
    return %arg0, %c0_i32 : i32, i32
  }
  func.func @transform_1(%arg0: i32) -> (i32, i32) {
    %c0_i32 = arith.constant 0 : i32
    %c0_i32_0 = arith.constant 0 : i32
    %c0_i32_1 = arith.constant 0 : i32
    return %c0_i32, %c0_i32_0 : i32, i32
  }
  func.func @transform_2(%arg0: i32) -> (i32, i32) {
    %c0_i32 = arith.constant 0 : i32
    %c0_i32_0 = arith.constant 0 : i32
    %c0_i32_1 = arith.constant 0 : i32
    return %c0_i32, %c0_i32_0 : i32, i32
  }
  func.func @transform_3(%arg0: i32) -> (i32, i32) {
    %c0_i32 = arith.constant 0 : i32
    %c0_i32_0 = arith.constant 0 : i32
    return %arg0, %c0_i32 : i32, i32
  }
  func.func @transform_4(%arg0: i32) -> (i32, i32) {
    %c0_i32 = arith.constant 0 : i32
    %c0_i32_0 = arith.constant 0 : i32
    %c0_i32_1 = arith.constant 0 : i32
    return %c0_i32, %c0_i32_0 : i32, i32
  }
  func.func @transform_5(%arg0: i32) -> (i32, i32) {
    %c0_i32 = arith.constant 0 : i32
    %c0_i32_0 = arith.constant 0 : i32
    %c0_i32_1 = arith.constant 0 : i32
    return %c0_i32, %c0_i32_0 : i32, i32
  }
  func.func @transform_6(%arg0: i32) -> (i32, i32) {
    %c0_i32 = arith.constant 0 : i32
    %c0_i32_0 = arith.constant 0 : i32
    return %arg0, %c0_i32 : i32, i32
  }
}

</mosaic_0001>

<llo_original>
// kernel: basic_block_forward.6
$region0: #{basic_block_forward.6}
  #allocation0 [shape = 'u32[]', space=smem, size = 0x4, offset = 0x4, fixed_abs, tag = 'smem constant byte address 0x4 - core index']
  #allocation1 [shape = 'u32[144,128]{1,0:T(1,128)}', space=vmem, size = 0x12000, scoped, tag = 'internal scratch']
  %s0 = inlined_call_operand.vmem [shape: bf16[512,128], index: 0, kind: input, shape index: {}]
  %s1 = inlined_call_operand.vmem [shape: f32[1,128], index: 1, kind: input, shape index: {}]
  %s2 = inlined_call_operand.vmem [shape: f32[1,128], index: 2, kind: input, shape index: {}]
  %s3 = inlined_call_operand.vmem [shape: bf16[512,128], index: 3, kind: output, shape index: {}]
  %s4 = sld [smem:[#allocation0]]
  $region22: #{basic_block_forward.6} parent=0
    _
  %s6 = ssub.s32 1, %s4
  %s7 = scalar_select 0, %s6, %s4
  // Predicated region
  $region2: #{basic_block_forward.6} parent=0 // pred_check
    _
  $region3: #{basic_block_forward.6} parent=0 // pred_check_branch
    %9 = sbr.rel (0) target = $region5
  $region4: #{basic_block_forward.6} parent=0 // pred_region
    _
  $region5: #{basic_block_forward.6} parent=0 // pred_fallthru
    _
  // Predicated region
  $region6: #{basic_block_forward.6} parent=0 // pred_check
    _
  $region7: #{basic_block_forward.6} parent=0 // pred_check_branch
    %11 = sbr.rel (0) target = $region9
  $region8: #{basic_block_forward.6} parent=0 // pred_region
    _
  $region9: #{basic_block_forward.6} parent=0 // pred_fallthru
    _
  // Predicated region
  $region10: #{basic_block_forward.6} parent=0 // pred_check
    _
  $region11: #{basic_block_forward.6} parent=0 // pred_check_branch
    %13 = sbr.rel (0) target = $region13
  $region12: #{basic_block_forward.6} parent=0 // pred_region
    _
  $region13: #{basic_block_forward.6} parent=0 // pred_fallthru
    _
  %v14 = vld [vmem:[%s0] sm:$0xf]
  %v15 = vld [vmem:[%s0 + $0x4] sm:$0xf]
  %v16 = vld [vmem:[%s0 + $0x8] sm:$0xf]
  %v17 = vld [vmem:[%s0 + $0xc] sm:$0xf]
  %v18 = vld [vmem:[%s0 + $0x10] sm:$0xf]
  %v19 = vld [vmem:[%s0 + $0x14] sm:$0xf]
  %v20 = vld [vmem:[%s0 + $0x18] sm:$0xf]
  %v21 = vld [vmem:[%s0 + $0x1c] sm:$0xf]
  %v22 = vld [vmem:[%s0 + $0x20] sm:$0xf]
  %v23 = vld [vmem:[%s0 + $0x24] sm:$0xf]
  %v24 = vld [vmem:[%s0 + $0x28] sm:$0xf]
  %v25 = vld [vmem:[%s0 + $0x2c] sm:$0xf]
  %v26 = vld [vmem:[%s0 + $0x30] sm:$0xf]
  %v27 = vld [vmem:[%s0 + $0x34] sm:$0xf]
  %v28 = vld [vmem:[%s0 + $0x38] sm:$0xf]
  %v29 = vld [vmem:[%s0 + $0x3c] sm:$0xf]
  %v30 = vld [vmem:[%s0 + $0x40] sm:$0xf]
  %v31 = vld [vmem:[%s0 + $0x44] sm:$0xf]
  %v32 = vld [vmem:[%s0 + $0x48] sm:$0xf]
  %v33 = vld [vmem:[%s0 + $0x4c] sm:$0xf]
  %v34 = vld [vmem:[%s0 + $0x50] sm:$0xf]
  %v35 = vld [vmem:[%s0 + $0x54] sm:$0xf]
  %v36 = vld [vmem:[%s0 + $0x58] sm:$0xf]
  %v37 = vld [vmem:[%s0 + $0x5c] sm:$0xf]
  %v38 = vld [vmem:[%s0 + $0x60] sm:$0xf]
  %v39 = vld [vmem:[%s0 + $0x64] sm:$0xf]
  %v40 = vld [vmem:[%s0 + $0x68] sm:$0xf]
  %v41 = vld [vmem:[%s0 + $0x6c] sm:$0xf]
  %v42 = vld [vmem:[%s0 + $0x70] sm:$0xf]
  %v43 = vld [vmem:[%s0 + $0x74] sm:$0xf]
  %v44 = vld [vmem:[%s0 + $0x78] sm:$0xf]
  %v45 = vld [vmem:[%s0 + $0x7c] sm:$0xf]
  %v46 = vld [vmem:[%s0 + $0x80] sm:$0xf]
  %v47 = vld [vmem:[%s0 + $0x84] sm:$0xf]
  %v48 = vld [vmem:[%s0 + $0x88] sm:$0xf]
  %v49 = vld [vmem:[%s0 + $0x8c] sm:$0xf]
  %v50 = vld [vmem:[%s0 + $0x90] sm:$0xf]
  %v51 = vld [vmem:[%s0 + $0x94] sm:$0xf]
  %v52 = vld [vmem:[%s0 + $0x98] sm:$0xf]
  %v53 = vld [vmem:[%s0 + $0x9c] sm:$0xf]
  %v54 = vld [vmem:[%s0 + $0xa0] sm:$0xf]
  %v55 = vld [vmem:[%s0 + $0xa4] sm:$0xf]
  %v56 = vld [vmem:[%s0 + $0xa8] sm:$0xf]
  %v57 = vld [vmem:[%s0 + $0xac] sm:$0xf]
  %v58 = vld [vmem:[%s0 + $0xb0] sm:$0xf]
  %v59 = vld [vmem:[%s0 + $0xb4] sm:$0xf]
  %v60 = vld [vmem:[%s0 + $0xb8] sm:$0xf]
  %v61 = vld [vmem:[%s0 + $0xbc] sm:$0xf]
  %v62 = vld [vmem:[%s0 + $0xc0] sm:$0xf]
  %v63 = vld [vmem:[%s0 + $0xc4] sm:$0xf]
  %v64 = vld [vmem:[%s0 + $0xc8] sm:$0xf]
  %v65 = vld [vmem:[%s0 + $0xcc] sm:$0xf]
  %v66 = vld [vmem:[%s0 + $0xd0] sm:$0xf]
  %v67 = vld [vmem:[%s0 + $0xd4] sm:$0xf]
  %v68 = vld [vmem:[%s0 + $0xd8] sm:$0xf]
  %v69 = vld [vmem:[%s0 + $0xdc] sm:$0xf]
  %v70 = vld [vmem:[%s0 + $0xe0] sm:$0xf]
  %v71 = vld [vmem:[%s0 + $0xe4] sm:$0xf]
  %v72 = vld [vmem:[%s0 + $0xe8] sm:$0xf]
  %v73 = vld [vmem:[%s0 + $0xec] sm:$0xf]
  %v74 = vld [vmem:[%s0 + $0xf0] sm:$0xf]
  %v75 = vld [vmem:[%s0 + $0xf4] sm:$0xf]
  %v76 = vld [vmem:[%s0 + $0xf8] sm:$0xf]
  %v77 = vld [vmem:[%s0 + $0xfc] sm:$0xf]
  %v78 = vunpack.c.l.bf16 %v14
  %v79 = vunpack.c.l.bf16 %v15
  %v80 = vunpack.c.l.bf16 %v16
  %v81 = vunpack.c.l.bf16 %v17
  %v82 = vunpack.c.l.bf16 %v18
  %v83 = vunpack.c.l.bf16 %v19
  %v84 = vunpack.c.l.bf16 %v20
  %v85 = vunpack.c.l.bf16 %v21
  %v86 = vunpack.c.l.bf16 %v22
  %v87 = vunpack.c.l.bf16 %v23
  %v88 = vunpack.c.l.bf16 %v24
  %v89 = vunpack.c.l.bf16 %v25
  %v90 = vunpack.c.l.bf16 %v26
  %v91 = vunpack.c.l.bf16 %v27
  %v92 = vunpack.c.l.bf16 %v28
  %v93 = vunpack.c.l.bf16 %v29
  %v94 = vunpack.c.l.bf16 %v30
  %v95 = vunpack.c.l.bf16 %v31
  %v96 = vunpack.c.l.bf16 %v32
  %v97 = vunpack.c.l.bf16 %v33
  %v98 = vunpack.c.l.bf16 %v34
  %v99 = vunpack.c.l.bf16 %v35
  %v100 = vunpack.c.l.bf16 %v36
  %v101 = vunpack.c.l.bf16 %v37
  %v102 = vunpack.c.l.bf16 %v38
  %v103 = vunpack.c.l.bf16 %v39
  %v104 = vunpack.c.l.bf16 %v40
  %v105 = vunpack.c.l.bf16 %v41
  %v106 = vunpack.c.l.bf16 %v42
  %v107 = vunpack.c.l.bf16 %v43
  %v108 = vunpack.c.l.bf16 %v44
  %v109 = vunpack.c.l.bf16 %v45
  %v110 = vunpack.c.l.bf16 %v46
  %v111 = vunpack.c.l.bf16 %v47
  %v112 = vunpack.c.l.bf16 %v48
  %v113 = vunpack.c.l.bf16 %v49
  %v114 = vunpack.c.l.bf16 %v50
  %v115 = vunpack.c.l.bf16 %v51
  %v116 = vunpack.c.l.bf16 %v52
  %v117 = vunpack.c.l.bf16 %v53
  %v118 = vunpack.c.l.bf16 %v54
  %v119 = vunpack.c.l.bf16 %v55
  %v120 = vunpack.c.l.bf16 %v56
  %v121 = vunpack.c.l.bf16 %v57
  %v122 = vunpack.c.l.bf16 %v58
  %v123 = vunpack.c.l.bf16 %v59
  %v124 = vunpack.c.l.bf16 %v60
  %v125 = vunpack.c.l.bf16 %v61
  %v126 = vunpack.c.l.bf16 %v62
  %v127 = vunpack.c.l.bf16 %v63
  %v128 = vunpack.c.l.bf16 %v64
  %v129 = vunpack.c.l.bf16 %v65
  %v130 = vunpack.c.l.bf16 %v66
  %v131 = vunpack.c.l.bf16 %v67
  %v132 = vunpack.c.l.bf16 %v68
  %v133 = vunpack.c.l.bf16 %v69
  %v134 = vunpack.c.l.bf16 %v70
  %v135 = vunpack.c.l.bf16 %v71
  %v136 = vunpack.c.l.bf16 %v72
  %v137 = vunpack.c.l.bf16 %v73
  %v138 = vunpack.c.l.bf16 %v74
  %v139 = vunpack.c.l.bf16 %v75
  %v140 = vunpack.c.l.bf16 %v76
  %v141 = vunpack.c.l.bf16 %v77
  %v142 = vld [vmem:[%s1] sm:$0x1]
  %v144 = vlaneseq
  %v145 = vshrl.u32 %v144, 7
  %v146 = vsub.s32 0, %v145
  %v147 = vrot.slane %v142, %v146
  %v149 = vmul.f32 %v78, %v147
  %v150 = vmul.f32 %v79, %v147
  %v151 = vmul.f32 %v80, %v147
  %v152 = vmul.f32 %v81, %v147
  %v153 = vmul.f32 %v82, %v147
  %v154 = vmul.f32 %v83, %v147
  %v155 = vmul.f32 %v84, %v147
  %v156 = vmul.f32 %v85, %v147
  %v157 = vmul.f32 %v86, %v147
  %v158 = vmul.f32 %v87, %v147
  %v159 = vmul.f32 %v88, %v147
  %v160 = vmul.f32 %v89, %v147
  %v161 = vmul.f32 %v90, %v147
  %v162 = vmul.f32 %v91, %v147
  %v163 = vmul.f32 %v92, %v147
  %v164 = vmul.f32 %v93, %v147
  %v165 = vmul.f32 %v94, %v147
  %v166 = vmul.f32 %v95, %v147
  %v167 = vmul.f32 %v96, %v147
  %v168 = vmul.f32 %v97, %v147
  %v169 = vmul.f32 %v98, %v147
  %v170 = vmul.f32 %v99, %v147
  %v171 = vmul.f32 %v100, %v147
  %v172 = vmul.f32 %v101, %v147
  %v173 = vmul.f32 %v102, %v147
  %v174 = vmul.f32 %v103, %v147
  %v175 = vmul.f32 %v104, %v147
  %v176 = vmul.f32 %v105, %v147
  %v177 = vmul.f32 %v106, %v147
  %v178 = vmul.f32 %v107, %v147
  %v179 = vmul.f32 %v108, %v147
  %v180 = vmul.f32 %v109, %v147
  %v181 = vmul.f32 %v110, %v147
  %v182 = vmul.f32 %v111, %v147
  %v183 = vmul.f32 %v112, %v147
  %v184 = vmul.f32 %v113, %v147
  %v185 = vmul.f32 %v114, %v147
  %v186 = vmul.f32 %v115, %v147
  %v187 = vmul.f32 %v116, %v147
  %v188 = vmul.f32 %v117, %v147
  %v189 = vmul.f32 %v118, %v147
  %v190 = vmul.f32 %v119, %v147
  %v191 = vmul.f32 %v120, %v147
  %v192 = vmul.f32 %v121, %v147
  %v193 = vmul.f32 %v122, %v147
  %v194 = vmul.f32 %v123, %v147
  %v195 = vmul.f32 %v124, %v147
  %v196 = vmul.f32 %v125, %v147
  %v197 = vmul.f32 %v126, %v147
  %v198 = vmul.f32 %v127, %v147
  %v199 = vmul.f32 %v128, %v147
  %v200 = vmul.f32 %v129, %v147
  %v201 = vmul.f32 %v130, %v147
  %v202 = vmul.f32 %v131, %v147
  %v203 = vmul.f32 %v132, %v147
  %v204 = vmul.f32 %v133, %v147
  %v205 = vmul.f32 %v134, %v147
  %v206 = vmul.f32 %v135, %v147
  %v207 = vmul.f32 %v136, %v147
  %v208 = vmul.f32 %v137, %v147
  %v209 = vmul.f32 %v138, %v147
  %v210 = vmul.f32 %v139, %v147
  %v211 = vmul.f32 %v140, %v147
  %v212 = vmul.f32 %v141, %v147
  %v213 = vld [vmem:[%s2] sm:$0x1]
  %v215 = vlaneseq
  %v216 = vshrl.u32 %v215, 7
  %v217 = vsub.s32 0, %v216
  %v218 = vrot.slane %v213, %v217
  %v220 = vadd.f32 %v149, %v218
  %v221 = vadd.f32 %v150, %v218
  %v222 = vadd.f32 %v151, %v218
  %v223 = vadd.f32 %v152, %v218
  %v224 = vadd.f32 %v153, %v218
  %v225 = vadd.f32 %v154, %v218
  %v226 = vadd.f32 %v155, %v218
  %v227 = vadd.f32 %v156, %v218
  %v228 = vadd.f32 %v157, %v218
  %v229 = vadd.f32 %v158, %v218
  %v230 = vadd.f32 %v159, %v218
  %v231 = vadd.f32 %v160, %v218
  %v232 = vadd.f32 %v161, %v218
  %v233 = vadd.f32 %v162, %v218
  %v234 = vadd.f32 %v163, %v218
  %v235 = vadd.f32 %v164, %v218
  %v236 = vadd.f32 %v165, %v218
  %v237 = vadd.f32 %v166, %v218
  %v238 = vadd.f32 %v167, %v218
  %v239 = vadd.f32 %v168, %v218
  %v240 = vadd.f32 %v169, %v218
  %v241 = vadd.f32 %v170, %v218
  %v242 = vadd.f32 %v171, %v218
  %v243 = vadd.f32 %v172, %v218
  %v244 = vadd.f32 %v173, %v218
  %v245 = vadd.f32 %v174, %v218
  %v246 = vadd.f32 %v175, %v218
  %v247 = vadd.f32 %v176, %v218
  %v248 = vadd.f32 %v177, %v218
  %v249 = vadd.f32 %v178, %v218
  %v250 = vadd.f32 %v179, %v218
  %v251 = vadd.f32 %v180, %v218
  %v252 = vadd.f32 %v181, %v218
  %v253 = vadd.f32 %v182, %v218
  %v254 = vadd.f32 %v183, %v218
  %v255 = vadd.f32 %v184, %v218
  %v256 = vadd.f32 %v185, %v218
  %v257 = vadd.f32 %v186, %v218
  %v258 = vadd.f32 %v187, %v218
  %v259 = vadd.f32 %v188, %v218
  %v260 = vadd.f32 %v189, %v218
  %v261 = vadd.f32 %v190, %v218
  %v262 = vadd.f32 %v191, %v218
  %v263 = vadd.f32 %v192, %v218
  %v264 = vadd.f32 %v193, %v218
  %v265 = vadd.f32 %v194, %v218
  %v266 = vadd.f32 %v195, %v218
  %v267 = vadd.f32 %v196, %v218
  %v268 = vadd.f32 %v197, %v218
  %v269 = vadd.f32 %v198, %v218
  %v270 = vadd.f32 %v199, %v218
  %v271 = vadd.f32 %v200, %v218
  %v272 = vadd.f32 %v201, %v218
  %v273 = vadd.f32 %v202, %v218
  %v274 = vadd.f32 %v203, %v218
  %v275 = vadd.f32 %v204, %v218
  %v276 = vadd.f32 %v205, %v218
  %v277 = vadd.f32 %v206, %v218
  %v278 = vadd.f32 %v207, %v218
  %v279 = vadd.f32 %v208, %v218
  %v280 = vadd.f32 %v209, %v218
  %v281 = vadd.f32 %v210, %v218
  %v282 = vadd.f32 %v211, %v218
  %v283 = vadd.f32 %v212, %v218
  %v284 = vmax.f32 %v220, 0.0
  %v285 = vmax.f32 %v221, 0.0
  %v286 = vmax.f32 %v222, 0.0
  %v287 = vmax.f32 %v223, 0.0
  %v288 = vmax.f32 %v224, 0.0
  %v289 = vmax.f32 %v225, 0.0
  %v290 = vmax.f32 %v226, 0.0
  %v291 = vmax.f32 %v227, 0.0
  %v292 = vmax.f32 %v228, 0.0
  %v293 = vmax.f32 %v229, 0.0
  %v294 = vmax.f32 %v230, 0.0
  %v295 = vmax.f32 %v231, 0.0
  %v296 = vmax.f32 %v232, 0.0
  %v297 = vmax.f32 %v233, 0.0
  %v298 = vmax.f32 %v234, 0.0
  %v299 = vmax.f32 %v235, 0.0
  %v300 = vmax.f32 %v236, 0.0
  %v301 = vmax.f32 %v237, 0.0
  %v302 = vmax.f32 %v238, 0.0
  %v303 = vmax.f32 %v239, 0.0
  %v304 = vmax.f32 %v240, 0.0
  %v305 = vmax.f32 %v241, 0.0
  %v306 = vmax.f32 %v242, 0.0
  %v307 = vmax.f32 %v243, 0.0
  %v308 = vmax.f32 %v244, 0.0
  %v309 = vmax.f32 %v245, 0.0
  %v310 = vmax.f32 %v246, 0.0
  %v311 = vmax.f32 %v247, 0.0
  %v312 = vmax.f32 %v248, 0.0
  %v313 = vmax.f32 %v249, 0.0
  %v314 = vmax.f32 %v250, 0.0
  %v315 = vmax.f32 %v251, 0.0
  %v316 = vmax.f32 %v252, 0.0
  %v317 = vmax.f32 %v253, 0.0
  %v318 = vmax.f32 %v254, 0.0
  %v319 = vmax.f32 %v255, 0.0
  %v320 = vmax.f32 %v256, 0.0
  %v321 = vmax.f32 %v257, 0.0
  %v322 = vmax.f32 %v258, 0.0
  %v323 = vmax.f32 %v259, 0.0
  %v324 = vmax.f32 %v260, 0.0
  %v325 = vmax.f32 %v261, 0.0
  %v326 = vmax.f32 %v262, 0.0
  %v327 = vmax.f32 %v263, 0.0
  %v328 = vmax.f32 %v264, 0.0
  %v329 = vmax.f32 %v265, 0.0
  %v330 = vmax.f32 %v266, 0.0
  %v331 = vmax.f32 %v267, 0.0
  %v332 = vmax.f32 %v268, 0.0
  %v333 = vmax.f32 %v269, 0.0
  %v334 = vmax.f32 %v270, 0.0
  %v335 = vmax.f32 %v271, 0.0
  %v336 = vmax.f32 %v272, 0.0
  %v337 = vmax.f32 %v273, 0.0
  %v338 = vmax.f32 %v274, 0.0
  %v339 = vmax.f32 %v275, 0.0
  %v340 = vmax.f32 %v276, 0.0
  %v341 = vmax.f32 %v277, 0.0
  %v342 = vmax.f32 %v278, 0.0
  %v343 = vmax.f32 %v279, 0.0
  %v344 = vmax.f32 %v280, 0.0
  %v345 = vmax.f32 %v281, 0.0
  %v346 = vmax.f32 %v282, 0.0
  %v347 = vmax.f32 %v283, 0.0
  %v348 = vpack.c.bf16 %v285, %v284
  %v349 = vpack.c.bf16 %v287, %v286
  %v350 = vpack.c.bf16 %v289, %v288
  %v351 = vpack.c.bf16 %v291, %v290
  %v352 = vpack.c.bf16 %v293, %v292
  %v353 = vpack.c.bf16 %v295, %v294
  %v354 = vpack.c.bf16 %v297, %v296
  %v355 = vpack.c.bf16 %v299, %v298
  %v356 = vpack.c.bf16 %v301, %v300
  %v357 = vpack.c.bf16 %v303, %v302
  %v358 = vpack.c.bf16 %v305, %v304
  %v359 = vpack.c.bf16 %v307, %v306
  %v360 = vpack.c.bf16 %v309, %v308
  %v361 = vpack.c.bf16 %v311, %v310
  %v362 = vpack.c.bf16 %v313, %v312
  %v363 = vpack.c.bf16 %v315, %v314
  %v364 = vpack.c.bf16 %v317, %v316
  %v365 = vpack.c.bf16 %v319, %v318
  %v366 = vpack.c.bf16 %v321, %v320
  %v367 = vpack.c.bf16 %v323, %v322
  %v368 = vpack.c.bf16 %v325, %v324
  %v369 = vpack.c.bf16 %v327, %v326
  %v370 = vpack.c.bf16 %v329, %v328
  %v371 = vpack.c.bf16 %v331, %v330
  %v372 = vpack.c.bf16 %v333, %v332
  %v373 = vpack.c.bf16 %v335, %v334
  %v374 = vpack.c.bf16 %v337, %v336
  %v375 = vpack.c.bf16 %v339, %v338
  %v376 = vpack.c.bf16 %v341, %v340
  %v377 = vpack.c.bf16 %v343, %v342
  %v378 = vpack.c.bf16 %v345, %v344
  %v379 = vpack.c.bf16 %v347, %v346
  %v412 = vunpack.c.l.b16 %v348
  %v413 = vunpack.c.h.b16 %v348
  %v414 = vunpack.c.l.b16 %v349
  %v415 = vunpack.c.h.b16 %v349
  %v416 = vunpack.c.l.b16 %v350
  %v417 = vunpack.c.h.b16 %v350
  %v418 = vunpack.c.l.b16 %v351
  %v419 = vunpack.c.h.b16 %v351
  %v420 = vunpack.c.l.b16 %v352
  %v421 = vunpack.c.h.b16 %v352
  %v422 = vunpack.c.l.b16 %v353
  %v423 = vunpack.c.h.b16 %v353
  %v424 = vunpack.c.l.b16 %v354
  %v425 = vunpack.c.h.b16 %v354
  %v426 = vunpack.c.l.b16 %v355
  %v427 = vunpack.c.h.b16 %v355
  %v428 = vunpack.c.l.b16 %v356
  %v429 = vunpack.c.h.b16 %v356
  %v430 = vunpack.c.l.b16 %v357
  %v431 = vunpack.c.h.b16 %v357
  %v432 = vunpack.c.l.b16 %v358
  %v433 = vunpack.c.h.b16 %v358
  %v434 = vunpack.c.l.b16 %v359
  %v435 = vunpack.c.h.b16 %v359
  %v436 = vunpack.c.l.b16 %v360
  %v437 = vunpack.c.h.b16 %v360
  %v438 = vunpack.c.l.b16 %v361
  %v439 = vunpack.c.h.b16 %v361
  %v440 = vunpack.c.l.b16 %v362
  %v441 = vunpack.c.h.b16 %v362
  %v442 = vunpack.c.l.b16 %v363
  %v443 = vunpack.c.h.b16 %v363
  %v444 = vunpack.c.l.b16 %v364
  %v445 = vunpack.c.h.b16 %v364
  %v446 = vunpack.c.l.b16 %v365
  %v447 = vunpack.c.h.b16 %v365
  %v448 = vunpack.c.l.b16 %v366
  %v449 = vunpack.c.h.b16 %v366
  %v450 = vunpack.c.l.b16 %v367
  %v451 = vunpack.c.h.b16 %v367
  %v452 = vunpack.c.l.b16 %v368
  %v453 = vunpack.c.h.b16 %v368
  %v454 = vunpack.c.l.b16 %v369
  %v455 = vunpack.c.h.b16 %v369
  %v456 = vunpack.c.l.b16 %v370
  %v457 = vunpack.c.h.b16 %v370
  %v458 = vunpack.c.l.b16 %v371
  %v459 = vunpack.c.h.b16 %v371
  %v460 = vunpack.c.l.b16 %v372
  %v461 = vunpack.c.h.b16 %v372
  %v462 = vunpack.c.l.b16 %v373
  %v463 = vunpack.c.h.b16 %v373
  %v464 = vunpack.c.l.b16 %v374
  %v465 = vunpack.c.h.b16 %v374
  %v466 = vunpack.c.l.b16 %v375
  %v467 = vunpack.c.h.b16 %v375
  %v468 = vunpack.c.l.b16 %v376
  %v469 = vunpack.c.h.b16 %v376
  %v470 = vunpack.c.l.b16 %v377
  %v471 = vunpack.c.h.b16 %v377
  %v472 = vunpack.c.l.b16 %v378
  %v473 = vunpack.c.h.b16 %v378
  %v474 = vunpack.c.l.b16 %v379
  %v475 = vunpack.c.h.b16 %v379
  %v476 = vpack.c.b16 %v412, %v412
  %v477 = vpack.c.b16 %v413, %v413
  %v478 = vpack.c.b16 %v414, %v414
  %v479 = vpack.c.b16 %v415, %v415
  %v480 = vpack.c.b16 %v416, %v416
  %v481 = vpack.c.b16 %v417, %v417
  %v482 = vpack.c.b16 %v418, %v418
  %v483 = vpack.c.b16 %v419, %v419
  %v484 = vpack.c.b16 %v420, %v420
  %v485 = vpack.c.b16 %v421, %v421
  %v486 = vpack.c.b16 %v422, %v422
  %v487 = vpack.c.b16 %v423, %v423
  %v488 = vpack.c.b16 %v424, %v424
  %v489 = vpack.c.b16 %v425, %v425
  %v490 = vpack.c.b16 %v426, %v426
  %v491 = vpack.c.b16 %v427, %v427
  %v492 = vpack.c.b16 %v428, %v428
  %v493 = vpack.c.b16 %v429, %v429
  %v494 = vpack.c.b16 %v430, %v430
  %v495 = vpack.c.b16 %v431, %v431
  %v496 = vpack.c.b16 %v432, %v432
  %v497 = vpack.c.b16 %v433, %v433
  %v498 = vpack.c.b16 %v434, %v434
  %v499 = vpack.c.b16 %v435, %v435
  %v500 = vpack.c.b16 %v436, %v436
  %v501 = vpack.c.b16 %v437, %v437
  %v502 = vpack.c.b16 %v438, %v438
  %v503 = vpack.c.b16 %v439, %v439
  %v504 = vpack.c.b16 %v440, %v440
  %v505 = vpack.c.b16 %v441, %v441
  %v506 = vpack.c.b16 %v442, %v442
  %v507 = vpack.c.b16 %v443, %v443
  %v508 = vpack.c.b16 %v444, %v444
  %v509 = vpack.c.b16 %v445, %v445
  %v510 = vpack.c.b16 %v446, %v446
  %v511 = vpack.c.b16 %v447, %v447
  %v512 = vpack.c.b16 %v448, %v448
  %v513 = vpack.c.b16 %v449, %v449
  %v514 = vpack.c.b16 %v450, %v450
  %v515 = vpack.c.b16 %v451, %v451
  %v516 = vpack.c.b16 %v452, %v452
  %v517 = vpack.c.b16 %v453, %v453
  %v518 = vpack.c.b16 %v454, %v454
  %v519 = vpack.c.b16 %v455, %v455
  %v520 = vpack.c.b16 %v456, %v456
  %v521 = vpack.c.b16 %v457, %v457
  %v522 = vpack.c.b16 %v458, %v458
  %v523 = vpack.c.b16 %v459, %v459
  %v524 = vpack.c.b16 %v460, %v460
  %v525 = vpack.c.b16 %v461, %v461
  %v526 = vpack.c.b16 %v462, %v462
  %v527 = vpack.c.b16 %v463, %v463
  %v528 = vpack.c.b16 %v464, %v464
  %v529 = vpack.c.b16 %v465, %v465
  %v530 = vpack.c.b16 %v466, %v466
  %v531 = vpack.c.b16 %v467, %v467
  %v532 = vpack.c.b16 %v468, %v468
  %v533 = vpack.c.b16 %v469, %v469
  %v534 = vpack.c.b16 %v470, %v470
  %v535 = vpack.c.b16 %v471, %v471
  %v536 = vpack.c.b16 %v472, %v472
  %v537 = vpack.c.b16 %v473, %v473
  %v538 = vpack.c.b16 %v474, %v474
  %v539 = vpack.c.b16 %v475, %v475
  %604 = vst [vmem:[%s3] sm:$0xf] %v476
  %605 = vst [vmem:[%s3 + $0x4] sm:$0xf] %v477
  %606 = vst [vmem:[%s3 + $0x8] sm:$0xf] %v478
  %607 = vst [vmem:[%s3 + $0xc] sm:$0xf] %v479
  %608 = vst [vmem:[%s3 + $0x10] sm:$0xf] %v480
  %609 = vst [vmem:[%s3 + $0x14] sm:$0xf] %v481
  %610 = vst [vmem:[%s3 + $0x18] sm:$0xf] %v482
  %611 = vst [vmem:[%s3 + $0x1c] sm:$0xf] %v483
  %612 = vst [vmem:[%s3 + $0x20] sm:$0xf] %v484
  %613 = vst [vmem:[%s3 + $0x24] sm:$0xf] %v485
  %614 = vst [vmem:[%s3 + $0x28] sm:$0xf] %v486
  %615 = vst [vmem:[%s3 + $0x2c] sm:$0xf] %v487
  %616 = vst [vmem:[%s3 + $0x30] sm:$0xf] %v488
  %617 = vst [vmem:[%s3 + $0x34] sm:$0xf] %v489
  %618 = vst [vmem:[%s3 + $0x38] sm:$0xf] %v490
  %619 = vst [vmem:[%s3 + $0x3c] sm:$0xf] %v491
  %620 = vst [vmem:[%s3 + $0x40] sm:$0xf] %v492
  %621 = vst [vmem:[%s3 + $0x44] sm:$0xf] %v493
  %622 = vst [vmem:[%s3 + $0x48] sm:$0xf] %v494
  %623 = vst [vmem:[%s3 + $0x4c] sm:$0xf] %v495
  %624 = vst [vmem:[%s3 + $0x50] sm:$0xf] %v496
  %625 = vst [vmem:[%s3 + $0x54] sm:$0xf] %v497
  %626 = vst [vmem:[%s3 + $0x58] sm:$0xf] %v498
  %627 = vst [vmem:[%s3 + $0x5c] sm:$0xf] %v499
  %628 = vst [vmem:[%s3 + $0x60] sm:$0xf] %v500
  %629 = vst [vmem:[%s3 + $0x64] sm:$0xf] %v501
  %630 = vst [vmem:[%s3 + $0x68] sm:$0xf] %v502
  %631 = vst [vmem:[%s3 + $0x6c] sm:$0xf] %v503
  %632 = vst [vmem:[%s3 + $0x70] sm:$0xf] %v504
  %633 = vst [vmem:[%s3 + $0x74] sm:$0xf] %v505
  %634 = vst [vmem:[%s3 + $0x78] sm:$0xf] %v506
  %635 = vst [vmem:[%s3 + $0x7c] sm:$0xf] %v507
  %636 = vst [vmem:[%s3 + $0x80] sm:$0xf] %v508
  %637 = vst [vmem:[%s3 + $0x84] sm:$0xf] %v509
  %638 = vst [vmem:[%s3 + $0x88] sm:$0xf] %v510
  %639 = vst [vmem:[%s3 + $0x8c] sm:$0xf] %v511
  %640 = vst [vmem:[%s3 + $0x90] sm:$0xf] %v512
  %641 = vst [vmem:[%s3 + $0x94] sm:$0xf] %v513
  %642 = vst [vmem:[%s3 + $0x98] sm:$0xf] %v514
  %643 = vst [vmem:[%s3 + $0x9c] sm:$0xf] %v515
  %644 = vst [vmem:[%s3 + $0xa0] sm:$0xf] %v516
  %645 = vst [vmem:[%s3 + $0xa4] sm:$0xf] %v517
  %646 = vst [vmem:[%s3 + $0xa8] sm:$0xf] %v518
  %647 = vst [vmem:[%s3 + $0xac] sm:$0xf] %v519
  %648 = vst [vmem:[%s3 + $0xb0] sm:$0xf] %v520
  %649 = vst [vmem:[%s3 + $0xb4] sm:$0xf] %v521
  %650 = vst [vmem:[%s3 + $0xb8] sm:$0xf] %v522
  %651 = vst [vmem:[%s3 + $0xbc] sm:$0xf] %v523
  %652 = vst [vmem:[%s3 + $0xc0] sm:$0xf] %v524
  %653 = vst [vmem:[%s3 + $0xc4] sm:$0xf] %v525
  %654 = vst [vmem:[%s3 + $0xc8] sm:$0xf] %v526
  %655 = vst [vmem:[%s3 + $0xcc] sm:$0xf] %v527
  %656 = vst [vmem:[%s3 + $0xd0] sm:$0xf] %v528
  %657 = vst [vmem:[%s3 + $0xd4] sm:$0xf] %v529
  %658 = vst [vmem:[%s3 + $0xd8] sm:$0xf] %v530
  %659 = vst [vmem:[%s3 + $0xdc] sm:$0xf] %v531
  %660 = vst [vmem:[%s3 + $0xe0] sm:$0xf] %v532
  %661 = vst [vmem:[%s3 + $0xe4] sm:$0xf] %v533
  %662 = vst [vmem:[%s3 + $0xe8] sm:$0xf] %v534
  %663 = vst [vmem:[%s3 + $0xec] sm:$0xf] %v535
  %664 = vst [vmem:[%s3 + $0xf0] sm:$0xf] %v536
  %665 = vst [vmem:[%s3 + $0xf4] sm:$0xf] %v537
  %666 = vst [vmem:[%s3 + $0xf8] sm:$0xf] %v538
  %667 = vst [vmem:[%s3 + $0xfc] sm:$0xf] %v539
  // Predicated region
  $region14: #{basic_block_forward.6} parent=0 // pred_check
    _
  $region15: #{basic_block_forward.6} parent=0 // pred_check_branch
    %669 = sbr.rel (0) target = $region17
  $region16: #{basic_block_forward.6} parent=0 // pred_region
    _
  $region17: #{basic_block_forward.6} parent=0 // pred_fallthru
    _
  // Predicated region
  $region18: #{basic_block_forward.6} parent=0 // pred_check
    _
  $region19: #{basic_block_forward.6} parent=0 // pred_check_branch
    %671 = sbr.rel (0) target = $region21
  $region20: #{basic_block_forward.6} parent=0 // pred_region
    _
  $region21: #{basic_block_forward.6} parent=0 // pred_fallthru
    _

// kernel: basic_block_forward.9
$region0: #{basic_block_forward.9}
  #allocation0 [shape = 'u32[]', space=smem, size = 0x4, offset = 0x4, fixed_abs, tag = 'smem constant byte address 0x4 - core index']
  #allocation1 [shape = 'u32[144,128]{1,0:T(1,128)}', space=vmem, size = 0x12000, scoped, tag = 'internal scratch']
  %s0 = inlined_call_operand.vmem [shape: bf16[512,128], index: 0, kind: input, shape index: {}]
  %s1 = inlined_call_operand.vmem [shape: f32[1,128], index: 1, kind: input, shape index: {}]
  %s2 = inlined_call_operand.vmem [shape: f32[1,128], index: 2, kind: input, shape index: {}]
  %s3 = inlined_call_operand.vmem [shape: bf16[512,128], index: 3, kind: input, shape index: {}]
  %s4 = inlined_call_operand.vmem [shape: f32[1,128], index: 4, kind: input, shape index: {}]
  %s5 = inlined_call_operand.vmem [shape: f32[1,128], index: 5, kind: input, shape index: {}]
  %s6 = inlined_call_operand.vmem [shape: f32[512,128], index: 6, kind: output, shape index: {}]
  %s7 = sld [smem:[#allocation0]]
  $region34: #{basic_block_forward.9} parent=0
    _
  %s9 = ssub.s32 1, %s7
  %s10 = scalar_select 0, %s9, %s7
  // Predicated region
  $region2: #{basic_block_forward.9} parent=0 // pred_check
    _
  $region3: #{basic_block_forward.9} parent=0 // pred_check_branch
    %12 = sbr.rel (0) target = $region5
  $region4: #{basic_block_forward.9} parent=0 // pred_region
    _
  $region5: #{basic_block_forward.9} parent=0 // pred_fallthru
    _
  // Predicated region
  $region6: #{basic_block_forward.9} parent=0 // pred_check
    _
  $region7: #{basic_block_forward.9} parent=0 // pred_check_branch
    %14 = sbr.rel (0) target = $region9
  $region8: #{basic_block_forward.9} parent=0 // pred_region
    _
  $region9: #{basic_block_forward.9} parent=0 // pred_fallthru
    _
  // Predicated region
  $region10: #{basic_block_forward.9} parent=0 // pred_check
    _
  $region11: #{basic_block_forward.9} parent=0 // pred_check_branch
    %16 = sbr.rel (0) target = $region13
  $region12: #{basic_block_forward.9} parent=0 // pred_region
    _
  $region13: #{basic_block_forward.9} parent=0 // pred_fallthru
    _
  // Predicated region
  $region14: #{basic_block_forward.9} parent=0 // pred_check
    _
  $region15: #{basic_block_forward.9} parent=0 // pred_check_branch
    %18 = sbr.rel (0) target = $region17
  $region16: #{basic_block_forward.9} parent=0 // pred_region
    _
  $region17: #{basic_block_forward.9} parent=0 // pred_fallthru
    _
  // Predicated region
  $region18: #{basic_block_forward.9} parent=0 // pred_check
    _
  $region19: #{basic_block_forward.9} parent=0 // pred_check_branch
    %20 = sbr.rel (0) target = $region21
  $region20: #{basic_block_forward.9} parent=0 // pred_region
    _
  $region21: #{basic_block_forward.9} parent=0 // pred_fallthru
    _
  // Predicated region
  $region22: #{basic_block_forward.9} parent=0 // pred_check
    _
  $region23: #{basic_block_forward.9} parent=0 // pred_check_branch
    %22 = sbr.rel (0) target = $region25
  $region24: #{basic_block_forward.9} parent=0 // pred_region
    _
  $region25: #{basic_block_forward.9} parent=0 // pred_fallthru
    _
  %v23 = vld [vmem:[%s0] sm:$0xf]
  %v24 = vld [vmem:[%s0 + $0x4] sm:$0xf]
  %v25 = vld [vmem:[%s0 + $0x8] sm:$0xf]
  %v26 = vld [vmem:[%s0 + $0xc] sm:$0xf]
  %v27 = vld [vmem:[%s0 + $0x10] sm:$0xf]
  %v28 = vld [vmem:[%s0 + $0x14] sm:$0xf]
  %v29 = vld [vmem:[%s0 + $0x18] sm:$0xf]
  %v30 = vld [vmem:[%s0 + $0x1c] sm:$0xf]
  %v31 = vld [vmem:[%s0 + $0x20] sm:$0xf]
  %v32 = vld [vmem:[%s0 + $0x24] sm:$0xf]
  %v33 = vld [vmem:[%s0 + $0x28] sm:$0xf]
  %v34 = vld [vmem:[%s0 + $0x2c] sm:$0xf]
  %v35 = vld [vmem:[%s0 + $0x30] sm:$0xf]
  %v36 = vld [vmem:[%s0 + $0x34] sm:$0xf]
  %v37 = vld [vmem:[%s0 + $0x38] sm:$0xf]
  %v38 = vld [vmem:[%s0 + $0x3c] sm:$0xf]
  %v39 = vld [vmem:[%s0 + $0x40] sm:$0xf]
  %v40 = vld [vmem:[%s0 + $0x44] sm:$0xf]
  %v41 = vld [vmem:[%s0 + $0x48] sm:$0xf]
  %v42 = vld [vmem:[%s0 + $0x4c] sm:$0xf]
  %v43 = vld [vmem:[%s0 + $0x50] sm:$0xf]
  %v44 = vld [vmem:[%s0 + $0x54] sm:$0xf]
  %v45 = vld [vmem:[%s0 + $0x58] sm:$0xf]
  %v46 = vld [vmem:[%s0 + $0x5c] sm:$0xf]
  %v47 = vld [vmem:[%s0 + $0x60] sm:$0xf]
  %v48 = vld [vmem:[%s0 + $0x64] sm:$0xf]
  %v49 = vld [vmem:[%s0 + $0x68] sm:$0xf]
  %v50 = vld [vmem:[%s0 + $0x6c] sm:$0xf]
  %v51 = vld [vmem:[%s0 + $0x70] sm:$0xf]
  %v52 = vld [vmem:[%s0 + $0x74] sm:$0xf]
  %v53 = vld [vmem:[%s0 + $0x78] sm:$0xf]
  %v54 = vld [vmem:[%s0 + $0x7c] sm:$0xf]
  %v55 = vld [vmem:[%s0 + $0x80] sm:$0xf]
  %v56 = vld [vmem:[%s0 + $0x84] sm:$0xf]
  %v57 = vld [vmem:[%s0 + $0x88] sm:$0xf]
  %v58 = vld [vmem:[%s0 + $0x8c] sm:$0xf]
  %v59 = vld [vmem:[%s0 + $0x90] sm:$0xf]
  %v60 = vld [vmem:[%s0 + $0x94] sm:$0xf]
  %v61 = vld [vmem:[%s0 + $0x98] sm:$0xf]
  %v62 = vld [vmem:[%s0 + $0x9c] sm:$0xf]
  %v63 = vld [vmem:[%s0 + $0xa0] sm:$0xf]
  %v64 = vld [vmem:[%s0 + $0xa4] sm:$0xf]
  %v65 = vld [vmem:[%s0 + $0xa8] sm:$0xf]
  %v66 = vld [vmem:[%s0 + $0xac] sm:$0xf]
  %v67 = vld [vmem:[%s0 + $0xb0] sm:$0xf]
  %v68 = vld [vmem:[%s0 + $0xb4] sm:$0xf]
  %v69 = vld [vmem:[%s0 + $0xb8] sm:$0xf]
  %v70 = vld [vmem:[%s0 + $0xbc] sm:$0xf]
  %v71 = vld [vmem:[%s0 + $0xc0] sm:$0xf]
  %v72 = vld [vmem:[%s0 + $0xc4] sm:$0xf]
  %v73 = vld [vmem:[%s0 + $0xc8] sm:$0xf]
  %v74 = vld [vmem:[%s0 + $0xcc] sm:$0xf]
  %v75 = vld [vmem:[%s0 + $0xd0] sm:$0xf]
  %v76 = vld [vmem:[%s0 + $0xd4] sm:$0xf]
  %v77 = vld [vmem:[%s0 + $0xd8] sm:$0xf]
  %v78 = vld [vmem:[%s0 + $0xdc] sm:$0xf]
  %v79 = vld [vmem:[%s0 + $0xe0] sm:$0xf]
  %v80 = vld [vmem:[%s0 + $0xe4] sm:$0xf]
  %v81 = vld [vmem:[%s0 + $0xe8] sm:$0xf]
  %v82 = vld [vmem:[%s0 + $0xec] sm:$0xf]
  %v83 = vld [vmem:[%s0 + $0xf0] sm:$0xf]
  %v84 = vld [vmem:[%s0 + $0xf4] sm:$0xf]
  %v85 = vld [vmem:[%s0 + $0xf8] sm:$0xf]
  %v86 = vld [vmem:[%s0 + $0xfc] sm:$0xf]
  %v87 = vunpack.c.l.bf16 %v23
  %v88 = vunpack.c.l.bf16 %v24
  %v89 = vunpack.c.l.bf16 %v25
  %v90 = vunpack.c.l.bf16 %v26
  %v91 = vunpack.c.l.bf16 %v27
  %v92 = vunpack.c.l.bf16 %v28
  %v93 = vunpack.c.l.bf16 %v29
  %v94 = vunpack.c.l.bf16 %v30
  %v95 = vunpack.c.l.bf16 %v31
  %v96 = vunpack.c.l.bf16 %v32
  %v97 = vunpack.c.l.bf16 %v33
  %v98 = vunpack.c.l.bf16 %v34
  %v99 = vunpack.c.l.bf16 %v35
  %v100 = vunpack.c.l.bf16 %v36
  %v101 = vunpack.c.l.bf16 %v37
  %v102 = vunpack.c.l.bf16 %v38
  %v103 = vunpack.c.l.bf16 %v39
  %v104 = vunpack.c.l.bf16 %v40
  %v105 = vunpack.c.l.bf16 %v41
  %v106 = vunpack.c.l.bf16 %v42
  %v107 = vunpack.c.l.bf16 %v43
  %v108 = vunpack.c.l.bf16 %v44
  %v109 = vunpack.c.l.bf16 %v45
  %v110 = vunpack.c.l.bf16 %v46
  %v111 = vunpack.c.l.bf16 %v47
  %v112 = vunpack.c.l.bf16 %v48
  %v113 = vunpack.c.l.bf16 %v49
  %v114 = vunpack.c.l.bf16 %v50
  %v115 = vunpack.c.l.bf16 %v51
  %v116 = vunpack.c.l.bf16 %v52
  %v117 = vunpack.c.l.bf16 %v53
  %v118 = vunpack.c.l.bf16 %v54
  %v119 = vunpack.c.l.bf16 %v55
  %v120 = vunpack.c.l.bf16 %v56
  %v121 = vunpack.c.l.bf16 %v57
  %v122 = vunpack.c.l.bf16 %v58
  %v123 = vunpack.c.l.bf16 %v59
  %v124 = vunpack.c.l.bf16 %v60
  %v125 = vunpack.c.l.bf16 %v61
  %v126 = vunpack.c.l.bf16 %v62
  %v127 = vunpack.c.l.bf16 %v63
  %v128 = vunpack.c.l.bf16 %v64
  %v129 = vunpack.c.l.bf16 %v65
  %v130 = vunpack.c.l.bf16 %v66
  %v131 = vunpack.c.l.bf16 %v67
  %v132 = vunpack.c.l.bf16 %v68
  %v133 = vunpack.c.l.bf16 %v69
  %v134 = vunpack.c.l.bf16 %v70
  %v135 = vunpack.c.l.bf16 %v71
  %v136 = vunpack.c.l.bf16 %v72
  %v137 = vunpack.c.l.bf16 %v73
  %v138 = vunpack.c.l.bf16 %v74
  %v139 = vunpack.c.l.bf16 %v75
  %v140 = vunpack.c.l.bf16 %v76
  %v141 = vunpack.c.l.bf16 %v77
  %v142 = vunpack.c.l.bf16 %v78
  %v143 = vunpack.c.l.bf16 %v79
  %v144 = vunpack.c.l.bf16 %v80
  %v145 = vunpack.c.l.bf16 %v81
  %v146 = vunpack.c.l.bf16 %v82
  %v147 = vunpack.c.l.bf16 %v83
  %v148 = vunpack.c.l.bf16 %v84
  %v149 = vunpack.c.l.bf16 %v85
  %v150 = vunpack.c.l.bf16 %v86
  %v151 = vld [vmem:[%s1] sm:$0x1]
  %v153 = vlaneseq
  %v154 = vshrl.u32 %v153, 7
  %v155 = vsub.s32 0, %v154
  %v156 = vrot.slane %v151, %v155
  %v158 = vmul.f32 %v87, %v156
  %v159 = vmul.f32 %v88, %v156
  %v160 = vmul.f32 %v89, %v156
  %v161 = vmul.f32 %v90, %v156
  %v162 = vmul.f32 %v91, %v156
  %v163 = vmul.f32 %v92, %v156
  %v164 = vmul.f32 %v93, %v156
  %v165 = vmul.f32 %v94, %v156
  %v166 = vmul.f32 %v95, %v156
  %v167 = vmul.f32 %v96, %v156
  %v168 = vmul.f32 %v97, %v156
  %v169 = vmul.f32 %v98, %v156
  %v170 = vmul.f32 %v99, %v156
  %v171 = vmul.f32 %v100, %v156
  %v172 = vmul.f32 %v101, %v156
  %v173 = vmul.f32 %v102, %v156
  %v174 = vmul.f32 %v103, %v156
  %v175 = vmul.f32 %v104, %v156
  %v176 = vmul.f32 %v105, %v156
  %v177 = vmul.f32 %v106, %v156
  %v178 = vmul.f32 %v107, %v156
  %v179 = vmul.f32 %v108, %v156
  %v180 = vmul.f32 %v109, %v156
  %v181 = vmul.f32 %v110, %v156
  %v182 = vmul.f32 %v111, %v156
  %v183 = vmul.f32 %v112, %v156
  %v184 = vmul.f32 %v113, %v156
  %v185 = vmul.f32 %v114, %v156
  %v186 = vmul.f32 %v115, %v156
  %v187 = vmul.f32 %v116, %v156
  %v188 = vmul.f32 %v117, %v156
  %v189 = vmul.f32 %v118, %v156
  %v190 = vmul.f32 %v119, %v156
  %v191 = vmul.f32 %v120, %v156
  %v192 = vmul.f32 %v121, %v156
  %v193 = vmul.f32 %v122, %v156
  %v194 = vmul.f32 %v123, %v156
  %v195 = vmul.f32 %v124, %v156
  %v196 = vmul.f32 %v125, %v156
  %v197 = vmul.f32 %v126, %v156
  %v198 = vmul.f32 %v127, %v156
  %v199 = vmul.f32 %v128, %v156
  %v200 = vmul.f32 %v129, %v156
  %v201 = vmul.f32 %v130, %v156
  %v202 = vmul.f32 %v131, %v156
  %v203 = vmul.f32 %v132, %v156
  %v204 = vmul.f32 %v133, %v156
  %v205 = vmul.f32 %v134, %v156
  %v206 = vmul.f32 %v135, %v156
  %v207 = vmul.f32 %v136, %v156
  %v208 = vmul.f32 %v137, %v156
  %v209 = vmul.f32 %v138, %v156
  %v210 = vmul.f32 %v139, %v156
  %v211 = vmul.f32 %v140, %v156
  %v212 = vmul.f32 %v141, %v156
  %v213 = vmul.f32 %v142, %v156
  %v214 = vmul.f32 %v143, %v156
  %v215 = vmul.f32 %v144, %v156
  %v216 = vmul.f32 %v145, %v156
  %v217 = vmul.f32 %v146, %v156
  %v218 = vmul.f32 %v147, %v156
  %v219 = vmul.f32 %v148, %v156
  %v220 = vmul.f32 %v149, %v156
  %v221 = vmul.f32 %v150, %v156
  %v222 = vld [vmem:[%s2] sm:$0x1]
  %v224 = vlaneseq
  %v225 = vshrl.u32 %v224, 7
  %v226 = vsub.s32 0, %v225
  %v227 = vrot.slane %v222, %v226
  %v229 = vadd.f32 %v158, %v227
  %v230 = vadd.f32 %v159, %v227
  %v231 = vadd.f32 %v160, %v227
  %v232 = vadd.f32 %v161, %v227
  %v233 = vadd.f32 %v162, %v227
  %v234 = vadd.f32 %v163, %v227
  %v235 = vadd.f32 %v164, %v227
  %v236 = vadd.f32 %v165, %v227
  %v237 = vadd.f32 %v166, %v227
  %v238 = vadd.f32 %v167, %v227
  %v239 = vadd.f32 %v168, %v227
  %v240 = vadd.f32 %v169, %v227
  %v241 = vadd.f32 %v170, %v227
  %v242 = vadd.f32 %v171, %v227
  %v243 = vadd.f32 %v172, %v227
  %v244 = vadd.f32 %v173, %v227
  %v245 = vadd.f32 %v174, %v227
  %v246 = vadd.f32 %v175, %v227
  %v247 = vadd.f32 %v176, %v227
  %v248 = vadd.f32 %v177, %v227
  %v249 = vadd.f32 %v178, %v227
  %v250 = vadd.f32 %v179, %v227
  %v251 = vadd.f32 %v180, %v227
  %v252 = vadd.f32 %v181, %v227
  %v253 = vadd.f32 %v182, %v227
  %v254 = vadd.f32 %v183, %v227
  %v255 = vadd.f32 %v184, %v227
  %v256 = vadd.f32 %v185, %v227
  %v257 = vadd.f32 %v186, %v227
  %v258 = vadd.f32 %v187, %v227
  %v259 = vadd.f32 %v188, %v227
  %v260 = vadd.f32 %v189, %v227
  %v261 = vadd.f32 %v190, %v227
  %v262 = vadd.f32 %v191, %v227
  %v263 = vadd.f32 %v192, %v227
  %v264 = vadd.f32 %v193, %v227
  %v265 = vadd.f32 %v194, %v227
  %v266 = vadd.f32 %v195, %v227
  %v267 = vadd.f32 %v196, %v227
  %v268 = vadd.f32 %v197, %v227
  %v269 = vadd.f32 %v198, %v227
  %v270 = vadd.f32 %v199, %v227
  %v271 = vadd.f32 %v200, %v227
  %v272 = vadd.f32 %v201, %v227
  %v273 = vadd.f32 %v202, %v227
  %v274 = vadd.f32 %v203, %v227
  %v275 = vadd.f32 %v204, %v227
  %v276 = vadd.f32 %v205, %v227
  %v277 = vadd.f32 %v206, %v227
  %v278 = vadd.f32 %v207, %v227
  %v279 = vadd.f32 %v208, %v227
  %v280 = vadd.f32 %v209, %v227
  %v281 = vadd.f32 %v210, %v227
  %v282 = vadd.f32 %v211, %v227
  %v283 = vadd.f32 %v212, %v227
  %v284 = vadd.f32 %v213, %v227
  %v285 = vadd.f32 %v214, %v227
  %v286 = vadd.f32 %v215, %v227
  %v287 = vadd.f32 %v216, %v227
  %v288 = vadd.f32 %v217, %v227
  %v289 = vadd.f32 %v218, %v227
  %v290 = vadd.f32 %v219, %v227
  %v291 = vadd.f32 %v220, %v227
  %v292 = vadd.f32 %v221, %v227
  %v293 = vld [vmem:[%s3] sm:$0xf]
  %v294 = vld [vmem:[%s3 + $0x4] sm:$0xf]
  %v295 = vld [vmem:[%s3 + $0x8] sm:$0xf]
  %v296 = vld [vmem:[%s3 + $0xc] sm:$0xf]
  %v297 = vld [vmem:[%s3 + $0x10] sm:$0xf]
  %v298 = vld [vmem:[%s3 + $0x14] sm:$0xf]
  %v299 = vld [vmem:[%s3 + $0x18] sm:$0xf]
  %v300 = vld [vmem:[%s3 + $0x1c] sm:$0xf]
  %v301 = vld [vmem:[%s3 + $0x20] sm:$0xf]
  %v302 = vld [vmem:[%s3 + $0x24] sm:$0xf]
  %v303 = vld [vmem:[%s3 + $0x28] sm:$0xf]
  %v304 = vld [vmem:[%s3 + $0x2c] sm:$0xf]
  %v305 = vld [vmem:[%s3 + $0x30] sm:$0xf]
  %v306 = vld [vmem:[%s3 + $0x34] sm:$0xf]
  %v307 = vld [vmem:[%s3 + $0x38] sm:$0xf]
  %v308 = vld [vmem:[%s3 + $0x3c] sm:$0xf]
  %v309 = vld [vmem:[%s3 + $0x40] sm:$0xf]
  %v310 = vld [vmem:[%s3 + $0x44] sm:$0xf]
  %v311 = vld [vmem:[%s3 + $0x48] sm:$0xf]
  %v312 = vld [vmem:[%s3 + $0x4c] sm:$0xf]
  %v313 = vld [vmem:[%s3 + $0x50] sm:$0xf]
  %v314 = vld [vmem:[%s3 + $0x54] sm:$0xf]
  %v315 = vld [vmem:[%s3 + $0x58] sm:$0xf]
  %v316 = vld [vmem:[%s3 + $0x5c] sm:$0xf]
  %v317 = vld [vmem:[%s3 + $0x60] sm:$0xf]
  %v318 = vld [vmem:[%s3 + $0x64] sm:$0xf]
  %v319 = vld [vmem:[%s3 + $0x68] sm:$0xf]
  %v320 = vld [vmem:[%s3 + $0x6c] sm:$0xf]
  %v321 = vld [vmem:[%s3 + $0x70] sm:$0xf]
  %v322 = vld [vmem:[%s3 + $0x74] sm:$0xf]
  %v323 = vld [vmem:[%s3 + $0x78] sm:$0xf]
  %v324 = vld [vmem:[%s3 + $0x7c] sm:$0xf]
  %v325 = vld [vmem:[%s3 + $0x80] sm:$0xf]
  %v326 = vld [vmem:[%s3 + $0x84] sm:$0xf]
  %v327 = vld [vmem:[%s3 + $0x88] sm:$0xf]
  %v328 = vld [vmem:[%s3 + $0x8c] sm:$0xf]
  %v329 = vld [vmem:[%s3 + $0x90] sm:$0xf]
  %v330 = vld [vmem:[%s3 + $0x94] sm:$0xf]
  %v331 = vld [vmem:[%s3 + $0x98] sm:$0xf]
  %v332 = vld [vmem:[%s3 + $0x9c] sm:$0xf]
  %v333 = vld [vmem:[%s3 + $0xa0] sm:$0xf]
  %v334 = vld [vmem:[%s3 + $0xa4] sm:$0xf]
  %v335 = vld [vmem:[%s3 + $0xa8] sm:$0xf]
  %v336 = vld [vmem:[%s3 + $0xac] sm:$0xf]
  %v337 = vld [vmem:[%s3 + $0xb0] sm:$0xf]
  %v338 = vld [vmem:[%s3 + $0xb4] sm:$0xf]
  %v339 = vld [vmem:[%s3 + $0xb8] sm:$0xf]
  %v340 = vld [vmem:[%s3 + $0xbc] sm:$0xf]
  %v341 = vld [vmem:[%s3 + $0xc0] sm:$0xf]
  %v342 = vld [vmem:[%s3 + $0xc4] sm:$0xf]
  %v343 = vld [vmem:[%s3 + $0xc8] sm:$0xf]
  %v344 = vld [vmem:[%s3 + $0xcc] sm:$0xf]
  %v345 = vld [vmem:[%s3 + $0xd0] sm:$0xf]
  %v346 = vld [vmem:[%s3 + $0xd4] sm:$0xf]
  %v347 = vld [vmem:[%s3 + $0xd8] sm:$0xf]
  %v348 = vld [vmem:[%s3 + $0xdc] sm:$0xf]
  %v349 = vld [vmem:[%s3 + $0xe0] sm:$0xf]
  %v350 = vld [vmem:[%s3 + $0xe4] sm:$0xf]
  %v351 = vld [vmem:[%s3 + $0xe8] sm:$0xf]
  %v352 = vld [vmem:[%s3 + $0xec] sm:$0xf]
  %v353 = vld [vmem:[%s3 + $0xf0] sm:$0xf]
  %v354 = vld [vmem:[%s3 + $0xf4] sm:$0xf]
  %v355 = vld [vmem:[%s3 + $0xf8] sm:$0xf]
  %v356 = vld [vmem:[%s3 + $0xfc] sm:$0xf]
  %v357 = vunpack.c.l.bf16 %v293
  %v358 = vunpack.c.l.bf16 %v294
  %v359 = vunpack.c.l.bf16 %v295
  %v360 = vunpack.c.l.bf16 %v296
  %v361 = vunpack.c.l.bf16 %v297
  %v362 = vunpack.c.l.bf16 %v298
  %v363 = vunpack.c.l.bf16 %v299
  %v364 = vunpack.c.l.bf16 %v300
  %v365 = vunpack.c.l.bf16 %v301
  %v366 = vunpack.c.l.bf16 %v302
  %v367 = vunpack.c.l.bf16 %v303
  %v368 = vunpack.c.l.bf16 %v304
  %v369 = vunpack.c.l.bf16 %v305
  %v370 = vunpack.c.l.bf16 %v306
  %v371 = vunpack.c.l.bf16 %v307
  %v372 = vunpack.c.l.bf16 %v308
  %v373 = vunpack.c.l.bf16 %v309
  %v374 = vunpack.c.l.bf16 %v310
  %v375 = vunpack.c.l.bf16 %v311
  %v376 = vunpack.c.l.bf16 %v312
  %v377 = vunpack.c.l.bf16 %v313
  %v378 = vunpack.c.l.bf16 %v314
  %v379 = vunpack.c.l.bf16 %v315
  %v380 = vunpack.c.l.bf16 %v316
  %v381 = vunpack.c.l.bf16 %v317
  %v382 = vunpack.c.l.bf16 %v318
  %v383 = vunpack.c.l.bf16 %v319
  %v384 = vunpack.c.l.bf16 %v320
  %v385 = vunpack.c.l.bf16 %v321
  %v386 = vunpack.c.l.bf16 %v322
  %v387 = vunpack.c.l.bf16 %v323
  %v388 = vunpack.c.l.bf16 %v324
  %v389 = vunpack.c.l.bf16 %v325
  %v390 = vunpack.c.l.bf16 %v326
  %v391 = vunpack.c.l.bf16 %v327
  %v392 = vunpack.c.l.bf16 %v328
  %v393 = vunpack.c.l.bf16 %v329
  %v394 = vunpack.c.l.bf16 %v330
  %v395 = vunpack.c.l.bf16 %v331
  %v396 = vunpack.c.l.bf16 %v332
  %v397 = vunpack.c.l.bf16 %v333
  %v398 = vunpack.c.l.bf16 %v334
  %v399 = vunpack.c.l.bf16 %v335
  %v400 = vunpack.c.l.bf16 %v336
  %v401 = vunpack.c.l.bf16 %v337
  %v402 = vunpack.c.l.bf16 %v338
  %v403 = vunpack.c.l.bf16 %v339
  %v404 = vunpack.c.l.bf16 %v340
  %v405 = vunpack.c.l.bf16 %v341
  %v406 = vunpack.c.l.bf16 %v342
  %v407 = vunpack.c.l.bf16 %v343
  %v408 = vunpack.c.l.bf16 %v344
  %v409 = vunpack.c.l.bf16 %v345
  %v410 = vunpack.c.l.bf16 %v346
  %v411 = vunpack.c.l.bf16 %v347
  %v412 = vunpack.c.l.bf16 %v348
  %v413 = vunpack.c.l.bf16 %v349
  %v414 = vunpack.c.l.bf16 %v350
  %v415 = vunpack.c.l.bf16 %v351
  %v416 = vunpack.c.l.bf16 %v352
  %v417 = vunpack.c.l.bf16 %v353
  %v418 = vunpack.c.l.bf16 %v354
  %v419 = vunpack.c.l.bf16 %v355
  %v420 = vunpack.c.l.bf16 %v356
  %v421 = vld [vmem:[%s4] sm:$0x1]
  %v423 = vlaneseq
  %v424 = vshrl.u32 %v423, 7
  %v425 = vsub.s32 0, %v424
  %v426 = vrot.slane %v421, %v425
  %v428 = vmul.f32 %v357, %v426
  %v429 = vmul.f32 %v358, %v426
  %v430 = vmul.f32 %v359, %v426
  %v431 = vmul.f32 %v360, %v426
  %v432 = vmul.f32 %v361, %v426
  %v433 = vmul.f32 %v362, %v426
  %v434 = vmul.f32 %v363, %v426
  %v435 = vmul.f32 %v364, %v426
  %v436 = vmul.f32 %v365, %v426
  %v437 = vmul.f32 %v366, %v426
  %v438 = vmul.f32 %v367, %v426
  %v439 = vmul.f32 %v368, %v426
  %v440 = vmul.f32 %v369, %v426
  %v441 = vmul.f32 %v370, %v426
  %v442 = vmul.f32 %v371, %v426
  %v443 = vmul.f32 %v372, %v426
  %v444 = vmul.f32 %v373, %v426
  %v445 = vmul.f32 %v374, %v426
  %v446 = vmul.f32 %v375, %v426
  %v447 = vmul.f32 %v376, %v426
  %v448 = vmul.f32 %v377, %v426
  %v449 = vmul.f32 %v378, %v426
  %v450 = vmul.f32 %v379, %v426
  %v451 = vmul.f32 %v380, %v426
  %v452 = vmul.f32 %v381, %v426
  %v453 = vmul.f32 %v382, %v426
  %v454 = vmul.f32 %v383, %v426
  %v455 = vmul.f32 %v384, %v426
  %v456 = vmul.f32 %v385, %v426
  %v457 = vmul.f32 %v386, %v426
  %v458 = vmul.f32 %v387, %v426
  %v459 = vmul.f32 %v388, %v426
  %v460 = vmul.f32 %v389, %v426
  %v461 = vmul.f32 %v390, %v426
  %v462 = vmul.f32 %v391, %v426
  %v463 = vmul.f32 %v392, %v426
  %v464 = vmul.f32 %v393, %v426
  %v465 = vmul.f32 %v394, %v426
  %v466 = vmul.f32 %v395, %v426
  %v467 = vmul.f32 %v396, %v426
  %v468 = vmul.f32 %v397, %v426
  %v469 = vmul.f32 %v398, %v426
  %v470 = vmul.f32 %v399, %v426
  %v471 = vmul.f32 %v400, %v426
  %v472 = vmul.f32 %v401, %v426
  %v473 = vmul.f32 %v402, %v426
  %v474 = vmul.f32 %v403, %v426
  %v475 = vmul.f32 %v404, %v426
  %v476 = vmul.f32 %v405, %v426
  %v477 = vmul.f32 %v406, %v426
  %v478 = vmul.f32 %v407, %v426
  %v479 = vmul.f32 %v408, %v426
  %v480 = vmul.f32 %v409, %v426
  %v481 = vmul.f32 %v410, %v426
  %v482 = vmul.f32 %v411, %v426
  %v483 = vmul.f32 %v412, %v426
  %v484 = vmul.f32 %v413, %v426
  %v485 = vmul.f32 %v414, %v426
  %v486 = vmul.f32 %v415, %v426
  %v487 = vmul.f32 %v416, %v426
  %v488 = vmul.f32 %v417, %v426
  %v489 = vmul.f32 %v418, %v426
  %v490 = vmul.f32 %v419, %v426
  %v491 = vmul.f32 %v420, %v426
  %v492 = vadd.f32 %v229, %v428
  %v493 = vadd.f32 %v230, %v429
  %v494 = vadd.f32 %v231, %v430
  %v495 = vadd.f32 %v232, %v431
  %v496 = vadd.f32 %v233, %v432
  %v497 = vadd.f32 %v234, %v433
  %v498 = vadd.f32 %v235, %v434
  %v499 = vadd.f32 %v236, %v435
  %v500 = vadd.f32 %v237, %v436
  %v501 = vadd.f32 %v238, %v437
  %v502 = vadd.f32 %v239, %v438
  %v503 = vadd.f32 %v240, %v439
  %v504 = vadd.f32 %v241, %v440
  %v505 = vadd.f32 %v242, %v441
  %v506 = vadd.f32 %v243, %v442
  %v507 = vadd.f32 %v244, %v443
  %v508 = vadd.f32 %v245, %v444
  %v509 = vadd.f32 %v246, %v445
  %v510 = vadd.f32 %v247, %v446
  %v511 = vadd.f32 %v248, %v447
  %v512 = vadd.f32 %v249, %v448
  %v513 = vadd.f32 %v250, %v449
  %v514 = vadd.f32 %v251, %v450
  %v515 = vadd.f32 %v252, %v451
  %v516 = vadd.f32 %v253, %v452
  %v517 = vadd.f32 %v254, %v453
  %v518 = vadd.f32 %v255, %v454
  %v519 = vadd.f32 %v256, %v455
  %v520 = vadd.f32 %v257, %v456
  %v521 = vadd.f32 %v258, %v457
  %v522 = vadd.f32 %v259, %v458
  %v523 = vadd.f32 %v260, %v459
  %v524 = vadd.f32 %v261, %v460
  %v525 = vadd.f32 %v262, %v461
  %v526 = vadd.f32 %v263, %v462
  %v527 = vadd.f32 %v264, %v463
  %v528 = vadd.f32 %v265, %v464
  %v529 = vadd.f32 %v266, %v465
  %v530 = vadd.f32 %v267, %v466
  %v531 = vadd.f32 %v268, %v467
  %v532 = vadd.f32 %v269, %v468
  %v533 = vadd.f32 %v270, %v469
  %v534 = vadd.f32 %v271, %v470
  %v535 = vadd.f32 %v272, %v471
  %v536 = vadd.f32 %v273, %v472
  %v537 = vadd.f32 %v274, %v473
  %v538 = vadd.f32 %v275, %v474
  %v539 = vadd.f32 %v276, %v475
  %v540 = vadd.f32 %v277, %v476
  %v541 = vadd.f32 %v278, %v477
  %v542 = vadd.f32 %v279, %v478
  %v543 = vadd.f32 %v280, %v479
  %v544 = vadd.f32 %v281, %v480
  %v545 = vadd.f32 %v282, %v481
  %v546 = vadd.f32 %v283, %v482
  %v547 = vadd.f32 %v284, %v483
  %v548 = vadd.f32 %v285, %v484
  %v549 = vadd.f32 %v286, %v485
  %v550 = vadd.f32 %v287, %v486
  %v551 = vadd.f32 %v288, %v487
  %v552 = vadd.f32 %v289, %v488
  %v553 = vadd.f32 %v290, %v489
  %v554 = vadd.f32 %v291, %v490
  %v555 = vadd.f32 %v292, %v491
  %v556 = vld [vmem:[%s5] sm:$0x1]
  %v558 = vlaneseq
  %v559 = vshrl.u32 %v558, 7
  %v560 = vsub.s32 0, %v559
  %v561 = vrot.slane %v556, %v560
  %v563 = vadd.f32 %v492, %v561
  %v564 = vadd.f32 %v493, %v561
  %v565 = vadd.f32 %v494, %v561
  %v566 = vadd.f32 %v495, %v561
  %v567 = vadd.f32 %v496, %v561
  %v568 = vadd.f32 %v497, %v561
  %v569 = vadd.f32 %v498, %v561
  %v570 = vadd.f32 %v499, %v561
  %v571 = vadd.f32 %v500, %v561
  %v572 = vadd.f32 %v501, %v561
  %v573 = vadd.f32 %v502, %v561
  %v574 = vadd.f32 %v503, %v561
  %v575 = vadd.f32 %v504, %v561
  %v576 = vadd.f32 %v505, %v561
  %v577 = vadd.f32 %v506, %v561
  %v578 = vadd.f32 %v507, %v561
  %v579 = vadd.f32 %v508, %v561
  %v580 = vadd.f32 %v509, %v561
  %v581 = vadd.f32 %v510, %v561
  %v582 = vadd.f32 %v511, %v561
  %v583 = vadd.f32 %v512, %v561
  %v584 = vadd.f32 %v513, %v561
  %v585 = vadd.f32 %v514, %v561
  %v586 = vadd.f32 %v515, %v561
  %v587 = vadd.f32 %v516, %v561
  %v588 = vadd.f32 %v517, %v561
  %v589 = vadd.f32 %v518, %v561
  %v590 = vadd.f32 %v519, %v561
  %v591 = vadd.f32 %v520, %v561
  %v592 = vadd.f32 %v521, %v561
  %v593 = vadd.f32 %v522, %v561
  %v594 = vadd.f32 %v523, %v561
  %v595 = vadd.f32 %v524, %v561
  %v596 = vadd.f32 %v525, %v561
  %v597 = vadd.f32 %v526, %v561
  %v598 = vadd.f32 %v527, %v561
  %v599 = vadd.f32 %v528, %v561
  %v600 = vadd.f32 %v529, %v561
  %v601 = vadd.f32 %v530, %v561
  %v602 = vadd.f32 %v531, %v561
  %v603 = vadd.f32 %v532, %v561
  %v604 = vadd.f32 %v533, %v561
  %v605 = vadd.f32 %v534, %v561
  %v606 = vadd.f32 %v535, %v561
  %v607 = vadd.f32 %v536, %v561
  %v608 = vadd.f32 %v537, %v561
  %v609 = vadd.f32 %v538, %v561
  %v610 = vadd.f32 %v539, %v561
  %v611 = vadd.f32 %v540, %v561
  %v612 = vadd.f32 %v541, %v561
  %v613 = vadd.f32 %v542, %v561
  %v614 = vadd.f32 %v543, %v561
  %v615 = vadd.f32 %v544, %v561
  %v616 = vadd.f32 %v545, %v561
  %v617 = vadd.f32 %v546, %v561
  %v618 = vadd.f32 %v547, %v561
  %v619 = vadd.f32 %v548, %v561
  %v620 = vadd.f32 %v549, %v561
  %v621 = vadd.f32 %v550, %v561
  %v622 = vadd.f32 %v551, %v561
  %v623 = vadd.f32 %v552, %v561
  %v624 = vadd.f32 %v553, %v561
  %v625 = vadd.f32 %v554, %v561
  %v626 = vadd.f32 %v555, %v561
  %v627 = vmax.f32 %v563, 0.0
  %v628 = vmax.f32 %v564, 0.0
  %v629 = vmax.f32 %v565, 0.0
  %v630 = vmax.f32 %v566, 0.0
  %v631 = vmax.f32 %v567, 0.0
  %v632 = vmax.f32 %v568, 0.0
  %v633 = vmax.f32 %v569, 0.0
  %v634 = vmax.f32 %v570, 0.0
  %v635 = vmax.f32 %v571, 0.0
  %v636 = vmax.f32 %v572, 0.0
  %v637 = vmax.f32 %v573, 0.0
  %v638 = vmax.f32 %v574, 0.0
  %v639 = vmax.f32 %v575, 0.0
  %v640 = vmax.f32 %v576, 0.0
  %v641 = vmax.f32 %v577, 0.0
  %v642 = vmax.f32 %v578, 0.0
  %v643 = vmax.f32 %v579, 0.0
  %v644 = vmax.f32 %v580, 0.0
  %v645 = vmax.f32 %v581, 0.0
  %v646 = vmax.f32 %v582, 0.0
  %v647 = vmax.f32 %v583, 0.0
  %v648 = vmax.f32 %v584, 0.0
  %v649 = vmax.f32 %v585, 0.0
  %v650 = vmax.f32 %v586, 0.0
  %v651 = vmax.f32 %v587, 0.0
  %v652 = vmax.f32 %v588, 0.0
  %v653 = vmax.f32 %v589, 0.0
  %v654 = vmax.f32 %v590, 0.0
  %v655 = vmax.f32 %v591, 0.0
  %v656 = vmax.f32 %v592, 0.0
  %v657 = vmax.f32 %v593, 0.0
  %v658 = vmax.f32 %v594, 0.0
  %v659 = vmax.f32 %v595, 0.0
  %v660 = vmax.f32 %v596, 0.0
  %v661 = vmax.f32 %v597, 0.0
  %v662 = vmax.f32 %v598, 0.0
  %v663 = vmax.f32 %v599, 0.0
  %v664 = vmax.f32 %v600, 0.0
  %v665 = vmax.f32 %v601, 0.0
  %v666 = vmax.f32 %v602, 0.0
  %v667 = vmax.f32 %v603, 0.0
  %v668 = vmax.f32 %v604, 0.0
  %v669 = vmax.f32 %v605, 0.0
  %v670 = vmax.f32 %v606, 0.0
  %v671 = vmax.f32 %v607, 0.0
  %v672 = vmax.f32 %v608, 0.0
  %v673 = vmax.f32 %v609, 0.0
  %v674 = vmax.f32 %v610, 0.0
  %v675 = vmax.f32 %v611, 0.0
  %v676 = vmax.f32 %v612, 0.0
  %v677 = vmax.f32 %v613, 0.0
  %v678 = vmax.f32 %v614, 0.0
  %v679 = vmax.f32 %v615, 0.0
  %v680 = vmax.f32 %v616, 0.0
  %v681 = vmax.f32 %v617, 0.0
  %v682 = vmax.f32 %v618, 0.0
  %v683 = vmax.f32 %v619, 0.0
  %v684 = vmax.f32 %v620, 0.0
  %v685 = vmax.f32 %v621, 0.0
  %v686 = vmax.f32 %v622, 0.0
  %v687 = vmax.f32 %v623, 0.0
  %v688 = vmax.f32 %v624, 0.0
  %v689 = vmax.f32 %v625, 0.0
  %v690 = vmax.f32 %v626, 0.0
  %691 = vst [vmem:[%s6] sm:$0xff] %v627
  %692 = vst [vmem:[%s6 + $0x8] sm:$0xff] %v628
  %693 = vst [vmem:[%s6 + $0x10] sm:$0xff] %v629
  %694 = vst [vmem:[%s6 + $0x18] sm:$0xff] %v630
  %695 = vst [vmem:[%s6 + $0x20] sm:$0xff] %v631
  %696 = vst [vmem:[%s6 + $0x28] sm:$0xff] %v632
  %697 = vst [vmem:[%s6 + $0x30] sm:$0xff] %v633
  %698 = vst [vmem:[%s6 + $0x38] sm:$0xff] %v634
  %699 = vst [vmem:[%s6 + $0x40] sm:$0xff] %v635
  %700 = vst [vmem:[%s6 + $0x48] sm:$0xff] %v636
  %701 = vst [vmem:[%s6 + $0x50] sm:$0xff] %v637
  %702 = vst [vmem:[%s6 + $0x58] sm:$0xff] %v638
  %703 = vst [vmem:[%s6 + $0x60] sm:$0xff] %v639
  %704 = vst [vmem:[%s6 + $0x68] sm:$0xff] %v640
  %705 = vst [vmem:[%s6 + $0x70] sm:$0xff] %v641
  %706 = vst [vmem:[%s6 + $0x78] sm:$0xff] %v642
  %707 = vst [vmem:[%s6 + $0x80] sm:$0xff] %v643
  %708 = vst [vmem:[%s6 + $0x88] sm:$0xff] %v644
  %709 = vst [vmem:[%s6 + $0x90] sm:$0xff] %v645
  %710 = vst [vmem:[%s6 + $0x98] sm:$0xff] %v646
  %711 = vst [vmem:[%s6 + $0xa0] sm:$0xff] %v647
  %712 = vst [vmem:[%s6 + $0xa8] sm:$0xff] %v648
  %713 = vst [vmem:[%s6 + $0xb0] sm:$0xff] %v649
  %714 = vst [vmem:[%s6 + $0xb8] sm:$0xff] %v650
  %715 = vst [vmem:[%s6 + $0xc0] sm:$0xff] %v651
  %716 = vst [vmem:[%s6 + $0xc8] sm:$0xff] %v652
  %717 = vst [vmem:[%s6 + $0xd0] sm:$0xff] %v653
  %718 = vst [vmem:[%s6 + $0xd8] sm:$0xff] %v654
  %719 = vst [vmem:[%s6 + $0xe0] sm:$0xff] %v655
  %720 = vst [vmem:[%s6 + $0xe8] sm:$0xff] %v656
  %721 = vst [vmem:[%s6 + $0xf0] sm:$0xff] %v657
  %722 = vst [vmem:[%s6 + $0xf8] sm:$0xff] %v658
  %723 = vst [vmem:[%s6 + $0x100] sm:$0xff] %v659
  %724 = vst [vmem:[%s6 + $0x108] sm:$0xff] %v660
  %725 = vst [vmem:[%s6 + $0x110] sm:$0xff] %v661
  %726 = vst [vmem:[%s6 + $0x118] sm:$0xff] %v662
  %727 = vst [vmem:[%s6 + $0x120] sm:$0xff] %v663
  %728 = vst [vmem:[%s6 + $0x128] sm:$0xff] %v664
  %729 = vst [vmem:[%s6 + $0x130] sm:$0xff] %v665
  %730 = vst [vmem:[%s6 + $0x138] sm:$0xff] %v666
  %731 = vst [vmem:[%s6 + $0x140] sm:$0xff] %v667
  %732 = vst [vmem:[%s6 + $0x148] sm:$0xff] %v668
  %733 = vst [vmem:[%s6 + $0x150] sm:$0xff] %v669
  %734 = vst [vmem:[%s6 + $0x158] sm:$0xff] %v670
  %735 = vst [vmem:[%s6 + $0x160] sm:$0xff] %v671
  %736 = vst [vmem:[%s6 + $0x168] sm:$0xff] %v672
  %737 = vst [vmem:[%s6 + $0x170] sm:$0xff] %v673
  %738 = vst [vmem:[%s6 + $0x178] sm:$0xff] %v674
  %739 = vst [vmem:[%s6 + $0x180] sm:$0xff] %v675
  %740 = vst [vmem:[%s6 + $0x188] sm:$0xff] %v676
  %741 = vst [vmem:[%s6 + $0x190] sm:$0xff] %v677
  %742 = vst [vmem:[%s6 + $0x198] sm:$0xff] %v678
  %743 = vst [vmem:[%s6 + $0x1a0] sm:$0xff] %v679
  %744 = vst [vmem:[%s6 + $0x1a8] sm:$0xff] %v680
  %745 = vst [vmem:[%s6 + $0x1b0] sm:$0xff] %v681
  %746 = vst [vmem:[%s6 + $0x1b8] sm:$0xff] %v682
  %747 = vst [vmem:[%s6 + $0x1c0] sm:$0xff] %v683
  %748 = vst [vmem:[%s6 + $0x1c8] sm:$0xff] %v684
  %749 = vst [vmem:[%s6 + $0x1d0] sm:$0xff] %v685
  %750 = vst [vmem:[%s6 + $0x1d8] sm:$0xff] %v686
  %751 = vst [vmem:[%s6 + $0x1e0] sm:$0xff] %v687
  %752 = vst [vmem:[%s6 + $0x1e8] sm:$0xff] %v688
  %753 = vst [vmem:[%s6 + $0x1f0] sm:$0xff] %v689
  %754 = vst [vmem:[%s6 + $0x1f8] sm:$0xff] %v690
  // Predicated region
  $region26: #{basic_block_forward.9} parent=0 // pred_check
    _
  $region27: #{basic_block_forward.9} parent=0 // pred_check_branch
    %756 = sbr.rel (0) target = $region29
  $region28: #{basic_block_forward.9} parent=0 // pred_region
    _
  $region29: #{basic_block_forward.9} parent=0 // pred_fallthru
    _
  // Predicated region
  $region30: #{basic_block_forward.9} parent=0 // pred_check
    _
  $region31: #{basic_block_forward.9} parent=0 // pred_check_branch
    %758 = sbr.rel (0) target = $region33
  $region32: #{basic_block_forward.9} parent=0 // pred_region
    _
  $region33: #{basic_block_forward.9} parent=0 // pred_fallthru
    _

// kernel: basic_block_forward.8
$region0: #{basic_block_forward.8}
  #allocation0 [shape = 'u32[]', space=smem, size = 0x4, offset = 0x4, fixed_abs, tag = 'smem constant byte address 0x4 - core index']
  #allocation1 [shape = 'u32[144,128]{1,0:T(1,128)}', space=vmem, size = 0x12000, scoped, tag = 'internal scratch']
  %s0 = inlined_call_operand.vmem [shape: bf16[512,128], index: 0, kind: input, shape index: {}]
  %s1 = inlined_call_operand.vmem [shape: bf16[128,128], index: 1, kind: input, shape index: {}]
  %s2 = inlined_call_operand.vmem [shape: bf16[512,128], index: 2, kind: output, shape index: {0}]
  %s3 = inlined_call_operand.vmem [shape: f32[1,8,128], index: 3, kind: output, shape index: {1}]
  %4 = xla_tuple %s2, %s3
  %s5 = sld [smem:[#allocation0]]
  $region26: #{basic_block_forward.8} parent=0
    _
  %s7 = ssub.s32 1, %s5
  %s8 = scalar_select 0, %s7, %s5
  // Predicated region
  $region2: #{basic_block_forward.8} parent=0 // pred_check
    _
  $region3: #{basic_block_forward.8} parent=0 // pred_check_branch
    %10 = sbr.rel (0) target = $region5
  $region4: #{basic_block_forward.8} parent=0 // pred_region
    _
  $region5: #{basic_block_forward.8} parent=0 // pred_fallthru
    _
  // Predicated region
  $region6: #{basic_block_forward.8} parent=0 // pred_check
    _
  $region7: #{basic_block_forward.8} parent=0 // pred_check_branch
    %12 = sbr.rel (0) target = $region9
  $region8: #{basic_block_forward.8} parent=0 // pred_region
    _
  $region9: #{basic_block_forward.8} parent=0 // pred_fallthru
    _
  %v14 = vld [vmem:[%s0] sm:$0xf]
  %v15 = vld [vmem:[%s0 + $0x4] sm:$0xf]
  %v16 = vld [vmem:[%s0 + $0x8] sm:$0xf]
  %v17 = vld [vmem:[%s0 + $0xc] sm:$0xf]
  %v18 = vld [vmem:[%s0 + $0x10] sm:$0xf]
  %v19 = vld [vmem:[%s0 + $0x14] sm:$0xf]
  %v20 = vld [vmem:[%s0 + $0x18] sm:$0xf]
  %v21 = vld [vmem:[%s0 + $0x1c] sm:$0xf]
  %v22 = vld [vmem:[%s0 + $0x20] sm:$0xf]
  %v23 = vld [vmem:[%s0 + $0x24] sm:$0xf]
  %v24 = vld [vmem:[%s0 + $0x28] sm:$0xf]
  %v25 = vld [vmem:[%s0 + $0x2c] sm:$0xf]
  %v26 = vld [vmem:[%s0 + $0x30] sm:$0xf]
  %v27 = vld [vmem:[%s0 + $0x34] sm:$0xf]
  %v28 = vld [vmem:[%s0 + $0x38] sm:$0xf]
  %v29 = vld [vmem:[%s0 + $0x3c] sm:$0xf]
  %v30 = vld [vmem:[%s0 + $0x40] sm:$0xf]
  %v31 = vld [vmem:[%s0 + $0x44] sm:$0xf]
  %v32 = vld [vmem:[%s0 + $0x48] sm:$0xf]
  %v33 = vld [vmem:[%s0 + $0x4c] sm:$0xf]
  %v34 = vld [vmem:[%s0 + $0x50] sm:$0xf]
  %v35 = vld [vmem:[%s0 + $0x54] sm:$0xf]
  %v36 = vld [vmem:[%s0 + $0x58] sm:$0xf]
  %v37 = vld [vmem:[%s0 + $0x5c] sm:$0xf]
  %v38 = vld [vmem:[%s0 + $0x60] sm:$0xf]
  %v39 = vld [vmem:[%s0 + $0x64] sm:$0xf]
  %v40 = vld [vmem:[%s0 + $0x68] sm:$0xf]
  %v41 = vld [vmem:[%s0 + $0x6c] sm:$0xf]
  %v42 = vld [vmem:[%s0 + $0x70] sm:$0xf]
  %v43 = vld [vmem:[%s0 + $0x74] sm:$0xf]
  %v44 = vld [vmem:[%s0 + $0x78] sm:$0xf]
  %v45 = vld [vmem:[%s0 + $0x7c] sm:$0xf]
  %v46 = vld [vmem:[%s0 + $0x80] sm:$0xf]
  %v47 = vld [vmem:[%s0 + $0x84] sm:$0xf]
  %v48 = vld [vmem:[%s0 + $0x88] sm:$0xf]
  %v49 = vld [vmem:[%s0 + $0x8c] sm:$0xf]
  %v50 = vld [vmem:[%s0 + $0x90] sm:$0xf]
  %v51 = vld [vmem:[%s0 + $0x94] sm:$0xf]
  %v52 = vld [vmem:[%s0 + $0x98] sm:$0xf]
  %v53 = vld [vmem:[%s0 + $0x9c] sm:$0xf]
  %v54 = vld [vmem:[%s0 + $0xa0] sm:$0xf]
  %v55 = vld [vmem:[%s0 + $0xa4] sm:$0xf]
  %v56 = vld [vmem:[%s0 + $0xa8] sm:$0xf]
  %v57 = vld [vmem:[%s0 + $0xac] sm:$0xf]
  %v58 = vld [vmem:[%s0 + $0xb0] sm:$0xf]
  %v59 = vld [vmem:[%s0 + $0xb4] sm:$0xf]
  %v60 = vld [vmem:[%s0 + $0xb8] sm:$0xf]
  %v61 = vld [vmem:[%s0 + $0xbc] sm:$0xf]
  %v62 = vld [vmem:[%s0 + $0xc0] sm:$0xf]
  %v63 = vld [vmem:[%s0 + $0xc4] sm:$0xf]
  %v64 = vld [vmem:[%s0 + $0xc8] sm:$0xf]
  %v65 = vld [vmem:[%s0 + $0xcc] sm:$0xf]
  %v66 = vld [vmem:[%s0 + $0xd0] sm:$0xf]
  %v67 = vld [vmem:[%s0 + $0xd4] sm:$0xf]
  %v68 = vld [vmem:[%s0 + $0xd8] sm:$0xf]
  %v69 = vld [vmem:[%s0 + $0xdc] sm:$0xf]
  %v70 = vld [vmem:[%s0 + $0xe0] sm:$0xf]
  %v71 = vld [vmem:[%s0 + $0xe4] sm:$0xf]
  %v72 = vld [vmem:[%s0 + $0xe8] sm:$0xf]
  %v73 = vld [vmem:[%s0 + $0xec] sm:$0xf]
  %v74 = vld [vmem:[%s0 + $0xf0] sm:$0xf]
  %v75 = vld [vmem:[%s0 + $0xf4] sm:$0xf]
  %v76 = vld [vmem:[%s0 + $0xf8] sm:$0xf]
  %v77 = vld [vmem:[%s0 + $0xfc] sm:$0xf]
  %v78 = vld [vmem:[%s1] sm:$0xf]
  %v79 = vld [vmem:[%s1 + $0x4] sm:$0xf]
  %v80 = vld [vmem:[%s1 + $0x8] sm:$0xf]
  %v81 = vld [vmem:[%s1 + $0xc] sm:$0xf]
  %v82 = vld [vmem:[%s1 + $0x10] sm:$0xf]
  %v83 = vld [vmem:[%s1 + $0x14] sm:$0xf]
  %v84 = vld [vmem:[%s1 + $0x18] sm:$0xf]
  %v85 = vld [vmem:[%s1 + $0x1c] sm:$0xf]
  %v86 = vld [vmem:[%s1 + $0x20] sm:$0xf]
  %v87 = vld [vmem:[%s1 + $0x24] sm:$0xf]
  %v88 = vld [vmem:[%s1 + $0x28] sm:$0xf]
  %v89 = vld [vmem:[%s1 + $0x2c] sm:$0xf]
  %v90 = vld [vmem:[%s1 + $0x30] sm:$0xf]
  %v91 = vld [vmem:[%s1 + $0x34] sm:$0xf]
  %v92 = vld [vmem:[%s1 + $0x38] sm:$0xf]
  %v93 = vld [vmem:[%s1 + $0x3c] sm:$0xf]
  %v158 = vunpack.c.l.b16 %v14
  %v159 = vunpack.c.l.b16 %v15
  %v160 = vunpack.c.l.b16 %v16
  %v161 = vunpack.c.l.b16 %v17
  %v162 = vunpack.c.l.b16 %v18
  %v163 = vunpack.c.l.b16 %v19
  %v164 = vunpack.c.l.b16 %v20
  %v165 = vunpack.c.l.b16 %v21
  %v166 = vunpack.c.l.b16 %v22
  %v167 = vunpack.c.l.b16 %v23
  %v168 = vunpack.c.l.b16 %v24
  %v169 = vunpack.c.l.b16 %v25
  %v170 = vunpack.c.l.b16 %v26
  %v171 = vunpack.c.l.b16 %v27
  %v172 = vunpack.c.l.b16 %v28
  %v173 = vunpack.c.l.b16 %v29
  %v174 = vunpack.c.l.b16 %v30
  %v175 = vunpack.c.l.b16 %v31
  %v176 = vunpack.c.l.b16 %v32
  %v177 = vunpack.c.l.b16 %v33
  %v178 = vunpack.c.l.b16 %v34
  %v179 = vunpack.c.l.b16 %v35
  %v180 = vunpack.c.l.b16 %v36
  %v181 = vunpack.c.l.b16 %v37
  %v182 = vunpack.c.l.b16 %v38
  %v183 = vunpack.c.l.b16 %v39
  %v184 = vunpack.c.l.b16 %v40
  %v185 = vunpack.c.l.b16 %v41
  %v186 = vunpack.c.l.b16 %v42
  %v187 = vunpack.c.l.b16 %v43
  %v188 = vunpack.c.l.b16 %v44
  %v189 = vunpack.c.l.b16 %v45
  %v190 = vunpack.c.l.b16 %v46
  %v191 = vunpack.c.l.b16 %v47
  %v192 = vunpack.c.l.b16 %v48
  %v193 = vunpack.c.l.b16 %v49
  %v194 = vunpack.c.l.b16 %v50
  %v195 = vunpack.c.l.b16 %v51
  %v196 = vunpack.c.l.b16 %v52
  %v197 = vunpack.c.l.b16 %v53
  %v198 = vunpack.c.l.b16 %v54
  %v199 = vunpack.c.l.b16 %v55
  %v200 = vunpack.c.l.b16 %v56
  %v201 = vunpack.c.l.b16 %v57
  %v202 = vunpack.c.l.b16 %v58
  %v203 = vunpack.c.l.b16 %v59
  %v204 = vunpack.c.l.b16 %v60
  %v205 = vunpack.c.l.b16 %v61
  %v206 = vunpack.c.l.b16 %v62
  %v207 = vunpack.c.l.b16 %v63
  %v208 = vunpack.c.l.b16 %v64
  %v209 = vunpack.c.l.b16 %v65
  %v210 = vunpack.c.l.b16 %v66
  %v211 = vunpack.c.l.b16 %v67
  %v212 = vunpack.c.l.b16 %v68
  %v213 = vunpack.c.l.b16 %v69
  %v214 = vunpack.c.l.b16 %v70
  %v215 = vunpack.c.l.b16 %v71
  %v216 = vunpack.c.l.b16 %v72
  %v217 = vunpack.c.l.b16 %v73
  %v218 = vunpack.c.l.b16 %v74
  %v219 = vunpack.c.l.b16 %v75
  %v220 = vunpack.c.l.b16 %v76
  %v221 = vunpack.c.l.b16 %v77
  %v222 = vpack.c.b16 %v159, %v158
  %v223 = vpack.c.b16 %v161, %v160
  %v224 = vpack.c.b16 %v163, %v162
  %v225 = vpack.c.b16 %v165, %v164
  %v226 = vpack.c.b16 %v167, %v166
  %v227 = vpack.c.b16 %v169, %v168
  %v228 = vpack.c.b16 %v171, %v170
  %v229 = vpack.c.b16 %v173, %v172
  %v230 = vpack.c.b16 %v175, %v174
  %v231 = vpack.c.b16 %v177, %v176
  %v232 = vpack.c.b16 %v179, %v178
  %v233 = vpack.c.b16 %v181, %v180
  %v234 = vpack.c.b16 %v183, %v182
  %v235 = vpack.c.b16 %v185, %v184
  %v236 = vpack.c.b16 %v187, %v186
  %v237 = vpack.c.b16 %v189, %v188
  %v238 = vpack.c.b16 %v191, %v190
  %v239 = vpack.c.b16 %v193, %v192
  %v240 = vpack.c.b16 %v195, %v194
  %v241 = vpack.c.b16 %v197, %v196
  %v242 = vpack.c.b16 %v199, %v198
  %v243 = vpack.c.b16 %v201, %v200
  %v244 = vpack.c.b16 %v203, %v202
  %v245 = vpack.c.b16 %v205, %v204
  %v246 = vpack.c.b16 %v207, %v206
  %v247 = vpack.c.b16 %v209, %v208
  %v248 = vpack.c.b16 %v211, %v210
  %v249 = vpack.c.b16 %v213, %v212
  %v250 = vpack.c.b16 %v215, %v214
  %v251 = vpack.c.b16 %v217, %v216
  %v252 = vpack.c.b16 %v219, %v218
  %v253 = vpack.c.b16 %v221, %v220
  %v302 = vunpack.c.l.b16 %v78
  %v303 = vunpack.c.l.b16 %v79
  %v304 = vunpack.c.l.b16 %v80
  %v305 = vunpack.c.l.b16 %v81
  %v306 = vunpack.c.l.b16 %v82
  %v307 = vunpack.c.l.b16 %v83
  %v308 = vunpack.c.l.b16 %v84
  %v309 = vunpack.c.l.b16 %v85
  %v310 = vunpack.c.l.b16 %v86
  %v311 = vunpack.c.l.b16 %v87
  %v312 = vunpack.c.l.b16 %v88
  %v313 = vunpack.c.l.b16 %v89
  %v314 = vunpack.c.l.b16 %v90
  %v315 = vunpack.c.l.b16 %v91
  %v316 = vunpack.c.l.b16 %v92
  %v317 = vunpack.c.l.b16 %v93
  %v318 = vpack.c.b16 %v303, %v302
  %v319 = vpack.c.b16 %v305, %v304
  %v320 = vpack.c.b16 %v307, %v306
  %v321 = vpack.c.b16 %v309, %v308
  %v322 = vpack.c.b16 %v311, %v310
  %v323 = vpack.c.b16 %v313, %v312
  %v324 = vpack.c.b16 %v315, %v314
  %v325 = vpack.c.b16 %v317, %v316
  %334 = vmatprep.subr.bf16.mxu0 0
  %335 = vmatpush1.bf16.msra.mxu0 %v318
  %336 = vmatprep.subr.bf16.mxu0 0
  %337 = vmatpush1.bf16.msra.mxu0 %v319
  %338 = vmatprep.subr.bf16.mxu0 0
  %339 = vmatpush1.bf16.msra.mxu0 %v320
  %340 = vmatprep.subr.bf16.mxu0 0
  %341 = vmatpush1.bf16.msra.mxu0 %v321
  %342 = vmatprep.subr.bf16.mxu0 0
  %343 = vmatpush1.bf16.msra.mxu0 %v322
  %344 = vmatprep.subr.bf16.mxu0 0
  %345 = vmatpush1.bf16.msra.mxu0 %v323
  %346 = vmatprep.subr.bf16.mxu0 0
  %347 = vmatpush1.bf16.msra.mxu0 %v324
  %348 = vmatprep.subr.bf16.mxu0 0
  %349 = vmatpush1.bf16.msra.mxu0 %v325
  %350 = vmatprep.subr.bf16.mxu0 0
  %351 = vmatpush1.bf16.msra.mxu0 0
  %352 = vmatprep.subr.bf16.mxu0 0
  %353 = vmatpush1.bf16.msra.mxu0 0
  %354 = vmatprep.subr.bf16.mxu0 0
  %355 = vmatpush1.bf16.msra.mxu0 0
  %356 = vmatprep.subr.bf16.mxu0 0
  %357 = vmatpush1.bf16.msra.mxu0 0
  %358 = vmatprep.subr.bf16.mxu0 0
  %359 = vmatpush1.bf16.msra.mxu0 0
  %360 = vmatprep.subr.bf16.mxu0 0
  %361 = vmatpush1.bf16.msra.mxu0 0
  %362 = vmatprep.subr.bf16.mxu0 0
  %363 = vmatpush1.bf16.msra.mxu0 0
  %364 = vmatprep.subr.bf16.mxu0 0
  %365 = vmatpush1.bf16.msra.mxu0 0
  %366 = vmatprep.mubr.bf16.mxu0 0
  %367 = vmatmul.mubr.bf16.gmra.mrb[0].mxu0 %v222
  %v368 = vpop.f32.mrb[0].mxu0
  %v369 = vadd.f32 0.0, %v368
  %v370 = vpop.f32.mrb[0].mxu0
  %v371 = vpop.f32.mrb[0].mxu0
  %v372 = vadd.f32 0.0, %v371
  %v373 = vpop.f32.mrb[0].mxu0
  %374 = vmatprep.mubr.bf16.mxu0 0
  %375 = vmatmul.mubr.bf16.gmra.mrb[0].mxu0 %v223
  %v376 = vpop.f32.mrb[0].mxu0
  %v377 = vadd.f32 0.0, %v376
  %v378 = vpop.f32.mrb[0].mxu0
  %v379 = vpop.f32.mrb[0].mxu0
  %v380 = vadd.f32 0.0, %v379
  %v381 = vpop.f32.mrb[0].mxu0
  %382 = vmatprep.mubr.bf16.mxu0 0
  %383 = vmatmul.mubr.bf16.gmra.mrb[0].mxu0 %v224
  %v384 = vpop.f32.mrb[0].mxu0
  %v385 = vadd.f32 0.0, %v384
  %v386 = vpop.f32.mrb[0].mxu0
  %v387 = vpop.f32.mrb[0].mxu0
  %v388 = vadd.f32 0.0, %v387
  %v389 = vpop.f32.mrb[0].mxu0
  %390 = vmatprep.mubr.bf16.mxu0 0
  %391 = vmatmul.mubr.bf16.gmra.mrb[0].mxu0 %v225
  %v392 = vpop.f32.mrb[0].mxu0
  %v393 = vadd.f32 0.0, %v392
  %v394 = vpop.f32.mrb[0].mxu0
  %v395 = vpop.f32.mrb[0].mxu0
  %v396 = vadd.f32 0.0, %v395
  %v397 = vpop.f32.mrb[0].mxu0
  %398 = vmatprep.mubr.bf16.mxu0 0
  %399 = vmatmul.mubr.bf16.gmra.mrb[0].mxu0 %v226
  %v400 = vpop.f32.mrb[0].mxu0
  %v401 = vadd.f32 0.0, %v400
  %v402 = vpop.f32.mrb[0].mxu0
  %v403 = vpop.f32.mrb[0].mxu0
  %v404 = vadd.f32 0.0, %v403
  %v405 = vpop.f32.mrb[0].mxu0
  %406 = vmatprep.mubr.bf16.mxu0 0
  %407 = vmatmul.mubr.bf16.gmra.mrb[0].mxu0 %v227
  %v408 = vpop.f32.mrb[0].mxu0
  %v409 = vadd.f32 0.0, %v408
  %v410 = vpop.f32.mrb[0].mxu0
  %v411 = vpop.f32.mrb[0].mxu0
  %v412 = vadd.f32 0.0, %v411
  %v413 = vpop.f32.mrb[0].mxu0
  %414 = vmatprep.mubr.bf16.mxu0 0
  %415 = vmatmul.mubr.bf16.gmra.mrb[0].mxu0 %v228
  %v416 = vpop.f32.mrb[0].mxu0
  %v417 = vadd.f32 0.0, %v416
  %v418 = vpop.f32.mrb[0].mxu0
  %v419 = vpop.f32.mrb[0].mxu0
  %v420 = vadd.f32 0.0, %v419
  %v421 = vpop.f32.mrb[0].mxu0
  %422 = vmatprep.mubr.bf16.mxu0 0
  %423 = vmatmul.mubr.bf16.gmra.mrb[0].mxu0 %v229
  %v424 = vpop.f32.mrb[0].mxu0
  %v425 = vadd.f32 0.0, %v424
  %v426 = vpop.f32.mrb[0].mxu0
  %v427 = vpop.f32.mrb[0].mxu0
  %v428 = vadd.f32 0.0, %v427
  %v429 = vpop.f32.mrb[0].mxu0
  %430 = vmatprep.mubr.bf16.mxu0 0
  %431 = vmatmul.mubr.bf16.gmra.mrb[0].mxu0 %v230
  %v432 = vpop.f32.mrb[0].mxu0
  %v433 = vadd.f32 0.0, %v432
  %v434 = vpop.f32.mrb[0].mxu0
  %v435 = vpop.f32.mrb[0].mxu0
  %v436 = vadd.f32 0.0, %v435
  %v437 = vpop.f32.mrb[0].mxu0
  %438 = vmatprep.mubr.bf16.mxu0 0
  %439 = vmatmul.mubr.bf16.gmra.mrb[0].mxu0 %v231
  %v440 = vpop.f32.mrb[0].mxu0
  %v441 = vadd.f32 0.0, %v440
  %v442 = vpop.f32.mrb[0].mxu0
  %v443 = vpop.f32.mrb[0].mxu0
  %v444 = vadd.f32 0.0, %v443
  %v445 = vpop.f32.mrb[0].mxu0
  %446 = vmatprep.mubr.bf16.mxu0 0
  %447 = vmatmul.mubr.bf16.gmra.mrb[0].mxu0 %v232
  %v448 = vpop.f32.mrb[0].mxu0
  %v449 = vadd.f32 0.0, %v448
  %v450 = vpop.f32.mrb[0].mxu0
  %v451 = vpop.f32.mrb[0].mxu0
  %v452 = vadd.f32 0.0, %v451
  %v453 = vpop.f32.mrb[0].mxu0
  %454 = vmatprep.mubr.bf16.mxu0 0
  %455 = vmatmul.mubr.bf16.gmra.mrb[0].mxu0 %v233
  %v456 = vpop.f32.mrb[0].mxu0
  %v457 = vadd.f32 0.0, %v456
  %v458 = vpop.f32.mrb[0].mxu0
  %v459 = vpop.f32.mrb[0].mxu0
  %v460 = vadd.f32 0.0, %v459
  %v461 = vpop.f32.mrb[0].mxu0
  %462 = vmatprep.mubr.bf16.mxu0 0
  %463 = vmatmul.mubr.bf16.gmra.mrb[0].mxu0 %v234
  %v464 = vpop.f32.mrb[0].mxu0
  %v465 = vadd.f32 0.0, %v464
  %v466 = vpop.f32.mrb[0].mxu0
  %v467 = vpop.f32.mrb[0].mxu0
  %v468 = vadd.f32 0.0, %v467
  %v469 = vpop.f32.mrb[0].mxu0
  %470 = vmatprep.mubr.bf16.mxu0 0
  %471 = vmatmul.mubr.bf16.gmra.mrb[0].mxu0 %v235
  %v472 = vpop.f32.mrb[0].mxu0
  %v473 = vadd.f32 0.0, %v472
  %v474 = vpop.f32.mrb[0].mxu0
  %v475 = vpop.f32.mrb[0].mxu0
  %v476 = vadd.f32 0.0, %v475
  %v477 = vpop.f32.mrb[0].mxu0
  %478 = vmatprep.mubr.bf16.mxu0 0
  %479 = vmatmul.mubr.bf16.gmra.mrb[0].mxu0 %v236
  %v480 = vpop.f32.mrb[0].mxu0
  %v481 = vadd.f32 0.0, %v480
  %v482 = vpop.f32.mrb[0].mxu0
  %v483 = vpop.f32.mrb[0].mxu0
  %v484 = vadd.f32 0.0, %v483
  %v485 = vpop.f32.mrb[0].mxu0
  %486 = vmatprep.mubr.bf16.mxu0 0
  %487 = vmatmul.mubr.bf16.gmra.mrb[0].mxu0 %v237
  %v488 = vpop.f32.mrb[0].mxu0
  %v489 = vadd.f32 0.0, %v488
  %v490 = vpop.f32.mrb[0].mxu0
  %v491 = vpop.f32.mrb[0].mxu0
  %v492 = vadd.f32 0.0, %v491
  %v493 = vpop.f32.mrb[0].mxu0
  %494 = vmatprep.mubr.bf16.mxu0 0
  %495 = vmatmul.mubr.bf16.gmra.mrb[0].mxu0 %v238
  %v496 = vpop.f32.mrb[0].mxu0
  %v497 = vadd.f32 0.0, %v496
  %v498 = vpop.f32.mrb[0].mxu0
  %v499 = vpop.f32.mrb[0].mxu0
  %v500 = vadd.f32 0.0, %v499
  %v501 = vpop.f32.mrb[0].mxu0
  %502 = vmatprep.mubr.bf16.mxu0 0
  %503 = vmatmul.mubr.bf16.gmra.mrb[0].mxu0 %v239
  %v504 = vpop.f32.mrb[0].mxu0
  %v505 = vadd.f32 0.0, %v504
  %v506 = vpop.f32.mrb[0].mxu0
  %v507 = vpop.f32.mrb[0].mxu0
  %v508 = vadd.f32 0.0, %v507
  %v509 = vpop.f32.mrb[0].mxu0
  %510 = vmatprep.mubr.bf16.mxu0 0
  %511 = vmatmul.mubr.bf16.gmra.mrb[0].mxu0 %v240
  %v512 = vpop.f32.mrb[0].mxu0
  %v513 = vadd.f32 0.0, %v512
  %v514 = vpop.f32.mrb[0].mxu0
  %v515 = vpop.f32.mrb[0].mxu0
  %v516 = vadd.f32 0.0, %v515
  %v517 = vpop.f32.mrb[0].mxu0
  %518 = vmatprep.mubr.bf16.mxu0 0
  %519 = vmatmul.mubr.bf16.gmra.mrb[0].mxu0 %v241
  %v520 = vpop.f32.mrb[0].mxu0
  %v521 = vadd.f32 0.0, %v520
  %v522 = vpop.f32.mrb[0].mxu0
  %v523 = vpop.f32.mrb[0].mxu0
  %v524 = vadd.f32 0.0, %v523
  %v525 = vpop.f32.mrb[0].mxu0
  %526 = vmatprep.mubr.bf16.mxu0 0
  %527 = vmatmul.mubr.bf16.gmra.mrb[0].mxu0 %v242
  %v528 = vpop.f32.mrb[0].mxu0
  %v529 = vadd.f32 0.0, %v528
  %v530 = vpop.f32.mrb[0].mxu0
  %v531 = vpop.f32.mrb[0].mxu0
  %v532 = vadd.f32 0.0, %v531
  %v533 = vpop.f32.mrb[0].mxu0
  %534 = vmatprep.mubr.bf16.mxu0 0
  %535 = vmatmul.mubr.bf16.gmra.mrb[0].mxu0 %v243
  %v536 = vpop.f32.mrb[0].mxu0
  %v537 = vadd.f32 0.0, %v536
  %v538 = vpop.f32.mrb[0].mxu0
  %v539 = vpop.f32.mrb[0].mxu0
  %v540 = vadd.f32 0.0, %v539
  %v541 = vpop.f32.mrb[0].mxu0
  %542 = vmatprep.mubr.bf16.mxu0 0
  %543 = vmatmul.mubr.bf16.gmra.mrb[0].mxu0 %v244
  %v544 = vpop.f32.mrb[0].mxu0
  %v545 = vadd.f32 0.0, %v544
  %v546 = vpop.f32.mrb[0].mxu0
  %v547 = vpop.f32.mrb[0].mxu0
  %v548 = vadd.f32 0.0, %v547
  %v549 = vpop.f32.mrb[0].mxu0
  %550 = vmatprep.mubr.bf16.mxu0 0
  %551 = vmatmul.mubr.bf16.gmra.mrb[0].mxu0 %v245
  %v552 = vpop.f32.mrb[0].mxu0
  %v553 = vadd.f32 0.0, %v552
  %v554 = vpop.f32.mrb[0].mxu0
  %v555 = vpop.f32.mrb[0].mxu0
  %v556 = vadd.f32 0.0, %v555
  %v557 = vpop.f32.mrb[0].mxu0
  %558 = vmatprep.mubr.bf16.mxu0 0
  %559 = vmatmul.mubr.bf16.gmra.mrb[0].mxu0 %v246
  %v560 = vpop.f32.mrb[0].mxu0
  %v561 = vadd.f32 0.0, %v560
  %v562 = vpop.f32.mrb[0].mxu0
  %v563 = vpop.f32.mrb[0].mxu0
  %v564 = vadd.f32 0.0, %v563
  %v565 = vpop.f32.mrb[0].mxu0
  %566 = vmatprep.mubr.bf16.mxu0 0
  %567 = vmatmul.mubr.bf16.gmra.mrb[0].mxu0 %v247
  %v568 = vpop.f32.mrb[0].mxu0
  %v569 = vadd.f32 0.0, %v568
  %v570 = vpop.f32.mrb[0].mxu0
  %v571 = vpop.f32.mrb[0].mxu0
  %v572 = vadd.f32 0.0, %v571
  %v573 = vpop.f32.mrb[0].mxu0
  %574 = vmatprep.mubr.bf16.mxu0 0
  %575 = vmatmul.mubr.bf16.gmra.mrb[0].mxu0 %v248
  %v576 = vpop.f32.mrb[0].mxu0
  %v577 = vadd.f32 0.0, %v576
  %v578 = vpop.f32.mrb[0].mxu0
  %v579 = vpop.f32.mrb[0].mxu0
  %v580 = vadd.f32 0.0, %v579
  %v581 = vpop.f32.mrb[0].mxu0
  %582 = vmatprep.mubr.bf16.mxu0 0
  %583 = vmatmul.mubr.bf16.gmra.mrb[0].mxu0 %v249
  %v584 = vpop.f32.mrb[0].mxu0
  %v585 = vadd.f32 0.0, %v584
  %v586 = vpop.f32.mrb[0].mxu0
  %v587 = vpop.f32.mrb[0].mxu0
  %v588 = vadd.f32 0.0, %v587
  %v589 = vpop.f32.mrb[0].mxu0
  %590 = vmatprep.mubr.bf16.mxu0 0
  %591 = vmatmul.mubr.bf16.gmra.mrb[0].mxu0 %v250
  %v592 = vpop.f32.mrb[0].mxu0
  %v593 = vadd.f32 0.0, %v592
  %v594 = vpop.f32.mrb[0].mxu0
  %v595 = vpop.f32.mrb[0].mxu0
  %v596 = vadd.f32 0.0, %v595
  %v597 = vpop.f32.mrb[0].mxu0
  %598 = vmatprep.mubr.bf16.mxu0 0
  %599 = vmatmul.mubr.bf16.gmra.mrb[0].mxu0 %v251
  %v600 = vpop.f32.mrb[0].mxu0
  %v601 = vadd.f32 0.0, %v600
  %v602 = vpop.f32.mrb[0].mxu0
  %v603 = vpop.f32.mrb[0].mxu0
  %v604 = vadd.f32 0.0, %v603
  %v605 = vpop.f32.mrb[0].mxu0
  %606 = vmatprep.mubr.bf16.mxu0 0
  %607 = vmatmul.mubr.bf16.gmra.mrb[0].mxu0 %v252
  %v608 = vpop.f32.mrb[0].mxu0
  %v609 = vadd.f32 0.0, %v608
  %v610 = vpop.f32.mrb[0].mxu0
  %v611 = vpop.f32.mrb[0].mxu0
  %v612 = vadd.f32 0.0, %v611
  %v613 = vpop.f32.mrb[0].mxu0
  %614 = vmatprep.mubr.bf16.mxu0 0
  %615 = vmatmul.mubr.bf16.gmra.mrb[0].mxu0 %v253
  %v616 = vpop.f32.mrb[0].mxu0
  %v617 = vadd.f32 0.0, %v616
  %v618 = vpop.f32.mrb[0].mxu0
  %v619 = vpop.f32.mrb[0].mxu0
  %v620 = vadd.f32 0.0, %v619
  %v621 = vpop.f32.mrb[0].mxu0
  %622 = vdwg.mxu0
  %v623 = vpack.c.bf16 %v372, %v369
  %v624 = vpack.c.bf16 %v380, %v377
  %v625 = vpack.c.bf16 %v388, %v385
  %v626 = vpack.c.bf16 %v396, %v393
  %v627 = vpack.c.bf16 %v404, %v401
  %v628 = vpack.c.bf16 %v412, %v409
  %v629 = vpack.c.bf16 %v420, %v417
  %v630 = vpack.c.bf16 %v428, %v425
  %v631 = vpack.c.bf16 %v436, %v433
  %v632 = vpack.c.bf16 %v444, %v441
  %v633 = vpack.c.bf16 %v452, %v449
  %v634 = vpack.c.bf16 %v460, %v457
  %v635 = vpack.c.bf16 %v468, %v465
  %v636 = vpack.c.bf16 %v476, %v473
  %v637 = vpack.c.bf16 %v484, %v481
  %v638 = vpack.c.bf16 %v492, %v489
  %v639 = vpack.c.bf16 %v500, %v497
  %v640 = vpack.c.bf16 %v508, %v505
  %v641 = vpack.c.bf16 %v516, %v513
  %v642 = vpack.c.bf16 %v524, %v521
  %v643 = vpack.c.bf16 %v532, %v529
  %v644 = vpack.c.bf16 %v540, %v537
  %v645 = vpack.c.bf16 %v548, %v545
  %v646 = vpack.c.bf16 %v556, %v553
  %v647 = vpack.c.bf16 %v564, %v561
  %v648 = vpack.c.bf16 %v572, %v569
  %v649 = vpack.c.bf16 %v580, %v577
  %v650 = vpack.c.bf16 %v588, %v585
  %v651 = vpack.c.bf16 %v596, %v593
  %v652 = vpack.c.bf16 %v604, %v601
  %v653 = vpack.c.bf16 %v612, %v609
  %v654 = vpack.c.bf16 %v620, %v617
  %v687 = vunpack.c.l.b16 %v623
  %v688 = vunpack.c.h.b16 %v623
  %v689 = vunpack.c.l.b16 %v624
  %v690 = vunpack.c.h.b16 %v624
  %v691 = vunpack.c.l.b16 %v625
  %v692 = vunpack.c.h.b16 %v625
  %v693 = vunpack.c.l.b16 %v626
  %v694 = vunpack.c.h.b16 %v626
  %v695 = vunpack.c.l.b16 %v627
  %v696 = vunpack.c.h.b16 %v627
  %v697 = vunpack.c.l.b16 %v628
  %v698 = vunpack.c.h.b16 %v628
  %v699 = vunpack.c.l.b16 %v629
  %v700 = vunpack.c.h.b16 %v629
  %v701 = vunpack.c.l.b16 %v630
  %v702 = vunpack.c.h.b16 %v630
  %v703 = vunpack.c.l.b16 %v631
  %v704 = vunpack.c.h.b16 %v631
  %v705 = vunpack.c.l.b16 %v632
  %v706 = vunpack.c.h.b16 %v632
  %v707 = vunpack.c.l.b16 %v633
  %v708 = vunpack.c.h.b16 %v633
  %v709 = vunpack.c.l.b16 %v634
  %v710 = vunpack.c.h.b16 %v634
  %v711 = vunpack.c.l.b16 %v635
  %v712 = vunpack.c.h.b16 %v635
  %v713 = vunpack.c.l.b16 %v636
  %v714 = vunpack.c.h.b16 %v636
  %v715 = vunpack.c.l.b16 %v637
  %v716 = vunpack.c.h.b16 %v637
  %v717 = vunpack.c.l.b16 %v638
  %v718 = vunpack.c.h.b16 %v638
  %v719 = vunpack.c.l.b16 %v639
  %v720 = vunpack.c.h.b16 %v639
  %v721 = vunpack.c.l.b16 %v640
  %v722 = vunpack.c.h.b16 %v640
  %v723 = vunpack.c.l.b16 %v641
  %v724 = vunpack.c.h.b16 %v641
  %v725 = vunpack.c.l.b16 %v642
  %v726 = vunpack.c.h.b16 %v642
  %v727 = vunpack.c.l.b16 %v643
  %v728 = vunpack.c.h.b16 %v643
  %v729 = vunpack.c.l.b16 %v644
  %v730 = vunpack.c.h.b16 %v644
  %v731 = vunpack.c.l.b16 %v645
  %v732 = vunpack.c.h.b16 %v645
  %v733 = vunpack.c.l.b16 %v646
  %v734 = vunpack.c.h.b16 %v646
  %v735 = vunpack.c.l.b16 %v647
  %v736 = vunpack.c.h.b16 %v647
  %v737 = vunpack.c.l.b16 %v648
  %v738 = vunpack.c.h.b16 %v648
  %v739 = vunpack.c.l.b16 %v649
  %v740 = vunpack.c.h.b16 %v649
  %v741 = vunpack.c.l.b16 %v650
  %v742 = vunpack.c.h.b16 %v650
  %v743 = vunpack.c.l.b16 %v651
  %v744 = vunpack.c.h.b16 %v651
  %v745 = vunpack.c.l.b16 %v652
  %v746 = vunpack.c.h.b16 %v652
  %v747 = vunpack.c.l.b16 %v653
  %v748 = vunpack.c.h.b16 %v653
  %v749 = vunpack.c.l.b16 %v654
  %v750 = vunpack.c.h.b16 %v654
  %v751 = vpack.c.b16 %v687, %v687
  %v752 = vpack.c.b16 %v688, %v688
  %v753 = vpack.c.b16 %v689, %v689
  %v754 = vpack.c.b16 %v690, %v690
  %v755 = vpack.c.b16 %v691, %v691
  %v756 = vpack.c.b16 %v692, %v692
  %v757 = vpack.c.b16 %v693, %v693
  %v758 = vpack.c.b16 %v694, %v694
  %v759 = vpack.c.b16 %v695, %v695
  %v760 = vpack.c.b16 %v696, %v696
  %v761 = vpack.c.b16 %v697, %v697
  %v762 = vpack.c.b16 %v698, %v698
  %v763 = vpack.c.b16 %v699, %v699
  %v764 = vpack.c.b16 %v700, %v700
  %v765 = vpack.c.b16 %v701, %v701
  %v766 = vpack.c.b16 %v702, %v702
  %v767 = vpack.c.b16 %v703, %v703
  %v768 = vpack.c.b16 %v704, %v704
  %v769 = vpack.c.b16 %v705, %v705
  %v770 = vpack.c.b16 %v706, %v706
  %v771 = vpack.c.b16 %v707, %v707
  %v772 = vpack.c.b16 %v708, %v708
  %v773 = vpack.c.b16 %v709, %v709
  %v774 = vpack.c.b16 %v710, %v710
  %v775 = vpack.c.b16 %v711, %v711
  %v776 = vpack.c.b16 %v712, %v712
  %v777 = vpack.c.b16 %v713, %v713
  %v778 = vpack.c.b16 %v714, %v714
  %v779 = vpack.c.b16 %v715, %v715
  %v780 = vpack.c.b16 %v716, %v716
  %v781 = vpack.c.b16 %v717, %v717
  %v782 = vpack.c.b16 %v718, %v718
  %v783 = vpack.c.b16 %v719, %v719
  %v784 = vpack.c.b16 %v720, %v720
  %v785 = vpack.c.b16 %v721, %v721
  %v786 = vpack.c.b16 %v722, %v722
  %v787 = vpack.c.b16 %v723, %v723
  %v788 = vpack.c.b16 %v724, %v724
  %v789 = vpack.c.b16 %v725, %v725
  %v790 = vpack.c.b16 %v726, %v726
  %v791 = vpack.c.b16 %v727, %v727
  %v792 = vpack.c.b16 %v728, %v728
  %v793 = vpack.c.b16 %v729, %v729
  %v794 = vpack.c.b16 %v730, %v730
  %v795 = vpack.c.b16 %v731, %v731
  %v796 = vpack.c.b16 %v732, %v732
  %v797 = vpack.c.b16 %v733, %v733
  %v798 = vpack.c.b16 %v734, %v734
  %v799 = vpack.c.b16 %v735, %v735
  %v800 = vpack.c.b16 %v736, %v736
  %v801 = vpack.c.b16 %v737, %v737
  %v802 = vpack.c.b16 %v738, %v738
  %v803 = vpack.c.b16 %v739, %v739
  %v804 = vpack.c.b16 %v740, %v740
  %v805 = vpack.c.b16 %v741, %v741
  %v806 = vpack.c.b16 %v742, %v742
  %v807 = vpack.c.b16 %v743, %v743
  %v808 = vpack.c.b16 %v744, %v744
  %v809 = vpack.c.b16 %v745, %v745
  %v810 = vpack.c.b16 %v746, %v746
  %v811 = vpack.c.b16 %v747, %v747
  %v812 = vpack.c.b16 %v748, %v748
  %v813 = vpack.c.b16 %v749, %v749
  %v814 = vpack.c.b16 %v750, %v750
  %879 = vst [vmem:[%s2] sm:$0xf] %v751
  %880 = vst [vmem:[%s2 + $0x4] sm:$0xf] %v752
  %881 = vst [vmem:[%s2 + $0x8] sm:$0xf] %v753
  %882 = vst [vmem:[%s2 + $0xc] sm:$0xf] %v754
  %883 = vst [vmem:[%s2 + $0x10] sm:$0xf] %v755
  %884 = vst [vmem:[%s2 + $0x14] sm:$0xf] %v756
  %885 = vst [vmem:[%s2 + $0x18] sm:$0xf] %v757
  %886 = vst [vmem:[%s2 + $0x1c] sm:$0xf] %v758
  %887 = vst [vmem:[%s2 + $0x20] sm:$0xf] %v759
  %888 = vst [vmem:[%s2 + $0x24] sm:$0xf] %v760
  %889 = vst [vmem:[%s2 + $0x28] sm:$0xf] %v761
  %890 = vst [vmem:[%s2 + $0x2c] sm:$0xf] %v762
  %891 = vst [vmem:[%s2 + $0x30] sm:$0xf] %v763
  %892 = vst [vmem:[%s2 + $0x34] sm:$0xf] %v764
  %893 = vst [vmem:[%s2 + $0x38] sm:$0xf] %v765
  %894 = vst [vmem:[%s2 + $0x3c] sm:$0xf] %v766
  %895 = vst [vmem:[%s2 + $0x40] sm:$0xf] %v767
  %896 = vst [vmem:[%s2 + $0x44] sm:$0xf] %v768
  %897 = vst [vmem:[%s2 + $0x48] sm:$0xf] %v769
  %898 = vst [vmem:[%s2 + $0x4c] sm:$0xf] %v770
  %899 = vst [vmem:[%s2 + $0x50] sm:$0xf] %v771
  %900 = vst [vmem:[%s2 + $0x54] sm:$0xf] %v772
  %901 = vst [vmem:[%s2 + $0x58] sm:$0xf] %v773
  %902 = vst [vmem:[%s2 + $0x5c] sm:$0xf] %v774
  %903 = vst [vmem:[%s2 + $0x60] sm:$0xf] %v775
  %904 = vst [vmem:[%s2 + $0x64] sm:$0xf] %v776
  %905 = vst [vmem:[%s2 + $0x68] sm:$0xf] %v777
  %906 = vst [vmem:[%s2 + $0x6c] sm:$0xf] %v778
  %907 = vst [vmem:[%s2 + $0x70] sm:$0xf] %v779
  %908 = vst [vmem:[%s2 + $0x74] sm:$0xf] %v780
  %909 = vst [vmem:[%s2 + $0x78] sm:$0xf] %v781
  %910 = vst [vmem:[%s2 + $0x7c] sm:$0xf] %v782
  %911 = vst [vmem:[%s2 + $0x80] sm:$0xf] %v783
  %912 = vst [vmem:[%s2 + $0x84] sm:$0xf] %v784
  %913 = vst [vmem:[%s2 + $0x88] sm:$0xf] %v785
  %914 = vst [vmem:[%s2 + $0x8c] sm:$0xf] %v786
  %915 = vst [vmem:[%s2 + $0x90] sm:$0xf] %v787
  %916 = vst [vmem:[%s2 + $0x94] sm:$0xf] %v788
  %917 = vst [vmem:[%s2 + $0x98] sm:$0xf] %v789
  %918 = vst [vmem:[%s2 + $0x9c] sm:$0xf] %v790
  %919 = vst [vmem:[%s2 + $0xa0] sm:$0xf] %v791
  %920 = vst [vmem:[%s2 + $0xa4] sm:$0xf] %v792
  %921 = vst [vmem:[%s2 + $0xa8] sm:$0xf] %v793
  %922 = vst [vmem:[%s2 + $0xac] sm:$0xf] %v794
  %923 = vst [vmem:[%s2 + $0xb0] sm:$0xf] %v795
  %924 = vst [vmem:[%s2 + $0xb4] sm:$0xf] %v796
  %925 = vst [vmem:[%s2 + $0xb8] sm:$0xf] %v797
  %926 = vst [vmem:[%s2 + $0xbc] sm:$0xf] %v798
  %927 = vst [vmem:[%s2 + $0xc0] sm:$0xf] %v799
  %928 = vst [vmem:[%s2 + $0xc4] sm:$0xf] %v800
  %929 = vst [vmem:[%s2 + $0xc8] sm:$0xf] %v801
  %930 = vst [vmem:[%s2 + $0xcc] sm:$0xf] %v802
  %931 = vst [vmem:[%s2 + $0xd0] sm:$0xf] %v803
  %932 = vst [vmem:[%s2 + $0xd4] sm:$0xf] %v804
  %933 = vst [vmem:[%s2 + $0xd8] sm:$0xf] %v805
  %934 = vst [vmem:[%s2 + $0xdc] sm:$0xf] %v806
  %935 = vst [vmem:[%s2 + $0xe0] sm:$0xf] %v807
  %936 = vst [vmem:[%s2 + $0xe4] sm:$0xf] %v808
  %937 = vst [vmem:[%s2 + $0xe8] sm:$0xf] %v809
  %938 = vst [vmem:[%s2 + $0xec] sm:$0xf] %v810
  %939 = vst [vmem:[%s2 + $0xf0] sm:$0xf] %v811
  %940 = vst [vmem:[%s2 + $0xf4] sm:$0xf] %v812
  %941 = vst [vmem:[%s2 + $0xf8] sm:$0xf] %v813
  %942 = vst [vmem:[%s2 + $0xfc] sm:$0xf] %v814
  %v943 = vadd.f32 %v369, %v372
  %v944 = vadd.f32 %v943, %v377
  %v945 = vadd.f32 %v944, %v380
  %v946 = vadd.f32 %v945, %v385
  %v947 = vadd.f32 %v946, %v388
  %v948 = vadd.f32 %v947, %v393
  %v949 = vadd.f32 %v948, %v396
  %v950 = vadd.f32 %v949, %v401
  %v951 = vadd.f32 %v950, %v404
  %v952 = vadd.f32 %v951, %v409
  %v953 = vadd.f32 %v952, %v412
  %v954 = vadd.f32 %v953, %v417
  %v955 = vadd.f32 %v954, %v420
  %v956 = vadd.f32 %v955, %v425
  %v957 = vadd.f32 %v956, %v428
  %v958 = vadd.f32 %v957, %v433
  %v959 = vadd.f32 %v958, %v436
  %v960 = vadd.f32 %v959, %v441
  %v961 = vadd.f32 %v960, %v444
  %v962 = vadd.f32 %v961, %v449
  %v963 = vadd.f32 %v962, %v452
  %v964 = vadd.f32 %v963, %v457
  %v965 = vadd.f32 %v964, %v460
  %v966 = vadd.f32 %v965, %v465
  %v967 = vadd.f32 %v966, %v468
  %v968 = vadd.f32 %v967, %v473
  %v969 = vadd.f32 %v968, %v476
  %v970 = vadd.f32 %v969, %v481
  %v971 = vadd.f32 %v970, %v484
  %v972 = vadd.f32 %v971, %v489
  %v973 = vadd.f32 %v972, %v492
  %v974 = vadd.f32 %v973, %v497
  %v975 = vadd.f32 %v974, %v500
  %v976 = vadd.f32 %v975, %v505
  %v977 = vadd.f32 %v976, %v508
  %v978 = vadd.f32 %v977, %v513
  %v979 = vadd.f32 %v978, %v516
  %v980 = vadd.f32 %v979, %v521
  %v981 = vadd.f32 %v980, %v524
  %v982 = vadd.f32 %v981, %v529
  %v983 = vadd.f32 %v982, %v532
  %v984 = vadd.f32 %v983, %v537
  %v985 = vadd.f32 %v984, %v540
  %v986 = vadd.f32 %v985, %v545
  %v987 = vadd.f32 %v986, %v548
  %v988 = vadd.f32 %v987, %v553
  %v989 = vadd.f32 %v988, %v556
  %v990 = vadd.f32 %v989, %v561
  %v991 = vadd.f32 %v990, %v564
  %v992 = vadd.f32 %v991, %v569
  %v993 = vadd.f32 %v992, %v572
  %v994 = vadd.f32 %v993, %v577
  %v995 = vadd.f32 %v994, %v580
  %v996 = vadd.f32 %v995, %v585
  %v997 = vadd.f32 %v996, %v588
  %v998 = vadd.f32 %v997, %v593
  %v999 = vadd.f32 %v998, %v596
  %v1000 = vadd.f32 %v999, %v601
  %v1001 = vadd.f32 %v1000, %v604
  %v1002 = vadd.f32 %v1001, %v609
  %v1003 = vadd.f32 %v1002, %v612
  %v1004 = vadd.f32 %v1003, %v617
  %v1005 = vadd.f32 %v1004, %v620
  %v1006 = vrot.slane %v1005, 4
  %v1007 = vadd.f32 %v1005, %v1006
  %v1008 = vrot.slane %v1007, 2
  %v1009 = vadd.f32 %v1007, %v1008
  %v1010 = vrot.slane %v1009, 1
  %v1011 = vadd.f32 %v1009, %v1010
  %1012 = vst [vmem:[%s3] sm:$0x1] %v1011
  %v1013 = vmul.f32 %v369, %v369
  %v1014 = vmul.f32 %v372, %v372
  %v1015 = vmul.f32 %v377, %v377
  %v1016 = vmul.f32 %v380, %v380
  %v1017 = vmul.f32 %v385, %v385
  %v1018 = vmul.f32 %v388, %v388
  %v1019 = vmul.f32 %v393, %v393
  %v1020 = vmul.f32 %v396, %v396
  %v1021 = vmul.f32 %v401, %v401
  %v1022 = vmul.f32 %v404, %v404
  %v1023 = vmul.f32 %v409, %v409
  %v1024 = vmul.f32 %v412, %v412
  %v1025 = vmul.f32 %v417, %v417
  %v1026 = vmul.f32 %v420, %v420
  %v1027 = vmul.f32 %v425, %v425
  %v1028 = vmul.f32 %v428, %v428
  %v1029 = vmul.f32 %v433, %v433
  %v1030 = vmul.f32 %v436, %v436
  %v1031 = vmul.f32 %v441, %v441
  %v1032 = vmul.f32 %v444, %v444
  %v1033 = vmul.f32 %v449, %v449
  %v1034 = vmul.f32 %v452, %v452
  %v1035 = vmul.f32 %v457, %v457
  %v1036 = vmul.f32 %v460, %v460
  %v1037 = vmul.f32 %v465, %v465
  %v1038 = vmul.f32 %v468, %v468
  %v1039 = vmul.f32 %v473, %v473
  %v1040 = vmul.f32 %v476, %v476
  %v1041 = vmul.f32 %v481, %v481
  %v1042 = vmul.f32 %v484, %v484
  %v1043 = vmul.f32 %v489, %v489
  %v1044 = vmul.f32 %v492, %v492
  %v1045 = vmul.f32 %v497, %v497
  %v1046 = vmul.f32 %v500, %v500
  %v1047 = vmul.f32 %v505, %v505
  %v1048 = vmul.f32 %v508, %v508
  %v1049 = vmul.f32 %v513, %v513
  %v1050 = vmul.f32 %v516, %v516
  %v1051 = vmul.f32 %v521, %v521
  %v1052 = vmul.f32 %v524, %v524
  %v1053 = vmul.f32 %v529, %v529
  %v1054 = vmul.f32 %v532, %v532
  %v1055 = vmul.f32 %v537, %v537
  %v1056 = vmul.f32 %v540, %v540
  %v1057 = vmul.f32 %v545, %v545
  %v1058 = vmul.f32 %v548, %v548
  %v1059 = vmul.f32 %v553, %v553
  %v1060 = vmul.f32 %v556, %v556
  %v1061 = vmul.f32 %v561, %v561
  %v1062 = vmul.f32 %v564, %v564
  %v1063 = vmul.f32 %v569, %v569
  %v1064 = vmul.f32 %v572, %v572
  %v1065 = vmul.f32 %v577, %v577
  %v1066 = vmul.f32 %v580, %v580
  %v1067 = vmul.f32 %v585, %v585
  %v1068 = vmul.f32 %v588, %v588
  %v1069 = vmul.f32 %v593, %v593
  %v1070 = vmul.f32 %v596, %v596
  %v1071 = vmul.f32 %v601, %v601
  %v1072 = vmul.f32 %v604, %v604
  %v1073 = vmul.f32 %v609, %v609
  %v1074 = vmul.f32 %v612, %v612
  %v1075 = vmul.f32 %v617, %v617
  %v1076 = vmul.f32 %v620, %v620
  %v1077 = vadd.f32 %v1013, %v1014
  %v1078 = vadd.f32 %v1077, %v1015
  %v1079 = vadd.f32 %v1078, %v1016
  %v1080 = vadd.f32 %v1079, %v1017
  %v1081 = vadd.f32 %v1080, %v1018
  %v1082 = vadd.f32 %v1081, %v1019
  %v1083 = vadd.f32 %v1082, %v1020
  %v1084 = vadd.f32 %v1083, %v1021
  %v1085 = vadd.f32 %v1084, %v1022
  %v1086 = vadd.f32 %v1085, %v1023
  %v1087 = vadd.f32 %v1086, %v1024
  %v1088 = vadd.f32 %v1087, %v1025
  %v1089 = vadd.f32 %v1088, %v1026
  %v1090 = vadd.f32 %v1089, %v1027
  %v1091 = vadd.f32 %v1090, %v1028
  %v1092 = vadd.f32 %v1091, %v1029
  %v1093 = vadd.f32 %v1092, %v1030
  %v1094 = vadd.f32 %v1093, %v1031
  %v1095 = vadd.f32 %v1094, %v1032
  %v1096 = vadd.f32 %v1095, %v1033
  %v1097 = vadd.f32 %v1096, %v1034
  %v1098 = vadd.f32 %v1097, %v1035
  %v1099 = vadd.f32 %v1098, %v1036
  %v1100 = vadd.f32 %v1099, %v1037
  %v1101 = vadd.f32 %v1100, %v1038
  %v1102 = vadd.f32 %v1101, %v1039
  %v1103 = vadd.f32 %v1102, %v1040
  %v1104 = vadd.f32 %v1103, %v1041
  %v1105 = vadd.f32 %v1104, %v1042
  %v1106 = vadd.f32 %v1105, %v1043
  %v1107 = vadd.f32 %v1106, %v1044
  %v1108 = vadd.f32 %v1107, %v1045
  %v1109 = vadd.f32 %v1108, %v1046
  %v1110 = vadd.f32 %v1109, %v1047
  %v1111 = vadd.f32 %v1110, %v1048
  %v1112 = vadd.f32 %v1111, %v1049
  %v1113 = vadd.f32 %v1112, %v1050
  %v1114 = vadd.f32 %v1113, %v1051
  %v1115 = vadd.f32 %v1114, %v1052
  %v1116 = vadd.f32 %v1115, %v1053
  %v1117 = vadd.f32 %v1116, %v1054
  %v1118 = vadd.f32 %v1117, %v1055
  %v1119 = vadd.f32 %v1118, %v1056
  %v1120 = vadd.f32 %v1119, %v1057
  %v1121 = vadd.f32 %v1120, %v1058
  %v1122 = vadd.f32 %v1121, %v1059
  %v1123 = vadd.f32 %v1122, %v1060
  %v1124 = vadd.f32 %v1123, %v1061
  %v1125 = vadd.f32 %v1124, %v1062
  %v1126 = vadd.f32 %v1125, %v1063
  %v1127 = vadd.f32 %v1126, %v1064
  %v1128 = vadd.f32 %v1127, %v1065
  %v1129 = vadd.f32 %v1128, %v1066
  %v1130 = vadd.f32 %v1129, %v1067
  %v1131 = vadd.f32 %v1130, %v1068
  %v1132 = vadd.f32 %v1131, %v1069
  %v1133 = vadd.f32 %v1132, %v1070
  %v1134 = vadd.f32 %v1133, %v1071
  %v1135 = vadd.f32 %v1134, %v1072
  %v1136 = vadd.f32 %v1135, %v1073
  %v1137 = vadd.f32 %v1136, %v1074
  %v1138 = vadd.f32 %v1137, %v1075
  %v1139 = vadd.f32 %v1138, %v1076
  %v1140 = vrot.slane %v1139, 4
  %v1141 = vadd.f32 %v1139, %v1140
  %v1142 = vrot.slane %v1141, 2
  %v1143 = vadd.f32 %v1141, %v1142
  %v1144 = vrot.slane %v1143, 1
  %v1145 = vadd.f32 %v1143, %v1144
  %1146 = vst [vmem:[%s3 + $0x1] sm:$0x1] %v1145
  // Predicated region
  $region10: #{basic_block_forward.8} parent=0 // pred_check
    _
  $region11: #{basic_block_forward.8} parent=0 // pred_check_branch
    %1148 = sbr.rel (0) target = $region13
  $region12: #{basic_block_forward.8} parent=0 // pred_region
    _
  $region13: #{basic_block_forward.8} parent=0 // pred_fallthru
    _
  // Predicated region
  $region14: #{basic_block_forward.8} parent=0 // pred_check
    _
  $region15: #{basic_block_forward.8} parent=0 // pred_check_branch
    %1150 = sbr.rel (0) target = $region17
  $region16: #{basic_block_forward.8} parent=0 // pred_region
    _
  $region17: #{basic_block_forward.8} parent=0 // pred_fallthru
    _
  // Predicated region
  $region18: #{basic_block_forward.8} parent=0 // pred_check
    _
  $region19: #{basic_block_forward.8} parent=0 // pred_check_branch
    %1152 = sbr.rel (0) target = $region21
  $region20: #{basic_block_forward.8} parent=0 // pred_region
    _
  $region21: #{basic_block_forward.8} parent=0 // pred_fallthru
    _
  // Predicated region
  $region22: #{basic_block_forward.8} parent=0 // pred_check
    _
  $region23: #{basic_block_forward.8} parent=0 // pred_check_branch
    %1154 = sbr.rel (0) target = $region25
  $region24: #{basic_block_forward.8} parent=0 // pred_region
    _
  $region25: #{basic_block_forward.8} parent=0 // pred_fallthru
    _

// kernel: basic_block_forward.5
$region0: #{basic_block_forward.5}
  #allocation0 [shape = 'u32[]', space=smem, size = 0x4, offset = 0x4, fixed_abs, tag = 'smem constant byte address 0x4 - core index']
  #allocation1 [shape = 'u32[144,128]{1,0:T(1,128)}', space=vmem, size = 0x12000, scoped, tag = 'internal scratch']
  #allocation2 [shape = 'f32[256,128]{1,0:T(8,128)}', space=vmem, size = 0x20000, scoped, tag = 'scratch operand']
  %s0 = inlined_call_operand.vmem [shape: bf16[2,18,18,128], index: 0, kind: input, shape index: {}]
  %s1 = inlined_call_operand.vmem [shape: bf16[9,128,128], index: 1, kind: input, shape index: {}]
  %s2 = inlined_call_operand.vmem [shape: bf16[2,256,128], index: 2, kind: output, shape index: {0}]
  %s3 = inlined_call_operand.vmem [shape: f32[2,8,128], index: 3, kind: output, shape index: {1}]
  %4 = xla_tuple %s2, %s3
  %s5 = sld [smem:[#allocation0]]
  $region49: #{basic_block_forward.5} parent=0
    _
  %s7 = ssub.s32 1, %s5
  %s8 = scalar_select 0, %s7, %s5
  loop: start=0, step=1, limit=4
  $region2: #{basic_block_forward.5} parent=0 // loop_pre_header
    _
  $region3: #{basic_block_forward.5} parent=0 // loop_header
    %s10 = sphi 0, %s14
    %p11 = scmp.ge.s32.totalorder %s10, 4
    %s17 = sphi 0, %s29
    %s18 = sphi 0, %s25
    %s19 = sphi 0, %s17
    %s20 = sphi 0, %s18
    %s21 = sphi 0, %s19
    %s22 = sphi 0, %s20
    %s32 = sphi 0, %s34
    %s35 = sphi 0, %s32
    %s36 = sphi 0, %s35
    %s52 = sphi 0, %s36
    %s58 = sphi 0, %s60
    %s61 = sphi 0, %s58
    %s62 = sphi 0, %s61
    %s78 = sphi 0, %s62
    %s86 = sphi 0, %s88
    %s89 = sphi 0, %s86
    %s90 = sphi 0, %s89
    %s106 = sphi 0, %s90
    %s114 = sphi 0, %s116
    %s117 = sphi 0, %s114
    %s118 = sphi 0, %s117
    %s134 = sphi 0, %s118
  $region4: #{basic_block_forward.5} parent=0 // loop_header_branch
    %13 = sbr.rel (%p11) target = $region8
  $region5: #{basic_block_forward.5} parent=0 // loop_body
    %s15 = ssub.s32 %s10, 1
    %s16 = ssub.s32 %s10, 2
    %s23 = sadd.s32 1, %s18
    %p24 = scmp.ge.s32.totalorder %s23, 1
    %s25 = scalar_select %p24, 0, %s23
    %s26 = sadd.s32 1, %s17
    %s27 = scalar_select %p24, %s26, %s17
    %p28 = scmp.ge.s32.totalorder %s27, 2
    %s29 = scalar_select %p28, 0, %s27
    %s30 = ssub.s32 %s17, %s29
    %p31 = scmp.eq.s32.totalorder %s30, 0
    %s33 = sadd.s32 %s32, 1
    %s34 = scalar_select %p31, %s32, %s33
    %p37 = pneg %p31
    %p38 = scmp.eq.s32.totalorder %s10, 1
    %p39 = por %p37, %p38
    %p40 = scmp.ne.s32.totalorder %s32, %s35
    %p41 = scmp.eq.s32.totalorder %s10, 0
    %p42 = por %p40, %p41
    %p43 = scmp.ne.s32.totalorder %s32, %s35
    %p44 = scmp.eq.s32.totalorder %s15, 1
    %p45 = por %p43, %p44
    %p46 = scmp.ne.s32.totalorder %s35, %s36
    %p47 = scmp.eq.s32.totalorder %s15, 0
    %p48 = por %p46, %p47
    %p49 = scmp.ne.s32.totalorder %s35, %s36
    %p50 = scmp.eq.s32.totalorder %s16, 1
    %p51 = por %p49, %p50
    %p53 = scmp.ne.s32.totalorder %s36, %s52
    %p54 = scmp.eq.s32.totalorder %s16, 0
    %p55 = por %p53, %p54
    %s56 = ssub.s32 %s18, %s25
    %p57 = scmp.eq.s32.totalorder %s56, 0
    %s59 = sadd.s32 %s58, 1
    %s60 = scalar_select %p57, %s58, %s59
    %p63 = pneg %p57
    %p64 = scmp.eq.s32.totalorder %s10, 1
    %p65 = por %p63, %p64
    %p66 = scmp.ne.s32.totalorder %s58, %s61
    %p67 = scmp.eq.s32.totalorder %s10, 0
    %p68 = por %p66, %p67
    %p69 = scmp.ne.s32.totalorder %s58, %s61
    %p70 = scmp.eq.s32.totalorder %s15, 1
    %p71 = por %p69, %p70
    %p72 = scmp.ne.s32.totalorder %s61, %s62
    %p73 = scmp.eq.s32.totalorder %s15, 0
    %p74 = por %p72, %p73
    %p75 = scmp.ne.s32.totalorder %s61, %s62
    %p76 = scmp.eq.s32.totalorder %s16, 1
    %p77 = por %p75, %p76
    %p79 = scmp.ne.s32.totalorder %s62, %s78
    %p80 = scmp.eq.s32.totalorder %s16, 0
    %p81 = por %p79, %p80
    %s82 = ssub.s32 %s17, %s29
    %s83 = ssub.s32 %s18, %s25
    %s84 = sor.u32 %s82, %s83
    %p85 = scmp.eq.s32.totalorder %s84, 0
    %s87 = sadd.s32 %s86, 1
    %s88 = scalar_select %p85, %s86, %s87
    %p91 = pneg %p85
    %p92 = scmp.eq.s32.totalorder %s10, 1
    %p93 = por %p91, %p92
    %p94 = scmp.ne.s32.totalorder %s86, %s89
    %p95 = scmp.eq.s32.totalorder %s10, 0
    %p96 = por %p94, %p95
    %p97 = scmp.ne.s32.totalorder %s86, %s89
    %p98 = scmp.eq.s32.totalorder %s15, 1
    %p99 = por %p97, %p98
    %p100 = scmp.ne.s32.totalorder %s89, %s90
    %p101 = scmp.eq.s32.totalorder %s15, 0
    %p102 = por %p100, %p101
    %p103 = scmp.ne.s32.totalorder %s89, %s90
    %p104 = scmp.eq.s32.totalorder %s16, 1
    %p105 = por %p103, %p104
    %p107 = scmp.ne.s32.totalorder %s90, %s106
    %p108 = scmp.eq.s32.totalorder %s16, 0
    %p109 = por %p107, %p108
    %s110 = ssub.s32 %s17, %s29
    %s111 = ssub.s32 %s18, %s25
    %s112 = sor.u32 %s110, %s111
    %p113 = scmp.eq.s32.totalorder %s112, 0
    %s115 = sadd.s32 %s114, 1
    %s116 = scalar_select %p113, %s114, %s115
    %p119 = pneg %p113
    %p120 = scmp.eq.s32.totalorder %s10, 1
    %p121 = por %p119, %p120
    %p122 = scmp.ne.s32.totalorder %s114, %s117
    %p123 = scmp.eq.s32.totalorder %s10, 0
    %p124 = por %p122, %p123
    %p125 = scmp.ne.s32.totalorder %s114, %s117
    %p126 = scmp.eq.s32.totalorder %s15, 1
    %p127 = por %p125, %p126
    %p128 = scmp.ne.s32.totalorder %s117, %s118
    %p129 = scmp.eq.s32.totalorder %s15, 0
    %p130 = por %p128, %p129
    %p131 = scmp.ne.s32.totalorder %s117, %s118
    %p132 = scmp.eq.s32.totalorder %s16, 1
    %p133 = por %p131, %p132
    %p135 = scmp.ne.s32.totalorder %s118, %s134
    %p136 = scmp.eq.s32.totalorder %s16, 0
    %p137 = por %p135, %p136
    %p138 = scmp.le.s32.totalorder 1, %s10
    %p139 = scmp.lt.s32.totalorder %s10, 3
    %p140 = pnand %p138, %p139
    %p141 = pneg %p140
    // Predicated region
    $region9: #{basic_block_forward.5} parent=5 // pred_check
      _
    $region10: #{basic_block_forward.5} parent=5 // pred_check_branch
      %143 = sbr.rel (%p140) target = $region12
    $region11: #{basic_block_forward.5} parent=5 // pred_region
      %s144 = ssub.s32 %s10, 1
      // Predicated region
      $region13: #{basic_block_forward.5} parent=11 // pred_check
        %p145 = pneg %p74
      $region14: #{basic_block_forward.5} parent=11 // pred_check_branch
        %147 = sbr.rel (%p145) target = $region16
      $region15: #{basic_block_forward.5} parent=11 // pred_region
        %p148 = scmp.lt.s32.totalorder %s20, 0
        %s149 = scalar_select %p148, %s20, 0
        %s150 = smul.addr %s149, 4
        %s151 = scalar_lea.vmem %s1, %s150
      $region16: #{basic_block_forward.5} parent=11 // pred_fallthru
        _
    $region12: #{basic_block_forward.5} parent=5 // pred_fallthru
      _
    %p152 = scmp.lt.s32.totalorder %s10, 2
    // Predicated region
    $region17: #{basic_block_forward.5} parent=5 // pred_check
      %p153 = pneg %p152
    $region18: #{basic_block_forward.5} parent=5 // pred_check_branch
      %155 = sbr.rel (%p153) target = $region20
    $region19: #{basic_block_forward.5} parent=5 // pred_region
      // Predicated region
      $region21: #{basic_block_forward.5} parent=19 // pred_check
        %p156 = pneg %p42
      $region22: #{basic_block_forward.5} parent=19 // pred_check_branch
        %158 = sbr.rel (%p156) target = $region24
      $region23: #{basic_block_forward.5} parent=19 // pred_region
        %p159 = scmp.lt.s32.totalorder %s17, 1
        %s160 = scalar_select %p159, %s17, 1
        %s161 = smul.addr %s160, 54
        %s162 = smul.addr %s161, 4
        %s163 = scalar_lea.vmem %s0, %s162
      $region24: #{basic_block_forward.5} parent=19 // pred_fallthru
        _
    $region20: #{basic_block_forward.5} parent=5 // pred_fallthru
      _
    %p164 = scmp.le.s32.totalorder 1, %s10
    %p165 = scmp.lt.s32.totalorder %s10, 3
    %p166 = pnand %p164, %p165
    %p167 = pneg %p166
    // Predicated region
    $region25: #{basic_block_forward.5} parent=5 // pred_check
      _
    $region26: #{basic_block_forward.5} parent=5 // pred_check_branch
      %169 = sbr.rel (%p166) target = $region28
    $region27: #{basic_block_forward.5} parent=5 // pred_region
      %s170 = ssub.s32 %s10, 1
      %p171 = scmp.lt.s32.totalorder %s19, 1
      %s172 = scalar_select %p171, %s19, 1
      %s173 = smul.addr %s172, 54
      %s174 = smul.addr %s173, 4
      %s175 = scalar_lea.vmem %s0, %s174
      %p176 = pneg %p48
      %p177 = pneg %p45
      %p178 = scmp.lt.s32.totalorder %s20, 0
      %s179 = scalar_select %p178, %s20, 0
      %s180 = smul.addr %s179, 4
      %s181 = scalar_lea.vmem %s1, %s180
      %p182 = pneg %p74
      %p183 = pneg %p71
      %p184 = pneg %p102
      %p185 = pneg %p99
      %p186 = scmp.lt.s32.totalorder %s19, 1
      %s187 = scalar_select %p186, %s19, 1
      %p188 = scmp.lt.s32.totalorder %s20, 0
      %s189 = scalar_select %p188, %s20, 0
      %s190 = smul.addr %s187, 32
      %s191 = sadd.s32 %s189, %s190
      %s192 = smul.addr %s191, 4
      %s193 = scalar_lea.vmem %s2, %s192
      %p194 = pneg %p130
      %p195 = pneg %p127
      %p196 = scmp.lt.s32.totalorder %s19, 1
      %s197 = scalar_select %p196, %s19, 1
      %p198 = scmp.lt.s32.totalorder %s20, 0
      %s199 = scalar_select %p198, %s20, 0
      %s200 = sadd.s32 %s199, %s197
      %s201 = smul.addr %s200, 8
      %s202 = scalar_lea.vmem %s3, %s201
      %p203 = scmp.lt.s32.totalorder %s19, 1
      %s204 = scalar_select %p203, %s19, 1
      %s205 = smul.addr %s204, 54
      %s206 = smul.addr %s205, 4
      %s207 = scalar_lea.vmem %s0, %s206
      %p208 = scmp.lt.s32.totalorder %s20, 0
      %s209 = scalar_select %p208, %s20, 0
      %s210 = smul.addr %s209, 4
      %s211 = scalar_lea.vmem %s1, %s210
      %p212 = scmp.lt.s32.totalorder %s19, 1
      %s213 = scalar_select %p212, %s19, 1
      %p214 = scmp.lt.s32.totalorder %s20, 0
      %s215 = scalar_select %p214, %s20, 0
      %s216 = smul.addr %s213, 32
      %s217 = sadd.s32 %s215, %s216
      %s218 = smul.addr %s217, 4
      %s219 = scalar_lea.vmem %s2, %s218
      %p220 = scmp.lt.s32.totalorder %s19, 1
      %s221 = scalar_select %p220, %s19, 1
      %p222 = scmp.lt.s32.totalorder %s20, 0
      %s223 = scalar_select %p222, %s20, 0
      %s224 = sadd.s32 %s223, %s221
      %s225 = smul.addr %s224, 8
      %s226 = scalar_lea.vmem %s3, %s225
      %228 = vst [vmem:[#allocation2] sm:$0xff] 0.0
      %229 = vst [vmem:[#allocation2 + $0x8] sm:$0xff] 0.0
      %230 = vst [vmem:[#allocation2 + $0x10] sm:$0xff] 0.0
      %231 = vst [vmem:[#allocation2 + $0x18] sm:$0xff] 0.0
      %232 = vst [vmem:[#allocation2 + $0x20] sm:$0xff] 0.0
      %233 = vst [vmem:[#allocation2 + $0x28] sm:$0xff] 0.0
      %234 = vst [vmem:[#allocation2 + $0x30] sm:$0xff] 0.0
      %235 = vst [vmem:[#allocation2 + $0x38] sm:$0xff] 0.0
      %236 = vst [vmem:[#allocation2 + $0x40] sm:$0xff] 0.0
      %237 = vst [vmem:[#allocation2 + $0x48] sm:$0xff] 0.0
      %238 = vst [vmem:[#allocation2 + $0x50] sm:$0xff] 0.0
      %239 = vst [vmem:[#allocation2 + $0x58] sm:$0xff] 0.0
      %240 = vst [vmem:[#allocation2 + $0x60] sm:$0xff] 0.0
      %241 = vst [vmem:[#allocation2 + $0x68] sm:$0xff] 0.0
      %242 = vst [vmem:[#allocation2 + $0x70] sm:$0xff] 0.0
      %243 = vst [vmem:[#allocation2 + $0x78] sm:$0xff] 0.0
      %244 = vst [vmem:[#allocation2 + $0x80] sm:$0xff] 0.0
      %245 = vst [vmem:[#allocation2 + $0x88] sm:$0xff] 0.0
      %246 = vst [vmem:[#allocation2 + $0x90] sm:$0xff] 0.0
      %247 = vst [vmem:[#allocation2 + $0x98] sm:$0xff] 0.0
      %248 = vst [vmem:[#allocation2 + $0xa0] sm:$0xff] 0.0
      %249 = vst [vmem:[#allocation2 + $0xa8] sm:$0xff] 0.0
      %250 = vst [vmem:[#allocation2 + $0xb0] sm:$0xff] 0.0
      %251 = vst [vmem:[#allocation2 + $0xb8] sm:$0xff] 0.0
      %252 = vst [vmem:[#allocation2 + $0xc0] sm:$0xff] 0.0
      %253 = vst [vmem:[#allocation2 + $0xc8] sm:$0xff] 0.0
      %254 = vst [vmem:[#allocation2 + $0xd0] sm:$0xff] 0.0
      %255 = vst [vmem:[#allocation2 + $0xd8] sm:$0xff] 0.0
      %256 = vst [vmem:[#allocation2 + $0xe0] sm:$0xff] 0.0
      %257 = vst [vmem:[#allocation2 + $0xe8] sm:$0xff] 0.0
      %258 = vst [vmem:[#allocation2 + $0xf0] sm:$0xff] 0.0
      %259 = vst [vmem:[#allocation2 + $0xf8] sm:$0xff] 0.0
      %v260 = vld [vmem:[%s207] sm:$0xf]
      %v261 = vld [vmem:[%s207 + $0x4] sm:$0xf]
      %v262 = vld [vmem:[%s207 + $0xc] sm:$0xf]
      %v263 = vld [vmem:[%s207 + $0x10] sm:$0xf]
      %v264 = vld [vmem:[%s207 + $0x18] sm:$0xf]
      %v265 = vld [vmem:[%s207 + $0x1c] sm:$0xf]
      %v266 = vld [vmem:[%s207 + $0x24] sm:$0xf]
      %v267 = vld [vmem:[%s207 + $0x28] sm:$0xf]
      %v268 = vld [vmem:[%s207 + $0x30] sm:$0xf]
      %v269 = vld [vmem:[%s207 + $0x34] sm:$0xf]
      %v270 = vld [vmem:[%s207 + $0x3c] sm:$0xf]
      %v271 = vld [vmem:[%s207 + $0x40] sm:$0xf]
      %v272 = vld [vmem:[%s207 + $0x48] sm:$0xf]
      %v273 = vld [vmem:[%s207 + $0x4c] sm:$0xf]
      %v274 = vld [vmem:[%s207 + $0x54] sm:$0xf]
      %v275 = vld [vmem:[%s207 + $0x58] sm:$0xf]
      %v276 = vld [vmem:[%s207 + $0x60] sm:$0xf]
      %v277 = vld [vmem:[%s207 + $0x64] sm:$0xf]
      %v278 = vld [vmem:[%s207 + $0x6c] sm:$0xf]
      %v279 = vld [vmem:[%s207 + $0x70] sm:$0xf]
      %v280 = vld [vmem:[%s207 + $0x78] sm:$0xf]
      %v281 = vld [vmem:[%s207 + $0x7c] sm:$0xf]
      %v282 = vld [vmem:[%s207 + $0x84] sm:$0xf]
      %v283 = vld [vmem:[%s207 + $0x88] sm:$0xf]
      %v284 = vld [vmem:[%s207 + $0x90] sm:$0xf]
      %v285 = vld [vmem:[%s207 + $0x94] sm:$0xf]
      %v286 = vld [vmem:[%s207 + $0x9c] sm:$0xf]
      %v287 = vld [vmem:[%s207 + $0xa0] sm:$0xf]
      %v288 = vld [vmem:[%s207 + $0xa8] sm:$0xf]
      %v289 = vld [vmem:[%s207 + $0xac] sm:$0xf]
      %v290 = vld [vmem:[%s207 + $0xb4] sm:$0xf]
      %v291 = vld [vmem:[%s207 + $0xb8] sm:$0xf]
      %v292 = vld [vmem:[#allocation2] sm:$0xff]
      %v293 = vld [vmem:[#allocation2 + $0x8] sm:$0xff]
      %v294 = vld [vmem:[#allocation2 + $0x10] sm:$0xff]
      %v295 = vld [vmem:[#allocation2 + $0x18] sm:$0xff]
      %v296 = vld [vmem:[#allocation2 + $0x20] sm:$0xff]
      %v297 = vld [vmem:[#allocation2 + $0x28] sm:$0xff]
      %v298 = vld [vmem:[#allocation2 + $0x30] sm:$0xff]
      %v299 = vld [vmem:[#allocation2 + $0x38] sm:$0xff]
      %v300 = vld [vmem:[#allocation2 + $0x40] sm:$0xff]
      %v301 = vld [vmem:[#allocation2 + $0x48] sm:$0xff]
      %v302 = vld [vmem:[#allocation2 + $0x50] sm:$0xff]
      %v303 = vld [vmem:[#allocation2 + $0x58] sm:$0xff]
      %v304 = vld [vmem:[#allocation2 + $0x60] sm:$0xff]
      %v305 = vld [vmem:[#allocation2 + $0x68] sm:$0xff]
      %v306 = vld [vmem:[#allocation2 + $0x70] sm:$0xff]
      %v307 = vld [vmem:[#allocation2 + $0x78] sm:$0xff]
      %v308 = vld [vmem:[#allocation2 + $0x80] sm:$0xff]
      %v309 = vld [vmem:[#allocation2 + $0x88] sm:$0xff]
      %v310 = vld [vmem:[#allocation2 + $0x90] sm:$0xff]
      %v311 = vld [vmem:[#allocation2 + $0x98] sm:$0xff]
      %v312 = vld [vmem:[#allocation2 + $0xa0] sm:$0xff]
      %v313 = vld [vmem:[#allocation2 + $0xa8] sm:$0xff]
      %v314 = vld [vmem:[#allocation2 + $0xb0] sm:$0xff]
      %v315 = vld [vmem:[#allocation2 + $0xb8] sm:$0xff]
      %v316 = vld [vmem:[#allocation2 + $0xc0] sm:$0xff]
      %v317 = vld [vmem:[#allocation2 + $0xc8] sm:$0xff]
      %v318 = vld [vmem:[#allocation2 + $0xd0] sm:$0xff]
      %v319 = vld [vmem:[#allocation2 + $0xd8] sm:$0xff]
      %v320 = vld [vmem:[#allocation2 + $0xe0] sm:$0xff]
      %v321 = vld [vmem:[#allocation2 + $0xe8] sm:$0xff]
      %v322 = vld [vmem:[#allocation2 + $0xf0] sm:$0xff]
      %v323 = vld [vmem:[#allocation2 + $0xf8] sm:$0xff]
      %v324 = vld [vmem:[%s211] sm:$0xf]
      %v325 = vld [vmem:[%s211 + $0x4] sm:$0xf]
      %v326 = vld [vmem:[%s211 + $0x8] sm:$0xf]
      %v327 = vld [vmem:[%s211 + $0xc] sm:$0xf]
      %v328 = vld [vmem:[%s211 + $0x10] sm:$0xf]
      %v329 = vld [vmem:[%s211 + $0x14] sm:$0xf]
      %v330 = vld [vmem:[%s211 + $0x18] sm:$0xf]
      %v331 = vld [vmem:[%s211 + $0x1c] sm:$0xf]
      %v332 = vld [vmem:[%s211 + $0x20] sm:$0xf]
      %v333 = vld [vmem:[%s211 + $0x24] sm:$0xf]
      %v334 = vld [vmem:[%s211 + $0x28] sm:$0xf]
      %v335 = vld [vmem:[%s211 + $0x2c] sm:$0xf]
      %v336 = vld [vmem:[%s211 + $0x30] sm:$0xf]
      %v337 = vld [vmem:[%s211 + $0x34] sm:$0xf]
      %v338 = vld [vmem:[%s211 + $0x38] sm:$0xf]
      %v339 = vld [vmem:[%s211 + $0x3c] sm:$0xf]
      %v372 = vunpack.c.l.b16 %v260
      %v373 = vunpack.c.l.b16 %v261
      %v374 = vunpack.c.l.b16 %v262
      %v375 = vunpack.c.l.b16 %v263
      %v376 = vunpack.c.l.b16 %v264
      %v377 = vunpack.c.l.b16 %v265
      %v378 = vunpack.c.l.b16 %v266
      %v379 = vunpack.c.l.b16 %v267
      %v380 = vunpack.c.l.b16 %v268
      %v381 = vunpack.c.l.b16 %v269
      %v382 = vunpack.c.l.b16 %v270
      %v383 = vunpack.c.l.b16 %v271
      %v384 = vunpack.c.l.b16 %v272
      %v385 = vunpack.c.l.b16 %v273
      %v386 = vunpack.c.l.b16 %v274
      %v387 = vunpack.c.l.b16 %v275
      %v388 = vunpack.c.l.b16 %v276
      %v389 = vunpack.c.l.b16 %v277
      %v390 = vunpack.c.l.b16 %v278
      %v391 = vunpack.c.l.b16 %v279
      %v392 = vunpack.c.l.b16 %v280
      %v393 = vunpack.c.l.b16 %v281
      %v394 = vunpack.c.l.b16 %v282
      %v395 = vunpack.c.l.b16 %v283
      %v396 = vunpack.c.l.b16 %v284
      %v397 = vunpack.c.l.b16 %v285
      %v398 = vunpack.c.l.b16 %v286
      %v399 = vunpack.c.l.b16 %v287
      %v400 = vunpack.c.l.b16 %v288
      %v401 = vunpack.c.l.b16 %v289
      %v402 = vunpack.c.l.b16 %v290
      %v403 = vunpack.c.l.b16 %v291
      %v404 = vpack.c.b16 %v373, %v372
      %v405 = vpack.c.b16 %v375, %v374
      %v406 = vpack.c.b16 %v377, %v376
      %v407 = vpack.c.b16 %v379, %v378
      %v408 = vpack.c.b16 %v381, %v380
      %v409 = vpack.c.b16 %v383, %v382
      %v410 = vpack.c.b16 %v385, %v384
      %v411 = vpack.c.b16 %v387, %v386
      %v412 = vpack.c.b16 %v389, %v388
      %v413 = vpack.c.b16 %v391, %v390
      %v414 = vpack.c.b16 %v393, %v392
      %v415 = vpack.c.b16 %v395, %v394
      %v416 = vpack.c.b16 %v397, %v396
      %v417 = vpack.c.b16 %v399, %v398
      %v418 = vpack.c.b16 %v401, %v400
      %v419 = vpack.c.b16 %v403, %v402
      %v452 = vunpack.c.l.b16 %v324
      %v453 = vunpack.c.l.b16 %v325
      %v454 = vunpack.c.l.b16 %v326
      %v455 = vunpack.c.l.b16 %v327
      %v456 = vunpack.c.l.b16 %v328
      %v457 = vunpack.c.l.b16 %v329
      %v458 = vunpack.c.l.b16 %v330
      %v459 = vunpack.c.l.b16 %v331
      %v460 = vunpack.c.l.b16 %v332
      %v461 = vunpack.c.l.b16 %v333
      %v462 = vunpack.c.l.b16 %v334
      %v463 = vunpack.c.l.b16 %v335
      %v464 = vunpack.c.l.b16 %v336
      %v465 = vunpack.c.l.b16 %v337
      %v466 = vunpack.c.l.b16 %v338
      %v467 = vunpack.c.l.b16 %v339
      %v468 = vpack.c.b16 %v453, %v452
      %v469 = vpack.c.b16 %v455, %v454
      %v470 = vpack.c.b16 %v457, %v456
      %v471 = vpack.c.b16 %v459, %v458
      %v472 = vpack.c.b16 %v461, %v460
      %v473 = vpack.c.b16 %v463, %v462
      %v474 = vpack.c.b16 %v465, %v464
      %v475 = vpack.c.b16 %v467, %v466
      %484 = vmatprep.subr.bf16.mxu0 0
      %485 = vmatpush1.bf16.msra.mxu0 %v468
      %486 = vmatprep.subr.bf16.mxu0 0
      %487 = vmatpush1.bf16.msra.mxu0 %v469
      %488 = vmatprep.subr.bf16.mxu0 0
      %489 = vmatpush1.bf16.msra.mxu0 %v470
      %490 = vmatprep.subr.bf16.mxu0 0
      %491 = vmatpush1.bf16.msra.mxu0 %v471
      %492 = vmatprep.subr.bf16.mxu0 0
      %493 = vmatpush1.bf16.msra.mxu0 %v472
      %494 = vmatprep.subr.bf16.mxu0 0
      %495 = vmatpush1.bf16.msra.mxu0 %v473
      %496 = vmatprep.subr.bf16.mxu0 0
      %497 = vmatpush1.bf16.msra.mxu0 %v474
      %498 = vmatprep.subr.bf16.mxu0 0
      %499 = vmatpush1.bf16.msra.mxu0 %v475
      %500 = vmatprep.subr.bf16.mxu0 0
      %501 = vmatpush1.bf16.msra.mxu0 0
      %502 = vmatprep.subr.bf16.mxu0 0
      %503 = vmatpush1.bf16.msra.mxu0 0
      %504 = vmatprep.subr.bf16.mxu0 0
      %505 = vmatpush1.bf16.msra.mxu0 0
      %506 = vmatprep.subr.bf16.mxu0 0
      %507 = vmatpush1.bf16.msra.mxu0 0
      %508 = vmatprep.subr.bf16.mxu0 0
      %509 = vmatpush1.bf16.msra.mxu0 0
      %510 = vmatprep.subr.bf16.mxu0 0
      %511 = vmatpush1.bf16.msra.mxu0 0
      %512 = vmatprep.subr.bf16.mxu0 0
      %513 = vmatpush1.bf16.msra.mxu0 0
      %514 = vmatprep.subr.bf16.mxu0 0
      %515 = vmatpush1.bf16.msra.mxu0 0
      %516 = vmatprep.mubr.bf16.mxu0 0
      %517 = vmatmul.mubr.bf16.gmra.mrb[0].mxu0 %v404
      %v518 = vpop.f32.mrb[0].mxu0
      %v519 = vadd.f32 0.0, %v518
      %v520 = vpop.f32.mrb[0].mxu0
      %v521 = vpop.f32.mrb[0].mxu0
      %v522 = vadd.f32 0.0, %v521
      %v523 = vpop.f32.mrb[0].mxu0
      %524 = vmatprep.mubr.bf16.mxu0 0
      %525 = vmatmul.mubr.bf16.gmra.mrb[0].mxu0 %v405
      %v526 = vpop.f32.mrb[0].mxu0
      %v527 = vadd.f32 0.0, %v526
      %v528 = vpop.f32.mrb[0].mxu0
      %v529 = vpop.f32.mrb[0].mxu0
      %v530 = vadd.f32 0.0, %v529
      %v531 = vpop.f32.mrb[0].mxu0
      %532 = vmatprep.mubr.bf16.mxu0 0
      %533 = vmatmul.mubr.bf16.gmra.mrb[0].mxu0 %v406
      %v534 = vpop.f32.mrb[0].mxu0
      %v535 = vadd.f32 0.0, %v534
      %v536 = vpop.f32.mrb[0].mxu0
      %v537 = vpop.f32.mrb[0].mxu0
      %v538 = vadd.f32 0.0, %v537
      %v539 = vpop.f32.mrb[0].mxu0
      %540 = vmatprep.mubr.bf16.mxu0 0
      %541 = vmatmul.mubr.bf16.gmra.mrb[0].mxu0 %v407
      %v542 = vpop.f32.mrb[0].mxu0
      %v543 = vadd.f32 0.0, %v542
      %v544 = vpop.f32.mrb[0].mxu0
      %v545 = vpop.f32.mrb[0].mxu0
      %v546 = vadd.f32 0.0, %v545
      %v547 = vpop.f32.mrb[0].mxu0
      %548 = vmatprep.mubr.bf16.mxu0 0
      %549 = vmatmul.mubr.bf16.gmra.mrb[0].mxu0 %v408
      %v550 = vpop.f32.mrb[0].mxu0
      %v551 = vadd.f32 0.0, %v550
      %v552 = vpop.f32.mrb[0].mxu0
      %v553 = vpop.f32.mrb[0].mxu0
      %v554 = vadd.f32 0.0, %v553
      %v555 = vpop.f32.mrb[0].mxu0
      %556 = vmatprep.mubr.bf16.mxu0 0
      %557 = vmatmul.mubr.bf16.gmra.mrb[0].mxu0 %v409
      %v558 = vpop.f32.mrb[0].mxu0
      %v559 = vadd.f32 0.0, %v558
      %v560 = vpop.f32.mrb[0].mxu0
      %v561 = vpop.f32.mrb[0].mxu0
      %v562 = vadd.f32 0.0, %v561
      %v563 = vpop.f32.mrb[0].mxu0
      %564 = vmatprep.mubr.bf16.mxu0 0
      %565 = vmatmul.mubr.bf16.gmra.mrb[0].mxu0 %v410
      %v566 = vpop.f32.mrb[0].mxu0
      %v567 = vadd.f32 0.0, %v566
      %v568 = vpop.f32.mrb[0].mxu0
      %v569 = vpop.f32.mrb[0].mxu0
      %v570 = vadd.f32 0.0, %v569
      %v571 = vpop.f32.mrb[0].mxu0
      %572 = vmatprep.mubr.bf16.mxu0 0
      %573 = vmatmul.mubr.bf16.gmra.mrb[0].mxu0 %v411
      %v574 = vpop.f32.mrb[0].mxu0
      %v575 = vadd.f32 0.0, %v574
      %v576 = vpop.f32.mrb[0].mxu0
      %v577 = vpop.f32.mrb[0].mxu0
      %v578 = vadd.f32 0.0, %v577
      %v579 = vpop.f32.mrb[0].mxu0
      %580 = vmatprep.mubr.bf16.mxu0 0
      %581 = vmatmul.mubr.bf16.gmra.mrb[0].mxu0 %v412
      %v582 = vpop.f32.mrb[0].mxu0
      %v583 = vadd.f32 0.0, %v582
      %v584 = vpop.f32.mrb[0].mxu0
      %v585 = vpop.f32.mrb[0].mxu0
      %v586 = vadd.f32 0.0, %v585
      %v587 = vpop.f32.mrb[0].mxu0
      %588 = vmatprep.mubr.bf16.mxu0 0
      %589 = vmatmul.mubr.bf16.gmra.mrb[0].mxu0 %v413
      %v590 = vpop.f32.mrb[0].mxu0
      %v591 = vadd.f32 0.0, %v590
      %v592 = vpop.f32.mrb[0].mxu0
      %v593 = vpop.f32.mrb[0].mxu0
      %v594 = vadd.f32 0.0, %v593
      %v595 = vpop.f32.mrb[0].mxu0
      %596 = vmatprep.mubr.bf16.mxu0 0
      %597 = vmatmul.mubr.bf16.gmra.mrb[0].mxu0 %v414
      %v598 = vpop.f32.mrb[0].mxu0
      %v599 = vadd.f32 0.0, %v598
      %v600 = vpop.f32.mrb[0].mxu0
      %v601 = vpop.f32.mrb[0].mxu0
      %v602 = vadd.f32 0.0, %v601
      %v603 = vpop.f32.mrb[0].mxu0
      %604 = vmatprep.mubr.bf16.mxu0 0
      %605 = vmatmul.mubr.bf16.gmra.mrb[0].mxu0 %v415
      %v606 = vpop.f32.mrb[0].mxu0
      %v607 = vadd.f32 0.0, %v606
      %v608 = vpop.f32.mrb[0].mxu0
      %v609 = vpop.f32.mrb[0].mxu0
      %v610 = vadd.f32 0.0, %v609
      %v611 = vpop.f32.mrb[0].mxu0
      %612 = vmatprep.mubr.bf16.mxu0 0
      %613 = vmatmul.mubr.bf16.gmra.mrb[0].mxu0 %v416
      %v614 = vpop.f32.mrb[0].mxu0
      %v615 = vadd.f32 0.0, %v614
      %v616 = vpop.f32.mrb[0].mxu0
      %v617 = vpop.f32.mrb[0].mxu0
      %v618 = vadd.f32 0.0, %v617
      %v619 = vpop.f32.mrb[0].mxu0
      %620 = vmatprep.mubr.bf16.mxu0 0
      %621 = vmatmul.mubr.bf16.gmra.mrb[0].mxu0 %v417
      %v622 = vpop.f32.mrb[0].mxu0
      %v623 = vadd.f32 0.0, %v622
      %v624 = vpop.f32.mrb[0].mxu0
      %v625 = vpop.f32.mrb[0].mxu0
      %v626 = vadd.f32 0.0, %v625
      %v627 = vpop.f32.mrb[0].mxu0
      %628 = vmatprep.mubr.bf16.mxu0 0
      %629 = vmatmul.mubr.bf16.gmra.mrb[0].mxu0 %v418
      %v630 = vpop.f32.mrb[0].mxu0
      %v631 = vadd.f32 0.0, %v630
      %v632 = vpop.f32.mrb[0].mxu0
      %v633 = vpop.f32.mrb[0].mxu0
      %v634 = vadd.f32 0.0, %v633
      %v635 = vpop.f32.mrb[0].mxu0
      %636 = vmatprep.mubr.bf16.mxu0 0
      %637 = vmatmul.mubr.bf16.gmra.mrb[0].mxu0 %v419
      %v638 = vpop.f32.mrb[0].mxu0
      %v639 = vadd.f32 0.0, %v638
      %v640 = vpop.f32.mrb[0].mxu0
      %v641 = vpop.f32.mrb[0].mxu0
      %v642 = vadd.f32 0.0, %v641
      %v643 = vpop.f32.mrb[0].mxu0
      %644 = vdwg.mxu0
      %v645 = vadd.f32 %v292, %v519
      %v646 = vadd.f32 %v293, %v522
      %v647 = vadd.f32 %v294, %v527
      %v648 = vadd.f32 %v295, %v530
      %v649 = vadd.f32 %v296, %v535
      %v650 = vadd.f32 %v297, %v538
      %v651 = vadd.f32 %v298, %v543
      %v652 = vadd.f32 %v299, %v546
      %v653 = vadd.f32 %v300, %v551
      %v654 = vadd.f32 %v301, %v554
      %v655 = vadd.f32 %v302, %v559
      %v656 = vadd.f32 %v303, %v562
      %v657 = vadd.f32 %v304, %v567
      %v658 = vadd.f32 %v305, %v570
      %v659 = vadd.f32 %v306, %v575
      %v660 = vadd.f32 %v307, %v578
      %v661 = vadd.f32 %v308, %v583
      %v662 = vadd.f32 %v309, %v586
      %v663 = vadd.f32 %v310, %v591
      %v664 = vadd.f32 %v311, %v594
      %v665 = vadd.f32 %v312, %v599
      %v666 = vadd.f32 %v313, %v602
      %v667 = vadd.f32 %v314, %v607
      %v668 = vadd.f32 %v315, %v610
      %v669 = vadd.f32 %v316, %v615
      %v670 = vadd.f32 %v317, %v618
      %v671 = vadd.f32 %v318, %v623
      %v672 = vadd.f32 %v319, %v626
      %v673 = vadd.f32 %v320, %v631
      %v674 = vadd.f32 %v321, %v634
      %v675 = vadd.f32 %v322, %v639
      %v676 = vadd.f32 %v323, %v642
      %677 = vst [vmem:[#allocation2] sm:$0xff] %v645
      %678 = vst [vmem:[#allocation2 + $0x8] sm:$0xff] %v646
      %679 = vst [vmem:[#allocation2 + $0x10] sm:$0xff] %v647
      %680 = vst [vmem:[#allocation2 + $0x18] sm:$0xff] %v648
      %681 = vst [vmem:[#allocation2 + $0x20] sm:$0xff] %v649
      %682 = vst [vmem:[#allocation2 + $0x28] sm:$0xff] %v650
      %683 = vst [vmem:[#allocation2 + $0x30] sm:$0xff] %v651
      %684 = vst [vmem:[#allocation2 + $0x38] sm:$0xff] %v652
      %685 = vst [vmem:[#allocation2 + $0x40] sm:$0xff] %v653
      %686 = vst [vmem:[#allocation2 + $0x48] sm:$0xff] %v654
      %687 = vst [vmem:[#allocation2 + $0x50] sm:$0xff] %v655
      %688 = vst [vmem:[#allocation2 + $0x58] sm:$0xff] %v656
      %689 = vst [vmem:[#allocation2 + $0x60] sm:$0xff] %v657
      %690 = vst [vmem:[#allocation2 + $0x68] sm:$0xff] %v658
      %691 = vst [vmem:[#allocation2 + $0x70] sm:$0xff] %v659
      %692 = vst [vmem:[#allocation2 + $0x78] sm:$0xff] %v660
      %693 = vst [vmem:[#allocation2 + $0x80] sm:$0xff] %v661
      %694 = vst [vmem:[#allocation2 + $0x88] sm:$0xff] %v662
      %695 = vst [vmem:[#allocation2 + $0x90] sm:$0xff] %v663
      %696 = vst [vmem:[#allocation2 + $0x98] sm:$0xff] %v664
      %697 = vst [vmem:[#allocation2 + $0xa0] sm:$0xff] %v665
      %698 = vst [vmem:[#allocation2 + $0xa8] sm:$0xff] %v666
      %699 = vst [vmem:[#allocation2 + $0xb0] sm:$0xff] %v667
      %700 = vst [vmem:[#allocation2 + $0xb8] sm:$0xff] %v668
      %701 = vst [vmem:[#allocation2 + $0xc0] sm:$0xff] %v669
      %702 = vst [vmem:[#allocation2 + $0xc8] sm:$0xff] %v670
      %703 = vst [vmem:[#allocation2 + $0xd0] sm:$0xff] %v671
      %704 = vst [vmem:[#allocation2 + $0xd8] sm:$0xff] %v672
      %705 = vst [vmem:[#allocation2 + $0xe0] sm:$0xff] %v673
      %706 = vst [vmem:[#allocation2 + $0xe8] sm:$0xff] %v674
      %707 = vst [vmem:[#allocation2 + $0xf0] sm:$0xff] %v675
      %708 = vst [vmem:[#allocation2 + $0xf8] sm:$0xff] %v676
      %v709 = vld [vmem:[%s207] sm:$0xf]
      %v710 = vld [vmem:[%s207 + $0x4] sm:$0xf]
      %v711 = vld [vmem:[%s207 + $0x8] sm:$0x1]
      %v712 = vld [vmem:[%s207 + $0xc] sm:$0xf]
      %v713 = vld [vmem:[%s207 + $0x10] sm:$0xf]
      %v714 = vld [vmem:[%s207 + $0x14] sm:$0x1]
      %v715 = vld [vmem:[%s207 + $0x18] sm:$0xf]
      %v716 = vld [vmem:[%s207 + $0x1c] sm:$0xf]
      %v717 = vld [vmem:[%s207 + $0x20] sm:$0x1]
      %v718 = vld [vmem:[%s207 + $0x24] sm:$0xf]
      %v719 = vld [vmem:[%s207 + $0x28] sm:$0xf]
      %v720 = vld [vmem:[%s207 + $0x2c] sm:$0x1]
      %v721 = vld [vmem:[%s207 + $0x30] sm:$0xf]
      %v722 = vld [vmem:[%s207 + $0x34] sm:$0xf]
      %v723 = vld [vmem:[%s207 + $0x38] sm:$0x1]
      %v724 = vld [vmem:[%s207 + $0x3c] sm:$0xf]
      %v725 = vld [vmem:[%s207 + $0x40] sm:$0xf]
      %v726 = vld [vmem:[%s207 + $0x44] sm:$0x1]
      %v727 = vld [vmem:[%s207 + $0x48] sm:$0xf]
      %v728 = vld [vmem:[%s207 + $0x4c] sm:$0xf]
      %v729 = vld [vmem:[%s207 + $0x50] sm:$0x1]
      %v730 = vld [vmem:[%s207 + $0x54] sm:$0xf]
      %v731 = vld [vmem:[%s207 + $0x58] sm:$0xf]
      %v732 = vld [vmem:[%s207 + $0x5c] sm:$0x1]
      %v733 = vld [vmem:[%s207 + $0x60] sm:$0xf]
      %v734 = vld [vmem:[%s207 + $0x64] sm:$0xf]
      %v735 = vld [vmem:[%s207 + $0x68] sm:$0x1]
      %v736 = vld [vmem:[%s207 + $0x6c] sm:$0xf]
      %v737 = vld [vmem:[%s207 + $0x70] sm:$0xf]
      %v738 = vld [vmem:[%s207 + $0x74] sm:$0x1]
      %v739 = vld [vmem:[%s207 + $0x78] sm:$0xf]
      %v740 = vld [vmem:[%s207 + $0x7c] sm:$0xf]
      %v741 = vld [vmem:[%s207 + $0x80] sm:$0x1]
      %v742 = vld [vmem:[%s207 + $0x84] sm:$0xf]
      %v743 = vld [vmem:[%s207 + $0x88] sm:$0xf]
      %v744 = vld [vmem:[%s207 + $0x8c] sm:$0x1]
      %v745 = vld [vmem:[%s207 + $0x90] sm:$0xf]
      %v746 = vld [vmem:[%s207 + $0x94] sm:$0xf]
      %v747 = vld [vmem:[%s207 + $0x98] sm:$0x1]
      %v748 = vld [vmem:[%s207 + $0x9c] sm:$0xf]
      %v749 = vld [vmem:[%s207 + $0xa0] sm:$0xf]
      %v750 = vld [vmem:[%s207 + $0xa4] sm:$0x1]
      %v751 = vld [vmem:[%s207 + $0xa8] sm:$0xf]
      %v752 = vld [vmem:[%s207 + $0xac] sm:$0xf]
      %v753 = vld [vmem:[%s207 + $0xb0] sm:$0x1]
      %v754 = vld [vmem:[%s207 + $0xb4] sm:$0xf]
      %v755 = vld [vmem:[%s207 + $0xb8] sm:$0xf]
      %v756 = vld [vmem:[%s207 + $0xbc] sm:$0x1]
      %vm757 = vsmask.f32 3328
      %vm758 = vsmask.f32 7440
      %vm759 = vmor %vm757, %vm758
      %v761 = vshrl.u32 %v709, 16
      %v763 = vrot.slane %v761, 4
      %v764 = vshll.u32 %v709, 16
      %v766 = vrot.slane %v764, 5
      %v767 = vor.u32 %v763, %v766
      %v768 = vrot.slane %v767, 4
      %v770 = vshll.u32 %v710, 16
      %v772 = vrot.slane %v770, 5
      %v773 = vsel %vm759, %v768, %v772
      %v774 = vshrl.u32 %v710, 16
      %v776 = vrot.slane %v774, 4
      %v777 = vor.u32 %v776, %v772
      %v778 = vrot.slane %v777, 4
      %v780 = vshll.u32 %v711, 16
      %v782 = vrot.slane %v780, 5
      %v783 = vsel %vm759, %v778, %v782
      %v785 = vshrl.u32 %v712, 16
      %v787 = vrot.slane %v785, 4
      %v788 = vshll.u32 %v712, 16
      %v790 = vrot.slane %v788, 5
      %v791 = vor.u32 %v787, %v790
      %v792 = vrot.slane %v791, 4
      %v794 = vshll.u32 %v713, 16
      %v796 = vrot.slane %v794, 5
      %v797 = vsel %vm759, %v792, %v796
      %v798 = vshrl.u32 %v713, 16
      %v800 = vrot.slane %v798, 4
      %v801 = vor.u32 %v800, %v796
      %v802 = vrot.slane %v801, 4
      %v804 = vshll.u32 %v714, 16
      %v806 = vrot.slane %v804, 5
      %v807 = vsel %vm759, %v802, %v806
      %v809 = vshrl.u32 %v715, 16
      %v811 = vrot.slane %v809, 4
      %v812 = vshll.u32 %v715, 16
      %v814 = vrot.slane %v812, 5
      %v815 = vor.u32 %v811, %v814
      %v816 = vrot.slane %v815, 4
      %v818 = vshll.u32 %v716, 16
      %v820 = vrot.slane %v818, 5
      %v821 = vsel %vm759, %v816, %v820
      %v822 = vshrl.u32 %v716, 16
      %v824 = vrot.slane %v822, 4
      %v825 = vor.u32 %v824, %v820
      %v826 = vrot.slane %v825, 4
      %v828 = vshll.u32 %v717, 16
      %v830 = vrot.slane %v828, 5
      %v831 = vsel %vm759, %v826, %v830
      %v833 = vshrl.u32 %v718, 16
      %v835 = vrot.slane %v833, 4
      %v836 = vshll.u32 %v718, 16
      %v838 = vrot.slane %v836, 5
      %v839 = vor.u32 %v835, %v838
      %v840 = vrot.slane %v839, 4
      %v842 = vshll.u32 %v719, 16
      %v844 = vrot.slane %v842, 5
      %v845 = vsel %vm759, %v840, %v844
      %v846 = vshrl.u32 %v719, 16
      %v848 = vrot.slane %v846, 4
      %v849 = vor.u32 %v848, %v844
      %v850 = vrot.slane %v849, 4
      %v852 = vshll.u32 %v720, 16
      %v854 = vrot.slane %v852, 5
      %v855 = vsel %vm759, %v850, %v854
      %v857 = vshrl.u32 %v721, 16
      %v859 = vrot.slane %v857, 4
      %v860 = vshll.u32 %v721, 16
      %v862 = vrot.slane %v860, 5
      %v863 = vor.u32 %v859, %v862
      %v864 = vrot.slane %v863, 4
      %v866 = vshll.u32 %v722, 16
      %v868 = vrot.slane %v866, 5
      %v869 = vsel %vm759, %v864, %v868
      %v870 = vshrl.u32 %v722, 16
      %v872 = vrot.slane %v870, 4
      %v873 = vor.u32 %v872, %v868
      %v874 = vrot.slane %v873, 4
      %v876 = vshll.u32 %v723, 16
      %v878 = vrot.slane %v876, 5
      %v879 = vsel %vm759, %v874, %v878
      %v881 = vshrl.u32 %v724, 16
      %v883 = vrot.slane %v881, 4
      %v884 = vshll.u32 %v724, 16
      %v886 = vrot.slane %v884, 5
      %v887 = vor.u32 %v883, %v886
      %v888 = vrot.slane %v887, 4
      %v890 = vshll.u32 %v725, 16
      %v892 = vrot.slane %v890, 5
      %v893 = vsel %vm759, %v888, %v892
      %v894 = vshrl.u32 %v725, 16
      %v896 = vrot.slane %v894, 4
      %v897 = vor.u32 %v896, %v892
      %v898 = vrot.slane %v897, 4
      %v900 = vshll.u32 %v726, 16
      %v902 = vrot.slane %v900, 5
      %v903 = vsel %vm759, %v898, %v902
      %v905 = vshrl.u32 %v727, 16
      %v907 = vrot.slane %v905, 4
      %v908 = vshll.u32 %v727, 16
      %v910 = vrot.slane %v908, 5
      %v911 = vor.u32 %v907, %v910
      %v912 = vrot.slane %v911, 4
      %v914 = vshll.u32 %v728, 16
      %v916 = vrot.slane %v914, 5
      %v917 = vsel %vm759, %v912, %v916
      %v918 = vshrl.u32 %v728, 16
      %v920 = vrot.slane %v918, 4
      %v921 = vor.u32 %v920, %v916
      %v922 = vrot.slane %v921, 4
      %v924 = vshll.u32 %v729, 16
      %v926 = vrot.slane %v924, 5
      %v927 = vsel %vm759, %v922, %v926
      %v929 = vshrl.u32 %v730, 16
      %v931 = vrot.slane %v929, 4
      %v932 = vshll.u32 %v730, 16
      %v934 = vrot.slane %v932, 5
      %v935 = vor.u32 %v931, %v934
      %v936 = vrot.slane %v935, 4
      %v938 = vshll.u32 %v731, 16
      %v940 = vrot.slane %v938, 5
      %v941 = vsel %vm759, %v936, %v940
      %v942 = vshrl.u32 %v731, 16
      %v944 = vrot.slane %v942, 4
      %v945 = vor.u32 %v944, %v940
      %v946 = vrot.slane %v945, 4
      %v948 = vshll.u32 %v732, 16
      %v950 = vrot.slane %v948, 5
      %v951 = vsel %vm759, %v946, %v950
      %v953 = vshrl.u32 %v733, 16
      %v955 = vrot.slane %v953, 4
      %v956 = vshll.u32 %v733, 16
      %v958 = vrot.slane %v956, 5
      %v959 = vor.u32 %v955, %v958
      %v960 = vrot.slane %v959, 4
      %v962 = vshll.u32 %v734, 16
      %v964 = vrot.slane %v962, 5
      %v965 = vsel %vm759, %v960, %v964
      %v966 = vshrl.u32 %v734, 16
      %v968 = vrot.slane %v966, 4
      %v969 = vor.u32 %v968, %v964
      %v970 = vrot.slane %v969, 4
      %v972 = vshll.u32 %v735, 16
      %v974 = vrot.slane %v972, 5
      %v975 = vsel %vm759, %v970, %v974
      %v977 = vshrl.u32 %v736, 16
      %v979 = vrot.slane %v977, 4
      %v980 = vshll.u32 %v736, 16
      %v982 = vrot.slane %v980, 5
      %v983 = vor.u32 %v979, %v982
      %v984 = vrot.slane %v983, 4
      %v986 = vshll.u32 %v737, 16
      %v988 = vrot.slane %v986, 5
      %v989 = vsel %vm759, %v984, %v988
      %v990 = vshrl.u32 %v737, 16
      %v992 = vrot.slane %v990, 4
      %v993 = vor.u32 %v992, %v988
      %v994 = vrot.slane %v993, 4
      %v996 = vshll.u32 %v738, 16
      %v998 = vrot.slane %v996, 5
      %v999 = vsel %vm759, %v994, %v998
      %v1001 = vshrl.u32 %v739, 16
      %v1003 = vrot.slane %v1001, 4
      %v1004 = vshll.u32 %v739, 16
      %v1006 = vrot.slane %v1004, 5
      %v1007 = vor.u32 %v1003, %v1006
      %v1008 = vrot.slane %v1007, 4
      %v1010 = vshll.u32 %v740, 16
      %v1012 = vrot.slane %v1010, 5
      %v1013 = vsel %vm759, %v1008, %v1012
      %v1014 = vshrl.u32 %v740, 16
      %v1016 = vrot.slane %v1014, 4
      %v1017 = vor.u32 %v1016, %v1012
      %v1018 = vrot.slane %v1017, 4
      %v1020 = vshll.u32 %v741, 16
      %v1022 = vrot.slane %v1020, 5
      %v1023 = vsel %vm759, %v1018, %v1022
      %v1025 = vshrl.u32 %v742, 16
      %v1027 = vrot.slane %v1025, 4
      %v1028 = vshll.u32 %v742, 16
      %v1030 = vrot.slane %v1028, 5
      %v1031 = vor.u32 %v1027, %v1030
      %v1032 = vrot.slane %v1031, 4
      %v1034 = vshll.u32 %v743, 16
      %v1036 = vrot.slane %v1034, 5
      %v1037 = vsel %vm759, %v1032, %v1036
      %v1038 = vshrl.u32 %v743, 16
      %v1040 = vrot.slane %v1038, 4
      %v1041 = vor.u32 %v1040, %v1036
      %v1042 = vrot.slane %v1041, 4
      %v1044 = vshll.u32 %v744, 16
      %v1046 = vrot.slane %v1044, 5
      %v1047 = vsel %vm759, %v1042, %v1046
      %v1049 = vshrl.u32 %v745, 16
      %v1051 = vrot.slane %v1049, 4
      %v1052 = vshll.u32 %v745, 16
      %v1054 = vrot.slane %v1052, 5
      %v1055 = vor.u32 %v1051, %v1054
      %v1056 = vrot.slane %v1055, 4
      %v1058 = vshll.u32 %v746, 16
      %v1060 = vrot.slane %v1058, 5
      %v1061 = vsel %vm759, %v1056, %v1060
      %v1062 = vshrl.u32 %v746, 16
      %v1064 = vrot.slane %v1062, 4
      %v1065 = vor.u32 %v1064, %v1060
      %v1066 = vrot.slane %v1065, 4
      %v1068 = vshll.u32 %v747, 16
      %v1070 = vrot.slane %v1068, 5
      %v1071 = vsel %vm759, %v1066, %v1070
      %v1073 = vshrl.u32 %v748, 16
      %v1075 = vrot.slane %v1073, 4
      %v1076 = vshll.u32 %v748, 16
      %v1078 = vrot.slane %v1076, 5
      %v1079 = vor.u32 %v1075, %v1078
      %v1080 = vrot.slane %v1079, 4
      %v1082 = vshll.u32 %v749, 16
      %v1084 = vrot.slane %v1082, 5
      %v1085 = vsel %vm759, %v1080, %v1084
      %v1086 = vshrl.u32 %v749, 16
      %v1088 = vrot.slane %v1086, 4
      %v1089 = vor.u32 %v1088, %v1084
      %v1090 = vrot.slane %v1089, 4
      %v1092 = vshll.u32 %v750, 16
      %v1094 = vrot.slane %v1092, 5
      %v1095 = vsel %vm759, %v1090, %v1094
      %v1097 = vshrl.u32 %v751, 16
      %v1099 = vrot.slane %v1097, 4
      %v1100 = vshll.u32 %v751, 16
      %v1102 = vrot.slane %v1100, 5
      %v1103 = vor.u32 %v1099, %v1102
      %v1104 = vrot.slane %v1103, 4
      %v1106 = vshll.u32 %v752, 16
      %v1108 = vrot.slane %v1106, 5
      %v1109 = vsel %vm759, %v1104, %v1108
      %v1110 = vshrl.u32 %v752, 16
      %v1112 = vrot.slane %v1110, 4
      %v1113 = vor.u32 %v1112, %v1108
      %v1114 = vrot.slane %v1113, 4
      %v1116 = vshll.u32 %v753, 16
      %v1118 = vrot.slane %v1116, 5
      %v1119 = vsel %vm759, %v1114, %v1118
      %v1121 = vshrl.u32 %v754, 16
      %v1123 = vrot.slane %v1121, 4
      %v1124 = vshll.u32 %v754, 16
      %v1126 = vrot.slane %v1124, 5
      %v1127 = vor.u32 %v1123, %v1126
      %v1128 = vrot.slane %v1127, 4
      %v1130 = vshll.u32 %v755, 16
      %v1132 = vrot.slane %v1130, 5
      %v1133 = vsel %vm759, %v1128, %v1132
      %v1134 = vshrl.u32 %v755, 16
      %v1136 = vrot.slane %v1134, 4
      %v1137 = vor.u32 %v1136, %v1132
      %v1138 = vrot.slane %v1137, 4
      %v1140 = vshll.u32 %v756, 16
      %v1142 = vrot.slane %v1140, 5
      %v1143 = vsel %vm759, %v1138, %v1142
      %v1144 = vld [vmem:[#allocation2] sm:$0xff]
      %v1145 = vld [vmem:[#allocation2 + $0x8] sm:$0xff]
      %v1146 = vld [vmem:[#allocation2 + $0x10] sm:$0xff]
      %v1147 = vld [vmem:[#allocation2 + $0x18] sm:$0xff]
      %v1148 = vld [vmem:[#allocation2 + $0x20] sm:$0xff]
      %v1149 = vld [vmem:[#allocation2 + $0x28] sm:$0xff]
      %v1150 = vld [vmem:[#allocation2 + $0x30] sm:$0xff]
      %v1151 = vld [vmem:[#allocation2 + $0x38] sm:$0xff]
      %v1152 = vld [vmem:[#allocation2 + $0x40] sm:$0xff]
      %v1153 = vld [vmem:[#allocation2 + $0x48] sm:$0xff]
      %v1154 = vld [vmem:[#allocation2 + $0x50] sm:$0xff]
      %v1155 = vld [vmem:[#allocation2 + $0x58] sm:$0xff]
      %v1156 = vld [vmem:[#allocation2 + $0x60] sm:$0xff]
      %v1157 = vld [vmem:[#allocation2 + $0x68] sm:$0xff]
      %v1158 = vld [vmem:[#allocation2 + $0x70] sm:$0xff]
      %v1159 = vld [vmem:[#allocation2 + $0x78] sm:$0xff]
      %v1160 = vld [vmem:[#allocation2 + $0x80] sm:$0xff]
      %v1161 = vld [vmem:[#allocation2 + $0x88] sm:$0xff]
      %v1162 = vld [vmem:[#allocation2 + $0x90] sm:$0xff]
      %v1163 = vld [vmem:[#allocation2 + $0x98] sm:$0xff]
      %v1164 = vld [vmem:[#allocation2 + $0xa0] sm:$0xff]
      %v1165 = vld [vmem:[#allocation2 + $0xa8] sm:$0xff]
      %v1166 = vld [vmem:[#allocation2 + $0xb0] sm:$0xff]
      %v1167 = vld [vmem:[#allocation2 + $0xb8] sm:$0xff]
      %v1168 = vld [vmem:[#allocation2 + $0xc0] sm:$0xff]
      %v1169 = vld [vmem:[#allocation2 + $0xc8] sm:$0xff]
      %v1170 = vld [vmem:[#allocation2 + $0xd0] sm:$0xff]
      %v1171 = vld [vmem:[#allocation2 + $0xd8] sm:$0xff]
      %v1172 = vld [vmem:[#allocation2 + $0xe0] sm:$0xff]
      %v1173 = vld [vmem:[#allocation2 + $0xe8] sm:$0xff]
      %v1174 = vld [vmem:[#allocation2 + $0xf0] sm:$0xff]
      %v1175 = vld [vmem:[#allocation2 + $0xf8] sm:$0xff]
      %s1176 = scalar_lea.vmem %s211, 64
      %v1177 = vld [vmem:[%s1176] sm:$0xf]
      %v1178 = vld [vmem:[%s1176 + $0x4] sm:$0xf]
      %v1179 = vld [vmem:[%s1176 + $0x8] sm:$0xf]
      %v1180 = vld [vmem:[%s1176 + $0xc] sm:$0xf]
      %v1181 = vld [vmem:[%s1176 + $0x10] sm:$0xf]
      %v1182 = vld [vmem:[%s1176 + $0x14] sm:$0xf]
      %v1183 = vld [vmem:[%s1176 + $0x18] sm:$0xf]
      %v1184 = vld [vmem:[%s1176 + $0x1c] sm:$0xf]
      %v1185 = vld [vmem:[%s1176 + $0x20] sm:$0xf]
      %v1186 = vld [vmem:[%s1176 + $0x24] sm:$0xf]
      %v1187 = vld [vmem:[%s1176 + $0x28] sm:$0xf]
      %v1188 = vld [vmem:[%s1176 + $0x2c] sm:$0xf]
      %v1189 = vld [vmem:[%s1176 + $0x30] sm:$0xf]
      %v1190 = vld [vmem:[%s1176 + $0x34] sm:$0xf]
      %v1191 = vld [vmem:[%s1176 + $0x38] sm:$0xf]
      %v1192 = vld [vmem:[%s1176 + $0x3c] sm:$0xf]
      %v1193 = vunpack.c.l.b16 %v773
      %v1194 = vunpack.c.l.b16 %v783
      %v1195 = vunpack.c.l.b16 %v797
      %v1196 = vunpack.c.l.b16 %v807
      %v1197 = vunpack.c.l.b16 %v821
      %v1198 = vunpack.c.l.b16 %v831
      %v1199 = vunpack.c.l.b16 %v845
      %v1200 = vunpack.c.l.b16 %v855
      %v1201 = vunpack.c.l.b16 %v869
      %v1202 = vunpack.c.l.b16 %v879
      %v1203 = vunpack.c.l.b16 %v893
      %v1204 = vunpack.c.l.b16 %v903
      %v1205 = vunpack.c.l.b16 %v917
      %v1206 = vunpack.c.l.b16 %v927
      %v1207 = vunpack.c.l.b16 %v941
      %v1208 = vunpack.c.l.b16 %v951
      %v1209 = vunpack.c.l.b16 %v965
      %v1210 = vunpack.c.l.b16 %v975
      %v1211 = vunpack.c.l.b16 %v989
      %v1212 = vunpack.c.l.b16 %v999
      %v1213 = vunpack.c.l.b16 %v1013
      %v1214 = vunpack.c.l.b16 %v1023
      %v1215 = vunpack.c.l.b16 %v1037
      %v1216 = vunpack.c.l.b16 %v1047
      %v1217 = vunpack.c.l.b16 %v1061
      %v1218 = vunpack.c.l.b16 %v1071
      %v1219 = vunpack.c.l.b16 %v1085
      %v1220 = vunpack.c.l.b16 %v1095
      %v1221 = vunpack.c.l.b16 %v1109
      %v1222 = vunpack.c.l.b16 %v1119
      %v1223 = vunpack.c.l.b16 %v1133
      %v1224 = vunpack.c.l.b16 %v1143
      %v1225 = vpack.c.b16 %v1194, %v1193
      %v1226 = vpack.c.b16 %v1196, %v1195
      %v1227 = vpack.c.b16 %v1198, %v1197
      %v1228 = vpack.c.b16 %v1200, %v1199
      %v1229 = vpack.c.b16 %v1202, %v1201
      %v1230 = vpack.c.b16 %v1204, %v1203
      %v1231 = vpack.c.b16 %v1206, %v1205
      %v1232 = vpack.c.b16 %v1208, %v1207
      %v1233 = vpack.c.b16 %v1210, %v1209
      %v1234 = vpack.c.b16 %v1212, %v1211
      %v1235 = vpack.c.b16 %v1214, %v1213
      %v1236 = vpack.c.b16 %v1216, %v1215
      %v1237 = vpack.c.b16 %v1218, %v1217
      %v1238 = vpack.c.b16 %v1220, %v1219
      %v1239 = vpack.c.b16 %v1222, %v1221
      %v1240 = vpack.c.b16 %v1224, %v1223
      %v1273 = vunpack.c.l.b16 %v1177
      %v1274 = vunpack.c.l.b16 %v1178
      %v1275 = vunpack.c.l.b16 %v1179
      %v1276 = vunpack.c.l.b16 %v1180
      %v1277 = vunpack.c.l.b16 %v1181
      %v1278 = vunpack.c.l.b16 %v1182
      %v1279 = vunpack.c.l.b16 %v1183
      %v1280 = vunpack.c.l.b16 %v1184
      %v1281 = vunpack.c.l.b16 %v1185
      %v1282 = vunpack.c.l.b16 %v1186
      %v1283 = vunpack.c.l.b16 %v1187
      %v1284 = vunpack.c.l.b16 %v1188
      %v1285 = vunpack.c.l.b16 %v1189
      %v1286 = vunpack.c.l.b16 %v1190
      %v1287 = vunpack.c.l.b16 %v1191
      %v1288 = vunpack.c.l.b16 %v1192
      %v1289 = vpack.c.b16 %v1274, %v1273
      %v1290 = vpack.c.b16 %v1276, %v1275
      %v1291 = vpack.c.b16 %v1278, %v1277
      %v1292 = vpack.c.b16 %v1280, %v1279
      %v1293 = vpack.c.b16 %v1282, %v1281
      %v1294 = vpack.c.b16 %v1284, %v1283
      %v1295 = vpack.c.b16 %v1286, %v1285
      %v1296 = vpack.c.b16 %v1288, %v1287
      %1305 = vmatprep.subr.bf16.mxu0 0
      %1306 = vmatpush1.bf16.msra.mxu0 %v1289
      %1307 = vmatprep.subr.bf16.mxu0 0
      %1308 = vmatpush1.bf16.msra.mxu0 %v1290
      %1309 = vmatprep.subr.bf16.mxu0 0
      %1310 = vmatpush1.bf16.msra.mxu0 %v1291
      %1311 = vmatprep.subr.bf16.mxu0 0
      %1312 = vmatpush1.bf16.msra.mxu0 %v1292
      %1313 = vmatprep.subr.bf16.mxu0 0
      %1314 = vmatpush1.bf16.msra.mxu0 %v1293
      %1315 = vmatprep.subr.bf16.mxu0 0
      %1316 = vmatpush1.bf16.msra.mxu0 %v1294
      %1317 = vmatprep.subr.bf16.mxu0 0
      %1318 = vmatpush1.bf16.msra.mxu0 %v1295
      %1319 = vmatprep.subr.bf16.mxu0 0
      %1320 = vmatpush1.bf16.msra.mxu0 %v1296
      %1321 = vmatprep.subr.bf16.mxu0 0
      %1322 = vmatpush1.bf16.msra.mxu0 0
      %1323 = vmatprep.subr.bf16.mxu0 0
      %1324 = vmatpush1.bf16.msra.mxu0 0
      %1325 = vmatprep.subr.bf16.mxu0 0
      %1326 = vmatpush1.bf16.msra.mxu0 0
      %1327 = vmatprep.subr.bf16.mxu0 0
      %1328 = vmatpush1.bf16.msra.mxu0 0
      %1329 = vmatprep.subr.bf16.mxu0 0
      %1330 = vmatpush1.bf16.msra.mxu0 0
      %1331 = vmatprep.subr.bf16.mxu0 0
      %1332 = vmatpush1.bf16.msra.mxu0 0
      %1333 = vmatprep.subr.bf16.mxu0 0
      %1334 = vmatpush1.bf16.msra.mxu0 0
      %1335 = vmatprep.subr.bf16.mxu0 0
      %1336 = vmatpush1.bf16.msra.mxu0 0
      %1337 = vmatprep.mubr.bf16.mxu0 0
      %1338 = vmatmul.mubr.bf16.gmra.mrb[0].mxu0 %v1225
      %v1339 = vpop.f32.mrb[0].mxu0
      %v1340 = vadd.f32 0.0, %v1339
      %v1341 = vpop.f32.mrb[0].mxu0
      %v1342 = vpop.f32.mrb[0].mxu0
      %v1343 = vadd.f32 0.0, %v1342
      %v1344 = vpop.f32.mrb[0].mxu0
      %1345 = vmatprep.mubr.bf16.mxu0 0
      %1346 = vmatmul.mubr.bf16.gmra.mrb[0].mxu0 %v1226
      %v1347 = vpop.f32.mrb[0].mxu0
      %v1348 = vadd.f32 0.0, %v1347
      %v1349 = vpop.f32.mrb[0].mxu0
      %v1350 = vpop.f32.mrb[0].mxu0
      %v1351 = vadd.f32 0.0, %v1350
      %v1352 = vpop.f32.mrb[0].mxu0
      %1353 = vmatprep.mubr.bf16.mxu0 0
      %1354 = vmatmul.mubr.bf16.gmra.mrb[0].mxu0 %v1227
      %v1355 = vpop.f32.mrb[0].mxu0
      %v1356 = vadd.f32 0.0, %v1355
      %v1357 = vpop.f32.mrb[0].mxu0
      %v1358 = vpop.f32.mrb[0].mxu0
      %v1359 = vadd.f32 0.0, %v1358
      %v1360 = vpop.f32.mrb[0].mxu0
      %1361 = vmatprep.mubr.bf16.mxu0 0
      %1362 = vmatmul.mubr.bf16.gmra.mrb[0].mxu0 %v1228
      %v1363 = vpop.f32.mrb[0].mxu0
      %v1364 = vadd.f32 0.0, %v1363
      %v1365 = vpop.f32.mrb[0].mxu0
      %v1366 = vpop.f32.mrb[0].mxu0
      %v1367 = vadd.f32 0.0, %v1366
      %v1368 = vpop.f32.mrb[0].mxu0
      %1369 = vmatprep.mubr.bf16.mxu0 0
      %1370 = vmatmul.mubr.bf16.gmra.mrb[0].mxu0 %v1229
      %v1371 = vpop.f32.mrb[0].mxu0
      %v1372 = vadd.f32 0.0, %v1371
      %v1373 = vpop.f32.mrb[0].mxu0
      %v1374 = vpop.f32.mrb[0].mxu0
      %v1375 = vadd.f32 0.0, %v1374
      %v1376 = vpop.f32.mrb[0].mxu0
      %1377 = vmatprep.mubr.bf16.mxu0 0
      %1378 = vmatmul.mubr.bf16.gmra.mrb[0].mxu0 %v1230
      %v1379 = vpop.f32.mrb[0].mxu0
      %v1380 = vadd.f32 0.0, %v1379
      %v1381 = vpop.f32.mrb[0].mxu0
      %v1382 = vpop.f32.mrb[0].mxu0
      %v1383 = vadd.f32 0.0, %v1382
      %v1384 = vpop.f32.mrb[0].mxu0
      %1385 = vmatprep.mubr.bf16.mxu0 0
      %1386 = vmatmul.mubr.bf16.gmra.mrb[0].mxu0 %v1231
      %v1387 = vpop.f32.mrb[0].mxu0
      %v1388 = vadd.f32 0.0, %v1387
      %v1389 = vpop.f32.mrb[0].mxu0
      %v1390 = vpop.f32.mrb[0].mxu0
      %v1391 = vadd.f32 0.0, %v1390
      %v1392 = vpop.f32.mrb[0].mxu0
      %1393 = vmatprep.mubr.bf16.mxu0 0
      %1394 = vmatmul.mubr.bf16.gmra.mrb[0].mxu0 %v1232
      %v1395 = vpop.f32.mrb[0].mxu0
      %v1396 = vadd.f32 0.0, %v1395
      %v1397 = vpop.f32.mrb[0].mxu0
      %v1398 = vpop.f32.mrb[0].mxu0
      %v1399 = vadd.f32 0.0, %v1398
      %v1400 = vpop.f32.mrb[0].mxu0
      %1401 = vmatprep.mubr.bf16.mxu0 0
      %1402 = vmatmul.mubr.bf16.gmra.mrb[0].mxu0 %v1233
      %v1403 = vpop.f32.mrb[0].mxu0
      %v1404 = vadd.f32 0.0, %v1403
      %v1405 = vpop.f32.mrb[0].mxu0
      %v1406 = vpop.f32.mrb[0].mxu0
      %v1407 = vadd.f32 0.0, %v1406
      %v1408 = vpop.f32.mrb[0].mxu0
      %1409 = vmatprep.mubr.bf16.mxu0 0
      %1410 = vmatmul.mubr.bf16.gmra.mrb[0].mxu0 %v1234
      %v1411 = vpop.f32.mrb[0].mxu0
      %v1412 = vadd.f32 0.0, %v1411
      %v1413 = vpop.f32.mrb[0].mxu0
      %v1414 = vpop.f32.mrb[0].mxu0
      %v1415 = vadd.f32 0.0, %v1414
      %v1416 = vpop.f32.mrb[0].mxu0
      %1417 = vmatprep.mubr.bf16.mxu0 0
      %1418 = vmatmul.mubr.bf16.gmra.mrb[0].mxu0 %v1235
      %v1419 = vpop.f32.mrb[0].mxu0
      %v1420 = vadd.f32 0.0, %v1419
      %v1421 = vpop.f32.mrb[0].mxu0
      %v1422 = vpop.f32.mrb[0].mxu0
      %v1423 = vadd.f32 0.0, %v1422
      %v1424 = vpop.f32.mrb[0].mxu0
      %1425 = vmatprep.mubr.bf16.mxu0 0
      %1426 = vmatmul.mubr.bf16.gmra.mrb[0].mxu0 %v1236
      %v1427 = vpop.f32.mrb[0].mxu0
      %v1428 = vadd.f32 0.0, %v1427
      %v1429 = vpop.f32.mrb[0].mxu0
      %v1430 = vpop.f32.mrb[0].mxu0
      %v1431 = vadd.f32 0.0, %v1430
      %v1432 = vpop.f32.mrb[0].mxu0
      %1433 = vmatprep.mubr.bf16.mxu0 0
      %1434 = vmatmul.mubr.bf16.gmra.mrb[0].mxu0 %v1237
      %v1435 = vpop.f32.mrb[0].mxu0
      %v1436 = vadd.f32 0.0, %v1435
      %v1437 = vpop.f32.mrb[0].mxu0
      %v1438 = vpop.f32.mrb[0].mxu0
      %v1439 = vadd.f32 0.0, %v1438
      %v1440 = vpop.f32.mrb[0].mxu0
      %1441 = vmatprep.mubr.bf16.mxu0 0
      %1442 = vmatmul.mubr.bf16.gmra.mrb[0].mxu0 %v1238
      %v1443 = vpop.f32.mrb[0].mxu0
      %v1444 = vadd.f32 0.0, %v1443
      %v1445 = vpop.f32.mrb[0].mxu0
      %v1446 = vpop.f32.mrb[0].mxu0
      %v1447 = vadd.f32 0.0, %v1446
      %v1448 = vpop.f32.mrb[0].mxu0
      %1449 = vmatprep.mubr.bf16.mxu0 0
      %1450 = vmatmul.mubr.bf16.gmra.mrb[0].mxu0 %v1239
      %v1451 = vpop.f32.mrb[0].mxu0
      %v1452 = vadd.f32 0.0, %v1451
      %v1453 = vpop.f32.mrb[0].mxu0
      %v1454 = vpop.f32.mrb[0].mxu0
      %v1455 = vadd.f32 0.0, %v1454
      %v1456 = vpop.f32.mrb[0].mxu0
      %1457 = vmatprep.mubr.bf16.mxu0 0
      %1458 = vmatmul.mubr.bf16.gmra.mrb[0].mxu0 %v1240
      %v1459 = vpop.f32.mrb[0].mxu0
      %v1460 = vadd.f32 0.0, %v1459
      %v1461 = vpop.f32.mrb[0].mxu0
      %v1462 = vpop.f32.mrb[0].mxu0
      %v1463 = vadd.f32 0.0, %v1462
      %v1464 = vpop.f32.mrb[0].mxu0
      %1465 = vdwg.mxu0
      %v1466 = vadd.f32 %v1144, %v1340
      %v1467 = vadd.f32 %v1145, %v1343
      %v1468 = vadd.f32 %v1146, %v1348
      %v1469 = vadd.f32 %v1147, %v1351
      %v1470 = vadd.f32 %v1148, %v1356
      %v1471 = vadd.f32 %v1149, %v1359
      %v1472 = vadd.f32 %v1150, %v1364
      %v1473 = vadd.f32 %v1151, %v1367
      %v1474 = vadd.f32 %v1152, %v1372
      %v1475 = vadd.f32 %v1153, %v1375
      %v1476 = vadd.f32 %v1154, %v1380
      %v1477 = vadd.f32 %v1155, %v1383
      %v1478 = vadd.f32 %v1156, %v1388
      %v1479 = vadd.f32 %v1157, %v1391
      %v1480 = vadd.f32 %v1158, %v1396
      %v1481 = vadd.f32 %v1159, %v1399
      %v1482 = vadd.f32 %v1160, %v1404
      %v1483 = vadd.f32 %v1161, %v1407
      %v1484 = vadd.f32 %v1162, %v1412
      %v1485 = vadd.f32 %v1163, %v1415
      %v1486 = vadd.f32 %v1164, %v1420
      %v1487 = vadd.f32 %v1165, %v1423
      %v1488 = vadd.f32 %v1166, %v1428
      %v1489 = vadd.f32 %v1167, %v1431
      %v1490 = vadd.f32 %v1168, %v1436
      %v1491 = vadd.f32 %v1169, %v1439
      %v1492 = vadd.f32 %v1170, %v1444
      %v1493 = vadd.f32 %v1171, %v1447
      %v1494 = vadd.f32 %v1172, %v1452
      %v1495 = vadd.f32 %v1173, %v1455
      %v1496 = vadd.f32 %v1174, %v1460
      %v1497 = vadd.f32 %v1175, %v1463
      %1498 = vst [vmem:[#allocation2] sm:$0xff] %v1466
      %1499 = vst [vmem:[#allocation2 + $0x8] sm:$0xff] %v1467
      %1500 = vst [vmem:[#allocation2 + $0x10] sm:$0xff] %v1468
      %1501 = vst [vmem:[#allocation2 + $0x18] sm:$0xff] %v1469
      %1502 = vst [vmem:[#allocation2 + $0x20] sm:$0xff] %v1470
      %1503 = vst [vmem:[#allocation2 + $0x28] sm:$0xff] %v1471
      %1504 = vst [vmem:[#allocation2 + $0x30] sm:$0xff] %v1472
      %1505 = vst [vmem:[#allocation2 + $0x38] sm:$0xff] %v1473
      %1506 = vst [vmem:[#allocation2 + $0x40] sm:$0xff] %v1474
      %1507 = vst [vmem:[#allocation2 + $0x48] sm:$0xff] %v1475
      %1508 = vst [vmem:[#allocation2 + $0x50] sm:$0xff] %v1476
      %1509 = vst [vmem:[#allocation2 + $0x58] sm:$0xff] %v1477
      %1510 = vst [vmem:[#allocation2 + $0x60] sm:$0xff] %v1478
      %1511 = vst [vmem:[#allocation2 + $0x68] sm:$0xff] %v1479
      %1512 = vst [vmem:[#allocation2 + $0x70] sm:$0xff] %v1480
      %1513 = vst [vmem:[#allocation2 + $0x78] sm:$0xff] %v1481
      %1514 = vst [vmem:[#allocation2 + $0x80] sm:$0xff] %v1482
      %1515 = vst [vmem:[#allocation2 + $0x88] sm:$0xff] %v1483
      %1516 = vst [vmem:[#allocation2 + $0x90] sm:$0xff] %v1484
      %1517 = vst [vmem:[#allocation2 + $0x98] sm:$0xff] %v1485
      %1518 = vst [vmem:[#allocation2 + $0xa0] sm:$0xff] %v1486
      %1519 = vst [vmem:[#allocation2 + $0xa8] sm:$0xff] %v1487
      %1520 = vst [vmem:[#allocation2 + $0xb0] sm:$0xff] %v1488
      %1521 = vst [vmem:[#allocation2 + $0xb8] sm:$0xff] %v1489
      %1522 = vst [vmem:[#allocation2 + $0xc0] sm:$0xff] %v1490
      %1523 = vst [vmem:[#allocation2 + $0xc8] sm:$0xff] %v1491
      %1524 = vst [vmem:[#allocation2 + $0xd0] sm:$0xff] %v1492
      %1525 = vst [vmem:[#allocation2 + $0xd8] sm:$0xff] %v1493
      %1526 = vst [vmem:[#allocation2 + $0xe0] sm:$0xff] %v1494
      %1527 = vst [vmem:[#allocation2 + $0xe8] sm:$0xff] %v1495
      %1528 = vst [vmem:[#allocation2 + $0xf0] sm:$0xff] %v1496
      %1529 = vst [vmem:[#allocation2 + $0xf8] sm:$0xff] %v1497
      %v1530 = vld [vmem:[%s207] sm:$0xe]
      %v1531 = vld [vmem:[%s207 + $0x4] sm:$0xf]
      %v1532 = vld [vmem:[%s207 + $0x8] sm:$0x1]
      %v1533 = vld [vmem:[%s207 + $0xc] sm:$0xe]
      %v1534 = vld [vmem:[%s207 + $0x10] sm:$0xf]
      %v1535 = vld [vmem:[%s207 + $0x14] sm:$0x1]
      %v1536 = vld [vmem:[%s207 + $0x18] sm:$0xe]
      %v1537 = vld [vmem:[%s207 + $0x1c] sm:$0xf]
      %v1538 = vld [vmem:[%s207 + $0x20] sm:$0x1]
      %v1539 = vld [vmem:[%s207 + $0x24] sm:$0xe]
      %v1540 = vld [vmem:[%s207 + $0x28] sm:$0xf]
      %v1541 = vld [vmem:[%s207 + $0x2c] sm:$0x1]
      %v1542 = vld [vmem:[%s207 + $0x30] sm:$0xe]
      %v1543 = vld [vmem:[%s207 + $0x34] sm:$0xf]
      %v1544 = vld [vmem:[%s207 + $0x38] sm:$0x1]
      %v1545 = vld [vmem:[%s207 + $0x3c] sm:$0xe]
      %v1546 = vld [vmem:[%s207 + $0x40] sm:$0xf]
      %v1547 = vld [vmem:[%s207 + $0x44] sm:$0x1]
      %v1548 = vld [vmem:[%s207 + $0x48] sm:$0xe]
      %v1549 = vld [vmem:[%s207 + $0x4c] sm:$0xf]
      %v1550 = vld [vmem:[%s207 + $0x50] sm:$0x1]
      %v1551 = vld [vmem:[%s207 + $0x54] sm:$0xe]
      %v1552 = vld [vmem:[%s207 + $0x58] sm:$0xf]
      %v1553 = vld [vmem:[%s207 + $0x5c] sm:$0x1]
      %v1554 = vld [vmem:[%s207 + $0x60] sm:$0xe]
      %v1555 = vld [vmem:[%s207 + $0x64] sm:$0xf]
      %v1556 = vld [vmem:[%s207 + $0x68] sm:$0x1]
      %v1557 = vld [vmem:[%s207 + $0x6c] sm:$0xe]
      %v1558 = vld [vmem:[%s207 + $0x70] sm:$0xf]
      %v1559 = vld [vmem:[%s207 + $0x74] sm:$0x1]
      %v1560 = vld [vmem:[%s207 + $0x78] sm:$0xe]
      %v1561 = vld [vmem:[%s207 + $0x7c] sm:$0xf]
      %v1562 = vld [vmem:[%s207 + $0x80] sm:$0x1]
      %v1563 = vld [vmem:[%s207 + $0x84] sm:$0xe]
      %v1564 = vld [vmem:[%s207 + $0x88] sm:$0xf]
      %v1565 = vld [vmem:[%s207 + $0x8c] sm:$0x1]
      %v1566 = vld [vmem:[%s207 + $0x90] sm:$0xe]
      %v1567 = vld [vmem:[%s207 + $0x94] sm:$0xf]
      %v1568 = vld [vmem:[%s207 + $0x98] sm:$0x1]
      %v1569 = vld [vmem:[%s207 + $0x9c] sm:$0xe]
      %v1570 = vld [vmem:[%s207 + $0xa0] sm:$0xf]
      %v1571 = vld [vmem:[%s207 + $0xa4] sm:$0x1]
      %v1572 = vld [vmem:[%s207 + $0xa8] sm:$0xe]
      %v1573 = vld [vmem:[%s207 + $0xac] sm:$0xf]
      %v1574 = vld [vmem:[%s207 + $0xb0] sm:$0x1]
      %v1575 = vld [vmem:[%s207 + $0xb4] sm:$0xe]
      %v1576 = vld [vmem:[%s207 + $0xb8] sm:$0xf]
      %v1577 = vld [vmem:[%s207 + $0xbc] sm:$0x1]
      %vm1626 = vcmask 1042432
      %vm1627 = vcmask 1046532
      %vm1628 = vmor %vm1626, %vm1627
      %v1629 = vrot.slane %v1530, 5
      %v1630 = vrot.slane %v1629, 4
      %v1631 = vrot.slane %v1531, 5
      %v1632 = vsel %vm1628, %v1630, %v1631
      %v1633 = vrot.slane %v1631, 4
      %v1634 = vrot.slane %v1532, 5
      %v1635 = vsel %vm1628, %v1633, %v1634
      %v1636 = vrot.slane %v1533, 5
      %v1637 = vrot.slane %v1636, 4
      %v1638 = vrot.slane %v1534, 5
      %v1639 = vsel %vm1628, %v1637, %v1638
      %v1640 = vrot.slane %v1638, 4
      %v1641 = vrot.slane %v1535, 5
      %v1642 = vsel %vm1628, %v1640, %v1641
      %v1643 = vrot.slane %v1536, 5
      %v1644 = vrot.slane %v1643, 4
      %v1645 = vrot.slane %v1537, 5
      %v1646 = vsel %vm1628, %v1644, %v1645
      %v1647 = vrot.slane %v1645, 4
      %v1648 = vrot.slane %v1538, 5
      %v1649 = vsel %vm1628, %v1647, %v1648
      %v1650 = vrot.slane %v1539, 5
      %v1651 = vrot.slane %v1650, 4
      %v1652 = vrot.slane %v1540, 5
      %v1653 = vsel %vm1628, %v1651, %v1652
      %v1654 = vrot.slane %v1652, 4
      %v1655 = vrot.slane %v1541, 5
      %v1656 = vsel %vm1628, %v1654, %v1655
      %v1657 = vrot.slane %v1542, 5
      %v1658 = vrot.slane %v1657, 4
      %v1659 = vrot.slane %v1543, 5
      %v1660 = vsel %vm1628, %v1658, %v1659
      %v1661 = vrot.slane %v1659, 4
      %v1662 = vrot.slane %v1544, 5
      %v1663 = vsel %vm1628, %v1661, %v1662
      %v1664 = vrot.slane %v1545, 5
      %v1665 = vrot.slane %v1664, 4
      %v1666 = vrot.slane %v1546, 5
      %v1667 = vsel %vm1628, %v1665, %v1666
      %v1668 = vrot.slane %v1666, 4
      %v1669 = vrot.slane %v1547, 5
      %v1670 = vsel %vm1628, %v1668, %v1669
      %v1671 = vrot.slane %v1548, 5
      %v1672 = vrot.slane %v1671, 4
      %v1673 = vrot.slane %v1549, 5
      %v1674 = vsel %vm1628, %v1672, %v1673
      %v1675 = vrot.slane %v1673, 4
      %v1676 = vrot.slane %v1550, 5
      %v1677 = vsel %vm1628, %v1675, %v1676
      %v1678 = vrot.slane %v1551, 5
      %v1679 = vrot.slane %v1678, 4
      %v1680 = vrot.slane %v1552, 5
      %v1681 = vsel %vm1628, %v1679, %v1680
      %v1682 = vrot.slane %v1680, 4
      %v1683 = vrot.slane %v1553, 5
      %v1684 = vsel %vm1628, %v1682, %v1683
      %v1685 = vrot.slane %v1554, 5
      %v1686 = vrot.slane %v1685, 4
      %v1687 = vrot.slane %v1555, 5
      %v1688 = vsel %vm1628, %v1686, %v1687
      %v1689 = vrot.slane %v1687, 4
      %v1690 = vrot.slane %v1556, 5
      %v1691 = vsel %vm1628, %v1689, %v1690
      %v1692 = vrot.slane %v1557, 5
      %v1693 = vrot.slane %v1692, 4
      %v1694 = vrot.slane %v1558, 5
      %v1695 = vsel %vm1628, %v1693, %v1694
      %v1696 = vrot.slane %v1694, 4
      %v1697 = vrot.slane %v1559, 5
      %v1698 = vsel %vm1628, %v1696, %v1697
      %v1699 = vrot.slane %v1560, 5
      %v1700 = vrot.slane %v1699, 4
      %v1701 = vrot.slane %v1561, 5
      %v1702 = vsel %vm1628, %v1700, %v1701
      %v1703 = vrot.slane %v1701, 4
      %v1704 = vrot.slane %v1562, 5
      %v1705 = vsel %vm1628, %v1703, %v1704
      %v1706 = vrot.slane %v1563, 5
      %v1707 = vrot.slane %v1706, 4
      %v1708 = vrot.slane %v1564, 5
      %v1709 = vsel %vm1628, %v1707, %v1708
      %v1710 = vrot.slane %v1708, 4
      %v1711 = vrot.slane %v1565, 5
      %v1712 = vsel %vm1628, %v1710, %v1711
      %v1713 = vrot.slane %v1566, 5
      %v1714 = vrot.slane %v1713, 4
      %v1715 = vrot.slane %v1567, 5
      %v1716 = vsel %vm1628, %v1714, %v1715
      %v1717 = vrot.slane %v1715, 4
      %v1718 = vrot.slane %v1568, 5
      %v1719 = vsel %vm1628, %v1717, %v1718
      %v1720 = vrot.slane %v1569, 5
      %v1721 = vrot.slane %v1720, 4
      %v1722 = vrot.slane %v1570, 5
      %v1723 = vsel %vm1628, %v1721, %v1722
      %v1724 = vrot.slane %v1722, 4
      %v1725 = vrot.slane %v1571, 5
      %v1726 = vsel %vm1628, %v1724, %v1725
      %v1727 = vrot.slane %v1572, 5
      %v1728 = vrot.slane %v1727, 4
      %v1729 = vrot.slane %v1573, 5
      %v1730 = vsel %vm1628, %v1728, %v1729
      %v1731 = vrot.slane %v1729, 4
      %v1732 = vrot.slane %v1574, 5
      %v1733 = vsel %vm1628, %v1731, %v1732
      %v1734 = vrot.slane %v1575, 5
      %v1735 = vrot.slane %v1734, 4
      %v1736 = vrot.slane %v1576, 5
      %v1737 = vsel %vm1628, %v1735, %v1736
      %v1738 = vrot.slane %v1736, 4
      %v1739 = vrot.slane %v1577, 5
      %v1740 = vsel %vm1628, %v1738, %v1739
      %v1741 = vld [vmem:[#allocation2] sm:$0xff]
      %v1742 = vld [vmem:[#allocation2 + $0x8] sm:$0xff]
      %v1743 = vld [vmem:[#allocation2 + $0x10] sm:$0xff]
      %v1744 = vld [vmem:[#allocation2 + $0x18] sm:$0xff]
      %v1745 = vld [vmem:[#allocation2 + $0x20] sm:$0xff]
      %v1746 = vld [vmem:[#allocation2 + $0x28] sm:$0xff]
      %v1747 = vld [vmem:[#allocation2 + $0x30] sm:$0xff]
      %v1748 = vld [vmem:[#allocation2 + $0x38] sm:$0xff]
      %v1749 = vld [vmem:[#allocation2 + $0x40] sm:$0xff]
      %v1750 = vld [vmem:[#allocation2 + $0x48] sm:$0xff]
      %v1751 = vld [vmem:[#allocation2 + $0x50] sm:$0xff]
      %v1752 = vld [vmem:[#allocation2 + $0x58] sm:$0xff]
      %v1753 = vld [vmem:[#allocation2 + $0x60] sm:$0xff]
      %v1754 = vld [vmem:[#allocation2 + $0x68] sm:$0xff]
      %v1755 = vld [vmem:[#allocation2 + $0x70] sm:$0xff]
      %v1756 = vld [vmem:[#allocation2 + $0x78] sm:$0xff]
      %v1757 = vld [vmem:[#allocation2 + $0x80] sm:$0xff]
      %v1758 = vld [vmem:[#allocation2 + $0x88] sm:$0xff]
      %v1759 = vld [vmem:[#allocation2 + $0x90] sm:$0xff]
      %v1760 = vld [vmem:[#allocation2 + $0x98] sm:$0xff]
      %v1761 = vld [vmem:[#allocation2 + $0xa0] sm:$0xff]
      %v1762 = vld [vmem:[#allocation2 + $0xa8] sm:$0xff]
      %v1763 = vld [vmem:[#allocation2 + $0xb0] sm:$0xff]
      %v1764 = vld [vmem:[#allocation2 + $0xb8] sm:$0xff]
      %v1765 = vld [vmem:[#allocation2 + $0xc0] sm:$0xff]
      %v1766 = vld [vmem:[#allocation2 + $0xc8] sm:$0xff]
      %v1767 = vld [vmem:[#allocation2 + $0xd0] sm:$0xff]
      %v1768 = vld [vmem:[#allocation2 + $0xd8] sm:$0xff]
      %v1769 = vld [vmem:[#allocation2 + $0xe0] sm:$0xff]
      %v1770 = vld [vmem:[#allocation2 + $0xe8] sm:$0xff]
      %v1771 = vld [vmem:[#allocation2 + $0xf0] sm:$0xff]
      %v1772 = vld [vmem:[#allocation2 + $0xf8] sm:$0xff]
      %s1773 = scalar_lea.vmem %s211, 128
      %v1774 = vld [vmem:[%s1773] sm:$0xf]
      %v1775 = vld [vmem:[%s1773 + $0x4] sm:$0xf]
      %v1776 = vld [vmem:[%s1773 + $0x8] sm:$0xf]
      %v1777 = vld [vmem:[%s1773 + $0xc] sm:$0xf]
      %v1778 = vld [vmem:[%s1773 + $0x10] sm:$0xf]
      %v1779 = vld [vmem:[%s1773 + $0x14] sm:$0xf]
      %v1780 = vld [vmem:[%s1773 + $0x18] sm:$0xf]
      %v1781 = vld [vmem:[%s1773 + $0x1c] sm:$0xf]
      %v1782 = vld [vmem:[%s1773 + $0x20] sm:$0xf]
      %v1783 = vld [vmem:[%s1773 + $0x24] sm:$0xf]
      %v1784 = vld [vmem:[%s1773 + $0x28] sm:$0xf]
      %v1785 = vld [vmem:[%s1773 + $0x2c] sm:$0xf]
      %v1786 = vld [vmem:[%s1773 + $0x30] sm:$0xf]
      %v1787 = vld [vmem:[%s1773 + $0x34] sm:$0xf]
      %v1788 = vld [vmem:[%s1773 + $0x38] sm:$0xf]
      %v1789 = vld [vmem:[%s1773 + $0x3c] sm:$0xf]
      %v1790 = vunpack.c.l.b16 %v1632
      %v1791 = vunpack.c.l.b16 %v1635
      %v1792 = vunpack.c.l.b16 %v1639
      %v1793 = vunpack.c.l.b16 %v1642
      %v1794 = vunpack.c.l.b16 %v1646
      %v1795 = vunpack.c.l.b16 %v1649
      %v1796 = vunpack.c.l.b16 %v1653
      %v1797 = vunpack.c.l.b16 %v1656
      %v1798 = vunpack.c.l.b16 %v1660
      %v1799 = vunpack.c.l.b16 %v1663
      %v1800 = vunpack.c.l.b16 %v1667
      %v1801 = vunpack.c.l.b16 %v1670
      %v1802 = vunpack.c.l.b16 %v1674
      %v1803 = vunpack.c.l.b16 %v1677
      %v1804 = vunpack.c.l.b16 %v1681
      %v1805 = vunpack.c.l.b16 %v1684
      %v1806 = vunpack.c.l.b16 %v1688
      %v1807 = vunpack.c.l.b16 %v1691
      %v1808 = vunpack.c.l.b16 %v1695
      %v1809 = vunpack.c.l.b16 %v1698
      %v1810 = vunpack.c.l.b16 %v1702
      %v1811 = vunpack.c.l.b16 %v1705
      %v1812 = vunpack.c.l.b16 %v1709
      %v1813 = vunpack.c.l.b16 %v1712
      %v1814 = vunpack.c.l.b16 %v1716
      %v1815 = vunpack.c.l.b16 %v1719
      %v1816 = vunpack.c.l.b16 %v1723
      %v1817 = vunpack.c.l.b16 %v1726
      %v1818 = vunpack.c.l.b16 %v1730
      %v1819 = vunpack.c.l.b16 %v1733
      %v1820 = vunpack.c.l.b16 %v1737
      %v1821 = vunpack.c.l.b16 %v1740
      %v1822 = vpack.c.b16 %v1791, %v1790
      %v1823 = vpack.c.b16 %v1793, %v1792
      %v1824 = vpack.c.b16 %v1795, %v1794
      %v1825 = vpack.c.b16 %v1797, %v1796
      %v1826 = vpack.c.b16 %v1799, %v1798
      %v1827 = vpack.c.b16 %v1801, %v1800
      %v1828 = vpack.c.b16 %v1803, %v1802
      %v1829 = vpack.c.b16 %v1805, %v1804
      %v1830 = vpack.c.b16 %v1807, %v1806
      %v1831 = vpack.c.b16 %v1809, %v1808
      %v1832 = vpack.c.b16 %v1811, %v1810
      %v1833 = vpack.c.b16 %v1813, %v1812
      %v1834 = vpack.c.b16 %v1815, %v1814
      %v1835 = vpack.c.b16 %v1817, %v1816
      %v1836 = vpack.c.b16 %v1819, %v1818
      %v1837 = vpack.c.b16 %v1821, %v1820
      %v1870 = vunpack.c.l.b16 %v1774
      %v1871 = vunpack.c.l.b16 %v1775
      %v1872 = vunpack.c.l.b16 %v1776
      %v1873 = vunpack.c.l.b16 %v1777
      %v1874 = vunpack.c.l.b16 %v1778
      %v1875 = vunpack.c.l.b16 %v1779
      %v1876 = vunpack.c.l.b16 %v1780
      %v1877 = vunpack.c.l.b16 %v1781
      %v1878 = vunpack.c.l.b16 %v1782
      %v1879 = vunpack.c.l.b16 %v1783
      %v1880 = vunpack.c.l.b16 %v1784
      %v1881 = vunpack.c.l.b16 %v1785
      %v1882 = vunpack.c.l.b16 %v1786
      %v1883 = vunpack.c.l.b16 %v1787
      %v1884 = vunpack.c.l.b16 %v1788
      %v1885 = vunpack.c.l.b16 %v1789
      %v1886 = vpack.c.b16 %v1871, %v1870
      %v1887 = vpack.c.b16 %v1873, %v1872
      %v1888 = vpack.c.b16 %v1875, %v1874
      %v1889 = vpack.c.b16 %v1877, %v1876
      %v1890 = vpack.c.b16 %v1879, %v1878
      %v1891 = vpack.c.b16 %v1881, %v1880
      %v1892 = vpack.c.b16 %v1883, %v1882
      %v1893 = vpack.c.b16 %v1885, %v1884
      %1902 = vmatprep.subr.bf16.mxu0 0
      %1903 = vmatpush1.bf16.msra.mxu0 %v1886
      %1904 = vmatprep.subr.bf16.mxu0 0
      %1905 = vmatpush1.bf16.msra.mxu0 %v1887
      %1906 = vmatprep.subr.bf16.mxu0 0
      %1907 = vmatpush1.bf16.msra.mxu0 %v1888
      %1908 = vmatprep.subr.bf16.mxu0 0
      %1909 = vmatpush1.bf16.msra.mxu0 %v1889
      %1910 = vmatprep.subr.bf16.mxu0 0
      %1911 = vmatpush1.bf16.msra.mxu0 %v1890
      %1912 = vmatprep.subr.bf16.mxu0 0
      %1913 = vmatpush1.bf16.msra.mxu0 %v1891
      %1914 = vmatprep.subr.bf16.mxu0 0
      %1915 = vmatpush1.bf16.msra.mxu0 %v1892
      %1916 = vmatprep.subr.bf16.mxu0 0
      %1917 = vmatpush1.bf16.msra.mxu0 %v1893
      %1918 = vmatprep.subr.bf16.mxu0 0
      %1919 = vmatpush1.bf16.msra.mxu0 0
      %1920 = vmatprep.subr.bf16.mxu0 0
      %1921 = vmatpush1.bf16.msra.mxu0 0
      %1922 = vmatprep.subr.bf16.mxu0 0
      %1923 = vmatpush1.bf16.msra.mxu0 0
      %1924 = vmatprep.subr.bf16.mxu0 0
      %1925 = vmatpush1.bf16.msra.mxu0 0
      %1926 = vmatprep.subr.bf16.mxu0 0
      %1927 = vmatpush1.bf16.msra.mxu0 0
      %1928 = vmatprep.subr.bf16.mxu0 0
      %1929 = vmatpush1.bf16.msra.mxu0 0
      %1930 = vmatprep.subr.bf16.mxu0 0
      %1931 = vmatpush1.bf16.msra.mxu0 0
      %1932 = vmatprep.subr.bf16.mxu0 0
      %1933 = vmatpush1.bf16.msra.mxu0 0
      %1934 = vmatprep.mubr.bf16.mxu0 0
      %1935 = vmatmul.mubr.bf16.gmra.mrb[0].mxu0 %v1822
      %v1936 = vpop.f32.mrb[0].mxu0
      %v1937 = vadd.f32 0.0, %v1936
      %v1938 = vpop.f32.mrb[0].mxu0
      %v1939 = vpop.f32.mrb[0].mxu0
      %v1940 = vadd.f32 0.0, %v1939
      %v1941 = vpop.f32.mrb[0].mxu0
      %1942 = vmatprep.mubr.bf16.mxu0 0
      %1943 = vmatmul.mubr.bf16.gmra.mrb[0].mxu0 %v1823
      %v1944 = vpop.f32.mrb[0].mxu0
      %v1945 = vadd.f32 0.0, %v1944
      %v1946 = vpop.f32.mrb[0].mxu0
      %v1947 = vpop.f32.mrb[0].mxu0
      %v1948 = vadd.f32 0.0, %v1947
      %v1949 = vpop.f32.mrb[0].mxu0
      %1950 = vmatprep.mubr.bf16.mxu0 0
      %1951 = vmatmul.mubr.bf16.gmra.mrb[0].mxu0 %v1824
      %v1952 = vpop.f32.mrb[0].mxu0
      %v1953 = vadd.f32 0.0, %v1952
      %v1954 = vpop.f32.mrb[0].mxu0
      %v1955 = vpop.f32.mrb[0].mxu0
      %v1956 = vadd.f32 0.0, %v1955
      %v1957 = vpop.f32.mrb[0].mxu0
      %1958 = vmatprep.mubr.bf16.mxu0 0
      %1959 = vmatmul.mubr.bf16.gmra.mrb[0].mxu0 %v1825
      %v1960 = vpop.f32.mrb[0].mxu0
      %v1961 = vadd.f32 0.0, %v1960
      %v1962 = vpop.f32.mrb[0].mxu0
      %v1963 = vpop.f32.mrb[0].mxu0
      %v1964 = vadd.f32 0.0, %v1963
      %v1965 = vpop.f32.mrb[0].mxu0
      %1966 = vmatprep.mubr.bf16.mxu0 0
      %1967 = vmatmul.mubr.bf16.gmra.mrb[0].mxu0 %v1826
      %v1968 = vpop.f32.mrb[0].mxu0
      %v1969 = vadd.f32 0.0, %v1968
      %v1970 = vpop.f32.mrb[0].mxu0
      %v1971 = vpop.f32.mrb[0].mxu0
      %v1972 = vadd.f32 0.0, %v1971
      %v1973 = vpop.f32.mrb[0].mxu0
      %1974 = vmatprep.mubr.bf16.mxu0 0
      %1975 = vmatmul.mubr.bf16.gmra.mrb[0].mxu0 %v1827
      %v1976 = vpop.f32.mrb[0].mxu0
      %v1977 = vadd.f32 0.0, %v1976
      %v1978 = vpop.f32.mrb[0].mxu0
      %v1979 = vpop.f32.mrb[0].mxu0
      %v1980 = vadd.f32 0.0, %v1979
      %v1981 = vpop.f32.mrb[0].mxu0
      %1982 = vmatprep.mubr.bf16.mxu0 0
      %1983 = vmatmul.mubr.bf16.gmra.mrb[0].mxu0 %v1828
      %v1984 = vpop.f32.mrb[0].mxu0
      %v1985 = vadd.f32 0.0, %v1984
      %v1986 = vpop.f32.mrb[0].mxu0
      %v1987 = vpop.f32.mrb[0].mxu0
      %v1988 = vadd.f32 0.0, %v1987
      %v1989 = vpop.f32.mrb[0].mxu0
      %1990 = vmatprep.mubr.bf16.mxu0 0
      %1991 = vmatmul.mubr.bf16.gmra.mrb[0].mxu0 %v1829
      %v1992 = vpop.f32.mrb[0].mxu0
      %v1993 = vadd.f32 0.0, %v1992
      %v1994 = vpop.f32.mrb[0].mxu0
      %v1995 = vpop.f32.mrb[0].mxu0
      %v1996 = vadd.f32 0.0, %v1995
      %v1997 = vpop.f32.mrb[0].mxu0
      %1998 = vmatprep.mubr.bf16.mxu0 0
      %1999 = vmatmul.mubr.bf16.gmra.mrb[0].mxu0 %v1830
      %v2000 = vpop.f32.mrb[0].mxu0
      %v2001 = vadd.f32 0.0, %v2000
      %v2002 = vpop.f32.mrb[0].mxu0
      %v2003 = vpop.f32.mrb[0].mxu0
      %v2004 = vadd.f32 0.0, %v2003
      %v2005 = vpop.f32.mrb[0].mxu0
      %2006 = vmatprep.mubr.bf16.mxu0 0
      %2007 = vmatmul.mubr.bf16.gmra.mrb[0].mxu0 %v1831
      %v2008 = vpop.f32.mrb[0].mxu0
      %v2009 = vadd.f32 0.0, %v2008
      %v2010 = vpop.f32.mrb[0].mxu0
      %v2011 = vpop.f32.mrb[0].mxu0
      %v2012 = vadd.f32 0.0, %v2011
      %v2013 = vpop.f32.mrb[0].mxu0
      %2014 = vmatprep.mubr.bf16.mxu0 0
      %2015 = vmatmul.mubr.bf16.gmra.mrb[0].mxu0 %v1832
      %v2016 = vpop.f32.mrb[0].mxu0
      %v2017 = vadd.f32 0.0, %v2016
      %v2018 = vpop.f32.mrb[0].mxu0
      %v2019 = vpop.f32.mrb[0].mxu0
      %v2020 = vadd.f32 0.0, %v2019
      %v2021 = vpop.f32.mrb[0].mxu0
      %2022 = vmatprep.mubr.bf16.mxu0 0
      %2023 = vmatmul.mubr.bf16.gmra.mrb[0].mxu0 %v1833
      %v2024 = vpop.f32.mrb[0].mxu0
      %v2025 = vadd.f32 0.0, %v2024
      %v2026 = vpop.f32.mrb[0].mxu0
      %v2027 = vpop.f32.mrb[0].mxu0
      %v2028 = vadd.f32 0.0, %v2027
      %v2029 = vpop.f32.mrb[0].mxu0
      %2030 = vmatprep.mubr.bf16.mxu0 0
      %2031 = vmatmul.mubr.bf16.gmra.mrb[0].mxu0 %v1834
      %v2032 = vpop.f32.mrb[0].mxu0
      %v2033 = vadd.f32 0.0, %v2032
      %v2034 = vpop.f32.mrb[0].mxu0
      %v2035 = vpop.f32.mrb[0].mxu0
      %v2036 = vadd.f32 0.0, %v2035
      %v2037 = vpop.f32.mrb[0].mxu0
      %2038 = vmatprep.mubr.bf16.mxu0 0
      %2039 = vmatmul.mubr.bf16.gmra.mrb[0].mxu0 %v1835
      %v2040 = vpop.f32.mrb[0].mxu0
      %v2041 = vadd.f32 0.0, %v2040
      %v2042 = vpop.f32.mrb[0].mxu0
      %v2043 = vpop.f32.mrb[0].mxu0
      %v2044 = vadd.f32 0.0, %v2043
      %v2045 = vpop.f32.mrb[0].mxu0
      %2046 = vmatprep.mubr.bf16.mxu0 0
      %2047 = vmatmul.mubr.bf16.gmra.mrb[0].mxu0 %v1836
      %v2048 = vpop.f32.mrb[0].mxu0
      %v2049 = vadd.f32 0.0, %v2048
      %v2050 = vpop.f32.mrb[0].mxu0
      %v2051 = vpop.f32.mrb[0].mxu0
      %v2052 = vadd.f32 0.0, %v2051
      %v2053 = vpop.f32.mrb[0].mxu0
      %2054 = vmatprep.mubr.bf16.mxu0 0
      %2055 = vmatmul.mubr.bf16.gmra.mrb[0].mxu0 %v1837
      %v2056 = vpop.f32.mrb[0].mxu0
      %v2057 = vadd.f32 0.0, %v2056
      %v2058 = vpop.f32.mrb[0].mxu0
      %v2059 = vpop.f32.mrb[0].mxu0
      %v2060 = vadd.f32 0.0, %v2059
      %v2061 = vpop.f32.mrb[0].mxu0
      %2062 = vdwg.mxu0
      %v2063 = vadd.f32 %v1741, %v1937
      %v2064 = vadd.f32 %v1742, %v1940
      %v2065 = vadd.f32 %v1743, %v1945
      %v2066 = vadd.f32 %v1744, %v1948
      %v2067 = vadd.f32 %v1745, %v1953
      %v2068 = vadd.f32 %v1746, %v1956
      %v2069 = vadd.f32 %v1747, %v1961
      %v2070 = vadd.f32 %v1748, %v1964
      %v2071 = vadd.f32 %v1749, %v1969
      %v2072 = vadd.f32 %v1750, %v1972
      %v2073 = vadd.f32 %v1751, %v1977
      %v2074 = vadd.f32 %v1752, %v1980
      %v2075 = vadd.f32 %v1753, %v1985
      %v2076 = vadd.f32 %v1754, %v1988
      %v2077 = vadd.f32 %v1755, %v1993
      %v2078 = vadd.f32 %v1756, %v1996
      %v2079 = vadd.f32 %v1757, %v2001
      %v2080 = vadd.f32 %v1758, %v2004
      %v2081 = vadd.f32 %v1759, %v2009
      %v2082 = vadd.f32 %v1760, %v2012
      %v2083 = vadd.f32 %v1761, %v2017
      %v2084 = vadd.f32 %v1762, %v2020
      %v2085 = vadd.f32 %v1763, %v2025
      %v2086 = vadd.f32 %v1764, %v2028
      %v2087 = vadd.f32 %v1765, %v2033
      %v2088 = vadd.f32 %v1766, %v2036
      %v2089 = vadd.f32 %v1767, %v2041
      %v2090 = vadd.f32 %v1768, %v2044
      %v2091 = vadd.f32 %v1769, %v2049
      %v2092 = vadd.f32 %v1770, %v2052
      %v2093 = vadd.f32 %v1771, %v2057
      %v2094 = vadd.f32 %v1772, %v2060
      %2095 = vst [vmem:[#allocation2] sm:$0xff] %v2063
      %2096 = vst [vmem:[#allocation2 + $0x8] sm:$0xff] %v2064
      %2097 = vst [vmem:[#allocation2 + $0x10] sm:$0xff] %v2065
      %2098 = vst [vmem:[#allocation2 + $0x18] sm:$0xff] %v2066
      %2099 = vst [vmem:[#allocation2 + $0x20] sm:$0xff] %v2067
      %2100 = vst [vmem:[#allocation2 + $0x28] sm:$0xff] %v2068
      %2101 = vst [vmem:[#allocation2 + $0x30] sm:$0xff] %v2069
      %2102 = vst [vmem:[#allocation2 + $0x38] sm:$0xff] %v2070
      %2103 = vst [vmem:[#allocation2 + $0x40] sm:$0xff] %v2071
      %2104 = vst [vmem:[#allocation2 + $0x48] sm:$0xff] %v2072
      %2105 = vst [vmem:[#allocation2 + $0x50] sm:$0xff] %v2073
      %2106 = vst [vmem:[#allocation2 + $0x58] sm:$0xff] %v2074
      %2107 = vst [vmem:[#allocation2 + $0x60] sm:$0xff] %v2075
      %2108 = vst [vmem:[#allocation2 + $0x68] sm:$0xff] %v2076
      %2109 = vst [vmem:[#allocation2 + $0x70] sm:$0xff] %v2077
      %2110 = vst [vmem:[#allocation2 + $0x78] sm:$0xff] %v2078
      %2111 = vst [vmem:[#allocation2 + $0x80] sm:$0xff] %v2079
      %2112 = vst [vmem:[#allocation2 + $0x88] sm:$0xff] %v2080
      %2113 = vst [vmem:[#allocation2 + $0x90] sm:$0xff] %v2081
      %2114 = vst [vmem:[#allocation2 + $0x98] sm:$0xff] %v2082
      %2115 = vst [vmem:[#allocation2 + $0xa0] sm:$0xff] %v2083
      %2116 = vst [vmem:[#allocation2 + $0xa8] sm:$0xff] %v2084
      %2117 = vst [vmem:[#allocation2 + $0xb0] sm:$0xff] %v2085
      %2118 = vst [vmem:[#allocation2 + $0xb8] sm:$0xff] %v2086
      %2119 = vst [vmem:[#allocation2 + $0xc0] sm:$0xff] %v2087
      %2120 = vst [vmem:[#allocation2 + $0xc8] sm:$0xff] %v2088
      %2121 = vst [vmem:[#allocation2 + $0xd0] sm:$0xff] %v2089
      %2122 = vst [vmem:[#allocation2 + $0xd8] sm:$0xff] %v2090
      %2123 = vst [vmem:[#allocation2 + $0xe0] sm:$0xff] %v2091
      %2124 = vst [vmem:[#allocation2 + $0xe8] sm:$0xff] %v2092
      %2125 = vst [vmem:[#allocation2 + $0xf0] sm:$0xff] %v2093
      %2126 = vst [vmem:[#allocation2 + $0xf8] sm:$0xff] %v2094
      %s2127 = scalar_lea.vmem %s207, 12
      %v2128 = vld [vmem:[%s2127] sm:$0xf]
      %v2129 = vld [vmem:[%s2127 + $0x4] sm:$0xf]
      %v2130 = vld [vmem:[%s2127 + $0xc] sm:$0xf]
      %v2131 = vld [vmem:[%s2127 + $0x10] sm:$0xf]
      %v2132 = vld [vmem:[%s2127 + $0x18] sm:$0xf]
      %v2133 = vld [vmem:[%s2127 + $0x1c] sm:$0xf]
      %v2134 = vld [vmem:[%s2127 + $0x24] sm:$0xf]
      %v2135 = vld [vmem:[%s2127 + $0x28] sm:$0xf]
      %v2136 = vld [vmem:[%s2127 + $0x30] sm:$0xf]
      %v2137 = vld [vmem:[%s2127 + $0x34] sm:$0xf]
      %v2138 = vld [vmem:[%s2127 + $0x3c] sm:$0xf]
      %v2139 = vld [vmem:[%s2127 + $0x40] sm:$0xf]
      %v2140 = vld [vmem:[%s2127 + $0x48] sm:$0xf]
      %v2141 = vld [vmem:[%s2127 + $0x4c] sm:$0xf]
      %v2142 = vld [vmem:[%s2127 + $0x54] sm:$0xf]
      %v2143 = vld [vmem:[%s2127 + $0x58] sm:$0xf]
      %v2144 = vld [vmem:[%s2127 + $0x60] sm:$0xf]
      %v2145 = vld [vmem:[%s2127 + $0x64] sm:$0xf]
      %v2146 = vld [vmem:[%s2127 + $0x6c] sm:$0xf]
      %v2147 = vld [vmem:[%s2127 + $0x70] sm:$0xf]
      %v2148 = vld [vmem:[%s2127 + $0x78] sm:$0xf]
      %v2149 = vld [vmem:[%s2127 + $0x7c] sm:$0xf]
      %v2150 = vld [vmem:[%s2127 + $0x84] sm:$0xf]
      %v2151 = vld [vmem:[%s2127 + $0x88] sm:$0xf]
      %v2152 = vld [vmem:[%s2127 + $0x90] sm:$0xf]
      %v2153 = vld [vmem:[%s2127 + $0x94] sm:$0xf]
      %v2154 = vld [vmem:[%s2127 + $0x9c] sm:$0xf]
      %v2155 = vld [vmem:[%s2127 + $0xa0] sm:$0xf]
      %v2156 = vld [vmem:[%s2127 + $0xa8] sm:$0xf]
      %v2157 = vld [vmem:[%s2127 + $0xac] sm:$0xf]
      %v2158 = vld [vmem:[%s2127 + $0xb4] sm:$0xf]
      %v2159 = vld [vmem:[%s2127 + $0xb8] sm:$0xf]
      %v2160 = vld [vmem:[#allocation2] sm:$0xff]
      %v2161 = vld [vmem:[#allocation2 + $0x8] sm:$0xff]
      %v2162 = vld [vmem:[#allocation2 + $0x10] sm:$0xff]
      %v2163 = vld [vmem:[#allocation2 + $0x18] sm:$0xff]
      %v2164 = vld [vmem:[#allocation2 + $0x20] sm:$0xff]
      %v2165 = vld [vmem:[#allocation2 + $0x28] sm:$0xff]
      %v2166 = vld [vmem:[#allocation2 + $0x30] sm:$0xff]
      %v2167 = vld [vmem:[#allocation2 + $0x38] sm:$0xff]
      %v2168 = vld [vmem:[#allocation2 + $0x40] sm:$0xff]
      %v2169 = vld [vmem:[#allocation2 + $0x48] sm:$0xff]
      %v2170 = vld [vmem:[#allocation2 + $0x50] sm:$0xff]
      %v2171 = vld [vmem:[#allocation2 + $0x58] sm:$0xff]
      %v2172 = vld [vmem:[#allocation2 + $0x60] sm:$0xff]
      %v2173 = vld [vmem:[#allocation2 + $0x68] sm:$0xff]
      %v2174 = vld [vmem:[#allocation2 + $0x70] sm:$0xff]
      %v2175 = vld [vmem:[#allocation2 + $0x78] sm:$0xff]
      %v2176 = vld [vmem:[#allocation2 + $0x80] sm:$0xff]
      %v2177 = vld [vmem:[#allocation2 + $0x88] sm:$0xff]
      %v2178 = vld [vmem:[#allocation2 + $0x90] sm:$0xff]
      %v2179 = vld [vmem:[#allocation2 + $0x98] sm:$0xff]
      %v2180 = vld [vmem:[#allocation2 + $0xa0] sm:$0xff]
      %v2181 = vld [vmem:[#allocation2 + $0xa8] sm:$0xff]
      %v2182 = vld [vmem:[#allocation2 + $0xb0] sm:$0xff]
      %v2183 = vld [vmem:[#allocation2 + $0xb8] sm:$0xff]
      %v2184 = vld [vmem:[#allocation2 + $0xc0] sm:$0xff]
      %v2185 = vld [vmem:[#allocation2 + $0xc8] sm:$0xff]
      %v2186 = vld [vmem:[#allocation2 + $0xd0] sm:$0xff]
      %v2187 = vld [vmem:[#allocation2 + $0xd8] sm:$0xff]
      %v2188 = vld [vmem:[#allocation2 + $0xe0] sm:$0xff]
      %v2189 = vld [vmem:[#allocation2 + $0xe8] sm:$0xff]
      %v2190 = vld [vmem:[#allocation2 + $0xf0] sm:$0xff]
      %v2191 = vld [vmem:[#allocation2 + $0xf8] sm:$0xff]
      %s2192 = scalar_lea.vmem %s211, 192
      %v2193 = vld [vmem:[%s2192] sm:$0xf]
      %v2194 = vld [vmem:[%s2192 + $0x4] sm:$0xf]
      %v2195 = vld [vmem:[%s2192 + $0x8] sm:$0xf]
      %v2196 = vld [vmem:[%s2192 + $0xc] sm:$0xf]
      %v2197 = vld [vmem:[%s2192 + $0x10] sm:$0xf]
      %v2198 = vld [vmem:[%s2192 + $0x14] sm:$0xf]
      %v2199 = vld [vmem:[%s2192 + $0x18] sm:$0xf]
      %v2200 = vld [vmem:[%s2192 + $0x1c] sm:$0xf]
      %v2201 = vld [vmem:[%s2192 + $0x20] sm:$0xf]
      %v2202 = vld [vmem:[%s2192 + $0x24] sm:$0xf]
      %v2203 = vld [vmem:[%s2192 + $0x28] sm:$0xf]
      %v2204 = vld [vmem:[%s2192 + $0x2c] sm:$0xf]
      %v2205 = vld [vmem:[%s2192 + $0x30] sm:$0xf]
      %v2206 = vld [vmem:[%s2192 + $0x34] sm:$0xf]
      %v2207 = vld [vmem:[%s2192 + $0x38] sm:$0xf]
      %v2208 = vld [vmem:[%s2192 + $0x3c] sm:$0xf]
      %v2241 = vunpack.c.l.b16 %v2128
      %v2242 = vunpack.c.l.b16 %v2129
      %v2243 = vunpack.c.l.b16 %v2130
      %v2244 = vunpack.c.l.b16 %v2131
      %v2245 = vunpack.c.l.b16 %v2132
      %v2246 = vunpack.c.l.b16 %v2133
      %v2247 = vunpack.c.l.b16 %v2134
      %v2248 = vunpack.c.l.b16 %v2135
      %v2249 = vunpack.c.l.b16 %v2136
      %v2250 = vunpack.c.l.b16 %v2137
      %v2251 = vunpack.c.l.b16 %v2138
      %v2252 = vunpack.c.l.b16 %v2139
      %v2253 = vunpack.c.l.b16 %v2140
      %v2254 = vunpack.c.l.b16 %v2141
      %v2255 = vunpack.c.l.b16 %v2142
      %v2256 = vunpack.c.l.b16 %v2143
      %v2257 = vunpack.c.l.b16 %v2144
      %v2258 = vunpack.c.l.b16 %v2145
      %v2259 = vunpack.c.l.b16 %v2146
      %v2260 = vunpack.c.l.b16 %v2147
      %v2261 = vunpack.c.l.b16 %v2148
      %v2262 = vunpack.c.l.b16 %v2149
      %v2263 = vunpack.c.l.b16 %v2150
      %v2264 = vunpack.c.l.b16 %v2151
      %v2265 = vunpack.c.l.b16 %v2152
      %v2266 = vunpack.c.l.b16 %v2153
      %v2267 = vunpack.c.l.b16 %v2154
      %v2268 = vunpack.c.l.b16 %v2155
      %v2269 = vunpack.c.l.b16 %v2156
      %v2270 = vunpack.c.l.b16 %v2157
      %v2271 = vunpack.c.l.b16 %v2158
      %v2272 = vunpack.c.l.b16 %v2159
      %v2273 = vpack.c.b16 %v2242, %v2241
      %v2274 = vpack.c.b16 %v2244, %v2243
      %v2275 = vpack.c.b16 %v2246, %v2245
      %v2276 = vpack.c.b16 %v2248, %v2247
      %v2277 = vpack.c.b16 %v2250, %v2249
      %v2278 = vpack.c.b16 %v2252, %v2251
      %v2279 = vpack.c.b16 %v2254, %v2253
      %v2280 = vpack.c.b16 %v2256, %v2255
      %v2281 = vpack.c.b16 %v2258, %v2257
      %v2282 = vpack.c.b16 %v2260, %v2259
      %v2283 = vpack.c.b16 %v2262, %v2261
      %v2284 = vpack.c.b16 %v2264, %v2263
      %v2285 = vpack.c.b16 %v2266, %v2265
      %v2286 = vpack.c.b16 %v2268, %v2267
      %v2287 = vpack.c.b16 %v2270, %v2269
      %v2288 = vpack.c.b16 %v2272, %v2271
      %v2321 = vunpack.c.l.b16 %v2193
      %v2322 = vunpack.c.l.b16 %v2194
      %v2323 = vunpack.c.l.b16 %v2195
      %v2324 = vunpack.c.l.b16 %v2196
      %v2325 = vunpack.c.l.b16 %v2197
      %v2326 = vunpack.c.l.b16 %v2198
      %v2327 = vunpack.c.l.b16 %v2199
      %v2328 = vunpack.c.l.b16 %v2200
      %v2329 = vunpack.c.l.b16 %v2201
      %v2330 = vunpack.c.l.b16 %v2202
      %v2331 = vunpack.c.l.b16 %v2203
      %v2332 = vunpack.c.l.b16 %v2204
      %v2333 = vunpack.c.l.b16 %v2205
      %v2334 = vunpack.c.l.b16 %v2206
      %v2335 = vunpack.c.l.b16 %v2207
      %v2336 = vunpack.c.l.b16 %v2208
      %v2337 = vpack.c.b16 %v2322, %v2321
      %v2338 = vpack.c.b16 %v2324, %v2323
      %v2339 = vpack.c.b16 %v2326, %v2325
      %v2340 = vpack.c.b16 %v2328, %v2327
      %v2341 = vpack.c.b16 %v2330, %v2329
      %v2342 = vpack.c.b16 %v2332, %v2331
      %v2343 = vpack.c.b16 %v2334, %v2333
      %v2344 = vpack.c.b16 %v2336, %v2335
      %2353 = vmatprep.subr.bf16.mxu0 0
      %2354 = vmatpush1.bf16.msra.mxu0 %v2337
      %2355 = vmatprep.subr.bf16.mxu0 0
      %2356 = vmatpush1.bf16.msra.mxu0 %v2338
      %2357 = vmatprep.subr.bf16.mxu0 0
      %2358 = vmatpush1.bf16.msra.mxu0 %v2339
      %2359 = vmatprep.subr.bf16.mxu0 0
      %2360 = vmatpush1.bf16.msra.mxu0 %v2340
      %2361 = vmatprep.subr.bf16.mxu0 0
      %2362 = vmatpush1.bf16.msra.mxu0 %v2341
      %2363 = vmatprep.subr.bf16.mxu0 0
      %2364 = vmatpush1.bf16.msra.mxu0 %v2342
      %2365 = vmatprep.subr.bf16.mxu0 0
      %2366 = vmatpush1.bf16.msra.mxu0 %v2343
      %2367 = vmatprep.subr.bf16.mxu0 0
      %2368 = vmatpush1.bf16.msra.mxu0 %v2344
      %2369 = vmatprep.subr.bf16.mxu0 0
      %2370 = vmatpush1.bf16.msra.mxu0 0
      %2371 = vmatprep.subr.bf16.mxu0 0
      %2372 = vmatpush1.bf16.msra.mxu0 0
      %2373 = vmatprep.subr.bf16.mxu0 0
      %2374 = vmatpush1.bf16.msra.mxu0 0
      %2375 = vmatprep.subr.bf16.mxu0 0
      %2376 = vmatpush1.bf16.msra.mxu0 0
      %2377 = vmatprep.subr.bf16.mxu0 0
      %2378 = vmatpush1.bf16.msra.mxu0 0
      %2379 = vmatprep.subr.bf16.mxu0 0
      %2380 = vmatpush1.bf16.msra.mxu0 0
      %2381 = vmatprep.subr.bf16.mxu0 0
      %2382 = vmatpush1.bf16.msra.mxu0 0
      %2383 = vmatprep.subr.bf16.mxu0 0
      %2384 = vmatpush1.bf16.msra.mxu0 0
      %2385 = vmatprep.mubr.bf16.mxu0 0
      %2386 = vmatmul.mubr.bf16.gmra.mrb[0].mxu0 %v2273
      %v2387 = vpop.f32.mrb[0].mxu0
      %v2388 = vadd.f32 0.0, %v2387
      %v2389 = vpop.f32.mrb[0].mxu0
      %v2390 = vpop.f32.mrb[0].mxu0
      %v2391 = vadd.f32 0.0, %v2390
      %v2392 = vpop.f32.mrb[0].mxu0
      %2393 = vmatprep.mubr.bf16.mxu0 0
      %2394 = vmatmul.mubr.bf16.gmra.mrb[0].mxu0 %v2274
      %v2395 = vpop.f32.mrb[0].mxu0
      %v2396 = vadd.f32 0.0, %v2395
      %v2397 = vpop.f32.mrb[0].mxu0
      %v2398 = vpop.f32.mrb[0].mxu0
      %v2399 = vadd.f32 0.0, %v2398
      %v2400 = vpop.f32.mrb[0].mxu0
      %2401 = vmatprep.mubr.bf16.mxu0 0
      %2402 = vmatmul.mubr.bf16.gmra.mrb[0].mxu0 %v2275
      %v2403 = vpop.f32.mrb[0].mxu0
      %v2404 = vadd.f32 0.0, %v2403
      %v2405 = vpop.f32.mrb[0].mxu0
      %v2406 = vpop.f32.mrb[0].mxu0
      %v2407 = vadd.f32 0.0, %v2406
      %v2408 = vpop.f32.mrb[0].mxu0
      %2409 = vmatprep.mubr.bf16.mxu0 0
      %2410 = vmatmul.mubr.bf16.gmra.mrb[0].mxu0 %v2276
      %v2411 = vpop.f32.mrb[0].mxu0
      %v2412 = vadd.f32 0.0, %v2411
      %v2413 = vpop.f32.mrb[0].mxu0
      %v2414 = vpop.f32.mrb[0].mxu0
      %v2415 = vadd.f32 0.0, %v2414
      %v2416 = vpop.f32.mrb[0].mxu0
      %2417 = vmatprep.mubr.bf16.mxu0 0
      %2418 = vmatmul.mubr.bf16.gmra.mrb[0].mxu0 %v2277
      %v2419 = vpop.f32.mrb[0].mxu0
      %v2420 = vadd.f32 0.0, %v2419
      %v2421 = vpop.f32.mrb[0].mxu0
      %v2422 = vpop.f32.mrb[0].mxu0
      %v2423 = vadd.f32 0.0, %v2422
      %v2424 = vpop.f32.mrb[0].mxu0
      %2425 = vmatprep.mubr.bf16.mxu0 0
      %2426 = vmatmul.mubr.bf16.gmra.mrb[0].mxu0 %v2278
      %v2427 = vpop.f32.mrb[0].mxu0
      %v2428 = vadd.f32 0.0, %v2427
      %v2429 = vpop.f32.mrb[0].mxu0
      %v2430 = vpop.f32.mrb[0].mxu0
      %v2431 = vadd.f32 0.0, %v2430
      %v2432 = vpop.f32.mrb[0].mxu0
      %2433 = vmatprep.mubr.bf16.mxu0 0
      %2434 = vmatmul.mubr.bf16.gmra.mrb[0].mxu0 %v2279
      %v2435 = vpop.f32.mrb[0].mxu0
      %v2436 = vadd.f32 0.0, %v2435
      %v2437 = vpop.f32.mrb[0].mxu0
      %v2438 = vpop.f32.mrb[0].mxu0
      %v2439 = vadd.f32 0.0, %v2438
      %v2440 = vpop.f32.mrb[0].mxu0
      %2441 = vmatprep.mubr.bf16.mxu0 0
      %2442 = vmatmul.mubr.bf16.gmra.mrb[0].mxu0 %v2280
      %v2443 = vpop.f32.mrb[0].mxu0
      %v2444 = vadd.f32 0.0, %v2443
      %v2445 = vpop.f32.mrb[0].mxu0
      %v2446 = vpop.f32.mrb[0].mxu0
      %v2447 = vadd.f32 0.0, %v2446
      %v2448 = vpop.f32.mrb[0].mxu0
      %2449 = vmatprep.mubr.bf16.mxu0 0
      %2450 = vmatmul.mubr.bf16.gmra.mrb[0].mxu0 %v2281
      %v2451 = vpop.f32.mrb[0].mxu0
      %v2452 = vadd.f32 0.0, %v2451
      %v2453 = vpop.f32.mrb[0].mxu0
      %v2454 = vpop.f32.mrb[0].mxu0
      %v2455 = vadd.f32 0.0, %v2454
      %v2456 = vpop.f32.mrb[0].mxu0
      %2457 = vmatprep.mubr.bf16.mxu0 0
      %2458 = vmatmul.mubr.bf16.gmra.mrb[0].mxu0 %v2282
      %v2459 = vpop.f32.mrb[0].mxu0
      %v2460 = vadd.f32 0.0, %v2459
      %v2461 = vpop.f32.mrb[0].mxu0
      %v2462 = vpop.f32.mrb[0].mxu0
      %v2463 = vadd.f32 0.0, %v2462
      %v2464 = vpop.f32.mrb[0].mxu0
      %2465 = vmatprep.mubr.bf16.mxu0 0
      %2466 = vmatmul.mubr.bf16.gmra.mrb[0].mxu0 %v2283
      %v2467 = vpop.f32.mrb[0].mxu0
      %v2468 = vadd.f32 0.0, %v2467
      %v2469 = vpop.f32.mrb[0].mxu0
      %v2470 = vpop.f32.mrb[0].mxu0
      %v2471 = vadd.f32 0.0, %v2470
      %v2472 = vpop.f32.mrb[0].mxu0
      %2473 = vmatprep.mubr.bf16.mxu0 0
      %2474 = vmatmul.mubr.bf16.gmra.mrb[0].mxu0 %v2284
      %v2475 = vpop.f32.mrb[0].mxu0
      %v2476 = vadd.f32 0.0, %v2475
      %v2477 = vpop.f32.mrb[0].mxu0
      %v2478 = vpop.f32.mrb[0].mxu0
      %v2479 = vadd.f32 0.0, %v2478
      %v2480 = vpop.f32.mrb[0].mxu0
      %2481 = vmatprep.mubr.bf16.mxu0 0
      %2482 = vmatmul.mubr.bf16.gmra.mrb[0].mxu0 %v2285
      %v2483 = vpop.f32.mrb[0].mxu0
      %v2484 = vadd.f32 0.0, %v2483
      %v2485 = vpop.f32.mrb[0].mxu0
      %v2486 = vpop.f32.mrb[0].mxu0
      %v2487 = vadd.f32 0.0, %v2486
      %v2488 = vpop.f32.mrb[0].mxu0
      %2489 = vmatprep.mubr.bf16.mxu0 0
      %2490 = vmatmul.mubr.bf16.gmra.mrb[0].mxu0 %v2286
      %v2491 = vpop.f32.mrb[0].mxu0
      %v2492 = vadd.f32 0.0, %v2491
      %v2493 = vpop.f32.mrb[0].mxu0
      %v2494 = vpop.f32.mrb[0].mxu0
      %v2495 = vadd.f32 0.0, %v2494
      %v2496 = vpop.f32.mrb[0].mxu0
      %2497 = vmatprep.mubr.bf16.mxu0 0
      %2498 = vmatmul.mubr.bf16.gmra.mrb[0].mxu0 %v2287
      %v2499 = vpop.f32.mrb[0].mxu0
      %v2500 = vadd.f32 0.0, %v2499
      %v2501 = vpop.f32.mrb[0].mxu0
      %v2502 = vpop.f32.mrb[0].mxu0
      %v2503 = vadd.f32 0.0, %v2502
      %v2504 = vpop.f32.mrb[0].mxu0
      %2505 = vmatprep.mubr.bf16.mxu0 0
      %2506 = vmatmul.mubr.bf16.gmra.mrb[0].mxu0 %v2288
      %v2507 = vpop.f32.mrb[0].mxu0
      %v2508 = vadd.f32 0.0, %v2507
      %v2509 = vpop.f32.mrb[0].mxu0
      %v2510 = vpop.f32.mrb[0].mxu0
      %v2511 = vadd.f32 0.0, %v2510
      %v2512 = vpop.f32.mrb[0].mxu0
      %2513 = vdwg.mxu0
      %v2514 = vadd.f32 %v2160, %v2388
      %v2515 = vadd.f32 %v2161, %v2391
      %v2516 = vadd.f32 %v2162, %v2396
      %v2517 = vadd.f32 %v2163, %v2399
      %v2518 = vadd.f32 %v2164, %v2404
      %v2519 = vadd.f32 %v2165, %v2407
      %v2520 = vadd.f32 %v2166, %v2412
      %v2521 = vadd.f32 %v2167, %v2415
      %v2522 = vadd.f32 %v2168, %v2420
      %v2523 = vadd.f32 %v2169, %v2423
      %v2524 = vadd.f32 %v2170, %v2428
      %v2525 = vadd.f32 %v2171, %v2431
      %v2526 = vadd.f32 %v2172, %v2436
      %v2527 = vadd.f32 %v2173, %v2439
      %v2528 = vadd.f32 %v2174, %v2444
      %v2529 = vadd.f32 %v2175, %v2447
      %v2530 = vadd.f32 %v2176, %v2452
      %v2531 = vadd.f32 %v2177, %v2455
      %v2532 = vadd.f32 %v2178, %v2460
      %v2533 = vadd.f32 %v2179, %v2463
      %v2534 = vadd.f32 %v2180, %v2468
      %v2535 = vadd.f32 %v2181, %v2471
      %v2536 = vadd.f32 %v2182, %v2476
      %v2537 = vadd.f32 %v2183, %v2479
      %v2538 = vadd.f32 %v2184, %v2484
      %v2539 = vadd.f32 %v2185, %v2487
      %v2540 = vadd.f32 %v2186, %v2492
      %v2541 = vadd.f32 %v2187, %v2495
      %v2542 = vadd.f32 %v2188, %v2500
      %v2543 = vadd.f32 %v2189, %v2503
      %v2544 = vadd.f32 %v2190, %v2508
      %v2545 = vadd.f32 %v2191, %v2511
      %2546 = vst [vmem:[#allocation2] sm:$0xff] %v2514
      %2547 = vst [vmem:[#allocation2 + $0x8] sm:$0xff] %v2515
      %2548 = vst [vmem:[#allocation2 + $0x10] sm:$0xff] %v2516
      %2549 = vst [vmem:[#allocation2 + $0x18] sm:$0xff] %v2517
      %2550 = vst [vmem:[#allocation2 + $0x20] sm:$0xff] %v2518
      %2551 = vst [vmem:[#allocation2 + $0x28] sm:$0xff] %v2519
      %2552 = vst [vmem:[#allocation2 + $0x30] sm:$0xff] %v2520
      %2553 = vst [vmem:[#allocation2 + $0x38] sm:$0xff] %v2521
      %2554 = vst [vmem:[#allocation2 + $0x40] sm:$0xff] %v2522
      %2555 = vst [vmem:[#allocation2 + $0x48] sm:$0xff] %v2523
      %2556 = vst [vmem:[#allocation2 + $0x50] sm:$0xff] %v2524
      %2557 = vst [vmem:[#allocation2 + $0x58] sm:$0xff] %v2525
      %2558 = vst [vmem:[#allocation2 + $0x60] sm:$0xff] %v2526
      %2559 = vst [vmem:[#allocation2 + $0x68] sm:$0xff] %v2527
      %2560 = vst [vmem:[#allocation2 + $0x70] sm:$0xff] %v2528
      %2561 = vst [vmem:[#allocation2 + $0x78] sm:$0xff] %v2529
      %2562 = vst [vmem:[#allocation2 + $0x80] sm:$0xff] %v2530
      %2563 = vst [vmem:[#allocation2 + $0x88] sm:$0xff] %v2531
      %2564 = vst [vmem:[#allocation2 + $0x90] sm:$0xff] %v2532
      %2565 = vst [vmem:[#allocation2 + $0x98] sm:$0xff] %v2533
      %2566 = vst [vmem:[#allocation2 + $0xa0] sm:$0xff] %v2534
      %2567 = vst [vmem:[#allocation2 + $0xa8] sm:$0xff] %v2535
      %2568 = vst [vmem:[#allocation2 + $0xb0] sm:$0xff] %v2536
      %2569 = vst [vmem:[#allocation2 + $0xb8] sm:$0xff] %v2537
      %2570 = vst [vmem:[#allocation2 + $0xc0] sm:$0xff] %v2538
      %2571 = vst [vmem:[#allocation2 + $0xc8] sm:$0xff] %v2539
      %2572 = vst [vmem:[#allocation2 + $0xd0] sm:$0xff] %v2540
      %2573 = vst [vmem:[#allocation2 + $0xd8] sm:$0xff] %v2541
      %2574 = vst [vmem:[#allocation2 + $0xe0] sm:$0xff] %v2542
      %2575 = vst [vmem:[#allocation2 + $0xe8] sm:$0xff] %v2543
      %2576 = vst [vmem:[#allocation2 + $0xf0] sm:$0xff] %v2544
      %2577 = vst [vmem:[#allocation2 + $0xf8] sm:$0xff] %v2545
      %v2578 = vld [vmem:[%s2127] sm:$0xf]
      %v2579 = vld [vmem:[%s2127 + $0x4] sm:$0xf]
      %v2580 = vld [vmem:[%s2127 + $0x8] sm:$0x1]
      %v2581 = vld [vmem:[%s2127 + $0xc] sm:$0xf]
      %v2582 = vld [vmem:[%s2127 + $0x10] sm:$0xf]
      %v2583 = vld [vmem:[%s2127 + $0x14] sm:$0x1]
      %v2584 = vld [vmem:[%s2127 + $0x18] sm:$0xf]
      %v2585 = vld [vmem:[%s2127 + $0x1c] sm:$0xf]
      %v2586 = vld [vmem:[%s2127 + $0x20] sm:$0x1]
      %v2587 = vld [vmem:[%s2127 + $0x24] sm:$0xf]
      %v2588 = vld [vmem:[%s2127 + $0x28] sm:$0xf]
      %v2589 = vld [vmem:[%s2127 + $0x2c] sm:$0x1]
      %v2590 = vld [vmem:[%s2127 + $0x30] sm:$0xf]
      %v2591 = vld [vmem:[%s2127 + $0x34] sm:$0xf]
      %v2592 = vld [vmem:[%s2127 + $0x38] sm:$0x1]
      %v2593 = vld [vmem:[%s2127 + $0x3c] sm:$0xf]
      %v2594 = vld [vmem:[%s2127 + $0x40] sm:$0xf]
      %v2595 = vld [vmem:[%s2127 + $0x44] sm:$0x1]
      %v2596 = vld [vmem:[%s2127 + $0x48] sm:$0xf]
      %v2597 = vld [vmem:[%s2127 + $0x4c] sm:$0xf]
      %v2598 = vld [vmem:[%s2127 + $0x50] sm:$0x1]
      %v2599 = vld [vmem:[%s2127 + $0x54] sm:$0xf]
      %v2600 = vld [vmem:[%s2127 + $0x58] sm:$0xf]
      %v2601 = vld [vmem:[%s2127 + $0x5c] sm:$0x1]
      %v2602 = vld [vmem:[%s2127 + $0x60] sm:$0xf]
      %v2603 = vld [vmem:[%s2127 + $0x64] sm:$0xf]
      %v2604 = vld [vmem:[%s2127 + $0x68] sm:$0x1]
      %v2605 = vld [vmem:[%s2127 + $0x6c] sm:$0xf]
      %v2606 = vld [vmem:[%s2127 + $0x70] sm:$0xf]
      %v2607 = vld [vmem:[%s2127 + $0x74] sm:$0x1]
      %v2608 = vld [vmem:[%s2127 + $0x78] sm:$0xf]
      %v2609 = vld [vmem:[%s2127 + $0x7c] sm:$0xf]
      %v2610 = vld [vmem:[%s2127 + $0x80] sm:$0x1]
      %v2611 = vld [vmem:[%s2127 + $0x84] sm:$0xf]
      %v2612 = vld [vmem:[%s2127 + $0x88] sm:$0xf]
      %v2613 = vld [vmem:[%s2127 + $0x8c] sm:$0x1]
      %v2614 = vld [vmem:[%s2127 + $0x90] sm:$0xf]
      %v2615 = vld [vmem:[%s2127 + $0x94] sm:$0xf]
      %v2616 = vld [vmem:[%s2127 + $0x98] sm:$0x1]
      %v2617 = vld [vmem:[%s2127 + $0x9c] sm:$0xf]
      %v2618 = vld [vmem:[%s2127 + $0xa0] sm:$0xf]
      %v2619 = vld [vmem:[%s2127 + $0xa4] sm:$0x1]
      %v2620 = vld [vmem:[%s2127 + $0xa8] sm:$0xf]
      %v2621 = vld [vmem:[%s2127 + $0xac] sm:$0xf]
      %v2622 = vld [vmem:[%s2127 + $0xb0] sm:$0x1]
      %v2623 = vld [vmem:[%s2127 + $0xb4] sm:$0xf]
      %v2624 = vld [vmem:[%s2127 + $0xb8] sm:$0xf]
      %v2625 = vld [vmem:[%s2127 + $0xbc] sm:$0x1]
      %v2627 = vshrl.u32 %v2578, 16
      %v2629 = vrot.slane %v2627, 4
      %v2630 = vshll.u32 %v2578, 16
      %v2632 = vrot.slane %v2630, 5
      %v2633 = vor.u32 %v2629, %v2632
      %v2634 = vrot.slane %v2633, 4
      %v2636 = vshll.u32 %v2579, 16
      %v2638 = vrot.slane %v2636, 5
      %v2639 = vsel %vm759, %v2634, %v2638
      %v2640 = vshrl.u32 %v2579, 16
      %v2642 = vrot.slane %v2640, 4
      %v2643 = vor.u32 %v2642, %v2638
      %v2644 = vrot.slane %v2643, 4
      %v2646 = vshll.u32 %v2580, 16
      %v2648 = vrot.slane %v2646, 5
      %v2649 = vsel %vm759, %v2644, %v2648
      %v2651 = vshrl.u32 %v2581, 16
      %v2653 = vrot.slane %v2651, 4
      %v2654 = vshll.u32 %v2581, 16
      %v2656 = vrot.slane %v2654, 5
      %v2657 = vor.u32 %v2653, %v2656
      %v2658 = vrot.slane %v2657, 4
      %v2660 = vshll.u32 %v2582, 16
      %v2662 = vrot.slane %v2660, 5
      %v2663 = vsel %vm759, %v2658, %v2662
      %v2664 = vshrl.u32 %v2582, 16
      %v2666 = vrot.slane %v2664, 4
      %v2667 = vor.u32 %v2666, %v2662
      %v2668 = vrot.slane %v2667, 4
      %v2670 = vshll.u32 %v2583, 16
      %v2672 = vrot.slane %v2670, 5
      %v2673 = vsel %vm759, %v2668, %v2672
      %v2675 = vshrl.u32 %v2584, 16
      %v2677 = vrot.slane %v2675, 4
      %v2678 = vshll.u32 %v2584, 16
      %v2680 = vrot.slane %v2678, 5
      %v2681 = vor.u32 %v2677, %v2680
      %v2682 = vrot.slane %v2681, 4
      %v2684 = vshll.u32 %v2585, 16
      %v2686 = vrot.slane %v2684, 5
      %v2687 = vsel %vm759, %v2682, %v2686
      %v2688 = vshrl.u32 %v2585, 16
      %v2690 = vrot.slane %v2688, 4
      %v2691 = vor.u32 %v2690, %v2686
      %v2692 = vrot.slane %v2691, 4
      %v2694 = vshll.u32 %v2586, 16
      %v2696 = vrot.slane %v2694, 5
      %v2697 = vsel %vm759, %v2692, %v2696
      %v2699 = vshrl.u32 %v2587, 16
      %v2701 = vrot.slane %v2699, 4
      %v2702 = vshll.u32 %v2587, 16
      %v2704 = vrot.slane %v2702, 5
      %v2705 = vor.u32 %v2701, %v2704
      %v2706 = vrot.slane %v2705, 4
      %v2708 = vshll.u32 %v2588, 16
      %v2710 = vrot.slane %v2708, 5
      %v2711 = vsel %vm759, %v2706, %v2710
      %v2712 = vshrl.u32 %v2588, 16
      %v2714 = vrot.slane %v2712, 4
      %v2715 = vor.u32 %v2714, %v2710
      %v2716 = vrot.slane %v2715, 4
      %v2718 = vshll.u32 %v2589, 16
      %v2720 = vrot.slane %v2718, 5
      %v2721 = vsel %vm759, %v2716, %v2720
      %v2723 = vshrl.u32 %v2590, 16
      %v2725 = vrot.slane %v2723, 4
      %v2726 = vshll.u32 %v2590, 16
      %v2728 = vrot.slane %v2726, 5
      %v2729 = vor.u32 %v2725, %v2728
      %v2730 = vrot.slane %v2729, 4
      %v2732 = vshll.u32 %v2591, 16
      %v2734 = vrot.slane %v2732, 5
      %v2735 = vsel %vm759, %v2730, %v2734
      %v2736 = vshrl.u32 %v2591, 16
      %v2738 = vrot.slane %v2736, 4
      %v2739 = vor.u32 %v2738, %v2734
      %v2740 = vrot.slane %v2739, 4
      %v2742 = vshll.u32 %v2592, 16
      %v2744 = vrot.slane %v2742, 5
      %v2745 = vsel %vm759, %v2740, %v2744
      %v2747 = vshrl.u32 %v2593, 16
      %v2749 = vrot.slane %v2747, 4
      %v2750 = vshll.u32 %v2593, 16
      %v2752 = vrot.slane %v2750, 5
      %v2753 = vor.u32 %v2749, %v2752
      %v2754 = vrot.slane %v2753, 4
      %v2756 = vshll.u32 %v2594, 16
      %v2758 = vrot.slane %v2756, 5
      %v2759 = vsel %vm759, %v2754, %v2758
      %v2760 = vshrl.u32 %v2594, 16
      %v2762 = vrot.slane %v2760, 4
      %v2763 = vor.u32 %v2762, %v2758
      %v2764 = vrot.slane %v2763, 4
      %v2766 = vshll.u32 %v2595, 16
      %v2768 = vrot.slane %v2766, 5
      %v2769 = vsel %vm759, %v2764, %v2768
      %v2771 = vshrl.u32 %v2596, 16
      %v2773 = vrot.slane %v2771, 4
      %v2774 = vshll.u32 %v2596, 16
      %v2776 = vrot.slane %v2774, 5
      %v2777 = vor.u32 %v2773, %v2776
      %v2778 = vrot.slane %v2777, 4
      %v2780 = vshll.u32 %v2597, 16
      %v2782 = vrot.slane %v2780, 5
      %v2783 = vsel %vm759, %v2778, %v2782
      %v2784 = vshrl.u32 %v2597, 16
      %v2786 = vrot.slane %v2784, 4
      %v2787 = vor.u32 %v2786, %v2782
      %v2788 = vrot.slane %v2787, 4
      %v2790 = vshll.u32 %v2598, 16
      %v2792 = vrot.slane %v2790, 5
      %v2793 = vsel %vm759, %v2788, %v2792
      %v2795 = vshrl.u32 %v2599, 16
      %v2797 = vrot.slane %v2795, 4
      %v2798 = vshll.u32 %v2599, 16
      %v2800 = vrot.slane %v2798, 5
      %v2801 = vor.u32 %v2797, %v2800
      %v2802 = vrot.slane %v2801, 4
      %v2804 = vshll.u32 %v2600, 16
      %v2806 = vrot.slane %v2804, 5
      %v2807 = vsel %vm759, %v2802, %v2806
      %v2808 = vshrl.u32 %v2600, 16
      %v2810 = vrot.slane %v2808, 4
      %v2811 = vor.u32 %v2810, %v2806
      %v2812 = vrot.slane %v2811, 4
      %v2814 = vshll.u32 %v2601, 16
      %v2816 = vrot.slane %v2814, 5
      %v2817 = vsel %vm759, %v2812, %v2816
      %v2819 = vshrl.u32 %v2602, 16
      %v2821 = vrot.slane %v2819, 4
      %v2822 = vshll.u32 %v2602, 16
      %v2824 = vrot.slane %v2822, 5
      %v2825 = vor.u32 %v2821, %v2824
      %v2826 = vrot.slane %v2825, 4
      %v2828 = vshll.u32 %v2603, 16
      %v2830 = vrot.slane %v2828, 5
      %v2831 = vsel %vm759, %v2826, %v2830
      %v2832 = vshrl.u32 %v2603, 16
      %v2834 = vrot.slane %v2832, 4
      %v2835 = vor.u32 %v2834, %v2830
      %v2836 = vrot.slane %v2835, 4
      %v2838 = vshll.u32 %v2604, 16
      %v2840 = vrot.slane %v2838, 5
      %v2841 = vsel %vm759, %v2836, %v2840
      %v2843 = vshrl.u32 %v2605, 16
      %v2845 = vrot.slane %v2843, 4
      %v2846 = vshll.u32 %v2605, 16
      %v2848 = vrot.slane %v2846, 5
      %v2849 = vor.u32 %v2845, %v2848
      %v2850 = vrot.slane %v2849, 4
      %v2852 = vshll.u32 %v2606, 16
      %v2854 = vrot.slane %v2852, 5
      %v2855 = vsel %vm759, %v2850, %v2854
      %v2856 = vshrl.u32 %v2606, 16
      %v2858 = vrot.slane %v2856, 4
      %v2859 = vor.u32 %v2858, %v2854
      %v2860 = vrot.slane %v2859, 4
      %v2862 = vshll.u32 %v2607, 16
      %v2864 = vrot.slane %v2862, 5
      %v2865 = vsel %vm759, %v2860, %v2864
      %v2867 = vshrl.u32 %v2608, 16
      %v2869 = vrot.slane %v2867, 4
      %v2870 = vshll.u32 %v2608, 16
      %v2872 = vrot.slane %v2870, 5
      %v2873 = vor.u32 %v2869, %v2872
      %v2874 = vrot.slane %v2873, 4
      %v2876 = vshll.u32 %v2609, 16
      %v2878 = vrot.slane %v2876, 5
      %v2879 = vsel %vm759, %v2874, %v2878
      %v2880 = vshrl.u32 %v2609, 16
      %v2882 = vrot.slane %v2880, 4
      %v2883 = vor.u32 %v2882, %v2878
      %v2884 = vrot.slane %v2883, 4
      %v2886 = vshll.u32 %v2610, 16
      %v2888 = vrot.slane %v2886, 5
      %v2889 = vsel %vm759, %v2884, %v2888
      %v2891 = vshrl.u32 %v2611, 16
      %v2893 = vrot.slane %v2891, 4
      %v2894 = vshll.u32 %v2611, 16
      %v2896 = vrot.slane %v2894, 5
      %v2897 = vor.u32 %v2893, %v2896
      %v2898 = vrot.slane %v2897, 4
      %v2900 = vshll.u32 %v2612, 16
      %v2902 = vrot.slane %v2900, 5
      %v2903 = vsel %vm759, %v2898, %v2902
      %v2904 = vshrl.u32 %v2612, 16
      %v2906 = vrot.slane %v2904, 4
      %v2907 = vor.u32 %v2906, %v2902
      %v2908 = vrot.slane %v2907, 4
      %v2910 = vshll.u32 %v2613, 16
      %v2912 = vrot.slane %v2910, 5
      %v2913 = vsel %vm759, %v2908, %v2912
      %v2915 = vshrl.u32 %v2614, 16
      %v2917 = vrot.slane %v2915, 4
      %v2918 = vshll.u32 %v2614, 16
      %v2920 = vrot.slane %v2918, 5
      %v2921 = vor.u32 %v2917, %v2920
      %v2922 = vrot.slane %v2921, 4
      %v2924 = vshll.u32 %v2615, 16
      %v2926 = vrot.slane %v2924, 5
      %v2927 = vsel %vm759, %v2922, %v2926
      %v2928 = vshrl.u32 %v2615, 16
      %v2930 = vrot.slane %v2928, 4
      %v2931 = vor.u32 %v2930, %v2926
      %v2932 = vrot.slane %v2931, 4
      %v2934 = vshll.u32 %v2616, 16
      %v2936 = vrot.slane %v2934, 5
      %v2937 = vsel %vm759, %v2932, %v2936
      %v2939 = vshrl.u32 %v2617, 16
      %v2941 = vrot.slane %v2939, 4
      %v2942 = vshll.u32 %v2617, 16
      %v2944 = vrot.slane %v2942, 5
      %v2945 = vor.u32 %v2941, %v2944
      %v2946 = vrot.slane %v2945, 4
      %v2948 = vshll.u32 %v2618, 16
      %v2950 = vrot.slane %v2948, 5
      %v2951 = vsel %vm759, %v2946, %v2950
      %v2952 = vshrl.u32 %v2618, 16
      %v2954 = vrot.slane %v2952, 4
      %v2955 = vor.u32 %v2954, %v2950
      %v2956 = vrot.slane %v2955, 4
      %v2958 = vshll.u32 %v2619, 16
      %v2960 = vrot.slane %v2958, 5
      %v2961 = vsel %vm759, %v2956, %v2960
      %v2963 = vshrl.u32 %v2620, 16
      %v2965 = vrot.slane %v2963, 4
      %v2966 = vshll.u32 %v2620, 16
      %v2968 = vrot.slane %v2966, 5
      %v2969 = vor.u32 %v2965, %v2968
      %v2970 = vrot.slane %v2969, 4
      %v2972 = vshll.u32 %v2621, 16
      %v2974 = vrot.slane %v2972, 5
      %v2975 = vsel %vm759, %v2970, %v2974
      %v2976 = vshrl.u32 %v2621, 16
      %v2978 = vrot.slane %v2976, 4
      %v2979 = vor.u32 %v2978, %v2974
      %v2980 = vrot.slane %v2979, 4
      %v2982 = vshll.u32 %v2622, 16
      %v2984 = vrot.slane %v2982, 5
      %v2985 = vsel %vm759, %v2980, %v2984
      %v2987 = vshrl.u32 %v2623, 16
      %v2989 = vrot.slane %v2987, 4
      %v2990 = vshll.u32 %v2623, 16
      %v2992 = vrot.slane %v2990, 5
      %v2993 = vor.u32 %v2989, %v2992
      %v2994 = vrot.slane %v2993, 4
      %v2996 = vshll.u32 %v2624, 16
      %v2998 = vrot.slane %v2996, 5
      %v2999 = vsel %vm759, %v2994, %v2998
      %v3000 = vshrl.u32 %v2624, 16
      %v3002 = vrot.slane %v3000, 4
      %v3003 = vor.u32 %v3002, %v2998
      %v3004 = vrot.slane %v3003, 4
      %v3006 = vshll.u32 %v2625, 16
      %v3008 = vrot.slane %v3006, 5
      %v3009 = vsel %vm759, %v3004, %v3008
      %v3010 = vld [vmem:[#allocation2] sm:$0xff]
      %v3011 = vld [vmem:[#allocation2 + $0x8] sm:$0xff]
      %v3012 = vld [vmem:[#allocation2 + $0x10] sm:$0xff]
      %v3013 = vld [vmem:[#allocation2 + $0x18] sm:$0xff]
      %v3014 = vld [vmem:[#allocation2 + $0x20] sm:$0xff]
      %v3015 = vld [vmem:[#allocation2 + $0x28] sm:$0xff]
      %v3016 = vld [vmem:[#allocation2 + $0x30] sm:$0xff]
      %v3017 = vld [vmem:[#allocation2 + $0x38] sm:$0xff]
      %v3018 = vld [vmem:[#allocation2 + $0x40] sm:$0xff]
      %v3019 = vld [vmem:[#allocation2 + $0x48] sm:$0xff]
      %v3020 = vld [vmem:[#allocation2 + $0x50] sm:$0xff]
      %v3021 = vld [vmem:[#allocation2 + $0x58] sm:$0xff]
      %v3022 = vld [vmem:[#allocation2 + $0x60] sm:$0xff]
      %v3023 = vld [vmem:[#allocation2 + $0x68] sm:$0xff]
      %v3024 = vld [vmem:[#allocation2 + $0x70] sm:$0xff]
      %v3025 = vld [vmem:[#allocation2 + $0x78] sm:$0xff]
      %v3026 = vld [vmem:[#allocation2 + $0x80] sm:$0xff]
      %v3027 = vld [vmem:[#allocation2 + $0x88] sm:$0xff]
      %v3028 = vld [vmem:[#allocation2 + $0x90] sm:$0xff]
      %v3029 = vld [vmem:[#allocation2 + $0x98] sm:$0xff]
      %v3030 = vld [vmem:[#allocation2 + $0xa0] sm:$0xff]
      %v3031 = vld [vmem:[#allocation2 + $0xa8] sm:$0xff]
      %v3032 = vld [vmem:[#allocation2 + $0xb0] sm:$0xff]
      %v3033 = vld [vmem:[#allocation2 + $0xb8] sm:$0xff]
      %v3034 = vld [vmem:[#allocation2 + $0xc0] sm:$0xff]
      %v3035 = vld [vmem:[#allocation2 + $0xc8] sm:$0xff]
      %v3036 = vld [vmem:[#allocation2 + $0xd0] sm:$0xff]
      %v3037 = vld [vmem:[#allocation2 + $0xd8] sm:$0xff]
      %v3038 = vld [vmem:[#allocation2 + $0xe0] sm:$0xff]
      %v3039 = vld [vmem:[#allocation2 + $0xe8] sm:$0xff]
      %v3040 = vld [vmem:[#allocation2 + $0xf0] sm:$0xff]
      %v3041 = vld [vmem:[#allocation2 + $0xf8] sm:$0xff]
      %s3042 = scalar_lea.vmem %s211, 256
      %v3043 = vld [vmem:[%s3042] sm:$0xf]
      %v3044 = vld [vmem:[%s3042 + $0x4] sm:$0xf]
      %v3045 = vld [vmem:[%s3042 + $0x8] sm:$0xf]
      %v3046 = vld [vmem:[%s3042 + $0xc] sm:$0xf]
      %v3047 = vld [vmem:[%s3042 + $0x10] sm:$0xf]
      %v3048 = vld [vmem:[%s3042 + $0x14] sm:$0xf]
      %v3049 = vld [vmem:[%s3042 + $0x18] sm:$0xf]
      %v3050 = vld [vmem:[%s3042 + $0x1c] sm:$0xf]
      %v3051 = vld [vmem:[%s3042 + $0x20] sm:$0xf]
      %v3052 = vld [vmem:[%s3042 + $0x24] sm:$0xf]
      %v3053 = vld [vmem:[%s3042 + $0x28] sm:$0xf]
      %v3054 = vld [vmem:[%s3042 + $0x2c] sm:$0xf]
      %v3055 = vld [vmem:[%s3042 + $0x30] sm:$0xf]
      %v3056 = vld [vmem:[%s3042 + $0x34] sm:$0xf]
      %v3057 = vld [vmem:[%s3042 + $0x38] sm:$0xf]
      %v3058 = vld [vmem:[%s3042 + $0x3c] sm:$0xf]
      %v3059 = vunpack.c.l.b16 %v2639
      %v3060 = vunpack.c.l.b16 %v2649
      %v3061 = vunpack.c.l.b16 %v2663
      %v3062 = vunpack.c.l.b16 %v2673
      %v3063 = vunpack.c.l.b16 %v2687
      %v3064 = vunpack.c.l.b16 %v2697
      %v3065 = vunpack.c.l.b16 %v2711
      %v3066 = vunpack.c.l.b16 %v2721
      %v3067 = vunpack.c.l.b16 %v2735
      %v3068 = vunpack.c.l.b16 %v2745
      %v3069 = vunpack.c.l.b16 %v2759
      %v3070 = vunpack.c.l.b16 %v2769
      %v3071 = vunpack.c.l.b16 %v2783
      %v3072 = vunpack.c.l.b16 %v2793
      %v3073 = vunpack.c.l.b16 %v2807
      %v3074 = vunpack.c.l.b16 %v2817
      %v3075 = vunpack.c.l.b16 %v2831
      %v3076 = vunpack.c.l.b16 %v2841
      %v3077 = vunpack.c.l.b16 %v2855
      %v3078 = vunpack.c.l.b16 %v2865
      %v3079 = vunpack.c.l.b16 %v2879
      %v3080 = vunpack.c.l.b16 %v2889
      %v3081 = vunpack.c.l.b16 %v2903
      %v3082 = vunpack.c.l.b16 %v2913
      %v3083 = vunpack.c.l.b16 %v2927
      %v3084 = vunpack.c.l.b16 %v2937
      %v3085 = vunpack.c.l.b16 %v2951
      %v3086 = vunpack.c.l.b16 %v2961
      %v3087 = vunpack.c.l.b16 %v2975
      %v3088 = vunpack.c.l.b16 %v2985
      %v3089 = vunpack.c.l.b16 %v2999
      %v3090 = vunpack.c.l.b16 %v3009
      %v3091 = vpack.c.b16 %v3060, %v3059
      %v3092 = vpack.c.b16 %v3062, %v3061
      %v3093 = vpack.c.b16 %v3064, %v3063
      %v3094 = vpack.c.b16 %v3066, %v3065
      %v3095 = vpack.c.b16 %v3068, %v3067
      %v3096 = vpack.c.b16 %v3070, %v3069
      %v3097 = vpack.c.b16 %v3072, %v3071
      %v3098 = vpack.c.b16 %v3074, %v3073
      %v3099 = vpack.c.b16 %v3076, %v3075
      %v3100 = vpack.c.b16 %v3078, %v3077
      %v3101 = vpack.c.b16 %v3080, %v3079
      %v3102 = vpack.c.b16 %v3082, %v3081
      %v3103 = vpack.c.b16 %v3084, %v3083
      %v3104 = vpack.c.b16 %v3086, %v3085
      %v3105 = vpack.c.b16 %v3088, %v3087
      %v3106 = vpack.c.b16 %v3090, %v3089
      %v3139 = vunpack.c.l.b16 %v3043
      %v3140 = vunpack.c.l.b16 %v3044
      %v3141 = vunpack.c.l.b16 %v3045
      %v3142 = vunpack.c.l.b16 %v3046
      %v3143 = vunpack.c.l.b16 %v3047
      %v3144 = vunpack.c.l.b16 %v3048
      %v3145 = vunpack.c.l.b16 %v3049
      %v3146 = vunpack.c.l.b16 %v3050
      %v3147 = vunpack.c.l.b16 %v3051
      %v3148 = vunpack.c.l.b16 %v3052
      %v3149 = vunpack.c.l.b16 %v3053
      %v3150 = vunpack.c.l.b16 %v3054
      %v3151 = vunpack.c.l.b16 %v3055
      %v3152 = vunpack.c.l.b16 %v3056
      %v3153 = vunpack.c.l.b16 %v3057
      %v3154 = vunpack.c.l.b16 %v3058
      %v3155 = vpack.c.b16 %v3140, %v3139
      %v3156 = vpack.c.b16 %v3142, %v3141
      %v3157 = vpack.c.b16 %v3144, %v3143
      %v3158 = vpack.c.b16 %v3146, %v3145
      %v3159 = vpack.c.b16 %v3148, %v3147
      %v3160 = vpack.c.b16 %v3150, %v3149
      %v3161 = vpack.c.b16 %v3152, %v3151
      %v3162 = vpack.c.b16 %v3154, %v3153
      %3171 = vmatprep.subr.bf16.mxu0 0
      %3172 = vmatpush1.bf16.msra.mxu0 %v3155
      %3173 = vmatprep.subr.bf16.mxu0 0
      %3174 = vmatpush1.bf16.msra.mxu0 %v3156
      %3175 = vmatprep.subr.bf16.mxu0 0
      %3176 = vmatpush1.bf16.msra.mxu0 %v3157
      %3177 = vmatprep.subr.bf16.mxu0 0
      %3178 = vmatpush1.bf16.msra.mxu0 %v3158
      %3179 = vmatprep.subr.bf16.mxu0 0
      %3180 = vmatpush1.bf16.msra.mxu0 %v3159
      %3181 = vmatprep.subr.bf16.mxu0 0
      %3182 = vmatpush1.bf16.msra.mxu0 %v3160
      %3183 = vmatprep.subr.bf16.mxu0 0
      %3184 = vmatpush1.bf16.msra.mxu0 %v3161
      %3185 = vmatprep.subr.bf16.mxu0 0
      %3186 = vmatpush1.bf16.msra.mxu0 %v3162
      %3187 = vmatprep.subr.bf16.mxu0 0
      %3188 = vmatpush1.bf16.msra.mxu0 0
      %3189 = vmatprep.subr.bf16.mxu0 0
      %3190 = vmatpush1.bf16.msra.mxu0 0
      %3191 = vmatprep.subr.bf16.mxu0 0
      %3192 = vmatpush1.bf16.msra.mxu0 0
      %3193 = vmatprep.subr.bf16.mxu0 0
      %3194 = vmatpush1.bf16.msra.mxu0 0
      %3195 = vmatprep.subr.bf16.mxu0 0
      %3196 = vmatpush1.bf16.msra.mxu0 0
      %3197 = vmatprep.subr.bf16.mxu0 0
      %3198 = vmatpush1.bf16.msra.mxu0 0
      %3199 = vmatprep.subr.bf16.mxu0 0
      %3200 = vmatpush1.bf16.msra.mxu0 0
      %3201 = vmatprep.subr.bf16.mxu0 0
      %3202 = vmatpush1.bf16.msra.mxu0 0
      %3203 = vmatprep.mubr.bf16.mxu0 0
      %3204 = vmatmul.mubr.bf16.gmra.mrb[0].mxu0 %v3091
      %v3205 = vpop.f32.mrb[0].mxu0
      %v3206 = vadd.f32 0.0, %v3205
      %v3207 = vpop.f32.mrb[0].mxu0
      %v3208 = vpop.f32.mrb[0].mxu0
      %v3209 = vadd.f32 0.0, %v3208
      %v3210 = vpop.f32.mrb[0].mxu0
      %3211 = vmatprep.mubr.bf16.mxu0 0
      %3212 = vmatmul.mubr.bf16.gmra.mrb[0].mxu0 %v3092
      %v3213 = vpop.f32.mrb[0].mxu0
      %v3214 = vadd.f32 0.0, %v3213
      %v3215 = vpop.f32.mrb[0].mxu0
      %v3216 = vpop.f32.mrb[0].mxu0
      %v3217 = vadd.f32 0.0, %v3216
      %v3218 = vpop.f32.mrb[0].mxu0
      %3219 = vmatprep.mubr.bf16.mxu0 0
      %3220 = vmatmul.mubr.bf16.gmra.mrb[0].mxu0 %v3093
      %v3221 = vpop.f32.mrb[0].mxu0
      %v3222 = vadd.f32 0.0, %v3221
      %v3223 = vpop.f32.mrb[0].mxu0
      %v3224 = vpop.f32.mrb[0].mxu0
      %v3225 = vadd.f32 0.0, %v3224
      %v3226 = vpop.f32.mrb[0].mxu0
      %3227 = vmatprep.mubr.bf16.mxu0 0
      %3228 = vmatmul.mubr.bf16.gmra.mrb[0].mxu0 %v3094
      %v3229 = vpop.f32.mrb[0].mxu0
      %v3230 = vadd.f32 0.0, %v3229
      %v3231 = vpop.f32.mrb[0].mxu0
      %v3232 = vpop.f32.mrb[0].mxu0
      %v3233 = vadd.f32 0.0, %v3232
      %v3234 = vpop.f32.mrb[0].mxu0
      %3235 = vmatprep.mubr.bf16.mxu0 0
      %3236 = vmatmul.mubr.bf16.gmra.mrb[0].mxu0 %v3095
      %v3237 = vpop.f32.mrb[0].mxu0
      %v3238 = vadd.f32 0.0, %v3237
      %v3239 = vpop.f32.mrb[0].mxu0
      %v3240 = vpop.f32.mrb[0].mxu0
      %v3241 = vadd.f32 0.0, %v3240
      %v3242 = vpop.f32.mrb[0].mxu0
      %3243 = vmatprep.mubr.bf16.mxu0 0
      %3244 = vmatmul.mubr.bf16.gmra.mrb[0].mxu0 %v3096
      %v3245 = vpop.f32.mrb[0].mxu0
      %v3246 = vadd.f32 0.0, %v3245
      %v3247 = vpop.f32.mrb[0].mxu0
      %v3248 = vpop.f32.mrb[0].mxu0
      %v3249 = vadd.f32 0.0, %v3248
      %v3250 = vpop.f32.mrb[0].mxu0
      %3251 = vmatprep.mubr.bf16.mxu0 0
      %3252 = vmatmul.mubr.bf16.gmra.mrb[0].mxu0 %v3097
      %v3253 = vpop.f32.mrb[0].mxu0
      %v3254 = vadd.f32 0.0, %v3253
      %v3255 = vpop.f32.mrb[0].mxu0
      %v3256 = vpop.f32.mrb[0].mxu0
      %v3257 = vadd.f32 0.0, %v3256
      %v3258 = vpop.f32.mrb[0].mxu0
      %3259 = vmatprep.mubr.bf16.mxu0 0
      %3260 = vmatmul.mubr.bf16.gmra.mrb[0].mxu0 %v3098
      %v3261 = vpop.f32.mrb[0].mxu0
      %v3262 = vadd.f32 0.0, %v3261
      %v3263 = vpop.f32.mrb[0].mxu0
      %v3264 = vpop.f32.mrb[0].mxu0
      %v3265 = vadd.f32 0.0, %v3264
      %v3266 = vpop.f32.mrb[0].mxu0
      %3267 = vmatprep.mubr.bf16.mxu0 0
      %3268 = vmatmul.mubr.bf16.gmra.mrb[0].mxu0 %v3099
      %v3269 = vpop.f32.mrb[0].mxu0
      %v3270 = vadd.f32 0.0, %v3269
      %v3271 = vpop.f32.mrb[0].mxu0
      %v3272 = vpop.f32.mrb[0].mxu0
      %v3273 = vadd.f32 0.0, %v3272
      %v3274 = vpop.f32.mrb[0].mxu0
      %3275 = vmatprep.mubr.bf16.mxu0 0
      %3276 = vmatmul.mubr.bf16.gmra.mrb[0].mxu0 %v3100
      %v3277 = vpop.f32.mrb[0].mxu0
      %v3278 = vadd.f32 0.0, %v3277
      %v3279 = vpop.f32.mrb[0].mxu0
      %v3280 = vpop.f32.mrb[0].mxu0
      %v3281 = vadd.f32 0.0, %v3280
      %v3282 = vpop.f32.mrb[0].mxu0
      %3283 = vmatprep.mubr.bf16.mxu0 0
      %3284 = vmatmul.mubr.bf16.gmra.mrb[0].mxu0 %v3101
      %v3285 = vpop.f32.mrb[0].mxu0
      %v3286 = vadd.f32 0.0, %v3285
      %v3287 = vpop.f32.mrb[0].mxu0
      %v3288 = vpop.f32.mrb[0].mxu0
      %v3289 = vadd.f32 0.0, %v3288
      %v3290 = vpop.f32.mrb[0].mxu0
      %3291 = vmatprep.mubr.bf16.mxu0 0
      %3292 = vmatmul.mubr.bf16.gmra.mrb[0].mxu0 %v3102
      %v3293 = vpop.f32.mrb[0].mxu0
      %v3294 = vadd.f32 0.0, %v3293
      %v3295 = vpop.f32.mrb[0].mxu0
      %v3296 = vpop.f32.mrb[0].mxu0
      %v3297 = vadd.f32 0.0, %v3296
      %v3298 = vpop.f32.mrb[0].mxu0
      %3299 = vmatprep.mubr.bf16.mxu0 0
      %3300 = vmatmul.mubr.bf16.gmra.mrb[0].mxu0 %v3103
      %v3301 = vpop.f32.mrb[0].mxu0
      %v3302 = vadd.f32 0.0, %v3301
      %v3303 = vpop.f32.mrb[0].mxu0
      %v3304 = vpop.f32.mrb[0].mxu0
      %v3305 = vadd.f32 0.0, %v3304
      %v3306 = vpop.f32.mrb[0].mxu0
      %3307 = vmatprep.mubr.bf16.mxu0 0
      %3308 = vmatmul.mubr.bf16.gmra.mrb[0].mxu0 %v3104
      %v3309 = vpop.f32.mrb[0].mxu0
      %v3310 = vadd.f32 0.0, %v3309
      %v3311 = vpop.f32.mrb[0].mxu0
      %v3312 = vpop.f32.mrb[0].mxu0
      %v3313 = vadd.f32 0.0, %v3312
      %v3314 = vpop.f32.mrb[0].mxu0
      %3315 = vmatprep.mubr.bf16.mxu0 0
      %3316 = vmatmul.mubr.bf16.gmra.mrb[0].mxu0 %v3105
      %v3317 = vpop.f32.mrb[0].mxu0
      %v3318 = vadd.f32 0.0, %v3317
      %v3319 = vpop.f32.mrb[0].mxu0
      %v3320 = vpop.f32.mrb[0].mxu0
      %v3321 = vadd.f32 0.0, %v3320
      %v3322 = vpop.f32.mrb[0].mxu0
      %3323 = vmatprep.mubr.bf16.mxu0 0
      %3324 = vmatmul.mubr.bf16.gmra.mrb[0].mxu0 %v3106
      %v3325 = vpop.f32.mrb[0].mxu0
      %v3326 = vadd.f32 0.0, %v3325
      %v3327 = vpop.f32.mrb[0].mxu0
      %v3328 = vpop.f32.mrb[0].mxu0
      %v3329 = vadd.f32 0.0, %v3328
      %v3330 = vpop.f32.mrb[0].mxu0
      %3331 = vdwg.mxu0
      %v3332 = vadd.f32 %v3010, %v3206
      %v3333 = vadd.f32 %v3011, %v3209
      %v3334 = vadd.f32 %v3012, %v3214
      %v3335 = vadd.f32 %v3013, %v3217
      %v3336 = vadd.f32 %v3014, %v3222
      %v3337 = vadd.f32 %v3015, %v3225
      %v3338 = vadd.f32 %v3016, %v3230
      %v3339 = vadd.f32 %v3017, %v3233
      %v3340 = vadd.f32 %v3018, %v3238
      %v3341 = vadd.f32 %v3019, %v3241
      %v3342 = vadd.f32 %v3020, %v3246
      %v3343 = vadd.f32 %v3021, %v3249
      %v3344 = vadd.f32 %v3022, %v3254
      %v3345 = vadd.f32 %v3023, %v3257
      %v3346 = vadd.f32 %v3024, %v3262
      %v3347 = vadd.f32 %v3025, %v3265
      %v3348 = vadd.f32 %v3026, %v3270
      %v3349 = vadd.f32 %v3027, %v3273
      %v3350 = vadd.f32 %v3028, %v3278
      %v3351 = vadd.f32 %v3029, %v3281
      %v3352 = vadd.f32 %v3030, %v3286
      %v3353 = vadd.f32 %v3031, %v3289
      %v3354 = vadd.f32 %v3032, %v3294
      %v3355 = vadd.f32 %v3033, %v3297
      %v3356 = vadd.f32 %v3034, %v3302
      %v3357 = vadd.f32 %v3035, %v3305
      %v3358 = vadd.f32 %v3036, %v3310
      %v3359 = vadd.f32 %v3037, %v3313
      %v3360 = vadd.f32 %v3038, %v3318
      %v3361 = vadd.f32 %v3039, %v3321
      %v3362 = vadd.f32 %v3040, %v3326
      %v3363 = vadd.f32 %v3041, %v3329
      %3364 = vst [vmem:[#allocation2] sm:$0xff] %v3332
      %3365 = vst [vmem:[#allocation2 + $0x8] sm:$0xff] %v3333
      %3366 = vst [vmem:[#allocation2 + $0x10] sm:$0xff] %v3334
      %3367 = vst [vmem:[#allocation2 + $0x18] sm:$0xff] %v3335
      %3368 = vst [vmem:[#allocation2 + $0x20] sm:$0xff] %v3336
      %3369 = vst [vmem:[#allocation2 + $0x28] sm:$0xff] %v3337
      %3370 = vst [vmem:[#allocation2 + $0x30] sm:$0xff] %v3338
      %3371 = vst [vmem:[#allocation2 + $0x38] sm:$0xff] %v3339
      %3372 = vst [vmem:[#allocation2 + $0x40] sm:$0xff] %v3340
      %3373 = vst [vmem:[#allocation2 + $0x48] sm:$0xff] %v3341
      %3374 = vst [vmem:[#allocation2 + $0x50] sm:$0xff] %v3342
      %3375 = vst [vmem:[#allocation2 + $0x58] sm:$0xff] %v3343
      %3376 = vst [vmem:[#allocation2 + $0x60] sm:$0xff] %v3344
      %3377 = vst [vmem:[#allocation2 + $0x68] sm:$0xff] %v3345
      %3378 = vst [vmem:[#allocation2 + $0x70] sm:$0xff] %v3346
      %3379 = vst [vmem:[#allocation2 + $0x78] sm:$0xff] %v3347
      %3380 = vst [vmem:[#allocation2 + $0x80] sm:$0xff] %v3348
      %3381 = vst [vmem:[#allocation2 + $0x88] sm:$0xff] %v3349
      %3382 = vst [vmem:[#allocation2 + $0x90] sm:$0xff] %v3350
      %3383 = vst [vmem:[#allocation2 + $0x98] sm:$0xff] %v3351
      %3384 = vst [vmem:[#allocation2 + $0xa0] sm:$0xff] %v3352
      %3385 = vst [vmem:[#allocation2 + $0xa8] sm:$0xff] %v3353
      %3386 = vst [vmem:[#allocation2 + $0xb0] sm:$0xff] %v3354
      %3387 = vst [vmem:[#allocation2 + $0xb8] sm:$0xff] %v3355
      %3388 = vst [vmem:[#allocation2 + $0xc0] sm:$0xff] %v3356
      %3389 = vst [vmem:[#allocation2 + $0xc8] sm:$0xff] %v3357
      %3390 = vst [vmem:[#allocation2 + $0xd0] sm:$0xff] %v3358
      %3391 = vst [vmem:[#allocation2 + $0xd8] sm:$0xff] %v3359
      %3392 = vst [vmem:[#allocation2 + $0xe0] sm:$0xff] %v3360
      %3393 = vst [vmem:[#allocation2 + $0xe8] sm:$0xff] %v3361
      %3394 = vst [vmem:[#allocation2 + $0xf0] sm:$0xff] %v3362
      %3395 = vst [vmem:[#allocation2 + $0xf8] sm:$0xff] %v3363
      %v3396 = vld [vmem:[%s2127] sm:$0xe]
      %v3397 = vld [vmem:[%s2127 + $0x4] sm:$0xf]
      %v3398 = vld [vmem:[%s2127 + $0x8] sm:$0x1]
      %v3399 = vld [vmem:[%s2127 + $0xc] sm:$0xe]
      %v3400 = vld [vmem:[%s2127 + $0x10] sm:$0xf]
      %v3401 = vld [vmem:[%s2127 + $0x14] sm:$0x1]
      %v3402 = vld [vmem:[%s2127 + $0x18] sm:$0xe]
      %v3403 = vld [vmem:[%s2127 + $0x1c] sm:$0xf]
      %v3404 = vld [vmem:[%s2127 + $0x20] sm:$0x1]
      %v3405 = vld [vmem:[%s2127 + $0x24] sm:$0xe]
      %v3406 = vld [vmem:[%s2127 + $0x28] sm:$0xf]
      %v3407 = vld [vmem:[%s2127 + $0x2c] sm:$0x1]
      %v3408 = vld [vmem:[%s2127 + $0x30] sm:$0xe]
      %v3409 = vld [vmem:[%s2127 + $0x34] sm:$0xf]
      %v3410 = vld [vmem:[%s2127 + $0x38] sm:$0x1]
      %v3411 = vld [vmem:[%s2127 + $0x3c] sm:$0xe]
      %v3412 = vld [vmem:[%s2127 + $0x40] sm:$0xf]
      %v3413 = vld [vmem:[%s2127 + $0x44] sm:$0x1]
      %v3414 = vld [vmem:[%s2127 + $0x48] sm:$0xe]
      %v3415 = vld [vmem:[%s2127 + $0x4c] sm:$0xf]
      %v3416 = vld [vmem:[%s2127 + $0x50] sm:$0x1]
      %v3417 = vld [vmem:[%s2127 + $0x54] sm:$0xe]
      %v3418 = vld [vmem:[%s2127 + $0x58] sm:$0xf]
      %v3419 = vld [vmem:[%s2127 + $0x5c] sm:$0x1]
      %v3420 = vld [vmem:[%s2127 + $0x60] sm:$0xe]
      %v3421 = vld [vmem:[%s2127 + $0x64] sm:$0xf]
      %v3422 = vld [vmem:[%s2127 + $0x68] sm:$0x1]
      %v3423 = vld [vmem:[%s2127 + $0x6c] sm:$0xe]
      %v3424 = vld [vmem:[%s2127 + $0x70] sm:$0xf]
      %v3425 = vld [vmem:[%s2127 + $0x74] sm:$0x1]
      %v3426 = vld [vmem:[%s2127 + $0x78] sm:$0xe]
      %v3427 = vld [vmem:[%s2127 + $0x7c] sm:$0xf]
      %v3428 = vld [vmem:[%s2127 + $0x80] sm:$0x1]
      %v3429 = vld [vmem:[%s2127 + $0x84] sm:$0xe]
      %v3430 = vld [vmem:[%s2127 + $0x88] sm:$0xf]
      %v3431 = vld [vmem:[%s2127 + $0x8c] sm:$0x1]
      %v3432 = vld [vmem:[%s2127 + $0x90] sm:$0xe]
      %v3433 = vld [vmem:[%s2127 + $0x94] sm:$0xf]
      %v3434 = vld [vmem:[%s2127 + $0x98] sm:$0x1]
      %v3435 = vld [vmem:[%s2127 + $0x9c] sm:$0xe]
      %v3436 = vld [vmem:[%s2127 + $0xa0] sm:$0xf]
      %v3437 = vld [vmem:[%s2127 + $0xa4] sm:$0x1]
      %v3438 = vld [vmem:[%s2127 + $0xa8] sm:$0xe]
      %v3439 = vld [vmem:[%s2127 + $0xac] sm:$0xf]
      %v3440 = vld [vmem:[%s2127 + $0xb0] sm:$0x1]
      %v3441 = vld [vmem:[%s2127 + $0xb4] sm:$0xe]
      %v3442 = vld [vmem:[%s2127 + $0xb8] sm:$0xf]
      %v3443 = vld [vmem:[%s2127 + $0xbc] sm:$0x1]
      %v3492 = vrot.slane %v3396, 5
      %v3493 = vrot.slane %v3492, 4
      %v3494 = vrot.slane %v3397, 5
      %v3495 = vsel %vm1628, %v3493, %v3494
      %v3496 = vrot.slane %v3494, 4
      %v3497 = vrot.slane %v3398, 5
      %v3498 = vsel %vm1628, %v3496, %v3497
      %v3499 = vrot.slane %v3399, 5
      %v3500 = vrot.slane %v3499, 4
      %v3501 = vrot.slane %v3400, 5
      %v3502 = vsel %vm1628, %v3500, %v3501
      %v3503 = vrot.slane %v3501, 4
      %v3504 = vrot.slane %v3401, 5
      %v3505 = vsel %vm1628, %v3503, %v3504
      %v3506 = vrot.slane %v3402, 5
      %v3507 = vrot.slane %v3506, 4
      %v3508 = vrot.slane %v3403, 5
      %v3509 = vsel %vm1628, %v3507, %v3508
      %v3510 = vrot.slane %v3508, 4
      %v3511 = vrot.slane %v3404, 5
      %v3512 = vsel %vm1628, %v3510, %v3511
      %v3513 = vrot.slane %v3405, 5
      %v3514 = vrot.slane %v3513, 4
      %v3515 = vrot.slane %v3406, 5
      %v3516 = vsel %vm1628, %v3514, %v3515
      %v3517 = vrot.slane %v3515, 4
      %v3518 = vrot.slane %v3407, 5
      %v3519 = vsel %vm1628, %v3517, %v3518
      %v3520 = vrot.slane %v3408, 5
      %v3521 = vrot.slane %v3520, 4
      %v3522 = vrot.slane %v3409, 5
      %v3523 = vsel %vm1628, %v3521, %v3522
      %v3524 = vrot.slane %v3522, 4
      %v3525 = vrot.slane %v3410, 5
      %v3526 = vsel %vm1628, %v3524, %v3525
      %v3527 = vrot.slane %v3411, 5
      %v3528 = vrot.slane %v3527, 4
      %v3529 = vrot.slane %v3412, 5
      %v3530 = vsel %vm1628, %v3528, %v3529
      %v3531 = vrot.slane %v3529, 4
      %v3532 = vrot.slane %v3413, 5
      %v3533 = vsel %vm1628, %v3531, %v3532
      %v3534 = vrot.slane %v3414, 5
      %v3535 = vrot.slane %v3534, 4
      %v3536 = vrot.slane %v3415, 5
      %v3537 = vsel %vm1628, %v3535, %v3536
      %v3538 = vrot.slane %v3536, 4
      %v3539 = vrot.slane %v3416, 5
      %v3540 = vsel %vm1628, %v3538, %v3539
      %v3541 = vrot.slane %v3417, 5
      %v3542 = vrot.slane %v3541, 4
      %v3543 = vrot.slane %v3418, 5
      %v3544 = vsel %vm1628, %v3542, %v3543
      %v3545 = vrot.slane %v3543, 4
      %v3546 = vrot.slane %v3419, 5
      %v3547 = vsel %vm1628, %v3545, %v3546
      %v3548 = vrot.slane %v3420, 5
      %v3549 = vrot.slane %v3548, 4
      %v3550 = vrot.slane %v3421, 5
      %v3551 = vsel %vm1628, %v3549, %v3550
      %v3552 = vrot.slane %v3550, 4
      %v3553 = vrot.slane %v3422, 5
      %v3554 = vsel %vm1628, %v3552, %v3553
      %v3555 = vrot.slane %v3423, 5
      %v3556 = vrot.slane %v3555, 4
      %v3557 = vrot.slane %v3424, 5
      %v3558 = vsel %vm1628, %v3556, %v3557
      %v3559 = vrot.slane %v3557, 4
      %v3560 = vrot.slane %v3425, 5
      %v3561 = vsel %vm1628, %v3559, %v3560
      %v3562 = vrot.slane %v3426, 5
      %v3563 = vrot.slane %v3562, 4
      %v3564 = vrot.slane %v3427, 5
      %v3565 = vsel %vm1628, %v3563, %v3564
      %v3566 = vrot.slane %v3564, 4
      %v3567 = vrot.slane %v3428, 5
      %v3568 = vsel %vm1628, %v3566, %v3567
      %v3569 = vrot.slane %v3429, 5
      %v3570 = vrot.slane %v3569, 4
      %v3571 = vrot.slane %v3430, 5
      %v3572 = vsel %vm1628, %v3570, %v3571
      %v3573 = vrot.slane %v3571, 4
      %v3574 = vrot.slane %v3431, 5
      %v3575 = vsel %vm1628, %v3573, %v3574
      %v3576 = vrot.slane %v3432, 5
      %v3577 = vrot.slane %v3576, 4
      %v3578 = vrot.slane %v3433, 5
      %v3579 = vsel %vm1628, %v3577, %v3578
      %v3580 = vrot.slane %v3578, 4
      %v3581 = vrot.slane %v3434, 5
      %v3582 = vsel %vm1628, %v3580, %v3581
      %v3583 = vrot.slane %v3435, 5
      %v3584 = vrot.slane %v3583, 4
      %v3585 = vrot.slane %v3436, 5
      %v3586 = vsel %vm1628, %v3584, %v3585
      %v3587 = vrot.slane %v3585, 4
      %v3588 = vrot.slane %v3437, 5
      %v3589 = vsel %vm1628, %v3587, %v3588
      %v3590 = vrot.slane %v3438, 5
      %v3591 = vrot.slane %v3590, 4
      %v3592 = vrot.slane %v3439, 5
      %v3593 = vsel %vm1628, %v3591, %v3592
      %v3594 = vrot.slane %v3592, 4
      %v3595 = vrot.slane %v3440, 5
      %v3596 = vsel %vm1628, %v3594, %v3595
      %v3597 = vrot.slane %v3441, 5
      %v3598 = vrot.slane %v3597, 4
      %v3599 = vrot.slane %v3442, 5
      %v3600 = vsel %vm1628, %v3598, %v3599
      %v3601 = vrot.slane %v3599, 4
      %v3602 = vrot.slane %v3443, 5
      %v3603 = vsel %vm1628, %v3601, %v3602
      %v3604 = vld [vmem:[#allocation2] sm:$0xff]
      %v3605 = vld [vmem:[#allocation2 + $0x8] sm:$0xff]
      %v3606 = vld [vmem:[#allocation2 + $0x10] sm:$0xff]
      %v3607 = vld [vmem:[#allocation2 + $0x18] sm:$0xff]
      %v3608 = vld [vmem:[#allocation2 + $0x20] sm:$0xff]
      %v3609 = vld [vmem:[#allocation2 + $0x28] sm:$0xff]
      %v3610 = vld [vmem:[#allocation2 + $0x30] sm:$0xff]
      %v3611 = vld [vmem:[#allocation2 + $0x38] sm:$0xff]
      %v3612 = vld [vmem:[#allocation2 + $0x40] sm:$0xff]
      %v3613 = vld [vmem:[#allocation2 + $0x48] sm:$0xff]
      %v3614 = vld [vmem:[#allocation2 + $0x50] sm:$0xff]
      %v3615 = vld [vmem:[#allocation2 + $0x58] sm:$0xff]
      %v3616 = vld [vmem:[#allocation2 + $0x60] sm:$0xff]
      %v3617 = vld [vmem:[#allocation2 + $0x68] sm:$0xff]
      %v3618 = vld [vmem:[#allocation2 + $0x70] sm:$0xff]
      %v3619 = vld [vmem:[#allocation2 + $0x78] sm:$0xff]
      %v3620 = vld [vmem:[#allocation2 + $0x80] sm:$0xff]
      %v3621 = vld [vmem:[#allocation2 + $0x88] sm:$0xff]
      %v3622 = vld [vmem:[#allocation2 + $0x90] sm:$0xff]
      %v3623 = vld [vmem:[#allocation2 + $0x98] sm:$0xff]
      %v3624 = vld [vmem:[#allocation2 + $0xa0] sm:$0xff]
      %v3625 = vld [vmem:[#allocation2 + $0xa8] sm:$0xff]
      %v3626 = vld [vmem:[#allocation2 + $0xb0] sm:$0xff]
      %v3627 = vld [vmem:[#allocation2 + $0xb8] sm:$0xff]
      %v3628 = vld [vmem:[#allocation2 + $0xc0] sm:$0xff]
      %v3629 = vld [vmem:[#allocation2 + $0xc8] sm:$0xff]
      %v3630 = vld [vmem:[#allocation2 + $0xd0] sm:$0xff]
      %v3631 = vld [vmem:[#allocation2 + $0xd8] sm:$0xff]
      %v3632 = vld [vmem:[#allocation2 + $0xe0] sm:$0xff]
      %v3633 = vld [vmem:[#allocation2 + $0xe8] sm:$0xff]
      %v3634 = vld [vmem:[#allocation2 + $0xf0] sm:$0xff]
      %v3635 = vld [vmem:[#allocation2 + $0xf8] sm:$0xff]
      %s3636 = scalar_lea.vmem %s211, 320
      %v3637 = vld [vmem:[%s3636] sm:$0xf]
      %v3638 = vld [vmem:[%s3636 + $0x4] sm:$0xf]
      %v3639 = vld [vmem:[%s3636 + $0x8] sm:$0xf]
      %v3640 = vld [vmem:[%s3636 + $0xc] sm:$0xf]
      %v3641 = vld [vmem:[%s3636 + $0x10] sm:$0xf]
      %v3642 = vld [vmem:[%s3636 + $0x14] sm:$0xf]
      %v3643 = vld [vmem:[%s3636 + $0x18] sm:$0xf]
      %v3644 = vld [vmem:[%s3636 + $0x1c] sm:$0xf]
      %v3645 = vld [vmem:[%s3636 + $0x20] sm:$0xf]
      %v3646 = vld [vmem:[%s3636 + $0x24] sm:$0xf]
      %v3647 = vld [vmem:[%s3636 + $0x28] sm:$0xf]
      %v3648 = vld [vmem:[%s3636 + $0x2c] sm:$0xf]
      %v3649 = vld [vmem:[%s3636 + $0x30] sm:$0xf]
      %v3650 = vld [vmem:[%s3636 + $0x34] sm:$0xf]
      %v3651 = vld [vmem:[%s3636 + $0x38] sm:$0xf]
      %v3652 = vld [vmem:[%s3636 + $0x3c] sm:$0xf]
      %v3653 = vunpack.c.l.b16 %v3495
      %v3654 = vunpack.c.l.b16 %v3498
      %v3655 = vunpack.c.l.b16 %v3502
      %v3656 = vunpack.c.l.b16 %v3505
      %v3657 = vunpack.c.l.b16 %v3509
      %v3658 = vunpack.c.l.b16 %v3512
      %v3659 = vunpack.c.l.b16 %v3516
      %v3660 = vunpack.c.l.b16 %v3519
      %v3661 = vunpack.c.l.b16 %v3523
      %v3662 = vunpack.c.l.b16 %v3526
      %v3663 = vunpack.c.l.b16 %v3530
      %v3664 = vunpack.c.l.b16 %v3533
      %v3665 = vunpack.c.l.b16 %v3537
      %v3666 = vunpack.c.l.b16 %v3540
      %v3667 = vunpack.c.l.b16 %v3544
      %v3668 = vunpack.c.l.b16 %v3547
      %v3669 = vunpack.c.l.b16 %v3551
      %v3670 = vunpack.c.l.b16 %v3554
      %v3671 = vunpack.c.l.b16 %v3558
      %v3672 = vunpack.c.l.b16 %v3561
      %v3673 = vunpack.c.l.b16 %v3565
      %v3674 = vunpack.c.l.b16 %v3568
      %v3675 = vunpack.c.l.b16 %v3572
      %v3676 = vunpack.c.l.b16 %v3575
      %v3677 = vunpack.c.l.b16 %v3579
      %v3678 = vunpack.c.l.b16 %v3582
      %v3679 = vunpack.c.l.b16 %v3586
      %v3680 = vunpack.c.l.b16 %v3589
      %v3681 = vunpack.c.l.b16 %v3593
      %v3682 = vunpack.c.l.b16 %v3596
      %v3683 = vunpack.c.l.b16 %v3600
      %v3684 = vunpack.c.l.b16 %v3603
      %v3685 = vpack.c.b16 %v3654, %v3653
      %v3686 = vpack.c.b16 %v3656, %v3655
      %v3687 = vpack.c.b16 %v3658, %v3657
      %v3688 = vpack.c.b16 %v3660, %v3659
      %v3689 = vpack.c.b16 %v3662, %v3661
      %v3690 = vpack.c.b16 %v3664, %v3663
      %v3691 = vpack.c.b16 %v3666, %v3665
      %v3692 = vpack.c.b16 %v3668, %v3667
      %v3693 = vpack.c.b16 %v3670, %v3669
      %v3694 = vpack.c.b16 %v3672, %v3671
      %v3695 = vpack.c.b16 %v3674, %v3673
      %v3696 = vpack.c.b16 %v3676, %v3675
      %v3697 = vpack.c.b16 %v3678, %v3677
      %v3698 = vpack.c.b16 %v3680, %v3679
      %v3699 = vpack.c.b16 %v3682, %v3681
      %v3700 = vpack.c.b16 %v3684, %v3683
      %v3733 = vunpack.c.l.b16 %v3637
      %v3734 = vunpack.c.l.b16 %v3638
      %v3735 = vunpack.c.l.b16 %v3639
      %v3736 = vunpack.c.l.b16 %v3640
      %v3737 = vunpack.c.l.b16 %v3641
      %v3738 = vunpack.c.l.b16 %v3642
      %v3739 = vunpack.c.l.b16 %v3643
      %v3740 = vunpack.c.l.b16 %v3644
      %v3741 = vunpack.c.l.b16 %v3645
      %v3742 = vunpack.c.l.b16 %v3646
      %v3743 = vunpack.c.l.b16 %v3647
      %v3744 = vunpack.c.l.b16 %v3648
      %v3745 = vunpack.c.l.b16 %v3649
      %v3746 = vunpack.c.l.b16 %v3650
      %v3747 = vunpack.c.l.b16 %v3651
      %v3748 = vunpack.c.l.b16 %v3652
      %v3749 = vpack.c.b16 %v3734, %v3733
      %v3750 = vpack.c.b16 %v3736, %v3735
      %v3751 = vpack.c.b16 %v3738, %v3737
      %v3752 = vpack.c.b16 %v3740, %v3739
      %v3753 = vpack.c.b16 %v3742, %v3741
      %v3754 = vpack.c.b16 %v3744, %v3743
      %v3755 = vpack.c.b16 %v3746, %v3745
      %v3756 = vpack.c.b16 %v3748, %v3747
      %3765 = vmatprep.subr.bf16.mxu0 0
      %3766 = vmatpush1.bf16.msra.mxu0 %v3749
      %3767 = vmatprep.subr.bf16.mxu0 0
      %3768 = vmatpush1.bf16.msra.mxu0 %v3750
      %3769 = vmatprep.subr.bf16.mxu0 0
      %3770 = vmatpush1.bf16.msra.mxu0 %v3751
      %3771 = vmatprep.subr.bf16.mxu0 0
      %3772 = vmatpush1.bf16.msra.mxu0 %v3752
      %3773 = vmatprep.subr.bf16.mxu0 0
      %3774 = vmatpush1.bf16.msra.mxu0 %v3753
      %3775 = vmatprep.subr.bf16.mxu0 0
      %3776 = vmatpush1.bf16.msra.mxu0 %v3754
      %3777 = vmatprep.subr.bf16.mxu0 0
      %3778 = vmatpush1.bf16.msra.mxu0 %v3755
      %3779 = vmatprep.subr.bf16.mxu0 0
      %3780 = vmatpush1.bf16.msra.mxu0 %v3756
      %3781 = vmatprep.subr.bf16.mxu0 0
      %3782 = vmatpush1.bf16.msra.mxu0 0
      %3783 = vmatprep.subr.bf16.mxu0 0
      %3784 = vmatpush1.bf16.msra.mxu0 0
      %3785 = vmatprep.subr.bf16.mxu0 0
      %3786 = vmatpush1.bf16.msra.mxu0 0
      %3787 = vmatprep.subr.bf16.mxu0 0
      %3788 = vmatpush1.bf16.msra.mxu0 0
      %3789 = vmatprep.subr.bf16.mxu0 0
      %3790 = vmatpush1.bf16.msra.mxu0 0
      %3791 = vmatprep.subr.bf16.mxu0 0
      %3792 = vmatpush1.bf16.msra.mxu0 0
      %3793 = vmatprep.subr.bf16.mxu0 0
      %3794 = vmatpush1.bf16.msra.mxu0 0
      %3795 = vmatprep.subr.bf16.mxu0 0
      %3796 = vmatpush1.bf16.msra.mxu0 0
      %3797 = vmatprep.mubr.bf16.mxu0 0
      %3798 = vmatmul.mubr.bf16.gmra.mrb[0].mxu0 %v3685
      %v3799 = vpop.f32.mrb[0].mxu0
      %v3800 = vadd.f32 0.0, %v3799
      %v3801 = vpop.f32.mrb[0].mxu0
      %v3802 = vpop.f32.mrb[0].mxu0
      %v3803 = vadd.f32 0.0, %v3802
      %v3804 = vpop.f32.mrb[0].mxu0
      %3805 = vmatprep.mubr.bf16.mxu0 0
      %3806 = vmatmul.mubr.bf16.gmra.mrb[0].mxu0 %v3686
      %v3807 = vpop.f32.mrb[0].mxu0
      %v3808 = vadd.f32 0.0, %v3807
      %v3809 = vpop.f32.mrb[0].mxu0
      %v3810 = vpop.f32.mrb[0].mxu0
      %v3811 = vadd.f32 0.0, %v3810
      %v3812 = vpop.f32.mrb[0].mxu0
      %3813 = vmatprep.mubr.bf16.mxu0 0
      %3814 = vmatmul.mubr.bf16.gmra.mrb[0].mxu0 %v3687
      %v3815 = vpop.f32.mrb[0].mxu0
      %v3816 = vadd.f32 0.0, %v3815
      %v3817 = vpop.f32.mrb[0].mxu0
      %v3818 = vpop.f32.mrb[0].mxu0
      %v3819 = vadd.f32 0.0, %v3818
      %v3820 = vpop.f32.mrb[0].mxu0
      %3821 = vmatprep.mubr.bf16.mxu0 0
      %3822 = vmatmul.mubr.bf16.gmra.mrb[0].mxu0 %v3688
      %v3823 = vpop.f32.mrb[0].mxu0
      %v3824 = vadd.f32 0.0, %v3823
      %v3825 = vpop.f32.mrb[0].mxu0
      %v3826 = vpop.f32.mrb[0].mxu0
      %v3827 = vadd.f32 0.0, %v3826
      %v3828 = vpop.f32.mrb[0].mxu0
      %3829 = vmatprep.mubr.bf16.mxu0 0
      %3830 = vmatmul.mubr.bf16.gmra.mrb[0].mxu0 %v3689
      %v3831 = vpop.f32.mrb[0].mxu0
      %v3832 = vadd.f32 0.0, %v3831
      %v3833 = vpop.f32.mrb[0].mxu0
      %v3834 = vpop.f32.mrb[0].mxu0
      %v3835 = vadd.f32 0.0, %v3834
      %v3836 = vpop.f32.mrb[0].mxu0
      %3837 = vmatprep.mubr.bf16.mxu0 0
      %3838 = vmatmul.mubr.bf16.gmra.mrb[0].mxu0 %v3690
      %v3839 = vpop.f32.mrb[0].mxu0
      %v3840 = vadd.f32 0.0, %v3839
      %v3841 = vpop.f32.mrb[0].mxu0
      %v3842 = vpop.f32.mrb[0].mxu0
      %v3843 = vadd.f32 0.0, %v3842
      %v3844 = vpop.f32.mrb[0].mxu0
      %3845 = vmatprep.mubr.bf16.mxu0 0
      %3846 = vmatmul.mubr.bf16.gmra.mrb[0].mxu0 %v3691
      %v3847 = vpop.f32.mrb[0].mxu0
      %v3848 = vadd.f32 0.0, %v3847
      %v3849 = vpop.f32.mrb[0].mxu0
      %v3850 = vpop.f32.mrb[0].mxu0
      %v3851 = vadd.f32 0.0, %v3850
      %v3852 = vpop.f32.mrb[0].mxu0
      %3853 = vmatprep.mubr.bf16.mxu0 0
      %3854 = vmatmul.mubr.bf16.gmra.mrb[0].mxu0 %v3692
      %v3855 = vpop.f32.mrb[0].mxu0
      %v3856 = vadd.f32 0.0, %v3855
      %v3857 = vpop.f32.mrb[0].mxu0
      %v3858 = vpop.f32.mrb[0].mxu0
      %v3859 = vadd.f32 0.0, %v3858
      %v3860 = vpop.f32.mrb[0].mxu0
      %3861 = vmatprep.mubr.bf16.mxu0 0
      %3862 = vmatmul.mubr.bf16.gmra.mrb[0].mxu0 %v3693
      %v3863 = vpop.f32.mrb[0].mxu0
      %v3864 = vadd.f32 0.0, %v3863
      %v3865 = vpop.f32.mrb[0].mxu0
      %v3866 = vpop.f32.mrb[0].mxu0
      %v3867 = vadd.f32 0.0, %v3866
      %v3868 = vpop.f32.mrb[0].mxu0
      %3869 = vmatprep.mubr.bf16.mxu0 0
      %3870 = vmatmul.mubr.bf16.gmra.mrb[0].mxu0 %v3694
      %v3871 = vpop.f32.mrb[0].mxu0
      %v3872 = vadd.f32 0.0, %v3871
      %v3873 = vpop.f32.mrb[0].mxu0
      %v3874 = vpop.f32.mrb[0].mxu0
      %v3875 = vadd.f32 0.0, %v3874
      %v3876 = vpop.f32.mrb[0].mxu0
      %3877 = vmatprep.mubr.bf16.mxu0 0
      %3878 = vmatmul.mubr.bf16.gmra.mrb[0].mxu0 %v3695
      %v3879 = vpop.f32.mrb[0].mxu0
      %v3880 = vadd.f32 0.0, %v3879
      %v3881 = vpop.f32.mrb[0].mxu0
      %v3882 = vpop.f32.mrb[0].mxu0
      %v3883 = vadd.f32 0.0, %v3882
      %v3884 = vpop.f32.mrb[0].mxu0
      %3885 = vmatprep.mubr.bf16.mxu0 0
      %3886 = vmatmul.mubr.bf16.gmra.mrb[0].mxu0 %v3696
      %v3887 = vpop.f32.mrb[0].mxu0
      %v3888 = vadd.f32 0.0, %v3887
      %v3889 = vpop.f32.mrb[0].mxu0
      %v3890 = vpop.f32.mrb[0].mxu0
      %v3891 = vadd.f32 0.0, %v3890
      %v3892 = vpop.f32.mrb[0].mxu0
      %3893 = vmatprep.mubr.bf16.mxu0 0
      %3894 = vmatmul.mubr.bf16.gmra.mrb[0].mxu0 %v3697
      %v3895 = vpop.f32.mrb[0].mxu0
      %v3896 = vadd.f32 0.0, %v3895
      %v3897 = vpop.f32.mrb[0].mxu0
      %v3898 = vpop.f32.mrb[0].mxu0
      %v3899 = vadd.f32 0.0, %v3898
      %v3900 = vpop.f32.mrb[0].mxu0
      %3901 = vmatprep.mubr.bf16.mxu0 0
      %3902 = vmatmul.mubr.bf16.gmra.mrb[0].mxu0 %v3698
      %v3903 = vpop.f32.mrb[0].mxu0
      %v3904 = vadd.f32 0.0, %v3903
      %v3905 = vpop.f32.mrb[0].mxu0
      %v3906 = vpop.f32.mrb[0].mxu0
      %v3907 = vadd.f32 0.0, %v3906
      %v3908 = vpop.f32.mrb[0].mxu0
      %3909 = vmatprep.mubr.bf16.mxu0 0
      %3910 = vmatmul.mubr.bf16.gmra.mrb[0].mxu0 %v3699
      %v3911 = vpop.f32.mrb[0].mxu0
      %v3912 = vadd.f32 0.0, %v3911
      %v3913 = vpop.f32.mrb[0].mxu0
      %v3914 = vpop.f32.mrb[0].mxu0
      %v3915 = vadd.f32 0.0, %v3914
      %v3916 = vpop.f32.mrb[0].mxu0
      %3917 = vmatprep.mubr.bf16.mxu0 0
      %3918 = vmatmul.mubr.bf16.gmra.mrb[0].mxu0 %v3700
      %v3919 = vpop.f32.mrb[0].mxu0
      %v3920 = vadd.f32 0.0, %v3919
      %v3921 = vpop.f32.mrb[0].mxu0
      %v3922 = vpop.f32.mrb[0].mxu0
      %v3923 = vadd.f32 0.0, %v3922
      %v3924 = vpop.f32.mrb[0].mxu0
      %3925 = vdwg.mxu0
      %v3926 = vadd.f32 %v3604, %v3800
      %v3927 = vadd.f32 %v3605, %v3803
      %v3928 = vadd.f32 %v3606, %v3808
      %v3929 = vadd.f32 %v3607, %v3811
      %v3930 = vadd.f32 %v3608, %v3816
      %v3931 = vadd.f32 %v3609, %v3819
      %v3932 = vadd.f32 %v3610, %v3824
      %v3933 = vadd.f32 %v3611, %v3827
      %v3934 = vadd.f32 %v3612, %v3832
      %v3935 = vadd.f32 %v3613, %v3835
      %v3936 = vadd.f32 %v3614, %v3840
      %v3937 = vadd.f32 %v3615, %v3843
      %v3938 = vadd.f32 %v3616, %v3848
      %v3939 = vadd.f32 %v3617, %v3851
      %v3940 = vadd.f32 %v3618, %v3856
      %v3941 = vadd.f32 %v3619, %v3859
      %v3942 = vadd.f32 %v3620, %v3864
      %v3943 = vadd.f32 %v3621, %v3867
      %v3944 = vadd.f32 %v3622, %v3872
      %v3945 = vadd.f32 %v3623, %v3875
      %v3946 = vadd.f32 %v3624, %v3880
      %v3947 = vadd.f32 %v3625, %v3883
      %v3948 = vadd.f32 %v3626, %v3888
      %v3949 = vadd.f32 %v3627, %v3891
      %v3950 = vadd.f32 %v3628, %v3896
      %v3951 = vadd.f32 %v3629, %v3899
      %v3952 = vadd.f32 %v3630, %v3904
      %v3953 = vadd.f32 %v3631, %v3907
      %v3954 = vadd.f32 %v3632, %v3912
      %v3955 = vadd.f32 %v3633, %v3915
      %v3956 = vadd.f32 %v3634, %v3920
      %v3957 = vadd.f32 %v3635, %v3923
      %3958 = vst [vmem:[#allocation2] sm:$0xff] %v3926
      %3959 = vst [vmem:[#allocation2 + $0x8] sm:$0xff] %v3927
      %3960 = vst [vmem:[#allocation2 + $0x10] sm:$0xff] %v3928
      %3961 = vst [vmem:[#allocation2 + $0x18] sm:$0xff] %v3929
      %3962 = vst [vmem:[#allocation2 + $0x20] sm:$0xff] %v3930
      %3963 = vst [vmem:[#allocation2 + $0x28] sm:$0xff] %v3931
      %3964 = vst [vmem:[#allocation2 + $0x30] sm:$0xff] %v3932
      %3965 = vst [vmem:[#allocation2 + $0x38] sm:$0xff] %v3933
      %3966 = vst [vmem:[#allocation2 + $0x40] sm:$0xff] %v3934
      %3967 = vst [vmem:[#allocation2 + $0x48] sm:$0xff] %v3935
      %3968 = vst [vmem:[#allocation2 + $0x50] sm:$0xff] %v3936
      %3969 = vst [vmem:[#allocation2 + $0x58] sm:$0xff] %v3937
      %3970 = vst [vmem:[#allocation2 + $0x60] sm:$0xff] %v3938
      %3971 = vst [vmem:[#allocation2 + $0x68] sm:$0xff] %v3939
      %3972 = vst [vmem:[#allocation2 + $0x70] sm:$0xff] %v3940
      %3973 = vst [vmem:[#allocation2 + $0x78] sm:$0xff] %v3941
      %3974 = vst [vmem:[#allocation2 + $0x80] sm:$0xff] %v3942
      %3975 = vst [vmem:[#allocation2 + $0x88] sm:$0xff] %v3943
      %3976 = vst [vmem:[#allocation2 + $0x90] sm:$0xff] %v3944
      %3977 = vst [vmem:[#allocation2 + $0x98] sm:$0xff] %v3945
      %3978 = vst [vmem:[#allocation2 + $0xa0] sm:$0xff] %v3946
      %3979 = vst [vmem:[#allocation2 + $0xa8] sm:$0xff] %v3947
      %3980 = vst [vmem:[#allocation2 + $0xb0] sm:$0xff] %v3948
      %3981 = vst [vmem:[#allocation2 + $0xb8] sm:$0xff] %v3949
      %3982 = vst [vmem:[#allocation2 + $0xc0] sm:$0xff] %v3950
      %3983 = vst [vmem:[#allocation2 + $0xc8] sm:$0xff] %v3951
      %3984 = vst [vmem:[#allocation2 + $0xd0] sm:$0xff] %v3952
      %3985 = vst [vmem:[#allocation2 + $0xd8] sm:$0xff] %v3953
      %3986 = vst [vmem:[#allocation2 + $0xe0] sm:$0xff] %v3954
      %3987 = vst [vmem:[#allocation2 + $0xe8] sm:$0xff] %v3955
      %3988 = vst [vmem:[#allocation2 + $0xf0] sm:$0xff] %v3956
      %3989 = vst [vmem:[#allocation2 + $0xf8] sm:$0xff] %v3957
      %s3990 = scalar_lea.vmem %s207, 24
      %v3991 = vld [vmem:[%s3990] sm:$0xf]
      %v3992 = vld [vmem:[%s3990 + $0x4] sm:$0xf]
      %v3993 = vld [vmem:[%s3990 + $0xc] sm:$0xf]
      %v3994 = vld [vmem:[%s3990 + $0x10] sm:$0xf]
      %v3995 = vld [vmem:[%s3990 + $0x18] sm:$0xf]
      %v3996 = vld [vmem:[%s3990 + $0x1c] sm:$0xf]
      %v3997 = vld [vmem:[%s3990 + $0x24] sm:$0xf]
      %v3998 = vld [vmem:[%s3990 + $0x28] sm:$0xf]
      %v3999 = vld [vmem:[%s3990 + $0x30] sm:$0xf]
      %v4000 = vld [vmem:[%s3990 + $0x34] sm:$0xf]
      %v4001 = vld [vmem:[%s3990 + $0x3c] sm:$0xf]
      %v4002 = vld [vmem:[%s3990 + $0x40] sm:$0xf]
      %v4003 = vld [vmem:[%s3990 + $0x48] sm:$0xf]
      %v4004 = vld [vmem:[%s3990 + $0x4c] sm:$0xf]
      %v4005 = vld [vmem:[%s3990 + $0x54] sm:$0xf]
      %v4006 = vld [vmem:[%s3990 + $0x58] sm:$0xf]
      %v4007 = vld [vmem:[%s3990 + $0x60] sm:$0xf]
      %v4008 = vld [vmem:[%s3990 + $0x64] sm:$0xf]
      %v4009 = vld [vmem:[%s3990 + $0x6c] sm:$0xf]
      %v4010 = vld [vmem:[%s3990 + $0x70] sm:$0xf]
      %v4011 = vld [vmem:[%s3990 + $0x78] sm:$0xf]
      %v4012 = vld [vmem:[%s3990 + $0x7c] sm:$0xf]
      %v4013 = vld [vmem:[%s3990 + $0x84] sm:$0xf]
      %v4014 = vld [vmem:[%s3990 + $0x88] sm:$0xf]
      %v4015 = vld [vmem:[%s3990 + $0x90] sm:$0xf]
      %v4016 = vld [vmem:[%s3990 + $0x94] sm:$0xf]
      %v4017 = vld [vmem:[%s3990 + $0x9c] sm:$0xf]
      %v4018 = vld [vmem:[%s3990 + $0xa0] sm:$0xf]
      %v4019 = vld [vmem:[%s3990 + $0xa8] sm:$0xf]
      %v4020 = vld [vmem:[%s3990 + $0xac] sm:$0xf]
      %v4021 = vld [vmem:[%s3990 + $0xb4] sm:$0xf]
      %v4022 = vld [vmem:[%s3990 + $0xb8] sm:$0xf]
      %v4023 = vld [vmem:[#allocation2] sm:$0xff]
      %v4024 = vld [vmem:[#allocation2 + $0x8] sm:$0xff]
      %v4025 = vld [vmem:[#allocation2 + $0x10] sm:$0xff]
      %v4026 = vld [vmem:[#allocation2 + $0x18] sm:$0xff]
      %v4027 = vld [vmem:[#allocation2 + $0x20] sm:$0xff]
      %v4028 = vld [vmem:[#allocation2 + $0x28] sm:$0xff]
      %v4029 = vld [vmem:[#allocation2 + $0x30] sm:$0xff]
      %v4030 = vld [vmem:[#allocation2 + $0x38] sm:$0xff]
      %v4031 = vld [vmem:[#allocation2 + $0x40] sm:$0xff]
      %v4032 = vld [vmem:[#allocation2 + $0x48] sm:$0xff]
      %v4033 = vld [vmem:[#allocation2 + $0x50] sm:$0xff]
      %v4034 = vld [vmem:[#allocation2 + $0x58] sm:$0xff]
      %v4035 = vld [vmem:[#allocation2 + $0x60] sm:$0xff]
      %v4036 = vld [vmem:[#allocation2 + $0x68] sm:$0xff]
      %v4037 = vld [vmem:[#allocation2 + $0x70] sm:$0xff]
      %v4038 = vld [vmem:[#allocation2 + $0x78] sm:$0xff]
      %v4039 = vld [vmem:[#allocation2 + $0x80] sm:$0xff]
      %v4040 = vld [vmem:[#allocation2 + $0x88] sm:$0xff]
      %v4041 = vld [vmem:[#allocation2 + $0x90] sm:$0xff]
      %v4042 = vld [vmem:[#allocation2 + $0x98] sm:$0xff]
      %v4043 = vld [vmem:[#allocation2 + $0xa0] sm:$0xff]
      %v4044 = vld [vmem:[#allocation2 + $0xa8] sm:$0xff]
      %v4045 = vld [vmem:[#allocation2 + $0xb0] sm:$0xff]
      %v4046 = vld [vmem:[#allocation2 + $0xb8] sm:$0xff]
      %v4047 = vld [vmem:[#allocation2 + $0xc0] sm:$0xff]
      %v4048 = vld [vmem:[#allocation2 + $0xc8] sm:$0xff]
      %v4049 = vld [vmem:[#allocation2 + $0xd0] sm:$0xff]
      %v4050 = vld [vmem:[#allocation2 + $0xd8] sm:$0xff]
      %v4051 = vld [vmem:[#allocation2 + $0xe0] sm:$0xff]
      %v4052 = vld [vmem:[#allocation2 + $0xe8] sm:$0xff]
      %v4053 = vld [vmem:[#allocation2 + $0xf0] sm:$0xff]
      %v4054 = vld [vmem:[#allocation2 + $0xf8] sm:$0xff]
      %s4055 = scalar_lea.vmem %s211, 384
      %v4056 = vld [vmem:[%s4055] sm:$0xf]
      %v4057 = vld [vmem:[%s4055 + $0x4] sm:$0xf]
      %v4058 = vld [vmem:[%s4055 + $0x8] sm:$0xf]
      %v4059 = vld [vmem:[%s4055 + $0xc] sm:$0xf]
      %v4060 = vld [vmem:[%s4055 + $0x10] sm:$0xf]
      %v4061 = vld [vmem:[%s4055 + $0x14] sm:$0xf]
      %v4062 = vld [vmem:[%s4055 + $0x18] sm:$0xf]
      %v4063 = vld [vmem:[%s4055 + $0x1c] sm:$0xf]
      %v4064 = vld [vmem:[%s4055 + $0x20] sm:$0xf]
      %v4065 = vld [vmem:[%s4055 + $0x24] sm:$0xf]
      %v4066 = vld [vmem:[%s4055 + $0x28] sm:$0xf]
      %v4067 = vld [vmem:[%s4055 + $0x2c] sm:$0xf]
      %v4068 = vld [vmem:[%s4055 + $0x30] sm:$0xf]
      %v4069 = vld [vmem:[%s4055 + $0x34] sm:$0xf]
      %v4070 = vld [vmem:[%s4055 + $0x38] sm:$0xf]
      %v4071 = vld [vmem:[%s4055 + $0x3c] sm:$0xf]
      %v4104 = vunpack.c.l.b16 %v3991
      %v4105 = vunpack.c.l.b16 %v3992
      %v4106 = vunpack.c.l.b16 %v3993
      %v4107 = vunpack.c.l.b16 %v3994
      %v4108 = vunpack.c.l.b16 %v3995
      %v4109 = vunpack.c.l.b16 %v3996
      %v4110 = vunpack.c.l.b16 %v3997
      %v4111 = vunpack.c.l.b16 %v3998
      %v4112 = vunpack.c.l.b16 %v3999
      %v4113 = vunpack.c.l.b16 %v4000
      %v4114 = vunpack.c.l.b16 %v4001
      %v4115 = vunpack.c.l.b16 %v4002
      %v4116 = vunpack.c.l.b16 %v4003
      %v4117 = vunpack.c.l.b16 %v4004
      %v4118 = vunpack.c.l.b16 %v4005
      %v4119 = vunpack.c.l.b16 %v4006
      %v4120 = vunpack.c.l.b16 %v4007
      %v4121 = vunpack.c.l.b16 %v4008
      %v4122 = vunpack.c.l.b16 %v4009
      %v4123 = vunpack.c.l.b16 %v4010
      %v4124 = vunpack.c.l.b16 %v4011
      %v4125 = vunpack.c.l.b16 %v4012
      %v4126 = vunpack.c.l.b16 %v4013
      %v4127 = vunpack.c.l.b16 %v4014
      %v4128 = vunpack.c.l.b16 %v4015
      %v4129 = vunpack.c.l.b16 %v4016
      %v4130 = vunpack.c.l.b16 %v4017
      %v4131 = vunpack.c.l.b16 %v4018
      %v4132 = vunpack.c.l.b16 %v4019
      %v4133 = vunpack.c.l.b16 %v4020
      %v4134 = vunpack.c.l.b16 %v4021
      %v4135 = vunpack.c.l.b16 %v4022
      %v4136 = vpack.c.b16 %v4105, %v4104
      %v4137 = vpack.c.b16 %v4107, %v4106
      %v4138 = vpack.c.b16 %v4109, %v4108
      %v4139 = vpack.c.b16 %v4111, %v4110
      %v4140 = vpack.c.b16 %v4113, %v4112
      %v4141 = vpack.c.b16 %v4115, %v4114
      %v4142 = vpack.c.b16 %v4117, %v4116
      %v4143 = vpack.c.b16 %v4119, %v4118
      %v4144 = vpack.c.b16 %v4121, %v4120
      %v4145 = vpack.c.b16 %v4123, %v4122
      %v4146 = vpack.c.b16 %v4125, %v4124
      %v4147 = vpack.c.b16 %v4127, %v4126
      %v4148 = vpack.c.b16 %v4129, %v4128
      %v4149 = vpack.c.b16 %v4131, %v4130
      %v4150 = vpack.c.b16 %v4133, %v4132
      %v4151 = vpack.c.b16 %v4135, %v4134
      %v4184 = vunpack.c.l.b16 %v4056
      %v4185 = vunpack.c.l.b16 %v4057
      %v4186 = vunpack.c.l.b16 %v4058
      %v4187 = vunpack.c.l.b16 %v4059
      %v4188 = vunpack.c.l.b16 %v4060
      %v4189 = vunpack.c.l.b16 %v4061
      %v4190 = vunpack.c.l.b16 %v4062
      %v4191 = vunpack.c.l.b16 %v4063
      %v4192 = vunpack.c.l.b16 %v4064
      %v4193 = vunpack.c.l.b16 %v4065
      %v4194 = vunpack.c.l.b16 %v4066
      %v4195 = vunpack.c.l.b16 %v4067
      %v4196 = vunpack.c.l.b16 %v4068
      %v4197 = vunpack.c.l.b16 %v4069
      %v4198 = vunpack.c.l.b16 %v4070
      %v4199 = vunpack.c.l.b16 %v4071
      %v4200 = vpack.c.b16 %v4185, %v4184
      %v4201 = vpack.c.b16 %v4187, %v4186
      %v4202 = vpack.c.b16 %v4189, %v4188
      %v4203 = vpack.c.b16 %v4191, %v4190
      %v4204 = vpack.c.b16 %v4193, %v4192
      %v4205 = vpack.c.b16 %v4195, %v4194
      %v4206 = vpack.c.b16 %v4197, %v4196
      %v4207 = vpack.c.b16 %v4199, %v4198
      %4216 = vmatprep.subr.bf16.mxu0 0
      %4217 = vmatpush1.bf16.msra.mxu0 %v4200
      %4218 = vmatprep.subr.bf16.mxu0 0
      %4219 = vmatpush1.bf16.msra.mxu0 %v4201
      %4220 = vmatprep.subr.bf16.mxu0 0
      %4221 = vmatpush1.bf16.msra.mxu0 %v4202
      %4222 = vmatprep.subr.bf16.mxu0 0
      %4223 = vmatpush1.bf16.msra.mxu0 %v4203
      %4224 = vmatprep.subr.bf16.mxu0 0
      %4225 = vmatpush1.bf16.msra.mxu0 %v4204
      %4226 = vmatprep.subr.bf16.mxu0 0
      %4227 = vmatpush1.bf16.msra.mxu0 %v4205
      %4228 = vmatprep.subr.bf16.mxu0 0
      %4229 = vmatpush1.bf16.msra.mxu0 %v4206
      %4230 = vmatprep.subr.bf16.mxu0 0
      %4231 = vmatpush1.bf16.msra.mxu0 %v4207
      %4232 = vmatprep.subr.bf16.mxu0 0
      %4233 = vmatpush1.bf16.msra.mxu0 0
      %4234 = vmatprep.subr.bf16.mxu0 0
      %4235 = vmatpush1.bf16.msra.mxu0 0
      %4236 = vmatprep.subr.bf16.mxu0 0
      %4237 = vmatpush1.bf16.msra.mxu0 0
      %4238 = vmatprep.subr.bf16.mxu0 0
      %4239 = vmatpush1.bf16.msra.mxu0 0
      %4240 = vmatprep.subr.bf16.mxu0 0
      %4241 = vmatpush1.bf16.msra.mxu0 0
      %4242 = vmatprep.subr.bf16.mxu0 0
      %4243 = vmatpush1.bf16.msra.mxu0 0
      %4244 = vmatprep.subr.bf16.mxu0 0
      %4245 = vmatpush1.bf16.msra.mxu0 0
      %4246 = vmatprep.subr.bf16.mxu0 0
      %4247 = vmatpush1.bf16.msra.mxu0 0
      %4248 = vmatprep.mubr.bf16.mxu0 0
      %4249 = vmatmul.mubr.bf16.gmra.mrb[0].mxu0 %v4136
      %v4250 = vpop.f32.mrb[0].mxu0
      %v4251 = vadd.f32 0.0, %v4250
      %v4252 = vpop.f32.mrb[0].mxu0
      %v4253 = vpop.f32.mrb[0].mxu0
      %v4254 = vadd.f32 0.0, %v4253
      %v4255 = vpop.f32.mrb[0].mxu0
      %4256 = vmatprep.mubr.bf16.mxu0 0
      %4257 = vmatmul.mubr.bf16.gmra.mrb[0].mxu0 %v4137
      %v4258 = vpop.f32.mrb[0].mxu0
      %v4259 = vadd.f32 0.0, %v4258
      %v4260 = vpop.f32.mrb[0].mxu0
      %v4261 = vpop.f32.mrb[0].mxu0
      %v4262 = vadd.f32 0.0, %v4261
      %v4263 = vpop.f32.mrb[0].mxu0
      %4264 = vmatprep.mubr.bf16.mxu0 0
      %4265 = vmatmul.mubr.bf16.gmra.mrb[0].mxu0 %v4138
      %v4266 = vpop.f32.mrb[0].mxu0
      %v4267 = vadd.f32 0.0, %v4266
      %v4268 = vpop.f32.mrb[0].mxu0
      %v4269 = vpop.f32.mrb[0].mxu0
      %v4270 = vadd.f32 0.0, %v4269
      %v4271 = vpop.f32.mrb[0].mxu0
      %4272 = vmatprep.mubr.bf16.mxu0 0
      %4273 = vmatmul.mubr.bf16.gmra.mrb[0].mxu0 %v4139
      %v4274 = vpop.f32.mrb[0].mxu0
      %v4275 = vadd.f32 0.0, %v4274
      %v4276 = vpop.f32.mrb[0].mxu0
      %v4277 = vpop.f32.mrb[0].mxu0
      %v4278 = vadd.f32 0.0, %v4277
      %v4279 = vpop.f32.mrb[0].mxu0
      %4280 = vmatprep.mubr.bf16.mxu0 0
      %4281 = vmatmul.mubr.bf16.gmra.mrb[0].mxu0 %v4140
      %v4282 = vpop.f32.mrb[0].mxu0
      %v4283 = vadd.f32 0.0, %v4282
      %v4284 = vpop.f32.mrb[0].mxu0
      %v4285 = vpop.f32.mrb[0].mxu0
      %v4286 = vadd.f32 0.0, %v4285
      %v4287 = vpop.f32.mrb[0].mxu0
      %4288 = vmatprep.mubr.bf16.mxu0 0
      %4289 = vmatmul.mubr.bf16.gmra.mrb[0].mxu0 %v4141
      %v4290 = vpop.f32.mrb[0].mxu0
      %v4291 = vadd.f32 0.0, %v4290
      %v4292 = vpop.f32.mrb[0].mxu0
      %v4293 = vpop.f32.mrb[0].mxu0
      %v4294 = vadd.f32 0.0, %v4293
      %v4295 = vpop.f32.mrb[0].mxu0
      %4296 = vmatprep.mubr.bf16.mxu0 0
      %4297 = vmatmul.mubr.bf16.gmra.mrb[0].mxu0 %v4142
      %v4298 = vpop.f32.mrb[0].mxu0
      %v4299 = vadd.f32 0.0, %v4298
      %v4300 = vpop.f32.mrb[0].mxu0
      %v4301 = vpop.f32.mrb[0].mxu0
      %v4302 = vadd.f32 0.0, %v4301
      %v4303 = vpop.f32.mrb[0].mxu0
      %4304 = vmatprep.mubr.bf16.mxu0 0
      %4305 = vmatmul.mubr.bf16.gmra.mrb[0].mxu0 %v4143
      %v4306 = vpop.f32.mrb[0].mxu0
      %v4307 = vadd.f32 0.0, %v4306
      %v4308 = vpop.f32.mrb[0].mxu0
      %v4309 = vpop.f32.mrb[0].mxu0
      %v4310 = vadd.f32 0.0, %v4309
      %v4311 = vpop.f32.mrb[0].mxu0
      %4312 = vmatprep.mubr.bf16.mxu0 0
      %4313 = vmatmul.mubr.bf16.gmra.mrb[0].mxu0 %v4144
      %v4314 = vpop.f32.mrb[0].mxu0
      %v4315 = vadd.f32 0.0, %v4314
      %v4316 = vpop.f32.mrb[0].mxu0
      %v4317 = vpop.f32.mrb[0].mxu0
      %v4318 = vadd.f32 0.0, %v4317
      %v4319 = vpop.f32.mrb[0].mxu0
      %4320 = vmatprep.mubr.bf16.mxu0 0
      %4321 = vmatmul.mubr.bf16.gmra.mrb[0].mxu0 %v4145
      %v4322 = vpop.f32.mrb[0].mxu0
      %v4323 = vadd.f32 0.0, %v4322
      %v4324 = vpop.f32.mrb[0].mxu0
      %v4325 = vpop.f32.mrb[0].mxu0
      %v4326 = vadd.f32 0.0, %v4325
      %v4327 = vpop.f32.mrb[0].mxu0
      %4328 = vmatprep.mubr.bf16.mxu0 0
      %4329 = vmatmul.mubr.bf16.gmra.mrb[0].mxu0 %v4146
      %v4330 = vpop.f32.mrb[0].mxu0
      %v4331 = vadd.f32 0.0, %v4330
      %v4332 = vpop.f32.mrb[0].mxu0
      %v4333 = vpop.f32.mrb[0].mxu0
      %v4334 = vadd.f32 0.0, %v4333
      %v4335 = vpop.f32.mrb[0].mxu0
      %4336 = vmatprep.mubr.bf16.mxu0 0
      %4337 = vmatmul.mubr.bf16.gmra.mrb[0].mxu0 %v4147
      %v4338 = vpop.f32.mrb[0].mxu0
      %v4339 = vadd.f32 0.0, %v4338
      %v4340 = vpop.f32.mrb[0].mxu0
      %v4341 = vpop.f32.mrb[0].mxu0
      %v4342 = vadd.f32 0.0, %v4341
      %v4343 = vpop.f32.mrb[0].mxu0
      %4344 = vmatprep.mubr.bf16.mxu0 0
      %4345 = vmatmul.mubr.bf16.gmra.mrb[0].mxu0 %v4148
      %v4346 = vpop.f32.mrb[0].mxu0
      %v4347 = vadd.f32 0.0, %v4346
      %v4348 = vpop.f32.mrb[0].mxu0
      %v4349 = vpop.f32.mrb[0].mxu0
      %v4350 = vadd.f32 0.0, %v4349
      %v4351 = vpop.f32.mrb[0].mxu0
      %4352 = vmatprep.mubr.bf16.mxu0 0
      %4353 = vmatmul.mubr.bf16.gmra.mrb[0].mxu0 %v4149
      %v4354 = vpop.f32.mrb[0].mxu0
      %v4355 = vadd.f32 0.0, %v4354
      %v4356 = vpop.f32.mrb[0].mxu0
      %v4357 = vpop.f32.mrb[0].mxu0
      %v4358 = vadd.f32 0.0, %v4357
      %v4359 = vpop.f32.mrb[0].mxu0
      %4360 = vmatprep.mubr.bf16.mxu0 0
      %4361 = vmatmul.mubr.bf16.gmra.mrb[0].mxu0 %v4150
      %v4362 = vpop.f32.mrb[0].mxu0
      %v4363 = vadd.f32 0.0, %v4362
      %v4364 = vpop.f32.mrb[0].mxu0
      %v4365 = vpop.f32.mrb[0].mxu0
      %v4366 = vadd.f32 0.0, %v4365
      %v4367 = vpop.f32.mrb[0].mxu0
      %4368 = vmatprep.mubr.bf16.mxu0 0
      %4369 = vmatmul.mubr.bf16.gmra.mrb[0].mxu0 %v4151
      %v4370 = vpop.f32.mrb[0].mxu0
      %v4371 = vadd.f32 0.0, %v4370
      %v4372 = vpop.f32.mrb[0].mxu0
      %v4373 = vpop.f32.mrb[0].mxu0
      %v4374 = vadd.f32 0.0, %v4373
      %v4375 = vpop.f32.mrb[0].mxu0
      %4376 = vdwg.mxu0
      %v4377 = vadd.f32 %v4023, %v4251
      %v4378 = vadd.f32 %v4024, %v4254
      %v4379 = vadd.f32 %v4025, %v4259
      %v4380 = vadd.f32 %v4026, %v4262
      %v4381 = vadd.f32 %v4027, %v4267
      %v4382 = vadd.f32 %v4028, %v4270
      %v4383 = vadd.f32 %v4029, %v4275
      %v4384 = vadd.f32 %v4030, %v4278
      %v4385 = vadd.f32 %v4031, %v4283
      %v4386 = vadd.f32 %v4032, %v4286
      %v4387 = vadd.f32 %v4033, %v4291
      %v4388 = vadd.f32 %v4034, %v4294
      %v4389 = vadd.f32 %v4035, %v4299
      %v4390 = vadd.f32 %v4036, %v4302
      %v4391 = vadd.f32 %v4037, %v4307
      %v4392 = vadd.f32 %v4038, %v4310
      %v4393 = vadd.f32 %v4039, %v4315
      %v4394 = vadd.f32 %v4040, %v4318
      %v4395 = vadd.f32 %v4041, %v4323
      %v4396 = vadd.f32 %v4042, %v4326
      %v4397 = vadd.f32 %v4043, %v4331
      %v4398 = vadd.f32 %v4044, %v4334
      %v4399 = vadd.f32 %v4045, %v4339
      %v4400 = vadd.f32 %v4046, %v4342
      %v4401 = vadd.f32 %v4047, %v4347
      %v4402 = vadd.f32 %v4048, %v4350
      %v4403 = vadd.f32 %v4049, %v4355
      %v4404 = vadd.f32 %v4050, %v4358
      %v4405 = vadd.f32 %v4051, %v4363
      %v4406 = vadd.f32 %v4052, %v4366
      %v4407 = vadd.f32 %v4053, %v4371
      %v4408 = vadd.f32 %v4054, %v4374
      %4409 = vst [vmem:[#allocation2] sm:$0xff] %v4377
      %4410 = vst [vmem:[#allocation2 + $0x8] sm:$0xff] %v4378
      %4411 = vst [vmem:[#allocation2 + $0x10] sm:$0xff] %v4379
      %4412 = vst [vmem:[#allocation2 + $0x18] sm:$0xff] %v4380
      %4413 = vst [vmem:[#allocation2 + $0x20] sm:$0xff] %v4381
      %4414 = vst [vmem:[#allocation2 + $0x28] sm:$0xff] %v4382
      %4415 = vst [vmem:[#allocation2 + $0x30] sm:$0xff] %v4383
      %4416 = vst [vmem:[#allocation2 + $0x38] sm:$0xff] %v4384
      %4417 = vst [vmem:[#allocation2 + $0x40] sm:$0xff] %v4385
      %4418 = vst [vmem:[#allocation2 + $0x48] sm:$0xff] %v4386
      %4419 = vst [vmem:[#allocation2 + $0x50] sm:$0xff] %v4387
      %4420 = vst [vmem:[#allocation2 + $0x58] sm:$0xff] %v4388
      %4421 = vst [vmem:[#allocation2 + $0x60] sm:$0xff] %v4389
      %4422 = vst [vmem:[#allocation2 + $0x68] sm:$0xff] %v4390
      %4423 = vst [vmem:[#allocation2 + $0x70] sm:$0xff] %v4391
      %4424 = vst [vmem:[#allocation2 + $0x78] sm:$0xff] %v4392
      %4425 = vst [vmem:[#allocation2 + $0x80] sm:$0xff] %v4393
      %4426 = vst [vmem:[#allocation2 + $0x88] sm:$0xff] %v4394
      %4427 = vst [vmem:[#allocation2 + $0x90] sm:$0xff] %v4395
      %4428 = vst [vmem:[#allocation2 + $0x98] sm:$0xff] %v4396
      %4429 = vst [vmem:[#allocation2 + $0xa0] sm:$0xff] %v4397
      %4430 = vst [vmem:[#allocation2 + $0xa8] sm:$0xff] %v4398
      %4431 = vst [vmem:[#allocation2 + $0xb0] sm:$0xff] %v4399
      %4432 = vst [vmem:[#allocation2 + $0xb8] sm:$0xff] %v4400
      %4433 = vst [vmem:[#allocation2 + $0xc0] sm:$0xff] %v4401
      %4434 = vst [vmem:[#allocation2 + $0xc8] sm:$0xff] %v4402
      %4435 = vst [vmem:[#allocation2 + $0xd0] sm:$0xff] %v4403
      %4436 = vst [vmem:[#allocation2 + $0xd8] sm:$0xff] %v4404
      %4437 = vst [vmem:[#allocation2 + $0xe0] sm:$0xff] %v4405
      %4438 = vst [vmem:[#allocation2 + $0xe8] sm:$0xff] %v4406
      %4439 = vst [vmem:[#allocation2 + $0xf0] sm:$0xff] %v4407
      %4440 = vst [vmem:[#allocation2 + $0xf8] sm:$0xff] %v4408
      %v4441 = vld [vmem:[%s3990] sm:$0xf]
      %v4442 = vld [vmem:[%s3990 + $0x4] sm:$0xf]
      %v4443 = vld [vmem:[%s3990 + $0x8] sm:$0x1]
      %v4444 = vld [vmem:[%s3990 + $0xc] sm:$0xf]
      %v4445 = vld [vmem:[%s3990 + $0x10] sm:$0xf]
      %v4446 = vld [vmem:[%s3990 + $0x14] sm:$0x1]
      %v4447 = vld [vmem:[%s3990 + $0x18] sm:$0xf]
      %v4448 = vld [vmem:[%s3990 + $0x1c] sm:$0xf]
      %v4449 = vld [vmem:[%s3990 + $0x20] sm:$0x1]
      %v4450 = vld [vmem:[%s3990 + $0x24] sm:$0xf]
      %v4451 = vld [vmem:[%s3990 + $0x28] sm:$0xf]
      %v4452 = vld [vmem:[%s3990 + $0x2c] sm:$0x1]
      %v4453 = vld [vmem:[%s3990 + $0x30] sm:$0xf]
      %v4454 = vld [vmem:[%s3990 + $0x34] sm:$0xf]
      %v4455 = vld [vmem:[%s3990 + $0x38] sm:$0x1]
      %v4456 = vld [vmem:[%s3990 + $0x3c] sm:$0xf]
      %v4457 = vld [vmem:[%s3990 + $0x40] sm:$0xf]
      %v4458 = vld [vmem:[%s3990 + $0x44] sm:$0x1]
      %v4459 = vld [vmem:[%s3990 + $0x48] sm:$0xf]
      %v4460 = vld [vmem:[%s3990 + $0x4c] sm:$0xf]
      %v4461 = vld [vmem:[%s3990 + $0x50] sm:$0x1]
      %v4462 = vld [vmem:[%s3990 + $0x54] sm:$0xf]
      %v4463 = vld [vmem:[%s3990 + $0x58] sm:$0xf]
      %v4464 = vld [vmem:[%s3990 + $0x5c] sm:$0x1]
      %v4465 = vld [vmem:[%s3990 + $0x60] sm:$0xf]
      %v4466 = vld [vmem:[%s3990 + $0x64] sm:$0xf]
      %v4467 = vld [vmem:[%s3990 + $0x68] sm:$0x1]
      %v4468 = vld [vmem:[%s3990 + $0x6c] sm:$0xf]
      %v4469 = vld [vmem:[%s3990 + $0x70] sm:$0xf]
      %v4470 = vld [vmem:[%s3990 + $0x74] sm:$0x1]
      %v4471 = vld [vmem:[%s3990 + $0x78] sm:$0xf]
      %v4472 = vld [vmem:[%s3990 + $0x7c] sm:$0xf]
      %v4473 = vld [vmem:[%s3990 + $0x80] sm:$0x1]
      %v4474 = vld [vmem:[%s3990 + $0x84] sm:$0xf]
      %v4475 = vld [vmem:[%s3990 + $0x88] sm:$0xf]
      %v4476 = vld [vmem:[%s3990 + $0x8c] sm:$0x1]
      %v4477 = vld [vmem:[%s3990 + $0x90] sm:$0xf]
      %v4478 = vld [vmem:[%s3990 + $0x94] sm:$0xf]
      %v4479 = vld [vmem:[%s3990 + $0x98] sm:$0x1]
      %v4480 = vld [vmem:[%s3990 + $0x9c] sm:$0xf]
      %v4481 = vld [vmem:[%s3990 + $0xa0] sm:$0xf]
      %v4482 = vld [vmem:[%s3990 + $0xa4] sm:$0x1]
      %v4483 = vld [vmem:[%s3990 + $0xa8] sm:$0xf]
      %v4484 = vld [vmem:[%s3990 + $0xac] sm:$0xf]
      %v4485 = vld [vmem:[%s3990 + $0xb0] sm:$0x1]
      %v4486 = vld [vmem:[%s3990 + $0xb4] sm:$0xf]
      %v4487 = vld [vmem:[%s3990 + $0xb8] sm:$0xf]
      %v4488 = vld [vmem:[%s3990 + $0xbc] sm:$0x1]
      %v4490 = vshrl.u32 %v4441, 16
      %v4492 = vrot.slane %v4490, 4
      %v4493 = vshll.u32 %v4441, 16
      %v4495 = vrot.slane %v4493, 5
      %v4496 = vor.u32 %v4492, %v4495
      %v4497 = vrot.slane %v4496, 4
      %v4499 = vshll.u32 %v4442, 16
      %v4501 = vrot.slane %v4499, 5
      %v4502 = vsel %vm759, %v4497, %v4501
      %v4503 = vshrl.u32 %v4442, 16
      %v4505 = vrot.slane %v4503, 4
      %v4506 = vor.u32 %v4505, %v4501
      %v4507 = vrot.slane %v4506, 4
      %v4509 = vshll.u32 %v4443, 16
      %v4511 = vrot.slane %v4509, 5
      %v4512 = vsel %vm759, %v4507, %v4511
      %v4514 = vshrl.u32 %v4444, 16
      %v4516 = vrot.slane %v4514, 4
      %v4517 = vshll.u32 %v4444, 16
      %v4519 = vrot.slane %v4517, 5
      %v4520 = vor.u32 %v4516, %v4519
      %v4521 = vrot.slane %v4520, 4
      %v4523 = vshll.u32 %v4445, 16
      %v4525 = vrot.slane %v4523, 5
      %v4526 = vsel %vm759, %v4521, %v4525
      %v4527 = vshrl.u32 %v4445, 16
      %v4529 = vrot.slane %v4527, 4
      %v4530 = vor.u32 %v4529, %v4525
      %v4531 = vrot.slane %v4530, 4
      %v4533 = vshll.u32 %v4446, 16
      %v4535 = vrot.slane %v4533, 5
      %v4536 = vsel %vm759, %v4531, %v4535
      %v4538 = vshrl.u32 %v4447, 16
      %v4540 = vrot.slane %v4538, 4
      %v4541 = vshll.u32 %v4447, 16
      %v4543 = vrot.slane %v4541, 5
      %v4544 = vor.u32 %v4540, %v4543
      %v4545 = vrot.slane %v4544, 4
      %v4547 = vshll.u32 %v4448, 16
      %v4549 = vrot.slane %v4547, 5
      %v4550 = vsel %vm759, %v4545, %v4549
      %v4551 = vshrl.u32 %v4448, 16
      %v4553 = vrot.slane %v4551, 4
      %v4554 = vor.u32 %v4553, %v4549
      %v4555 = vrot.slane %v4554, 4
      %v4557 = vshll.u32 %v4449, 16
      %v4559 = vrot.slane %v4557, 5
      %v4560 = vsel %vm759, %v4555, %v4559
      %v4562 = vshrl.u32 %v4450, 16
      %v4564 = vrot.slane %v4562, 4
      %v4565 = vshll.u32 %v4450, 16
      %v4567 = vrot.slane %v4565, 5
      %v4568 = vor.u32 %v4564, %v4567
      %v4569 = vrot.slane %v4568, 4
      %v4571 = vshll.u32 %v4451, 16
      %v4573 = vrot.slane %v4571, 5
      %v4574 = vsel %vm759, %v4569, %v4573
      %v4575 = vshrl.u32 %v4451, 16
      %v4577 = vrot.slane %v4575, 4
      %v4578 = vor.u32 %v4577, %v4573
      %v4579 = vrot.slane %v4578, 4
      %v4581 = vshll.u32 %v4452, 16
      %v4583 = vrot.slane %v4581, 5
      %v4584 = vsel %vm759, %v4579, %v4583
      %v4586 = vshrl.u32 %v4453, 16
      %v4588 = vrot.slane %v4586, 4
      %v4589 = vshll.u32 %v4453, 16
      %v4591 = vrot.slane %v4589, 5
      %v4592 = vor.u32 %v4588, %v4591
      %v4593 = vrot.slane %v4592, 4
      %v4595 = vshll.u32 %v4454, 16
      %v4597 = vrot.slane %v4595, 5
      %v4598 = vsel %vm759, %v4593, %v4597
      %v4599 = vshrl.u32 %v4454, 16
      %v4601 = vrot.slane %v4599, 4
      %v4602 = vor.u32 %v4601, %v4597
      %v4603 = vrot.slane %v4602, 4
      %v4605 = vshll.u32 %v4455, 16
      %v4607 = vrot.slane %v4605, 5
      %v4608 = vsel %vm759, %v4603, %v4607
      %v4610 = vshrl.u32 %v4456, 16
      %v4612 = vrot.slane %v4610, 4
      %v4613 = vshll.u32 %v4456, 16
      %v4615 = vrot.slane %v4613, 5
      %v4616 = vor.u32 %v4612, %v4615
      %v4617 = vrot.slane %v4616, 4
      %v4619 = vshll.u32 %v4457, 16
      %v4621 = vrot.slane %v4619, 5
      %v4622 = vsel %vm759, %v4617, %v4621
      %v4623 = vshrl.u32 %v4457, 16
      %v4625 = vrot.slane %v4623, 4
      %v4626 = vor.u32 %v4625, %v4621
      %v4627 = vrot.slane %v4626, 4
      %v4629 = vshll.u32 %v4458, 16
      %v4631 = vrot.slane %v4629, 5
      %v4632 = vsel %vm759, %v4627, %v4631
      %v4634 = vshrl.u32 %v4459, 16
      %v4636 = vrot.slane %v4634, 4
      %v4637 = vshll.u32 %v4459, 16
      %v4639 = vrot.slane %v4637, 5
      %v4640 = vor.u32 %v4636, %v4639
      %v4641 = vrot.slane %v4640, 4
      %v4643 = vshll.u32 %v4460, 16
      %v4645 = vrot.slane %v4643, 5
      %v4646 = vsel %vm759, %v4641, %v4645
      %v4647 = vshrl.u32 %v4460, 16
      %v4649 = vrot.slane %v4647, 4
      %v4650 = vor.u32 %v4649, %v4645
      %v4651 = vrot.slane %v4650, 4
      %v4653 = vshll.u32 %v4461, 16
      %v4655 = vrot.slane %v4653, 5
      %v4656 = vsel %vm759, %v4651, %v4655
      %v4658 = vshrl.u32 %v4462, 16
      %v4660 = vrot.slane %v4658, 4
      %v4661 = vshll.u32 %v4462, 16
      %v4663 = vrot.slane %v4661, 5
      %v4664 = vor.u32 %v4660, %v4663
      %v4665 = vrot.slane %v4664, 4
      %v4667 = vshll.u32 %v4463, 16
      %v4669 = vrot.slane %v4667, 5
      %v4670 = vsel %vm759, %v4665, %v4669
      %v4671 = vshrl.u32 %v4463, 16
      %v4673 = vrot.slane %v4671, 4
      %v4674 = vor.u32 %v4673, %v4669
      %v4675 = vrot.slane %v4674, 4
      %v4677 = vshll.u32 %v4464, 16
      %v4679 = vrot.slane %v4677, 5
      %v4680 = vsel %vm759, %v4675, %v4679
      %v4682 = vshrl.u32 %v4465, 16
      %v4684 = vrot.slane %v4682, 4
      %v4685 = vshll.u32 %v4465, 16
      %v4687 = vrot.slane %v4685, 5
      %v4688 = vor.u32 %v4684, %v4687
      %v4689 = vrot.slane %v4688, 4
      %v4691 = vshll.u32 %v4466, 16
      %v4693 = vrot.slane %v4691, 5
      %v4694 = vsel %vm759, %v4689, %v4693
      %v4695 = vshrl.u32 %v4466, 16
      %v4697 = vrot.slane %v4695, 4
      %v4698 = vor.u32 %v4697, %v4693
      %v4699 = vrot.slane %v4698, 4
      %v4701 = vshll.u32 %v4467, 16
      %v4703 = vrot.slane %v4701, 5
      %v4704 = vsel %vm759, %v4699, %v4703
      %v4706 = vshrl.u32 %v4468, 16
      %v4708 = vrot.slane %v4706, 4
      %v4709 = vshll.u32 %v4468, 16
      %v4711 = vrot.slane %v4709, 5
      %v4712 = vor.u32 %v4708, %v4711
      %v4713 = vrot.slane %v4712, 4
      %v4715 = vshll.u32 %v4469, 16
      %v4717 = vrot.slane %v4715, 5
      %v4718 = vsel %vm759, %v4713, %v4717
      %v4719 = vshrl.u32 %v4469, 16
      %v4721 = vrot.slane %v4719, 4
      %v4722 = vor.u32 %v4721, %v4717
      %v4723 = vrot.slane %v4722, 4
      %v4725 = vshll.u32 %v4470, 16
      %v4727 = vrot.slane %v4725, 5
      %v4728 = vsel %vm759, %v4723, %v4727
      %v4730 = vshrl.u32 %v4471, 16
      %v4732 = vrot.slane %v4730, 4
      %v4733 = vshll.u32 %v4471, 16
      %v4735 = vrot.slane %v4733, 5
      %v4736 = vor.u32 %v4732, %v4735
      %v4737 = vrot.slane %v4736, 4
      %v4739 = vshll.u32 %v4472, 16
      %v4741 = vrot.slane %v4739, 5
      %v4742 = vsel %vm759, %v4737, %v4741
      %v4743 = vshrl.u32 %v4472, 16
      %v4745 = vrot.slane %v4743, 4
      %v4746 = vor.u32 %v4745, %v4741
      %v4747 = vrot.slane %v4746, 4
      %v4749 = vshll.u32 %v4473, 16
      %v4751 = vrot.slane %v4749, 5
      %v4752 = vsel %vm759, %v4747, %v4751
      %v4754 = vshrl.u32 %v4474, 16
      %v4756 = vrot.slane %v4754, 4
      %v4757 = vshll.u32 %v4474, 16
      %v4759 = vrot.slane %v4757, 5
      %v4760 = vor.u32 %v4756, %v4759
      %v4761 = vrot.slane %v4760, 4
      %v4763 = vshll.u32 %v4475, 16
      %v4765 = vrot.slane %v4763, 5
      %v4766 = vsel %vm759, %v4761, %v4765
      %v4767 = vshrl.u32 %v4475, 16
      %v4769 = vrot.slane %v4767, 4
      %v4770 = vor.u32 %v4769, %v4765
      %v4771 = vrot.slane %v4770, 4
      %v4773 = vshll.u32 %v4476, 16
      %v4775 = vrot.slane %v4773, 5
      %v4776 = vsel %vm759, %v4771, %v4775
      %v4778 = vshrl.u32 %v4477, 16
      %v4780 = vrot.slane %v4778, 4
      %v4781 = vshll.u32 %v4477, 16
      %v4783 = vrot.slane %v4781, 5
      %v4784 = vor.u32 %v4780, %v4783
      %v4785 = vrot.slane %v4784, 4
      %v4787 = vshll.u32 %v4478, 16
      %v4789 = vrot.slane %v4787, 5
      %v4790 = vsel %vm759, %v4785, %v4789
      %v4791 = vshrl.u32 %v4478, 16
      %v4793 = vrot.slane %v4791, 4
      %v4794 = vor.u32 %v4793, %v4789
      %v4795 = vrot.slane %v4794, 4
      %v4797 = vshll.u32 %v4479, 16
      %v4799 = vrot.slane %v4797, 5
      %v4800 = vsel %vm759, %v4795, %v4799
      %v4802 = vshrl.u32 %v4480, 16
      %v4804 = vrot.slane %v4802, 4
      %v4805 = vshll.u32 %v4480, 16
      %v4807 = vrot.slane %v4805, 5
      %v4808 = vor.u32 %v4804, %v4807
      %v4809 = vrot.slane %v4808, 4
      %v4811 = vshll.u32 %v4481, 16
      %v4813 = vrot.slane %v4811, 5
      %v4814 = vsel %vm759, %v4809, %v4813
      %v4815 = vshrl.u32 %v4481, 16
      %v4817 = vrot.slane %v4815, 4
      %v4818 = vor.u32 %v4817, %v4813
      %v4819 = vrot.slane %v4818, 4
      %v4821 = vshll.u32 %v4482, 16
      %v4823 = vrot.slane %v4821, 5
      %v4824 = vsel %vm759, %v4819, %v4823
      %v4826 = vshrl.u32 %v4483, 16
      %v4828 = vrot.slane %v4826, 4
      %v4829 = vshll.u32 %v4483, 16
      %v4831 = vrot.slane %v4829, 5
      %v4832 = vor.u32 %v4828, %v4831
      %v4833 = vrot.slane %v4832, 4
      %v4835 = vshll.u32 %v4484, 16
      %v4837 = vrot.slane %v4835, 5
      %v4838 = vsel %vm759, %v4833, %v4837
      %v4839 = vshrl.u32 %v4484, 16
      %v4841 = vrot.slane %v4839, 4
      %v4842 = vor.u32 %v4841, %v4837
      %v4843 = vrot.slane %v4842, 4
      %v4845 = vshll.u32 %v4485, 16
      %v4847 = vrot.slane %v4845, 5
      %v4848 = vsel %vm759, %v4843, %v4847
      %v4850 = vshrl.u32 %v4486, 16
      %v4852 = vrot.slane %v4850, 4
      %v4853 = vshll.u32 %v4486, 16
      %v4855 = vrot.slane %v4853, 5
      %v4856 = vor.u32 %v4852, %v4855
      %v4857 = vrot.slane %v4856, 4
      %v4859 = vshll.u32 %v4487, 16
      %v4861 = vrot.slane %v4859, 5
      %v4862 = vsel %vm759, %v4857, %v4861
      %v4863 = vshrl.u32 %v4487, 16
      %v4865 = vrot.slane %v4863, 4
      %v4866 = vor.u32 %v4865, %v4861
      %v4867 = vrot.slane %v4866, 4
      %v4869 = vshll.u32 %v4488, 16
      %v4871 = vrot.slane %v4869, 5
      %v4872 = vsel %vm759, %v4867, %v4871
      %v4873 = vld [vmem:[#allocation2] sm:$0xff]
      %v4874 = vld [vmem:[#allocation2 + $0x8] sm:$0xff]
      %v4875 = vld [vmem:[#allocation2 + $0x10] sm:$0xff]
      %v4876 = vld [vmem:[#allocation2 + $0x18] sm:$0xff]
      %v4877 = vld [vmem:[#allocation2 + $0x20] sm:$0xff]
      %v4878 = vld [vmem:[#allocation2 + $0x28] sm:$0xff]
      %v4879 = vld [vmem:[#allocation2 + $0x30] sm:$0xff]
      %v4880 = vld [vmem:[#allocation2 + $0x38] sm:$0xff]
      %v4881 = vld [vmem:[#allocation2 + $0x40] sm:$0xff]
      %v4882 = vld [vmem:[#allocation2 + $0x48] sm:$0xff]
      %v4883 = vld [vmem:[#allocation2 + $0x50] sm:$0xff]
      %v4884 = vld [vmem:[#allocation2 + $0x58] sm:$0xff]
      %v4885 = vld [vmem:[#allocation2 + $0x60] sm:$0xff]
      %v4886 = vld [vmem:[#allocation2 + $0x68] sm:$0xff]
      %v4887 = vld [vmem:[#allocation2 + $0x70] sm:$0xff]
      %v4888 = vld [vmem:[#allocation2 + $0x78] sm:$0xff]
      %v4889 = vld [vmem:[#allocation2 + $0x80] sm:$0xff]
      %v4890 = vld [vmem:[#allocation2 + $0x88] sm:$0xff]
      %v4891 = vld [vmem:[#allocation2 + $0x90] sm:$0xff]
      %v4892 = vld [vmem:[#allocation2 + $0x98] sm:$0xff]
      %v4893 = vld [vmem:[#allocation2 + $0xa0] sm:$0xff]
      %v4894 = vld [vmem:[#allocation2 + $0xa8] sm:$0xff]
      %v4895 = vld [vmem:[#allocation2 + $0xb0] sm:$0xff]
      %v4896 = vld [vmem:[#allocation2 + $0xb8] sm:$0xff]
      %v4897 = vld [vmem:[#allocation2 + $0xc0] sm:$0xff]
      %v4898 = vld [vmem:[#allocation2 + $0xc8] sm:$0xff]
      %v4899 = vld [vmem:[#allocation2 + $0xd0] sm:$0xff]
      %v4900 = vld [vmem:[#allocation2 + $0xd8] sm:$0xff]
      %v4901 = vld [vmem:[#allocation2 + $0xe0] sm:$0xff]
      %v4902 = vld [vmem:[#allocation2 + $0xe8] sm:$0xff]
      %v4903 = vld [vmem:[#allocation2 + $0xf0] sm:$0xff]
      %v4904 = vld [vmem:[#allocation2 + $0xf8] sm:$0xff]
      %s4905 = scalar_lea.vmem %s211, 448
      %v4906 = vld [vmem:[%s4905] sm:$0xf]
      %v4907 = vld [vmem:[%s4905 + $0x4] sm:$0xf]
      %v4908 = vld [vmem:[%s4905 + $0x8] sm:$0xf]
      %v4909 = vld [vmem:[%s4905 + $0xc] sm:$0xf]
      %v4910 = vld [vmem:[%s4905 + $0x10] sm:$0xf]
      %v4911 = vld [vmem:[%s4905 + $0x14] sm:$0xf]
      %v4912 = vld [vmem:[%s4905 + $0x18] sm:$0xf]
      %v4913 = vld [vmem:[%s4905 + $0x1c] sm:$0xf]
      %v4914 = vld [vmem:[%s4905 + $0x20] sm:$0xf]
      %v4915 = vld [vmem:[%s4905 + $0x24] sm:$0xf]
      %v4916 = vld [vmem:[%s4905 + $0x28] sm:$0xf]
      %v4917 = vld [vmem:[%s4905 + $0x2c] sm:$0xf]
      %v4918 = vld [vmem:[%s4905 + $0x30] sm:$0xf]
      %v4919 = vld [vmem:[%s4905 + $0x34] sm:$0xf]
      %v4920 = vld [vmem:[%s4905 + $0x38] sm:$0xf]
      %v4921 = vld [vmem:[%s4905 + $0x3c] sm:$0xf]
      %v4922 = vunpack.c.l.b16 %v4502
      %v4923 = vunpack.c.l.b16 %v4512
      %v4924 = vunpack.c.l.b16 %v4526
      %v4925 = vunpack.c.l.b16 %v4536
      %v4926 = vunpack.c.l.b16 %v4550
      %v4927 = vunpack.c.l.b16 %v4560
      %v4928 = vunpack.c.l.b16 %v4574
      %v4929 = vunpack.c.l.b16 %v4584
      %v4930 = vunpack.c.l.b16 %v4598
      %v4931 = vunpack.c.l.b16 %v4608
      %v4932 = vunpack.c.l.b16 %v4622
      %v4933 = vunpack.c.l.b16 %v4632
      %v4934 = vunpack.c.l.b16 %v4646
      %v4935 = vunpack.c.l.b16 %v4656
      %v4936 = vunpack.c.l.b16 %v4670
      %v4937 = vunpack.c.l.b16 %v4680
      %v4938 = vunpack.c.l.b16 %v4694
      %v4939 = vunpack.c.l.b16 %v4704
      %v4940 = vunpack.c.l.b16 %v4718
      %v4941 = vunpack.c.l.b16 %v4728
      %v4942 = vunpack.c.l.b16 %v4742
      %v4943 = vunpack.c.l.b16 %v4752
      %v4944 = vunpack.c.l.b16 %v4766
      %v4945 = vunpack.c.l.b16 %v4776
      %v4946 = vunpack.c.l.b16 %v4790
      %v4947 = vunpack.c.l.b16 %v4800
      %v4948 = vunpack.c.l.b16 %v4814
      %v4949 = vunpack.c.l.b16 %v4824
      %v4950 = vunpack.c.l.b16 %v4838
      %v4951 = vunpack.c.l.b16 %v4848
      %v4952 = vunpack.c.l.b16 %v4862
      %v4953 = vunpack.c.l.b16 %v4872
      %v4954 = vpack.c.b16 %v4923, %v4922
      %v4955 = vpack.c.b16 %v4925, %v4924
      %v4956 = vpack.c.b16 %v4927, %v4926
      %v4957 = vpack.c.b16 %v4929, %v4928
      %v4958 = vpack.c.b16 %v4931, %v4930
      %v4959 = vpack.c.b16 %v4933, %v4932
      %v4960 = vpack.c.b16 %v4935, %v4934
      %v4961 = vpack.c.b16 %v4937, %v4936
      %v4962 = vpack.c.b16 %v4939, %v4938
      %v4963 = vpack.c.b16 %v4941, %v4940
      %v4964 = vpack.c.b16 %v4943, %v4942
      %v4965 = vpack.c.b16 %v4945, %v4944
      %v4966 = vpack.c.b16 %v4947, %v4946
      %v4967 = vpack.c.b16 %v4949, %v4948
      %v4968 = vpack.c.b16 %v4951, %v4950
      %v4969 = vpack.c.b16 %v4953, %v4952
      %v5002 = vunpack.c.l.b16 %v4906
      %v5003 = vunpack.c.l.b16 %v4907
      %v5004 = vunpack.c.l.b16 %v4908
      %v5005 = vunpack.c.l.b16 %v4909
      %v5006 = vunpack.c.l.b16 %v4910
      %v5007 = vunpack.c.l.b16 %v4911
      %v5008 = vunpack.c.l.b16 %v4912
      %v5009 = vunpack.c.l.b16 %v4913
      %v5010 = vunpack.c.l.b16 %v4914
      %v5011 = vunpack.c.l.b16 %v4915
      %v5012 = vunpack.c.l.b16 %v4916
      %v5013 = vunpack.c.l.b16 %v4917
      %v5014 = vunpack.c.l.b16 %v4918
      %v5015 = vunpack.c.l.b16 %v4919
      %v5016 = vunpack.c.l.b16 %v4920
      %v5017 = vunpack.c.l.b16 %v4921
      %v5018 = vpack.c.b16 %v5003, %v5002
      %v5019 = vpack.c.b16 %v5005, %v5004
      %v5020 = vpack.c.b16 %v5007, %v5006
      %v5021 = vpack.c.b16 %v5009, %v5008
      %v5022 = vpack.c.b16 %v5011, %v5010
      %v5023 = vpack.c.b16 %v5013, %v5012
      %v5024 = vpack.c.b16 %v5015, %v5014
      %v5025 = vpack.c.b16 %v5017, %v5016
      %5034 = vmatprep.subr.bf16.mxu0 0
      %5035 = vmatpush1.bf16.msra.mxu0 %v5018
      %5036 = vmatprep.subr.bf16.mxu0 0
      %5037 = vmatpush1.bf16.msra.mxu0 %v5019
      %5038 = vmatprep.subr.bf16.mxu0 0
      %5039 = vmatpush1.bf16.msra.mxu0 %v5020
      %5040 = vmatprep.subr.bf16.mxu0 0
      %5041 = vmatpush1.bf16.msra.mxu0 %v5021
      %5042 = vmatprep.subr.bf16.mxu0 0
      %5043 = vmatpush1.bf16.msra.mxu0 %v5022
      %5044 = vmatprep.subr.bf16.mxu0 0
      %5045 = vmatpush1.bf16.msra.mxu0 %v5023
      %5046 = vmatprep.subr.bf16.mxu0 0
      %5047 = vmatpush1.bf16.msra.mxu0 %v5024
      %5048 = vmatprep.subr.bf16.mxu0 0
      %5049 = vmatpush1.bf16.msra.mxu0 %v5025
      %5050 = vmatprep.subr.bf16.mxu0 0
      %5051 = vmatpush1.bf16.msra.mxu0 0
      %5052 = vmatprep.subr.bf16.mxu0 0
      %5053 = vmatpush1.bf16.msra.mxu0 0
      %5054 = vmatprep.subr.bf16.mxu0 0
      %5055 = vmatpush1.bf16.msra.mxu0 0
      %5056 = vmatprep.subr.bf16.mxu0 0
      %5057 = vmatpush1.bf16.msra.mxu0 0
      %5058 = vmatprep.subr.bf16.mxu0 0
      %5059 = vmatpush1.bf16.msra.mxu0 0
      %5060 = vmatprep.subr.bf16.mxu0 0
      %5061 = vmatpush1.bf16.msra.mxu0 0
      %5062 = vmatprep.subr.bf16.mxu0 0
      %5063 = vmatpush1.bf16.msra.mxu0 0
      %5064 = vmatprep.subr.bf16.mxu0 0
      %5065 = vmatpush1.bf16.msra.mxu0 0
      %5066 = vmatprep.mubr.bf16.mxu0 0
      %5067 = vmatmul.mubr.bf16.gmra.mrb[0].mxu0 %v4954
      %v5068 = vpop.f32.mrb[0].mxu0
      %v5069 = vadd.f32 0.0, %v5068
      %v5070 = vpop.f32.mrb[0].mxu0
      %v5071 = vpop.f32.mrb[0].mxu0
      %v5072 = vadd.f32 0.0, %v5071
      %v5073 = vpop.f32.mrb[0].mxu0
      %5074 = vmatprep.mubr.bf16.mxu0 0
      %5075 = vmatmul.mubr.bf16.gmra.mrb[0].mxu0 %v4955
      %v5076 = vpop.f32.mrb[0].mxu0
      %v5077 = vadd.f32 0.0, %v5076
      %v5078 = vpop.f32.mrb[0].mxu0
      %v5079 = vpop.f32.mrb[0].mxu0
      %v5080 = vadd.f32 0.0, %v5079
      %v5081 = vpop.f32.mrb[0].mxu0
      %5082 = vmatprep.mubr.bf16.mxu0 0
      %5083 = vmatmul.mubr.bf16.gmra.mrb[0].mxu0 %v4956
      %v5084 = vpop.f32.mrb[0].mxu0
      %v5085 = vadd.f32 0.0, %v5084
      %v5086 = vpop.f32.mrb[0].mxu0
      %v5087 = vpop.f32.mrb[0].mxu0
      %v5088 = vadd.f32 0.0, %v5087
      %v5089 = vpop.f32.mrb[0].mxu0
      %5090 = vmatprep.mubr.bf16.mxu0 0
      %5091 = vmatmul.mubr.bf16.gmra.mrb[0].mxu0 %v4957
      %v5092 = vpop.f32.mrb[0].mxu0
      %v5093 = vadd.f32 0.0, %v5092
      %v5094 = vpop.f32.mrb[0].mxu0
      %v5095 = vpop.f32.mrb[0].mxu0
      %v5096 = vadd.f32 0.0, %v5095
      %v5097 = vpop.f32.mrb[0].mxu0
      %5098 = vmatprep.mubr.bf16.mxu0 0
      %5099 = vmatmul.mubr.bf16.gmra.mrb[0].mxu0 %v4958
      %v5100 = vpop.f32.mrb[0].mxu0
      %v5101 = vadd.f32 0.0, %v5100
      %v5102 = vpop.f32.mrb[0].mxu0
      %v5103 = vpop.f32.mrb[0].mxu0
      %v5104 = vadd.f32 0.0, %v5103
      %v5105 = vpop.f32.mrb[0].mxu0
      %5106 = vmatprep.mubr.bf16.mxu0 0
      %5107 = vmatmul.mubr.bf16.gmra.mrb[0].mxu0 %v4959
      %v5108 = vpop.f32.mrb[0].mxu0
      %v5109 = vadd.f32 0.0, %v5108
      %v5110 = vpop.f32.mrb[0].mxu0
      %v5111 = vpop.f32.mrb[0].mxu0
      %v5112 = vadd.f32 0.0, %v5111
      %v5113 = vpop.f32.mrb[0].mxu0
      %5114 = vmatprep.mubr.bf16.mxu0 0
      %5115 = vmatmul.mubr.bf16.gmra.mrb[0].mxu0 %v4960
      %v5116 = vpop.f32.mrb[0].mxu0
      %v5117 = vadd.f32 0.0, %v5116
      %v5118 = vpop.f32.mrb[0].mxu0
      %v5119 = vpop.f32.mrb[0].mxu0
      %v5120 = vadd.f32 0.0, %v5119
      %v5121 = vpop.f32.mrb[0].mxu0
      %5122 = vmatprep.mubr.bf16.mxu0 0
      %5123 = vmatmul.mubr.bf16.gmra.mrb[0].mxu0 %v4961
      %v5124 = vpop.f32.mrb[0].mxu0
      %v5125 = vadd.f32 0.0, %v5124
      %v5126 = vpop.f32.mrb[0].mxu0
      %v5127 = vpop.f32.mrb[0].mxu0
      %v5128 = vadd.f32 0.0, %v5127
      %v5129 = vpop.f32.mrb[0].mxu0
      %5130 = vmatprep.mubr.bf16.mxu0 0
      %5131 = vmatmul.mubr.bf16.gmra.mrb[0].mxu0 %v4962
      %v5132 = vpop.f32.mrb[0].mxu0
      %v5133 = vadd.f32 0.0, %v5132
      %v5134 = vpop.f32.mrb[0].mxu0
      %v5135 = vpop.f32.mrb[0].mxu0
      %v5136 = vadd.f32 0.0, %v5135
      %v5137 = vpop.f32.mrb[0].mxu0
      %5138 = vmatprep.mubr.bf16.mxu0 0
      %5139 = vmatmul.mubr.bf16.gmra.mrb[0].mxu0 %v4963
      %v5140 = vpop.f32.mrb[0].mxu0
      %v5141 = vadd.f32 0.0, %v5140
      %v5142 = vpop.f32.mrb[0].mxu0
      %v5143 = vpop.f32.mrb[0].mxu0
      %v5144 = vadd.f32 0.0, %v5143
      %v5145 = vpop.f32.mrb[0].mxu0
      %5146 = vmatprep.mubr.bf16.mxu0 0
      %5147 = vmatmul.mubr.bf16.gmra.mrb[0].mxu0 %v4964
      %v5148 = vpop.f32.mrb[0].mxu0
      %v5149 = vadd.f32 0.0, %v5148
      %v5150 = vpop.f32.mrb[0].mxu0
      %v5151 = vpop.f32.mrb[0].mxu0
      %v5152 = vadd.f32 0.0, %v5151
      %v5153 = vpop.f32.mrb[0].mxu0
      %5154 = vmatprep.mubr.bf16.mxu0 0
      %5155 = vmatmul.mubr.bf16.gmra.mrb[0].mxu0 %v4965
      %v5156 = vpop.f32.mrb[0].mxu0
      %v5157 = vadd.f32 0.0, %v5156
      %v5158 = vpop.f32.mrb[0].mxu0
      %v5159 = vpop.f32.mrb[0].mxu0
      %v5160 = vadd.f32 0.0, %v5159
      %v5161 = vpop.f32.mrb[0].mxu0
      %5162 = vmatprep.mubr.bf16.mxu0 0
      %5163 = vmatmul.mubr.bf16.gmra.mrb[0].mxu0 %v4966
      %v5164 = vpop.f32.mrb[0].mxu0
      %v5165 = vadd.f32 0.0, %v5164
      %v5166 = vpop.f32.mrb[0].mxu0
      %v5167 = vpop.f32.mrb[0].mxu0
      %v5168 = vadd.f32 0.0, %v5167
      %v5169 = vpop.f32.mrb[0].mxu0
      %5170 = vmatprep.mubr.bf16.mxu0 0
      %5171 = vmatmul.mubr.bf16.gmra.mrb[0].mxu0 %v4967
      %v5172 = vpop.f32.mrb[0].mxu0
      %v5173 = vadd.f32 0.0, %v5172
      %v5174 = vpop.f32.mrb[0].mxu0
      %v5175 = vpop.f32.mrb[0].mxu0
      %v5176 = vadd.f32 0.0, %v5175
      %v5177 = vpop.f32.mrb[0].mxu0
      %5178 = vmatprep.mubr.bf16.mxu0 0
      %5179 = vmatmul.mubr.bf16.gmra.mrb[0].mxu0 %v4968
      %v5180 = vpop.f32.mrb[0].mxu0
      %v5181 = vadd.f32 0.0, %v5180
      %v5182 = vpop.f32.mrb[0].mxu0
      %v5183 = vpop.f32.mrb[0].mxu0
      %v5184 = vadd.f32 0.0, %v5183
      %v5185 = vpop.f32.mrb[0].mxu0
      %5186 = vmatprep.mubr.bf16.mxu0 0
      %5187 = vmatmul.mubr.bf16.gmra.mrb[0].mxu0 %v4969
      %v5188 = vpop.f32.mrb[0].mxu0
      %v5189 = vadd.f32 0.0, %v5188
      %v5190 = vpop.f32.mrb[0].mxu0
      %v5191 = vpop.f32.mrb[0].mxu0
      %v5192 = vadd.f32 0.0, %v5191
      %v5193 = vpop.f32.mrb[0].mxu0
      %5194 = vdwg.mxu0
      %v5195 = vadd.f32 %v4873, %v5069
      %v5196 = vadd.f32 %v4874, %v5072
      %v5197 = vadd.f32 %v4875, %v5077
      %v5198 = vadd.f32 %v4876, %v5080
      %v5199 = vadd.f32 %v4877, %v5085
      %v5200 = vadd.f32 %v4878, %v5088
      %v5201 = vadd.f32 %v4879, %v5093
      %v5202 = vadd.f32 %v4880, %v5096
      %v5203 = vadd.f32 %v4881, %v5101
      %v5204 = vadd.f32 %v4882, %v5104
      %v5205 = vadd.f32 %v4883, %v5109
      %v5206 = vadd.f32 %v4884, %v5112
      %v5207 = vadd.f32 %v4885, %v5117
      %v5208 = vadd.f32 %v4886, %v5120
      %v5209 = vadd.f32 %v4887, %v5125
      %v5210 = vadd.f32 %v4888, %v5128
      %v5211 = vadd.f32 %v4889, %v5133
      %v5212 = vadd.f32 %v4890, %v5136
      %v5213 = vadd.f32 %v4891, %v5141
      %v5214 = vadd.f32 %v4892, %v5144
      %v5215 = vadd.f32 %v4893, %v5149
      %v5216 = vadd.f32 %v4894, %v5152
      %v5217 = vadd.f32 %v4895, %v5157
      %v5218 = vadd.f32 %v4896, %v5160
      %v5219 = vadd.f32 %v4897, %v5165
      %v5220 = vadd.f32 %v4898, %v5168
      %v5221 = vadd.f32 %v4899, %v5173
      %v5222 = vadd.f32 %v4900, %v5176
      %v5223 = vadd.f32 %v4901, %v5181
      %v5224 = vadd.f32 %v4902, %v5184
      %v5225 = vadd.f32 %v4903, %v5189
      %v5226 = vadd.f32 %v4904, %v5192
      %5227 = vst [vmem:[#allocation2] sm:$0xff] %v5195
      %5228 = vst [vmem:[#allocation2 + $0x8] sm:$0xff] %v5196
      %5229 = vst [vmem:[#allocation2 + $0x10] sm:$0xff] %v5197
      %5230 = vst [vmem:[#allocation2 + $0x18] sm:$0xff] %v5198
      %5231 = vst [vmem:[#allocation2 + $0x20] sm:$0xff] %v5199
      %5232 = vst [vmem:[#allocation2 + $0x28] sm:$0xff] %v5200
      %5233 = vst [vmem:[#allocation2 + $0x30] sm:$0xff] %v5201
      %5234 = vst [vmem:[#allocation2 + $0x38] sm:$0xff] %v5202
      %5235 = vst [vmem:[#allocation2 + $0x40] sm:$0xff] %v5203
      %5236 = vst [vmem:[#allocation2 + $0x48] sm:$0xff] %v5204
      %5237 = vst [vmem:[#allocation2 + $0x50] sm:$0xff] %v5205
      %5238 = vst [vmem:[#allocation2 + $0x58] sm:$0xff] %v5206
      %5239 = vst [vmem:[#allocation2 + $0x60] sm:$0xff] %v5207
      %5240 = vst [vmem:[#allocation2 + $0x68] sm:$0xff] %v5208
      %5241 = vst [vmem:[#allocation2 + $0x70] sm:$0xff] %v5209
      %5242 = vst [vmem:[#allocation2 + $0x78] sm:$0xff] %v5210
      %5243 = vst [vmem:[#allocation2 + $0x80] sm:$0xff] %v5211
      %5244 = vst [vmem:[#allocation2 + $0x88] sm:$0xff] %v5212
      %5245 = vst [vmem:[#allocation2 + $0x90] sm:$0xff] %v5213
      %5246 = vst [vmem:[#allocation2 + $0x98] sm:$0xff] %v5214
      %5247 = vst [vmem:[#allocation2 + $0xa0] sm:$0xff] %v5215
      %5248 = vst [vmem:[#allocation2 + $0xa8] sm:$0xff] %v5216
      %5249 = vst [vmem:[#allocation2 + $0xb0] sm:$0xff] %v5217
      %5250 = vst [vmem:[#allocation2 + $0xb8] sm:$0xff] %v5218
      %5251 = vst [vmem:[#allocation2 + $0xc0] sm:$0xff] %v5219
      %5252 = vst [vmem:[#allocation2 + $0xc8] sm:$0xff] %v5220
      %5253 = vst [vmem:[#allocation2 + $0xd0] sm:$0xff] %v5221
      %5254 = vst [vmem:[#allocation2 + $0xd8] sm:$0xff] %v5222
      %5255 = vst [vmem:[#allocation2 + $0xe0] sm:$0xff] %v5223
      %5256 = vst [vmem:[#allocation2 + $0xe8] sm:$0xff] %v5224
      %5257 = vst [vmem:[#allocation2 + $0xf0] sm:$0xff] %v5225
      %5258 = vst [vmem:[#allocation2 + $0xf8] sm:$0xff] %v5226
      %v5259 = vld [vmem:[%s3990] sm:$0xe]
      %v5260 = vld [vmem:[%s3990 + $0x4] sm:$0xf]
      %v5261 = vld [vmem:[%s3990 + $0x8] sm:$0x1]
      %v5262 = vld [vmem:[%s3990 + $0xc] sm:$0xe]
      %v5263 = vld [vmem:[%s3990 + $0x10] sm:$0xf]
      %v5264 = vld [vmem:[%s3990 + $0x14] sm:$0x1]
      %v5265 = vld [vmem:[%s3990 + $0x18] sm:$0xe]
      %v5266 = vld [vmem:[%s3990 + $0x1c] sm:$0xf]
      %v5267 = vld [vmem:[%s3990 + $0x20] sm:$0x1]
      %v5268 = vld [vmem:[%s3990 + $0x24] sm:$0xe]
      %v5269 = vld [vmem:[%s3990 + $0x28] sm:$0xf]
      %v5270 = vld [vmem:[%s3990 + $0x2c] sm:$0x1]
      %v5271 = vld [vmem:[%s3990 + $0x30] sm:$0xe]
      %v5272 = vld [vmem:[%s3990 + $0x34] sm:$0xf]
      %v5273 = vld [vmem:[%s3990 + $0x38] sm:$0x1]
      %v5274 = vld [vmem:[%s3990 + $0x3c] sm:$0xe]
      %v5275 = vld [vmem:[%s3990 + $0x40] sm:$0xf]
      %v5276 = vld [vmem:[%s3990 + $0x44] sm:$0x1]
      %v5277 = vld [vmem:[%s3990 + $0x48] sm:$0xe]
      %v5278 = vld [vmem:[%s3990 + $0x4c] sm:$0xf]
      %v5279 = vld [vmem:[%s3990 + $0x50] sm:$0x1]
      %v5280 = vld [vmem:[%s3990 + $0x54] sm:$0xe]
      %v5281 = vld [vmem:[%s3990 + $0x58] sm:$0xf]
      %v5282 = vld [vmem:[%s3990 + $0x5c] sm:$0x1]
      %v5283 = vld [vmem:[%s3990 + $0x60] sm:$0xe]
      %v5284 = vld [vmem:[%s3990 + $0x64] sm:$0xf]
      %v5285 = vld [vmem:[%s3990 + $0x68] sm:$0x1]
      %v5286 = vld [vmem:[%s3990 + $0x6c] sm:$0xe]
      %v5287 = vld [vmem:[%s3990 + $0x70] sm:$0xf]
      %v5288 = vld [vmem:[%s3990 + $0x74] sm:$0x1]
      %v5289 = vld [vmem:[%s3990 + $0x78] sm:$0xe]
      %v5290 = vld [vmem:[%s3990 + $0x7c] sm:$0xf]
      %v5291 = vld [vmem:[%s3990 + $0x80] sm:$0x1]
      %v5292 = vld [vmem:[%s3990 + $0x84] sm:$0xe]
      %v5293 = vld [vmem:[%s3990 + $0x88] sm:$0xf]
      %v5294 = vld [vmem:[%s3990 + $0x8c] sm:$0x1]
      %v5295 = vld [vmem:[%s3990 + $0x90] sm:$0xe]
      %v5296 = vld [vmem:[%s3990 + $0x94] sm:$0xf]
      %v5297 = vld [vmem:[%s3990 + $0x98] sm:$0x1]
      %v5298 = vld [vmem:[%s3990 + $0x9c] sm:$0xe]
      %v5299 = vld [vmem:[%s3990 + $0xa0] sm:$0xf]
      %v5300 = vld [vmem:[%s3990 + $0xa4] sm:$0x1]
      %v5301 = vld [vmem:[%s3990 + $0xa8] sm:$0xe]
      %v5302 = vld [vmem:[%s3990 + $0xac] sm:$0xf]
      %v5303 = vld [vmem:[%s3990 + $0xb0] sm:$0x1]
      %v5304 = vld [vmem:[%s3990 + $0xb4] sm:$0xe]
      %v5305 = vld [vmem:[%s3990 + $0xb8] sm:$0xf]
      %v5306 = vld [vmem:[%s3990 + $0xbc] sm:$0x1]
      %v5355 = vrot.slane %v5259, 5
      %v5356 = vrot.slane %v5355, 4
      %v5357 = vrot.slane %v5260, 5
      %v5358 = vsel %vm1628, %v5356, %v5357
      %v5359 = vrot.slane %v5357, 4
      %v5360 = vrot.slane %v5261, 5
      %v5361 = vsel %vm1628, %v5359, %v5360
      %v5362 = vrot.slane %v5262, 5
      %v5363 = vrot.slane %v5362, 4
      %v5364 = vrot.slane %v5263, 5
      %v5365 = vsel %vm1628, %v5363, %v5364
      %v5366 = vrot.slane %v5364, 4
      %v5367 = vrot.slane %v5264, 5
      %v5368 = vsel %vm1628, %v5366, %v5367
      %v5369 = vrot.slane %v5265, 5
      %v5370 = vrot.slane %v5369, 4
      %v5371 = vrot.slane %v5266, 5
      %v5372 = vsel %vm1628, %v5370, %v5371
      %v5373 = vrot.slane %v5371, 4
      %v5374 = vrot.slane %v5267, 5
      %v5375 = vsel %vm1628, %v5373, %v5374
      %v5376 = vrot.slane %v5268, 5
      %v5377 = vrot.slane %v5376, 4
      %v5378 = vrot.slane %v5269, 5
      %v5379 = vsel %vm1628, %v5377, %v5378
      %v5380 = vrot.slane %v5378, 4
      %v5381 = vrot.slane %v5270, 5
      %v5382 = vsel %vm1628, %v5380, %v5381
      %v5383 = vrot.slane %v5271, 5
      %v5384 = vrot.slane %v5383, 4
      %v5385 = vrot.slane %v5272, 5
      %v5386 = vsel %vm1628, %v5384, %v5385
      %v5387 = vrot.slane %v5385, 4
      %v5388 = vrot.slane %v5273, 5
      %v5389 = vsel %vm1628, %v5387, %v5388
      %v5390 = vrot.slane %v5274, 5
      %v5391 = vrot.slane %v5390, 4
      %v5392 = vrot.slane %v5275, 5
      %v5393 = vsel %vm1628, %v5391, %v5392
      %v5394 = vrot.slane %v5392, 4
      %v5395 = vrot.slane %v5276, 5
      %v5396 = vsel %vm1628, %v5394, %v5395
      %v5397 = vrot.slane %v5277, 5
      %v5398 = vrot.slane %v5397, 4
      %v5399 = vrot.slane %v5278, 5
      %v5400 = vsel %vm1628, %v5398, %v5399
      %v5401 = vrot.slane %v5399, 4
      %v5402 = vrot.slane %v5279, 5
      %v5403 = vsel %vm1628, %v5401, %v5402
      %v5404 = vrot.slane %v5280, 5
      %v5405 = vrot.slane %v5404, 4
      %v5406 = vrot.slane %v5281, 5
      %v5407 = vsel %vm1628, %v5405, %v5406
      %v5408 = vrot.slane %v5406, 4
      %v5409 = vrot.slane %v5282, 5
      %v5410 = vsel %vm1628, %v5408, %v5409
      %v5411 = vrot.slane %v5283, 5
      %v5412 = vrot.slane %v5411, 4
      %v5413 = vrot.slane %v5284, 5
      %v5414 = vsel %vm1628, %v5412, %v5413
      %v5415 = vrot.slane %v5413, 4
      %v5416 = vrot.slane %v5285, 5
      %v5417 = vsel %vm1628, %v5415, %v5416
      %v5418 = vrot.slane %v5286, 5
      %v5419 = vrot.slane %v5418, 4
      %v5420 = vrot.slane %v5287, 5
      %v5421 = vsel %vm1628, %v5419, %v5420
      %v5422 = vrot.slane %v5420, 4
      %v5423 = vrot.slane %v5288, 5
      %v5424 = vsel %vm1628, %v5422, %v5423
      %v5425 = vrot.slane %v5289, 5
      %v5426 = vrot.slane %v5425, 4
      %v5427 = vrot.slane %v5290, 5
      %v5428 = vsel %vm1628, %v5426, %v5427
      %v5429 = vrot.slane %v5427, 4
      %v5430 = vrot.slane %v5291, 5
      %v5431 = vsel %vm1628, %v5429, %v5430
      %v5432 = vrot.slane %v5292, 5
      %v5433 = vrot.slane %v5432, 4
      %v5434 = vrot.slane %v5293, 5
      %v5435 = vsel %vm1628, %v5433, %v5434
      %v5436 = vrot.slane %v5434, 4
      %v5437 = vrot.slane %v5294, 5
      %v5438 = vsel %vm1628, %v5436, %v5437
      %v5439 = vrot.slane %v5295, 5
      %v5440 = vrot.slane %v5439, 4
      %v5441 = vrot.slane %v5296, 5
      %v5442 = vsel %vm1628, %v5440, %v5441
      %v5443 = vrot.slane %v5441, 4
      %v5444 = vrot.slane %v5297, 5
      %v5445 = vsel %vm1628, %v5443, %v5444
      %v5446 = vrot.slane %v5298, 5
      %v5447 = vrot.slane %v5446, 4
      %v5448 = vrot.slane %v5299, 5
      %v5449 = vsel %vm1628, %v5447, %v5448
      %v5450 = vrot.slane %v5448, 4
      %v5451 = vrot.slane %v5300, 5
      %v5452 = vsel %vm1628, %v5450, %v5451
      %v5453 = vrot.slane %v5301, 5
      %v5454 = vrot.slane %v5453, 4
      %v5455 = vrot.slane %v5302, 5
      %v5456 = vsel %vm1628, %v5454, %v5455
      %v5457 = vrot.slane %v5455, 4
      %v5458 = vrot.slane %v5303, 5
      %v5459 = vsel %vm1628, %v5457, %v5458
      %v5460 = vrot.slane %v5304, 5
      %v5461 = vrot.slane %v5460, 4
      %v5462 = vrot.slane %v5305, 5
      %v5463 = vsel %vm1628, %v5461, %v5462
      %v5464 = vrot.slane %v5462, 4
      %v5465 = vrot.slane %v5306, 5
      %v5466 = vsel %vm1628, %v5464, %v5465
      %v5467 = vld [vmem:[#allocation2] sm:$0xff]
      %v5468 = vld [vmem:[#allocation2 + $0x8] sm:$0xff]
      %v5469 = vld [vmem:[#allocation2 + $0x10] sm:$0xff]
      %v5470 = vld [vmem:[#allocation2 + $0x18] sm:$0xff]
      %v5471 = vld [vmem:[#allocation2 + $0x20] sm:$0xff]
      %v5472 = vld [vmem:[#allocation2 + $0x28] sm:$0xff]
      %v5473 = vld [vmem:[#allocation2 + $0x30] sm:$0xff]
      %v5474 = vld [vmem:[#allocation2 + $0x38] sm:$0xff]
      %v5475 = vld [vmem:[#allocation2 + $0x40] sm:$0xff]
      %v5476 = vld [vmem:[#allocation2 + $0x48] sm:$0xff]
      %v5477 = vld [vmem:[#allocation2 + $0x50] sm:$0xff]
      %v5478 = vld [vmem:[#allocation2 + $0x58] sm:$0xff]
      %v5479 = vld [vmem:[#allocation2 + $0x60] sm:$0xff]
      %v5480 = vld [vmem:[#allocation2 + $0x68] sm:$0xff]
      %v5481 = vld [vmem:[#allocation2 + $0x70] sm:$0xff]
      %v5482 = vld [vmem:[#allocation2 + $0x78] sm:$0xff]
      %v5483 = vld [vmem:[#allocation2 + $0x80] sm:$0xff]
      %v5484 = vld [vmem:[#allocation2 + $0x88] sm:$0xff]
      %v5485 = vld [vmem:[#allocation2 + $0x90] sm:$0xff]
      %v5486 = vld [vmem:[#allocation2 + $0x98] sm:$0xff]
      %v5487 = vld [vmem:[#allocation2 + $0xa0] sm:$0xff]
      %v5488 = vld [vmem:[#allocation2 + $0xa8] sm:$0xff]
      %v5489 = vld [vmem:[#allocation2 + $0xb0] sm:$0xff]
      %v5490 = vld [vmem:[#allocation2 + $0xb8] sm:$0xff]
      %v5491 = vld [vmem:[#allocation2 + $0xc0] sm:$0xff]
      %v5492 = vld [vmem:[#allocation2 + $0xc8] sm:$0xff]
      %v5493 = vld [vmem:[#allocation2 + $0xd0] sm:$0xff]
      %v5494 = vld [vmem:[#allocation2 + $0xd8] sm:$0xff]
      %v5495 = vld [vmem:[#allocation2 + $0xe0] sm:$0xff]
      %v5496 = vld [vmem:[#allocation2 + $0xe8] sm:$0xff]
      %v5497 = vld [vmem:[#allocation2 + $0xf0] sm:$0xff]
      %v5498 = vld [vmem:[#allocation2 + $0xf8] sm:$0xff]
      %s5499 = scalar_lea.vmem %s211, 512
      %v5500 = vld [vmem:[%s5499] sm:$0xf]
      %v5501 = vld [vmem:[%s5499 + $0x4] sm:$0xf]
      %v5502 = vld [vmem:[%s5499 + $0x8] sm:$0xf]
      %v5503 = vld [vmem:[%s5499 + $0xc] sm:$0xf]
      %v5504 = vld [vmem:[%s5499 + $0x10] sm:$0xf]
      %v5505 = vld [vmem:[%s5499 + $0x14] sm:$0xf]
      %v5506 = vld [vmem:[%s5499 + $0x18] sm:$0xf]
      %v5507 = vld [vmem:[%s5499 + $0x1c] sm:$0xf]
      %v5508 = vld [vmem:[%s5499 + $0x20] sm:$0xf]
      %v5509 = vld [vmem:[%s5499 + $0x24] sm:$0xf]
      %v5510 = vld [vmem:[%s5499 + $0x28] sm:$0xf]
      %v5511 = vld [vmem:[%s5499 + $0x2c] sm:$0xf]
      %v5512 = vld [vmem:[%s5499 + $0x30] sm:$0xf]
      %v5513 = vld [vmem:[%s5499 + $0x34] sm:$0xf]
      %v5514 = vld [vmem:[%s5499 + $0x38] sm:$0xf]
      %v5515 = vld [vmem:[%s5499 + $0x3c] sm:$0xf]
      %v5516 = vunpack.c.l.b16 %v5358
      %v5517 = vunpack.c.l.b16 %v5361
      %v5518 = vunpack.c.l.b16 %v5365
      %v5519 = vunpack.c.l.b16 %v5368
      %v5520 = vunpack.c.l.b16 %v5372
      %v5521 = vunpack.c.l.b16 %v5375
      %v5522 = vunpack.c.l.b16 %v5379
      %v5523 = vunpack.c.l.b16 %v5382
      %v5524 = vunpack.c.l.b16 %v5386
      %v5525 = vunpack.c.l.b16 %v5389
      %v5526 = vunpack.c.l.b16 %v5393
      %v5527 = vunpack.c.l.b16 %v5396
      %v5528 = vunpack.c.l.b16 %v5400
      %v5529 = vunpack.c.l.b16 %v5403
      %v5530 = vunpack.c.l.b16 %v5407
      %v5531 = vunpack.c.l.b16 %v5410
      %v5532 = vunpack.c.l.b16 %v5414
      %v5533 = vunpack.c.l.b16 %v5417
      %v5534 = vunpack.c.l.b16 %v5421
      %v5535 = vunpack.c.l.b16 %v5424
      %v5536 = vunpack.c.l.b16 %v5428
      %v5537 = vunpack.c.l.b16 %v5431
      %v5538 = vunpack.c.l.b16 %v5435
      %v5539 = vunpack.c.l.b16 %v5438
      %v5540 = vunpack.c.l.b16 %v5442
      %v5541 = vunpack.c.l.b16 %v5445
      %v5542 = vunpack.c.l.b16 %v5449
      %v5543 = vunpack.c.l.b16 %v5452
      %v5544 = vunpack.c.l.b16 %v5456
      %v5545 = vunpack.c.l.b16 %v5459
      %v5546 = vunpack.c.l.b16 %v5463
      %v5547 = vunpack.c.l.b16 %v5466
      %v5548 = vpack.c.b16 %v5517, %v5516
      %v5549 = vpack.c.b16 %v5519, %v5518
      %v5550 = vpack.c.b16 %v5521, %v5520
      %v5551 = vpack.c.b16 %v5523, %v5522
      %v5552 = vpack.c.b16 %v5525, %v5524
      %v5553 = vpack.c.b16 %v5527, %v5526
      %v5554 = vpack.c.b16 %v5529, %v5528
      %v5555 = vpack.c.b16 %v5531, %v5530
      %v5556 = vpack.c.b16 %v5533, %v5532
      %v5557 = vpack.c.b16 %v5535, %v5534
      %v5558 = vpack.c.b16 %v5537, %v5536
      %v5559 = vpack.c.b16 %v5539, %v5538
      %v5560 = vpack.c.b16 %v5541, %v5540
      %v5561 = vpack.c.b16 %v5543, %v5542
      %v5562 = vpack.c.b16 %v5545, %v5544
      %v5563 = vpack.c.b16 %v5547, %v5546
      %v5596 = vunpack.c.l.b16 %v5500
      %v5597 = vunpack.c.l.b16 %v5501
      %v5598 = vunpack.c.l.b16 %v5502
      %v5599 = vunpack.c.l.b16 %v5503
      %v5600 = vunpack.c.l.b16 %v5504
      %v5601 = vunpack.c.l.b16 %v5505
      %v5602 = vunpack.c.l.b16 %v5506
      %v5603 = vunpack.c.l.b16 %v5507
      %v5604 = vunpack.c.l.b16 %v5508
      %v5605 = vunpack.c.l.b16 %v5509
      %v5606 = vunpack.c.l.b16 %v5510
      %v5607 = vunpack.c.l.b16 %v5511
      %v5608 = vunpack.c.l.b16 %v5512
      %v5609 = vunpack.c.l.b16 %v5513
      %v5610 = vunpack.c.l.b16 %v5514
      %v5611 = vunpack.c.l.b16 %v5515
      %v5612 = vpack.c.b16 %v5597, %v5596
      %v5613 = vpack.c.b16 %v5599, %v5598
      %v5614 = vpack.c.b16 %v5601, %v5600
      %v5615 = vpack.c.b16 %v5603, %v5602
      %v5616 = vpack.c.b16 %v5605, %v5604
      %v5617 = vpack.c.b16 %v5607, %v5606
      %v5618 = vpack.c.b16 %v5609, %v5608
      %v5619 = vpack.c.b16 %v5611, %v5610
      %5628 = vmatprep.subr.bf16.mxu0 0
      %5629 = vmatpush1.bf16.msra.mxu0 %v5612
      %5630 = vmatprep.subr.bf16.mxu0 0
      %5631 = vmatpush1.bf16.msra.mxu0 %v5613
      %5632 = vmatprep.subr.bf16.mxu0 0
      %5633 = vmatpush1.bf16.msra.mxu0 %v5614
      %5634 = vmatprep.subr.bf16.mxu0 0
      %5635 = vmatpush1.bf16.msra.mxu0 %v5615
      %5636 = vmatprep.subr.bf16.mxu0 0
      %5637 = vmatpush1.bf16.msra.mxu0 %v5616
      %5638 = vmatprep.subr.bf16.mxu0 0
      %5639 = vmatpush1.bf16.msra.mxu0 %v5617
      %5640 = vmatprep.subr.bf16.mxu0 0
      %5641 = vmatpush1.bf16.msra.mxu0 %v5618
      %5642 = vmatprep.subr.bf16.mxu0 0
      %5643 = vmatpush1.bf16.msra.mxu0 %v5619
      %5644 = vmatprep.subr.bf16.mxu0 0
      %5645 = vmatpush1.bf16.msra.mxu0 0
      %5646 = vmatprep.subr.bf16.mxu0 0
      %5647 = vmatpush1.bf16.msra.mxu0 0
      %5648 = vmatprep.subr.bf16.mxu0 0
      %5649 = vmatpush1.bf16.msra.mxu0 0
      %5650 = vmatprep.subr.bf16.mxu0 0
      %5651 = vmatpush1.bf16.msra.mxu0 0
      %5652 = vmatprep.subr.bf16.mxu0 0
      %5653 = vmatpush1.bf16.msra.mxu0 0
      %5654 = vmatprep.subr.bf16.mxu0 0
      %5655 = vmatpush1.bf16.msra.mxu0 0
      %5656 = vmatprep.subr.bf16.mxu0 0
      %5657 = vmatpush1.bf16.msra.mxu0 0
      %5658 = vmatprep.subr.bf16.mxu0 0
      %5659 = vmatpush1.bf16.msra.mxu0 0
      %5660 = vmatprep.mubr.bf16.mxu0 0
      %5661 = vmatmul.mubr.bf16.gmra.mrb[0].mxu0 %v5548
      %v5662 = vpop.f32.mrb[0].mxu0
      %v5663 = vadd.f32 0.0, %v5662
      %v5664 = vpop.f32.mrb[0].mxu0
      %v5665 = vpop.f32.mrb[0].mxu0
      %v5666 = vadd.f32 0.0, %v5665
      %v5667 = vpop.f32.mrb[0].mxu0
      %5668 = vmatprep.mubr.bf16.mxu0 0
      %5669 = vmatmul.mubr.bf16.gmra.mrb[0].mxu0 %v5549
      %v5670 = vpop.f32.mrb[0].mxu0
      %v5671 = vadd.f32 0.0, %v5670
      %v5672 = vpop.f32.mrb[0].mxu0
      %v5673 = vpop.f32.mrb[0].mxu0
      %v5674 = vadd.f32 0.0, %v5673
      %v5675 = vpop.f32.mrb[0].mxu0
      %5676 = vmatprep.mubr.bf16.mxu0 0
      %5677 = vmatmul.mubr.bf16.gmra.mrb[0].mxu0 %v5550
      %v5678 = vpop.f32.mrb[0].mxu0
      %v5679 = vadd.f32 0.0, %v5678
      %v5680 = vpop.f32.mrb[0].mxu0
      %v5681 = vpop.f32.mrb[0].mxu0
      %v5682 = vadd.f32 0.0, %v5681
      %v5683 = vpop.f32.mrb[0].mxu0
      %5684 = vmatprep.mubr.bf16.mxu0 0
      %5685 = vmatmul.mubr.bf16.gmra.mrb[0].mxu0 %v5551
      %v5686 = vpop.f32.mrb[0].mxu0
      %v5687 = vadd.f32 0.0, %v5686
      %v5688 = vpop.f32.mrb[0].mxu0
      %v5689 = vpop.f32.mrb[0].mxu0
      %v5690 = vadd.f32 0.0, %v5689
      %v5691 = vpop.f32.mrb[0].mxu0
      %5692 = vmatprep.mubr.bf16.mxu0 0
      %5693 = vmatmul.mubr.bf16.gmra.mrb[0].mxu0 %v5552
      %v5694 = vpop.f32.mrb[0].mxu0
      %v5695 = vadd.f32 0.0, %v5694
      %v5696 = vpop.f32.mrb[0].mxu0
      %v5697 = vpop.f32.mrb[0].mxu0
      %v5698 = vadd.f32 0.0, %v5697
      %v5699 = vpop.f32.mrb[0].mxu0
      %5700 = vmatprep.mubr.bf16.mxu0 0
      %5701 = vmatmul.mubr.bf16.gmra.mrb[0].mxu0 %v5553
      %v5702 = vpop.f32.mrb[0].mxu0
      %v5703 = vadd.f32 0.0, %v5702
      %v5704 = vpop.f32.mrb[0].mxu0
      %v5705 = vpop.f32.mrb[0].mxu0
      %v5706 = vadd.f32 0.0, %v5705
      %v5707 = vpop.f32.mrb[0].mxu0
      %5708 = vmatprep.mubr.bf16.mxu0 0
      %5709 = vmatmul.mubr.bf16.gmra.mrb[0].mxu0 %v5554
      %v5710 = vpop.f32.mrb[0].mxu0
      %v5711 = vadd.f32 0.0, %v5710
      %v5712 = vpop.f32.mrb[0].mxu0
      %v5713 = vpop.f32.mrb[0].mxu0
      %v5714 = vadd.f32 0.0, %v5713
      %v5715 = vpop.f32.mrb[0].mxu0
      %5716 = vmatprep.mubr.bf16.mxu0 0
      %5717 = vmatmul.mubr.bf16.gmra.mrb[0].mxu0 %v5555
      %v5718 = vpop.f32.mrb[0].mxu0
      %v5719 = vadd.f32 0.0, %v5718
      %v5720 = vpop.f32.mrb[0].mxu0
      %v5721 = vpop.f32.mrb[0].mxu0
      %v5722 = vadd.f32 0.0, %v5721
      %v5723 = vpop.f32.mrb[0].mxu0
      %5724 = vmatprep.mubr.bf16.mxu0 0
      %5725 = vmatmul.mubr.bf16.gmra.mrb[0].mxu0 %v5556
      %v5726 = vpop.f32.mrb[0].mxu0
      %v5727 = vadd.f32 0.0, %v5726
      %v5728 = vpop.f32.mrb[0].mxu0
      %v5729 = vpop.f32.mrb[0].mxu0
      %v5730 = vadd.f32 0.0, %v5729
      %v5731 = vpop.f32.mrb[0].mxu0
      %5732 = vmatprep.mubr.bf16.mxu0 0
      %5733 = vmatmul.mubr.bf16.gmra.mrb[0].mxu0 %v5557
      %v5734 = vpop.f32.mrb[0].mxu0
      %v5735 = vadd.f32 0.0, %v5734
      %v5736 = vpop.f32.mrb[0].mxu0
      %v5737 = vpop.f32.mrb[0].mxu0
      %v5738 = vadd.f32 0.0, %v5737
      %v5739 = vpop.f32.mrb[0].mxu0
      %5740 = vmatprep.mubr.bf16.mxu0 0
      %5741 = vmatmul.mubr.bf16.gmra.mrb[0].mxu0 %v5558
      %v5742 = vpop.f32.mrb[0].mxu0
      %v5743 = vadd.f32 0.0, %v5742
      %v5744 = vpop.f32.mrb[0].mxu0
      %v5745 = vpop.f32.mrb[0].mxu0
      %v5746 = vadd.f32 0.0, %v5745
      %v5747 = vpop.f32.mrb[0].mxu0
      %5748 = vmatprep.mubr.bf16.mxu0 0
      %5749 = vmatmul.mubr.bf16.gmra.mrb[0].mxu0 %v5559
      %v5750 = vpop.f32.mrb[0].mxu0
      %v5751 = vadd.f32 0.0, %v5750
      %v5752 = vpop.f32.mrb[0].mxu0
      %v5753 = vpop.f32.mrb[0].mxu0
      %v5754 = vadd.f32 0.0, %v5753
      %v5755 = vpop.f32.mrb[0].mxu0
      %5756 = vmatprep.mubr.bf16.mxu0 0
      %5757 = vmatmul.mubr.bf16.gmra.mrb[0].mxu0 %v5560
      %v5758 = vpop.f32.mrb[0].mxu0
      %v5759 = vadd.f32 0.0, %v5758
      %v5760 = vpop.f32.mrb[0].mxu0
      %v5761 = vpop.f32.mrb[0].mxu0
      %v5762 = vadd.f32 0.0, %v5761
      %v5763 = vpop.f32.mrb[0].mxu0
      %5764 = vmatprep.mubr.bf16.mxu0 0
      %5765 = vmatmul.mubr.bf16.gmra.mrb[0].mxu0 %v5561
      %v5766 = vpop.f32.mrb[0].mxu0
      %v5767 = vadd.f32 0.0, %v5766
      %v5768 = vpop.f32.mrb[0].mxu0
      %v5769 = vpop.f32.mrb[0].mxu0
      %v5770 = vadd.f32 0.0, %v5769
      %v5771 = vpop.f32.mrb[0].mxu0
      %5772 = vmatprep.mubr.bf16.mxu0 0
      %5773 = vmatmul.mubr.bf16.gmra.mrb[0].mxu0 %v5562
      %v5774 = vpop.f32.mrb[0].mxu0
      %v5775 = vadd.f32 0.0, %v5774
      %v5776 = vpop.f32.mrb[0].mxu0
      %v5777 = vpop.f32.mrb[0].mxu0
      %v5778 = vadd.f32 0.0, %v5777
      %v5779 = vpop.f32.mrb[0].mxu0
      %5780 = vmatprep.mubr.bf16.mxu0 0
      %5781 = vmatmul.mubr.bf16.gmra.mrb[0].mxu0 %v5563
      %v5782 = vpop.f32.mrb[0].mxu0
      %v5783 = vadd.f32 0.0, %v5782
      %v5784 = vpop.f32.mrb[0].mxu0
      %v5785 = vpop.f32.mrb[0].mxu0
      %v5786 = vadd.f32 0.0, %v5785
      %v5787 = vpop.f32.mrb[0].mxu0
      %5788 = vdwg.mxu0
      %v5789 = vadd.f32 %v5467, %v5663
      %v5790 = vadd.f32 %v5468, %v5666
      %v5791 = vadd.f32 %v5469, %v5671
      %v5792 = vadd.f32 %v5470, %v5674
      %v5793 = vadd.f32 %v5471, %v5679
      %v5794 = vadd.f32 %v5472, %v5682
      %v5795 = vadd.f32 %v5473, %v5687
      %v5796 = vadd.f32 %v5474, %v5690
      %v5797 = vadd.f32 %v5475, %v5695
      %v5798 = vadd.f32 %v5476, %v5698
      %v5799 = vadd.f32 %v5477, %v5703
      %v5800 = vadd.f32 %v5478, %v5706
      %v5801 = vadd.f32 %v5479, %v5711
      %v5802 = vadd.f32 %v5480, %v5714
      %v5803 = vadd.f32 %v5481, %v5719
      %v5804 = vadd.f32 %v5482, %v5722
      %v5805 = vadd.f32 %v5483, %v5727
      %v5806 = vadd.f32 %v5484, %v5730
      %v5807 = vadd.f32 %v5485, %v5735
      %v5808 = vadd.f32 %v5486, %v5738
      %v5809 = vadd.f32 %v5487, %v5743
      %v5810 = vadd.f32 %v5488, %v5746
      %v5811 = vadd.f32 %v5489, %v5751
      %v5812 = vadd.f32 %v5490, %v5754
      %v5813 = vadd.f32 %v5491, %v5759
      %v5814 = vadd.f32 %v5492, %v5762
      %v5815 = vadd.f32 %v5493, %v5767
      %v5816 = vadd.f32 %v5494, %v5770
      %v5817 = vadd.f32 %v5495, %v5775
      %v5818 = vadd.f32 %v5496, %v5778
      %v5819 = vadd.f32 %v5497, %v5783
      %v5820 = vadd.f32 %v5498, %v5786
      %5821 = vst [vmem:[#allocation2] sm:$0xff] %v5789
      %5822 = vst [vmem:[#allocation2 + $0x8] sm:$0xff] %v5790
      %5823 = vst [vmem:[#allocation2 + $0x10] sm:$0xff] %v5791
      %5824 = vst [vmem:[#allocation2 + $0x18] sm:$0xff] %v5792
      %5825 = vst [vmem:[#allocation2 + $0x20] sm:$0xff] %v5793
      %5826 = vst [vmem:[#allocation2 + $0x28] sm:$0xff] %v5794
      %5827 = vst [vmem:[#allocation2 + $0x30] sm:$0xff] %v5795
      %5828 = vst [vmem:[#allocation2 + $0x38] sm:$0xff] %v5796
      %5829 = vst [vmem:[#allocation2 + $0x40] sm:$0xff] %v5797
      %5830 = vst [vmem:[#allocation2 + $0x48] sm:$0xff] %v5798
      %5831 = vst [vmem:[#allocation2 + $0x50] sm:$0xff] %v5799
      %5832 = vst [vmem:[#allocation2 + $0x58] sm:$0xff] %v5800
      %5833 = vst [vmem:[#allocation2 + $0x60] sm:$0xff] %v5801
      %5834 = vst [vmem:[#allocation2 + $0x68] sm:$0xff] %v5802
      %5835 = vst [vmem:[#allocation2 + $0x70] sm:$0xff] %v5803
      %5836 = vst [vmem:[#allocation2 + $0x78] sm:$0xff] %v5804
      %5837 = vst [vmem:[#allocation2 + $0x80] sm:$0xff] %v5805
      %5838 = vst [vmem:[#allocation2 + $0x88] sm:$0xff] %v5806
      %5839 = vst [vmem:[#allocation2 + $0x90] sm:$0xff] %v5807
      %5840 = vst [vmem:[#allocation2 + $0x98] sm:$0xff] %v5808
      %5841 = vst [vmem:[#allocation2 + $0xa0] sm:$0xff] %v5809
      %5842 = vst [vmem:[#allocation2 + $0xa8] sm:$0xff] %v5810
      %5843 = vst [vmem:[#allocation2 + $0xb0] sm:$0xff] %v5811
      %5844 = vst [vmem:[#allocation2 + $0xb8] sm:$0xff] %v5812
      %5845 = vst [vmem:[#allocation2 + $0xc0] sm:$0xff] %v5813
      %5846 = vst [vmem:[#allocation2 + $0xc8] sm:$0xff] %v5814
      %5847 = vst [vmem:[#allocation2 + $0xd0] sm:$0xff] %v5815
      %5848 = vst [vmem:[#allocation2 + $0xd8] sm:$0xff] %v5816
      %5849 = vst [vmem:[#allocation2 + $0xe0] sm:$0xff] %v5817
      %5850 = vst [vmem:[#allocation2 + $0xe8] sm:$0xff] %v5818
      %5851 = vst [vmem:[#allocation2 + $0xf0] sm:$0xff] %v5819
      %5852 = vst [vmem:[#allocation2 + $0xf8] sm:$0xff] %v5820
      %v5853 = vld [vmem:[#allocation2] sm:$0xff]
      %v5854 = vld [vmem:[#allocation2 + $0x8] sm:$0xff]
      %v5855 = vld [vmem:[#allocation2 + $0x10] sm:$0xff]
      %v5856 = vld [vmem:[#allocation2 + $0x18] sm:$0xff]
      %v5857 = vld [vmem:[#allocation2 + $0x20] sm:$0xff]
      %v5858 = vld [vmem:[#allocation2 + $0x28] sm:$0xff]
      %v5859 = vld [vmem:[#allocation2 + $0x30] sm:$0xff]
      %v5860 = vld [vmem:[#allocation2 + $0x38] sm:$0xff]
      %v5861 = vld [vmem:[#allocation2 + $0x40] sm:$0xff]
      %v5862 = vld [vmem:[#allocation2 + $0x48] sm:$0xff]
      %v5863 = vld [vmem:[#allocation2 + $0x50] sm:$0xff]
      %v5864 = vld [vmem:[#allocation2 + $0x58] sm:$0xff]
      %v5865 = vld [vmem:[#allocation2 + $0x60] sm:$0xff]
      %v5866 = vld [vmem:[#allocation2 + $0x68] sm:$0xff]
      %v5867 = vld [vmem:[#allocation2 + $0x70] sm:$0xff]
      %v5868 = vld [vmem:[#allocation2 + $0x78] sm:$0xff]
      %v5869 = vld [vmem:[#allocation2 + $0x80] sm:$0xff]
      %v5870 = vld [vmem:[#allocation2 + $0x88] sm:$0xff]
      %v5871 = vld [vmem:[#allocation2 + $0x90] sm:$0xff]
      %v5872 = vld [vmem:[#allocation2 + $0x98] sm:$0xff]
      %v5873 = vld [vmem:[#allocation2 + $0xa0] sm:$0xff]
      %v5874 = vld [vmem:[#allocation2 + $0xa8] sm:$0xff]
      %v5875 = vld [vmem:[#allocation2 + $0xb0] sm:$0xff]
      %v5876 = vld [vmem:[#allocation2 + $0xb8] sm:$0xff]
      %v5877 = vld [vmem:[#allocation2 + $0xc0] sm:$0xff]
      %v5878 = vld [vmem:[#allocation2 + $0xc8] sm:$0xff]
      %v5879 = vld [vmem:[#allocation2 + $0xd0] sm:$0xff]
      %v5880 = vld [vmem:[#allocation2 + $0xd8] sm:$0xff]
      %v5881 = vld [vmem:[#allocation2 + $0xe0] sm:$0xff]
      %v5882 = vld [vmem:[#allocation2 + $0xe8] sm:$0xff]
      %v5883 = vld [vmem:[#allocation2 + $0xf0] sm:$0xff]
      %v5884 = vld [vmem:[#allocation2 + $0xf8] sm:$0xff]
      %v5885 = vpack.c.bf16 %v5854, %v5853
      %v5886 = vpack.c.bf16 %v5856, %v5855
      %v5887 = vpack.c.bf16 %v5858, %v5857
      %v5888 = vpack.c.bf16 %v5860, %v5859
      %v5889 = vpack.c.bf16 %v5862, %v5861
      %v5890 = vpack.c.bf16 %v5864, %v5863
      %v5891 = vpack.c.bf16 %v5866, %v5865
      %v5892 = vpack.c.bf16 %v5868, %v5867
      %v5893 = vpack.c.bf16 %v5870, %v5869
      %v5894 = vpack.c.bf16 %v5872, %v5871
      %v5895 = vpack.c.bf16 %v5874, %v5873
      %v5896 = vpack.c.bf16 %v5876, %v5875
      %v5897 = vpack.c.bf16 %v5878, %v5877
      %v5898 = vpack.c.bf16 %v5880, %v5879
      %v5899 = vpack.c.bf16 %v5882, %v5881
      %v5900 = vpack.c.bf16 %v5884, %v5883
      %v5917 = vunpack.c.l.b16 %v5885
      %v5918 = vunpack.c.h.b16 %v5885
      %v5919 = vunpack.c.l.b16 %v5886
      %v5920 = vunpack.c.h.b16 %v5886
      %v5921 = vunpack.c.l.b16 %v5887
      %v5922 = vunpack.c.h.b16 %v5887
      %v5923 = vunpack.c.l.b16 %v5888
      %v5924 = vunpack.c.h.b16 %v5888
      %v5925 = vunpack.c.l.b16 %v5889
      %v5926 = vunpack.c.h.b16 %v5889
      %v5927 = vunpack.c.l.b16 %v5890
      %v5928 = vunpack.c.h.b16 %v5890
      %v5929 = vunpack.c.l.b16 %v5891
      %v5930 = vunpack.c.h.b16 %v5891
      %v5931 = vunpack.c.l.b16 %v5892
      %v5932 = vunpack.c.h.b16 %v5892
      %v5933 = vunpack.c.l.b16 %v5893
      %v5934 = vunpack.c.h.b16 %v5893
      %v5935 = vunpack.c.l.b16 %v5894
      %v5936 = vunpack.c.h.b16 %v5894
      %v5937 = vunpack.c.l.b16 %v5895
      %v5938 = vunpack.c.h.b16 %v5895
      %v5939 = vunpack.c.l.b16 %v5896
      %v5940 = vunpack.c.h.b16 %v5896
      %v5941 = vunpack.c.l.b16 %v5897
      %v5942 = vunpack.c.h.b16 %v5897
      %v5943 = vunpack.c.l.b16 %v5898
      %v5944 = vunpack.c.h.b16 %v5898
      %v5945 = vunpack.c.l.b16 %v5899
      %v5946 = vunpack.c.h.b16 %v5899
      %v5947 = vunpack.c.l.b16 %v5900
      %v5948 = vunpack.c.h.b16 %v5900
      %v5949 = vpack.c.b16 %v5917, %v5917
      %v5950 = vpack.c.b16 %v5918, %v5918
      %v5951 = vpack.c.b16 %v5919, %v5919
      %v5952 = vpack.c.b16 %v5920, %v5920
      %v5953 = vpack.c.b16 %v5921, %v5921
      %v5954 = vpack.c.b16 %v5922, %v5922
      %v5955 = vpack.c.b16 %v5923, %v5923
      %v5956 = vpack.c.b16 %v5924, %v5924
      %v5957 = vpack.c.b16 %v5925, %v5925
      %v5958 = vpack.c.b16 %v5926, %v5926
      %v5959 = vpack.c.b16 %v5927, %v5927
      %v5960 = vpack.c.b16 %v5928, %v5928
      %v5961 = vpack.c.b16 %v5929, %v5929
      %v5962 = vpack.c.b16 %v5930, %v5930
      %v5963 = vpack.c.b16 %v5931, %v5931
      %v5964 = vpack.c.b16 %v5932, %v5932
      %v5965 = vpack.c.b16 %v5933, %v5933
      %v5966 = vpack.c.b16 %v5934, %v5934
      %v5967 = vpack.c.b16 %v5935, %v5935
      %v5968 = vpack.c.b16 %v5936, %v5936
      %v5969 = vpack.c.b16 %v5937, %v5937
      %v5970 = vpack.c.b16 %v5938, %v5938
      %v5971 = vpack.c.b16 %v5939, %v5939
      %v5972 = vpack.c.b16 %v5940, %v5940
      %v5973 = vpack.c.b16 %v5941, %v5941
      %v5974 = vpack.c.b16 %v5942, %v5942
      %v5975 = vpack.c.b16 %v5943, %v5943
      %v5976 = vpack.c.b16 %v5944, %v5944
      %v5977 = vpack.c.b16 %v5945, %v5945
      %v5978 = vpack.c.b16 %v5946, %v5946
      %v5979 = vpack.c.b16 %v5947, %v5947
      %v5980 = vpack.c.b16 %v5948, %v5948
      %6013 = vst [vmem:[%s219] sm:$0xf] %v5949
      %6014 = vst [vmem:[%s219 + $0x4] sm:$0xf] %v5950
      %6015 = vst [vmem:[%s219 + $0x8] sm:$0xf] %v5951
      %6016 = vst [vmem:[%s219 + $0xc] sm:$0xf] %v5952
      %6017 = vst [vmem:[%s219 + $0x10] sm:$0xf] %v5953
      %6018 = vst [vmem:[%s219 + $0x14] sm:$0xf] %v5954
      %6019 = vst [vmem:[%s219 + $0x18] sm:$0xf] %v5955
      %6020 = vst [vmem:[%s219 + $0x1c] sm:$0xf] %v5956
      %6021 = vst [vmem:[%s219 + $0x20] sm:$0xf] %v5957
      %6022 = vst [vmem:[%s219 + $0x24] sm:$0xf] %v5958
      %6023 = vst [vmem:[%s219 + $0x28] sm:$0xf] %v5959
      %6024 = vst [vmem:[%s219 + $0x2c] sm:$0xf] %v5960
      %6025 = vst [vmem:[%s219 + $0x30] sm:$0xf] %v5961
      %6026 = vst [vmem:[%s219 + $0x34] sm:$0xf] %v5962
      %6027 = vst [vmem:[%s219 + $0x38] sm:$0xf] %v5963
      %6028 = vst [vmem:[%s219 + $0x3c] sm:$0xf] %v5964
      %6029 = vst [vmem:[%s219 + $0x40] sm:$0xf] %v5965
      %6030 = vst [vmem:[%s219 + $0x44] sm:$0xf] %v5966
      %6031 = vst [vmem:[%s219 + $0x48] sm:$0xf] %v5967
      %6032 = vst [vmem:[%s219 + $0x4c] sm:$0xf] %v5968
      %6033 = vst [vmem:[%s219 + $0x50] sm:$0xf] %v5969
      %6034 = vst [vmem:[%s219 + $0x54] sm:$0xf] %v5970
      %6035 = vst [vmem:[%s219 + $0x58] sm:$0xf] %v5971
      %6036 = vst [vmem:[%s219 + $0x5c] sm:$0xf] %v5972
      %6037 = vst [vmem:[%s219 + $0x60] sm:$0xf] %v5973
      %6038 = vst [vmem:[%s219 + $0x64] sm:$0xf] %v5974
      %6039 = vst [vmem:[%s219 + $0x68] sm:$0xf] %v5975
      %6040 = vst [vmem:[%s219 + $0x6c] sm:$0xf] %v5976
      %6041 = vst [vmem:[%s219 + $0x70] sm:$0xf] %v5977
      %6042 = vst [vmem:[%s219 + $0x74] sm:$0xf] %v5978
      %6043 = vst [vmem:[%s219 + $0x78] sm:$0xf] %v5979
      %6044 = vst [vmem:[%s219 + $0x7c] sm:$0xf] %v5980
      %v6045 = vadd.f32 %v5853, %v5854
      %v6046 = vadd.f32 %v6045, %v5855
      %v6047 = vadd.f32 %v6046, %v5856
      %v6048 = vadd.f32 %v6047, %v5857
      %v6049 = vadd.f32 %v6048, %v5858
      %v6050 = vadd.f32 %v6049, %v5859
      %v6051 = vadd.f32 %v6050, %v5860
      %v6052 = vadd.f32 %v6051, %v5861
      %v6053 = vadd.f32 %v6052, %v5862
      %v6054 = vadd.f32 %v6053, %v5863
      %v6055 = vadd.f32 %v6054, %v5864
      %v6056 = vadd.f32 %v6055, %v5865
      %v6057 = vadd.f32 %v6056, %v5866
      %v6058 = vadd.f32 %v6057, %v5867
      %v6059 = vadd.f32 %v6058, %v5868
      %v6060 = vadd.f32 %v6059, %v5869
      %v6061 = vadd.f32 %v6060, %v5870
      %v6062 = vadd.f32 %v6061, %v5871
      %v6063 = vadd.f32 %v6062, %v5872
      %v6064 = vadd.f32 %v6063, %v5873
      %v6065 = vadd.f32 %v6064, %v5874
      %v6066 = vadd.f32 %v6065, %v5875
      %v6067 = vadd.f32 %v6066, %v5876
      %v6068 = vadd.f32 %v6067, %v5877
      %v6069 = vadd.f32 %v6068, %v5878
      %v6070 = vadd.f32 %v6069, %v5879
      %v6071 = vadd.f32 %v6070, %v5880
      %v6072 = vadd.f32 %v6071, %v5881
      %v6073 = vadd.f32 %v6072, %v5882
      %v6074 = vadd.f32 %v6073, %v5883
      %v6075 = vadd.f32 %v6074, %v5884
      %v6076 = vrot.slane %v6075, 4
      %v6077 = vadd.f32 %v6075, %v6076
      %v6078 = vrot.slane %v6077, 2
      %v6079 = vadd.f32 %v6077, %v6078
      %v6080 = vrot.slane %v6079, 1
      %v6081 = vadd.f32 %v6079, %v6080
      %6082 = vst [vmem:[%s226] sm:$0x1] %v6081
      %v6083 = vmul.f32 %v5853, %v5853
      %v6084 = vmul.f32 %v5854, %v5854
      %v6085 = vmul.f32 %v5855, %v5855
      %v6086 = vmul.f32 %v5856, %v5856
      %v6087 = vmul.f32 %v5857, %v5857
      %v6088 = vmul.f32 %v5858, %v5858
      %v6089 = vmul.f32 %v5859, %v5859
      %v6090 = vmul.f32 %v5860, %v5860
      %v6091 = vmul.f32 %v5861, %v5861
      %v6092 = vmul.f32 %v5862, %v5862
      %v6093 = vmul.f32 %v5863, %v5863
      %v6094 = vmul.f32 %v5864, %v5864
      %v6095 = vmul.f32 %v5865, %v5865
      %v6096 = vmul.f32 %v5866, %v5866
      %v6097 = vmul.f32 %v5867, %v5867
      %v6098 = vmul.f32 %v5868, %v5868
      %v6099 = vmul.f32 %v5869, %v5869
      %v6100 = vmul.f32 %v5870, %v5870
      %v6101 = vmul.f32 %v5871, %v5871
      %v6102 = vmul.f32 %v5872, %v5872
      %v6103 = vmul.f32 %v5873, %v5873
      %v6104 = vmul.f32 %v5874, %v5874
      %v6105 = vmul.f32 %v5875, %v5875
      %v6106 = vmul.f32 %v5876, %v5876
      %v6107 = vmul.f32 %v5877, %v5877
      %v6108 = vmul.f32 %v5878, %v5878
      %v6109 = vmul.f32 %v5879, %v5879
      %v6110 = vmul.f32 %v5880, %v5880
      %v6111 = vmul.f32 %v5881, %v5881
      %v6112 = vmul.f32 %v5882, %v5882
      %v6113 = vmul.f32 %v5883, %v5883
      %v6114 = vmul.f32 %v5884, %v5884
      %v6115 = vadd.f32 %v6083, %v6084
      %v6116 = vadd.f32 %v6115, %v6085
      %v6117 = vadd.f32 %v6116, %v6086
      %v6118 = vadd.f32 %v6117, %v6087
      %v6119 = vadd.f32 %v6118, %v6088
      %v6120 = vadd.f32 %v6119, %v6089
      %v6121 = vadd.f32 %v6120, %v6090
      %v6122 = vadd.f32 %v6121, %v6091
      %v6123 = vadd.f32 %v6122, %v6092
      %v6124 = vadd.f32 %v6123, %v6093
      %v6125 = vadd.f32 %v6124, %v6094
      %v6126 = vadd.f32 %v6125, %v6095
      %v6127 = vadd.f32 %v6126, %v6096
      %v6128 = vadd.f32 %v6127, %v6097
      %v6129 = vadd.f32 %v6128, %v6098
      %v6130 = vadd.f32 %v6129, %v6099
      %v6131 = vadd.f32 %v6130, %v6100
      %v6132 = vadd.f32 %v6131, %v6101
      %v6133 = vadd.f32 %v6132, %v6102
      %v6134 = vadd.f32 %v6133, %v6103
      %v6135 = vadd.f32 %v6134, %v6104
      %v6136 = vadd.f32 %v6135, %v6105
      %v6137 = vadd.f32 %v6136, %v6106
      %v6138 = vadd.f32 %v6137, %v6107
      %v6139 = vadd.f32 %v6138, %v6108
      %v6140 = vadd.f32 %v6139, %v6109
      %v6141 = vadd.f32 %v6140, %v6110
      %v6142 = vadd.f32 %v6141, %v6111
      %v6143 = vadd.f32 %v6142, %v6112
      %v6144 = vadd.f32 %v6143, %v6113
      %v6145 = vadd.f32 %v6144, %v6114
      %v6146 = vrot.slane %v6145, 4
      %v6147 = vadd.f32 %v6145, %v6146
      %v6148 = vrot.slane %v6147, 2
      %v6149 = vadd.f32 %v6147, %v6148
      %v6150 = vrot.slane %v6149, 1
      %v6151 = vadd.f32 %v6149, %v6150
      %6152 = vst [vmem:[%s226 + $0x1] sm:$0x1] %v6151
      %p6153 = scmp.lt.s32.totalorder %s19, 1
      %s6154 = scalar_select %p6153, %s19, 1
      %p6155 = scmp.lt.s32.totalorder %s20, 0
      %s6156 = scalar_select %p6155, %s20, 0
      %s6157 = smul.addr %s6154, 32
      %s6158 = sadd.s32 %s6156, %s6157
      %s6159 = smul.addr %s6158, 4
      %s6160 = scalar_lea.vmem %s2, %s6159
      %p6161 = scmp.lt.s32.totalorder %s19, 1
      %s6162 = scalar_select %p6161, %s19, 1
      %p6163 = scmp.lt.s32.totalorder %s20, 0
      %s6164 = scalar_select %p6163, %s20, 0
      %s6165 = sadd.s32 %s6164, %s6162
      %s6166 = smul.addr %s6165, 8
      %s6167 = scalar_lea.vmem %s3, %s6166
      // Predicated region
      $region29: #{basic_block_forward.5} parent=27 // pred_check
        %p6168 = pneg %p99
      $region30: #{basic_block_forward.5} parent=27 // pred_check_branch
        %6170 = sbr.rel (%p6168) target = $region32
      $region31: #{basic_block_forward.5} parent=27 // pred_region
        _
      $region32: #{basic_block_forward.5} parent=27 // pred_fallthru
        _
      // Predicated region
      $region33: #{basic_block_forward.5} parent=27 // pred_check
        %p6171 = pneg %p127
      $region34: #{basic_block_forward.5} parent=27 // pred_check_branch
        %6173 = sbr.rel (%p6171) target = $region36
      $region35: #{basic_block_forward.5} parent=27 // pred_region
        _
      $region36: #{basic_block_forward.5} parent=27 // pred_fallthru
        _
    $region28: #{basic_block_forward.5} parent=5 // pred_fallthru
      _
    %p6174 = scmp.le.s32.totalorder 2, %s10
    // Predicated region
    $region37: #{basic_block_forward.5} parent=5 // pred_check
      %p6175 = pneg %p6174
    $region38: #{basic_block_forward.5} parent=5 // pred_check_branch
      %6177 = sbr.rel (%p6175) target = $region40
    $region39: #{basic_block_forward.5} parent=5 // pred_region
      %s6178 = ssub.s32 %s10, 2
      // Predicated region
      $region41: #{basic_block_forward.5} parent=39 // pred_check
        %p6179 = pneg %p105
      $region42: #{basic_block_forward.5} parent=39 // pred_check_branch
        %6181 = sbr.rel (%p6179) target = $region44
      $region43: #{basic_block_forward.5} parent=39 // pred_region
        %p6182 = scmp.lt.s32.totalorder %s21, 1
        %s6183 = scalar_select %p6182, %s21, 1
        %p6184 = scmp.lt.s32.totalorder %s22, 0
        %s6185 = scalar_select %p6184, %s22, 0
        %s6186 = smul.addr %s6183, 32
        %s6187 = sadd.s32 %s6185, %s6186
        %s6188 = smul.addr %s6187, 4
        %s6189 = scalar_lea.vmem %s2, %s6188
      $region44: #{basic_block_forward.5} parent=39 // pred_fallthru
        _
      // Predicated region
      $region45: #{basic_block_forward.5} parent=39 // pred_check
        %p6190 = pneg %p133
      $region46: #{basic_block_forward.5} parent=39 // pred_check_branch
        %6192 = sbr.rel (%p6190) target = $region48
      $region47: #{basic_block_forward.5} parent=39 // pred_region
        %p6193 = scmp.lt.s32.totalorder %s21, 1
        %s6194 = scalar_select %p6193, %s21, 1
        %p6195 = scmp.lt.s32.totalorder %s22, 0
        %s6196 = scalar_select %p6195, %s22, 0
        %s6197 = sadd.s32 %s6196, %s6194
        %s6198 = smul.addr %s6197, 8
        %s6199 = scalar_lea.vmem %s3, %s6198
      $region48: #{basic_block_forward.5} parent=39 // pred_fallthru
        _
    $region40: #{basic_block_forward.5} parent=5 // pred_fallthru
      _
  $region6: #{basic_block_forward.5} parent=0 // loop_footer
    %s14 = sadd.s32 1, %s10
  $region7: #{basic_block_forward.5} parent=0 // loop_footer_branch
    %9 = sbr.rel target = $region3
  $region8: #{basic_block_forward.5} parent=0 // loop_exit
    _

</llo_original>
